<compile_context>
chip_gen: v7x
topology: tpu7x:2x2x1
jax: 0.10.0
libtpu: 0.0.40
codegen_flags: <defaults>
</compile_context>

<pallas_src>
import functools

import numpy as np
import jax
import jax.numpy as jnp
from jax.experimental import pallas as pl
from jax.experimental.pallas import tpu as pltpu

LRELU_SLOPE = 0.2
BN_EPS = 1e-5
KW = 4          # conv kernel size
PADW = 1        # int(floor((4 - 1)/2))
LANE = 128
COMPUTE_DTYPE = jnp.bfloat16


def _round_up(x, m):
    return (x + m - 1) // m * m


def _divisors_desc(n):
    return [d for d in range(n, 0, -1) if n % d == 0]


_VMEM_CFG = None


def _vmem_config():
    """(per-block working-set budget, vmem_limit_bytes) — generation aware."""
    global _VMEM_CFG
    if _VMEM_CFG is None:
        try:
            cap = int(getattr(pltpu.get_tpu_info(), "vmem_capacity_bytes", 0))
        except Exception:
            cap = 0
        if cap >= 100 * 1024 * 1024:                 # v5e / v6e: 128 MiB VMEM
            _VMEM_CFG = (64 * 1024 * 1024, 100 * 1024 * 1024)
        else:                                        # v7x (64 MiB) / unknown
            _VMEM_CFG = (24 * 1024 * 1024, 48 * 1024 * 1024)
    return _VMEM_CFG


# ----------------------------- Pallas kernel ---------------------------------
def _conv_kernel(x_ref, w_ref, scale_ref, shift_ref, o_ref, *scratch,
                 wq, cq, kk_side, lrelu):
    """One (batch, row-tile, cout-tile) block of a stride-1 kk x kk conv.

    x_ref:     (1, 1, slab_rows, cq)  prepared activation slab (halo + 0-tail)
    w_ref:     (kk*kk*cq, tn)         repacked weights, bf16
    scale/shift: (1, tn)              folded bias + BN affine, f32
    o_ref:     (1, m, tn)             output block, bf16
    scratch:   optional (m, tn) f32 VMEM accumulator (present iff kk > 1)
    """
    m = o_ref.shape[1]
    ntap = kk_side * kk_side

    def tap_dot(tap):
        ki, kj = divmod(tap, kk_side)
        off = ki * wq + kj
        a = x_ref[0, 0, off:off + m, :]                  # (m, cq) bf16
        wk = w_ref[tap * cq:(tap + 1) * cq, :]           # (cq, tn) bf16
        return jnp.dot(a, wk, preferred_element_type=jnp.float32)

    if ntap == 1:
        acc = tap_dot(0)
    else:
        acc_ref = scratch[0]
        acc_ref[...] = tap_dot(0)
        for tap in range(1, ntap):
            acc_ref[...] += tap_dot(tap)
        acc = acc_ref[...]

    y = acc * scale_ref[...] + shift_ref[...]            # f32 epilogue
    if lrelu:
        y = jnp.where(y >= 0, y, LRELU_SLOPE * y)
    o_ref[0] = y.astype(o_ref.dtype)


# ------------------------------ tile selection --------------------------------
def _block_bytes(th, wq, cq, tn, kk_side):
    m = th * wq
    slab_rows = (th + kk_side - 1) * wq + (kk_side - 1)
    slab = 2 * slab_rows * cq * 2                 # double-buffered input slab
    wgt = 2 * kk_side * kk_side * cq * tn * 2     # double-buffered weights
    outb = 2 * m * tn * 2                         # double-buffered output
    acc = m * tn * 4                              # f32 accumulator
    tmp = m * tn * 4                              # epilogue temporaries
    return slab + wgt + outb + acc + tmp


def _pick_tiles(ho, wq, cq, cout_p, kk_side, budget):
    """Pick (row-tile th, cout-tile tn).

    Prefer tn == cout_p (weights stay resident -> no HBM refetch) with the
    largest th that fits the VMEM budget; fall back to narrower tn only if it
    buys a substantially larger row tile.
    """
    tns = []
    for tn in (cout_p, 256, 128):
        if tn <= cout_p and cout_p % tn == 0 and tn not in tns:
            tns.append(tn)
    valid_th = [t for t in _divisors_desc(ho) if t == ho or (t * wq) % 8 == 0]
    target_m = min(ho * wq, 2048)

    cands = []
    for tn in tns:                                # descending tn
        for th in valid_th:                       # descending th
            if _block_bytes(th, wq, cq, tn, kk_side) <= budget:
                cands.append((th, tn))
                break
    for th, tn in cands:                          # prefer largest tn if tile big
        if th * wq >= target_m:
            return th, tn
    if cands:
        return max(cands, key=lambda c: (c[0] * wq, c[1]))
    # TODO(synk): nothing fits the budget; smallest legal tile may overshoot it
    # (limit is ~2x budget, so this still compiles for sane shapes).
    return valid_th[-1], tns[-1]


# ------------------------------- pallas wrapper --------------------------------
def _conv_pallas(xt, w_mat, scale, shift, *, ho, wq, cq, cout_p, kk_side,
                 lrelu, th, tn):
    """xt: (N, n_rt, slab_rows, Cq) bf16 -> (N, Ho*Wq, Cout_p) bf16."""
    n, n_rt, slab_rows, _ = xt.shape
    n_ct = cout_p // tn
    m = th * wq
    ntap = kk_side * kk_side
    _, vmem_limit = _vmem_config()

    kernel = functools.partial(_conv_kernel, wq=wq, cq=cq,
                               kk_side=kk_side, lrelu=lrelu)
    scratch = [pltpu.VMEM((m, tn), jnp.float32)] if ntap > 1 else []

    return pl.pallas_call(
        kernel,
        out_shape=jax.ShapeDtypeStruct((n, ho * wq, cout_p), COMPUTE_DTYPE),
        grid_spec=pltpu.PrefetchScalarGridSpec(
            num_scalar_prefetch=0,
            grid=(n, n_rt, n_ct),
            in_specs=[
                # activation slab: constant in j -> re-DMA elided across Cout
                # tiles; auto double-buffered across (b, r).
                pl.BlockSpec((1, 1, slab_rows, cq), lambda b, r, j: (b, r, 0, 0)),
                # weights: with tn == cout_p the index is constant -> one fetch.
                pl.BlockSpec((ntap * cq, tn), lambda b, r, j: (0, j)),
                pl.BlockSpec((1, tn), lambda b, r, j: (0, j)),
                pl.BlockSpec((1, tn), lambda b, r, j: (0, j)),
            ],
            out_specs=pl.BlockSpec((1, m, tn), lambda b, r, j: (b, r, j)),
            scratch_shapes=scratch,
        ),
        compiler_params=pltpu.CompilerParams(
            dimension_semantics=("parallel", "parallel", "arbitrary"),
            vmem_limit_bytes=vmem_limit,
        ),
    )(xt, w_mat, scale, shift)


# ------------------------- one-time parameter prepare -------------------------
def _fold_bn(layer):
    cout = layer["w"].shape[0]
    if layer["has_bn"]:
        scale = layer["gamma"] / jnp.sqrt(layer["var"] + BN_EPS)
        shift = (layer["b"] - layer["mean"]) * scale + layer["beta"]
    else:
        scale = jnp.ones((cout,), jnp.float32)
        shift = layer["b"]
    return scale, shift


def prepare_layer(layer, c_in):
    """Repack OIHW weights into matmul form; fold bias + (eval) BN. Done once."""
    w = layer["w"]                                    # (cout, cin, 4, 4)
    cout, cin = w.shape[0], w.shape[1]
    assert cin == c_in
    stride = layer["stride"]
    cout_p = _round_up(cout, LANE)
    fuse = (stride == 2) and (16 * cin <= LANE)       # first-layer full im2col

    if fuse:
        # Single-tap conv: K layout = (qi*2+qj)*4*cin + (di*2+dj)*cin + ci.
        kk_side = 1
        cq = LANE
        wr = jnp.zeros((1, cq, cout_p), jnp.float32)
        for ki in range(4):
            for kj in range(4):
                row = (((ki // 2) * 2 + (kj // 2)) * 4 * cin
                       + ((ki % 2) * 2 + (kj % 2)) * cin)
                wr = wr.at[0, row:row + cin, :cout].set(
                    jnp.transpose(w[:, :, ki, kj]))
    elif stride == 2:
        # k=4,s=2 conv == k=2,s=1 conv on the space-to-depth'd padded input.
        kk_side = 2
        cq = _round_up(4 * cin, LANE)
        wr = jnp.zeros((4, cq, cout_p), jnp.float32)
        for qi in range(2):
            for qj in range(2):
                for di in range(2):
                    for dj in range(2):
                        tap = qi * 2 + qj
                        r0 = (di * 2 + dj) * cin
                        wr = wr.at[tap, r0:r0 + cin, :cout].set(
                            jnp.transpose(w[:, :, 2 * qi + di, 2 * qj + dj]))
    else:
        kk_side = 4
        cq = _round_up(cin, LANE)
        wr = jnp.zeros((16, cq, cout_p), jnp.float32)
        for ki in range(4):
            for kj in range(4):
                wr = wr.at[ki * 4 + kj, :cin, :cout].set(
                    jnp.transpose(w[:, :, ki, kj]))

    w_mat = wr.reshape(kk_side * kk_side * cq, cout_p).astype(COMPUTE_DTYPE)
    scale, shift = _fold_bn(layer)
    scale_p = jnp.ones((1, cout_p), jnp.float32).at[0, :cout].set(scale)
    shift_p = jnp.zeros((1, cout_p), jnp.float32).at[0, :cout].set(shift)
    return dict(w_mat=w_mat, scale=scale_p, shift=shift_p, stride=stride,
                kk_side=kk_side, cq=cq, cout=cout, cout_p=cout_p,
                lrelu=layer["lrelu"], fuse_taps=fuse)


def prepare_discriminator(layers, input_nc):
    prepared, c_in = [], input_nc
    for layer in layers:
        p = prepare_layer(layer, c_in)
        prepared.append(p)
        c_in = p["cout"]                 # carry REAL channels, not padded
    return prepared


# ------------------------------- forward pass ---------------------------------
def _layer_geometry(h, w, p):
    if p["stride"] == 2:
        assert h % 2 == 0 and w % 2 == 0, "stride-2 stage needs even H/W"
        ho, wo = h // 2, w // 2
        if p["fuse_taps"]:
            hq, wq = ho, wo
        else:
            hq, wq = (h + 2) // 2, (w + 2) // 2
    else:
        ho, wo = h - 1, w - 1
        hq, wq = h + 2, w + 2
    return ho, wo, hq, wq


def _prepare_activation(x, p, *, th, ho, wo, wq):
    """Pad, (space-to-depth / im2col), channel-pad, row-tile with halo + 0-tail.

    Returns (N, n_rt, slab_rows, Cq) bf16 — one contiguous slab per grid block.
    """
    n, h, w, c = x.shape
    kk, cq = p["kk_side"], p["cq"]
    xp = jnp.pad(x, ((0, 0), (PADW, PADW), (PADW, PADW), (0, 0)))
    if p["stride"] == 2:
        h2, w2 = (h + 2) // 2, (w + 2) // 2
        y = xp.reshape(n, h2, 2, w2, 2, c)
        y = jnp.transpose(y, (0, 1, 3, 2, 4, 5)).reshape(n, h2, w2, 4 * c)
        if p["fuse_taps"]:
            # 2x2 stride-1 im2col over the s2d image -> single-tap conv.
            y = jnp.concatenate(
                [y[:, 0:ho, 0:wo], y[:, 0:ho, 1:wo + 1],
                 y[:, 1:ho + 1, 0:wo], y[:, 1:ho + 1, 1:wo + 1]], axis=-1)
    else:
        y = xp
    cnow = y.shape[-1]
    if cnow < cq:
        y = jnp.pad(y, ((0, 0), (0, 0), (0, 0), (0, cq - cnow)))

    th_in = th + kk - 1
    n_rt = ho // th
    tiles = [y[:, r * th:r * th + th_in] for r in range(n_rt)]
    yt = jnp.stack(tiles, axis=1).reshape(n, n_rt, th_in * wq, cq)
    tail = kk - 1
    if tail:                                   # zero tail: junk-column taps
        yt = jnp.pad(yt, ((0, 0), (0, 0), (0, tail), (0, 0)))
    return yt


def apply_layer(x, p):
    n, h, w, _ = x.shape
    ho, wo, _, wq = _layer_geometry(h, w, p)
    budget, _ = _vmem_config()
    th, tn = _pick_tiles(ho, wq, p["cq"], p["cout_p"], p["kk_side"], budget)
    xt = _prepare_activation(x, p, th=th, ho=ho, wo=wo, wq=wq)
    oflat = _conv_pallas(xt, p["w_mat"], p["scale"], p["shift"],
                         ho=ho, wq=wq, cq=p["cq"], cout_p=p["cout_p"],
                         kk_side=p["kk_side"], lrelu=p["lrelu"], th=th, tn=tn)
    # (N, Ho*Wq, Cout_p) -> (N, Ho, Wo, Cout_real): drop junk cols & pad chans.
    return oflat.reshape(n, ho, wq, p["cout_p"])[:, :, :wo, :p["cout"]]


def nlayer_discriminator_forward(x_nchw, prepared):
    x = jnp.transpose(x_nchw, (0, 2, 3, 1)).astype(COMPUTE_DTYPE)   # NCHW->NHWC
    for p in prepared:
        x = apply_layer(x, p)
    return jnp.transpose(x.astype(jnp.float32), (0, 3, 1, 2))       # NHWC->NCHW


# ------------------------- deterministic parameter init -----------------------
def init_params(key, input_nc, ndf=64, n_layers=3):
    # Mirror NLayerDiscriminator.__init__ layer structure.
    specs = [(input_nc, ndf, 2, False, True)]
    nf = ndf
    for _ in range(1, n_layers):
        nf_prev, nf = nf, min(nf * 2, 512)
        specs.append((nf_prev, nf, 2, True, True))
    nf_prev, nf = nf, min(nf * 2, 512)
    specs.append((nf_prev, nf, 1, True, True))
    specs.append((nf, 1, 1, False, False))

    layers = []
    for k, (cin, cout, stride, has_bn, lrelu) in zip(
            jax.random.split(key, len(specs)), specs):
        k1, k2, k3, k4, k5, k6 = jax.random.split(k, 6)
        bound = 1.0 / np.sqrt(cin * KW * KW)
        w = jax.random.uniform(k1, (cout, cin, KW, KW), jnp.float32, -bound, bound)
        b = jax.random.uniform(k2, (cout,), jnp.float32, -bound, bound)
        if has_bn:
            gamma = 1.0 + 0.1 * jax.random.normal(k3, (cout,), jnp.float32)
            beta = 0.1 * jax.random.normal(k4, (cout,), jnp.float32)
            mean = 0.1 * jax.random.normal(k5, (cout,), jnp.float32)
            var = 1.0 + 0.1 * jax.random.uniform(k6, (cout,), jnp.float32)
        else:
            gamma = jnp.ones((cout,), jnp.float32)
            beta = jnp.zeros((cout,), jnp.float32)
            mean = jnp.zeros((cout,), jnp.float32)
            var = jnp.ones((cout,), jnp.float32)
        layers.append(dict(w=w, b=b, gamma=gamma, beta=beta, mean=mean, var=var,
                           stride=stride, has_bn=has_bn, lrelu=lrelu))
    return layers


# ----------------------------- pure-JAX reference ------------------------------
def ref_forward(x_nchw, layers):
    y = x_nchw.astype(jnp.float32)
    for layer in layers:
        s = layer["stride"]
        y = jax.lax.conv_general_dilated(
            y, layer["w"], window_strides=(s, s),
            padding=[(PADW, PADW), (PADW, PADW)],
            dimension_numbers=("NCHW", "OIHW", "NCHW"))
        y = y + layer["b"][None, :, None, None]
        if layer["has_bn"]:
            y = ((y - layer["mean"][None, :, None, None])
                 / jnp.sqrt(layer["var"][None, :, None, None] + BN_EPS)
                 * layer["gamma"][None, :, None, None]
                 + layer["beta"][None, :, None, None])
        if layer["lrelu"]:
            y = jnp.where(y >= 0, y, LRELU_SLOPE * y)
    return y


if __name__ == "__main__":
    key = jax.random.PRNGKey(0)
    k_in, k_par = jax.random.split(key)

    # Small config: input_nc=4, ndf=16, n_layers=3, 32x32 input.
    input_nc, ndf, n_layers = 4, 16, 3
    x = jax.random.normal(k_in, (2, input_nc, 32, 32), jnp.float32)
    layers = init_params(k_par, input_nc, ndf=ndf, n_layers=n_layers)

    prepared = prepare_discriminator(layers, input_nc)   # one-time weight prep
    fwd = jax.jit(lambda xx: nlayer_discriminator_forward(xx, prepared))
    out = jax.block_until_ready(fwd(x))

    ref = ref_forward(x, layers)
    assert out.shape == ref.shape == (2, 1, 2, 2), (out.shape, ref.shape)
    # bf16 MXU operands (f32 accumulation) -> loosen tolerance vs f32 reference.
    np.testing.assert_allclose(np.asarray(out), np.asarray(ref),
                               rtol=6e-2, atol=6e-2)
    print("KERNEL_OK")
</pallas_src>

<mosaic_0001>
module attributes {stable_mosaic.version = 11 : i64} {
  func.func @_conv_kernel(%arg0: i32, %arg1: i32, %arg2: i32, %arg3: memref<1x1x256x128xbf16, #tpu.memory_space<vmem>>, %arg4: memref<128x128xbf16, #tpu.memory_space<vmem>>, %arg5: memref<1x128xf32, #tpu.memory_space<vmem>>, %arg6: memref<1x128xf32, #tpu.memory_space<vmem>>, %arg7: memref<1x256x128xbf16, #tpu.memory_space<vmem>>) attributes {dimension_semantics = [#tpu.dimension_semantics<parallel>, #tpu.dimension_semantics<parallel>, #tpu.dimension_semantics<arbitrary>], iteration_bounds = array<i64: 2, 1, 1>, scalar_prefetch = 0 : i64, scratch_operands = 0 : i64, tpu.core_type = #tpu.core_type<tc>, window_params = [{transform_indices = @transform_0, window_bounds = array<i64: 1, 1, 256, 128>}, {transform_indices = @transform_1, window_bounds = array<i64: 128, 128>}, {transform_indices = @transform_2, window_bounds = array<i64: 1, 128>}, {transform_indices = @transform_3, window_bounds = array<i64: 1, 128>}, {transform_indices = @transform_4, window_bounds = array<i64: 1, 256, 128>}]} {
    %c0 = arith.constant 0 : index
    %c0_0 = arith.constant 0 : index
    %c0_1 = arith.constant 0 : index
    %c0_2 = arith.constant 0 : index
    %0 = vector.load %arg3[%c0, %c0_0, %c0_1, %c0_2] : memref<1x1x256x128xbf16, #tpu.memory_space<vmem>>, vector<1x1x256x128xbf16>
    %1 = vector.shape_cast %0 : vector<1x1x256x128xbf16> to vector<256x128xbf16>
    %c0_3 = arith.constant 0 : index
    %c0_4 = arith.constant 0 : index
    %2 = vector.load %arg4[%c0_3, %c0_4] : memref<128x128xbf16, #tpu.memory_space<vmem>>, vector<128x128xbf16>
    %cst = arith.constant dense<0.000000e+00> : vector<256x128xf32>
    %3 = tpu.matmul %1, %2, %cst {dimension_numbers = #tpu.dot_dimension_numbers<[1], [0], [0], [1], [0, 0, 1, 1], [], []>} : vector<256x128xbf16>, vector<128x128xbf16>, vector<256x128xf32> -> vector<256x128xf32>
    %c0_5 = arith.constant 0 : index
    %c0_6 = arith.constant 0 : index
    %4 = vector.load %arg5[%c0_5, %c0_6] : memref<1x128xf32, #tpu.memory_space<vmem>>, vector<1x128xf32>
    %5 = vector.broadcast %4 : vector<1x128xf32> to vector<256x128xf32>
    %6 = arith.mulf %3, %5 : vector<256x128xf32>
    %c0_7 = arith.constant 0 : index
    %c0_8 = arith.constant 0 : index
    %7 = vector.load %arg6[%c0_7, %c0_8] : memref<1x128xf32, #tpu.memory_space<vmem>>, vector<1x128xf32>
    %8 = vector.broadcast %7 : vector<1x128xf32> to vector<256x128xf32>
    %9 = arith.addf %6, %8 : vector<256x128xf32>
    %cst_9 = arith.constant 0.000000e+00 : f32
    %10 = vector.broadcast %cst_9 : f32 to vector<256x128xf32>
    %11 = arith.cmpf oge, %9, %10 : vector<256x128xf32>
    %cst_10 = arith.constant 2.000000e-01 : f32
    %12 = vector.broadcast %cst_10 : f32 to vector<256x128xf32>
    %13 = arith.mulf %12, %9 : vector<256x128xf32>
    %14 = arith.select %11, %9, %13 : vector<256x128xi1>, vector<256x128xf32>
    %15 = arith.truncf %14 : vector<256x128xf32> to vector<256x128xbf16>
    %c0_11 = arith.constant 0 : index
    %c0_12 = arith.constant 0 : index
    %c0_13 = arith.constant 0 : index
    %16 = vector.load %arg7[%c0_11, %c0_12, %c0_13] : memref<1x256x128xbf16, #tpu.memory_space<vmem>>, vector<1x256x128xbf16>
    %17 = vector.shape_cast %16 : vector<1x256x128xbf16> to vector<256x128xbf16>
    %18 = vector.shape_cast %15 : vector<256x128xbf16> to vector<1x256x128xbf16>
    tpu.vector_store %arg7[%c0_11, %c0_12, %c0_13], %18 {strides = array<i32>} : memref<1x256x128xbf16, #tpu.memory_space<vmem>>, vector<1x256x128xbf16>,
    return
  }
  func.func @transform_0(%arg0: i32, %arg1: i32, %arg2: i32) -> (i32, i32, i32, i32) {
    %c0_i32 = arith.constant 0 : i32
    %c0_i32_0 = arith.constant 0 : i32
    %c0_i32_1 = arith.constant 0 : i32
    return %arg0, %arg1, %c0_i32, %c0_i32_0 : i32, i32, i32, i32
  }
  func.func @transform_1(%arg0: i32, %arg1: i32, %arg2: i32) -> (i32, i32) {
    %c0_i32 = arith.constant 0 : i32
    %c0_i32_0 = arith.constant 0 : i32
    return %c0_i32, %arg2 : i32, i32
  }
  func.func @transform_2(%arg0: i32, %arg1: i32, %arg2: i32) -> (i32, i32) {
    %c0_i32 = arith.constant 0 : i32
    %c0_i32_0 = arith.constant 0 : i32
    return %c0_i32, %arg2 : i32, i32
  }
  func.func @transform_3(%arg0: i32, %arg1: i32, %arg2: i32) -> (i32, i32) {
    %c0_i32 = arith.constant 0 : i32
    %c0_i32_0 = arith.constant 0 : i32
    return %c0_i32, %arg2 : i32, i32
  }
  func.func @transform_4(%arg0: i32, %arg1: i32, %arg2: i32) -> (i32, i32, i32) {
    %c0_i32 = arith.constant 0 : i32
    return %arg0, %arg1, %arg2 : i32, i32, i32
  }
}

module attributes {stable_mosaic.version = 11 : i64} {
  func.func @_conv_kernel(%arg0: i32, %arg1: i32, %arg2: i32, %arg3: memref<1x1x82x128xbf16, #tpu.memory_space<vmem>>, %arg4: memref<512x128xbf16, #tpu.memory_space<vmem>>, %arg5: memref<1x128xf32, #tpu.memory_space<vmem>>, %arg6: memref<1x128xf32, #tpu.memory_space<vmem>>, %arg7: memref<1x72x128xbf16, #tpu.memory_space<vmem>>, %arg8: memref<72x128xf32, #tpu.memory_space<vmem>>) attributes {dimension_semantics = [#tpu.dimension_semantics<parallel>, #tpu.dimension_semantics<parallel>, #tpu.dimension_semantics<arbitrary>], iteration_bounds = array<i64: 2, 1, 1>, scalar_prefetch = 0 : i64, scratch_operands = 1 : i64, tpu.core_type = #tpu.core_type<tc>, window_params = [{transform_indices = @transform_0, window_bounds = array<i64: 1, 1, 82, 128>}, {transform_indices = @transform_1, window_bounds = array<i64: 512, 128>}, {transform_indices = @transform_2, window_bounds = array<i64: 1, 128>}, {transform_indices = @transform_3, window_bounds = array<i64: 1, 128>}, {transform_indices = @transform_4, window_bounds = array<i64: 1, 72, 128>}]} {
    %c0 = arith.constant 0 : index
    %c0_0 = arith.constant 0 : index
    %c0_1 = arith.constant 0 : index
    %c0_2 = arith.constant 0 : index
    %0 = vector.load %arg3[%c0, %c0_0, %c0_1, %c0_2] : memref<1x1x82x128xbf16, #tpu.memory_space<vmem>>, vector<1x1x72x128xbf16>
    %1 = vector.shape_cast %0 : vector<1x1x72x128xbf16> to vector<72x128xbf16>
    %c0_3 = arith.constant 0 : index
    %c0_4 = arith.constant 0 : index
    %2 = vector.load %arg4[%c0_3, %c0_4] : memref<512x128xbf16, #tpu.memory_space<vmem>>, vector<128x128xbf16>
    %cst = arith.constant dense<0.000000e+00> : vector<72x128xf32>
    %3 = tpu.matmul %1, %2, %cst {dimension_numbers = #tpu.dot_dimension_numbers<[1], [0], [0], [1], [0, 0, 1, 1], [], []>} : vector<72x128xbf16>, vector<128x128xbf16>, vector<72x128xf32> -> vector<72x128xf32>
    %c0_5 = arith.constant 0 : index
    %c0_6 = arith.constant 0 : index
    %4 = vector.load %arg8[%c0_5, %c0_6] : memref<72x128xf32, #tpu.memory_space<vmem>>, vector<72x128xf32>
    tpu.vector_store %arg8[%c0_5, %c0_6], %3 {strides = array<i32>} : memref<72x128xf32, #tpu.memory_space<vmem>>, vector<72x128xf32>,
    %c0_7 = arith.constant 0 : index
    %c0_8 = arith.constant 0 : index
    %5 = vector.load %arg8[%c0_7, %c0_8] : memref<72x128xf32, #tpu.memory_space<vmem>>, vector<72x128xf32>
    %c0_9 = arith.constant 0 : index
    %c0_10 = arith.constant 0 : index
    %c1 = arith.constant 1 : index
    %c0_11 = arith.constant 0 : index
    %6 = vector.load %arg3[%c0_9, %c0_10, %c1, %c0_11] : memref<1x1x82x128xbf16, #tpu.memory_space<vmem>>, vector<1x1x72x128xbf16>
    %7 = vector.shape_cast %6 : vector<1x1x72x128xbf16> to vector<72x128xbf16>
    %c128 = arith.constant 128 : index
    %c0_12 = arith.constant 0 : index
    %8 = vector.load %arg4[%c128, %c0_12] : memref<512x128xbf16, #tpu.memory_space<vmem>>, vector<128x128xbf16>
    %cst_13 = arith.constant dense<0.000000e+00> : vector<72x128xf32>
    %9 = tpu.matmul %7, %8, %cst_13 {dimension_numbers = #tpu.dot_dimension_numbers<[1], [0], [0], [1], [0, 0, 1, 1], [], []>} : vector<72x128xbf16>, vector<128x128xbf16>, vector<72x128xf32> -> vector<72x128xf32>
    %10 = arith.addf %5, %9 : vector<72x128xf32>
    %c0_14 = arith.constant 0 : index
    %c0_15 = arith.constant 0 : index
    %11 = vector.load %arg8[%c0_14, %c0_15] : memref<72x128xf32, #tpu.memory_space<vmem>>, vector<72x128xf32>
    tpu.vector_store %arg8[%c0_14, %c0_15], %10 {strides = array<i32>} : memref<72x128xf32, #tpu.memory_space<vmem>>, vector<72x128xf32>,
    %c0_16 = arith.constant 0 : index
    %c0_17 = arith.constant 0 : index
    %12 = vector.load %arg8[%c0_16, %c0_17] : memref<72x128xf32, #tpu.memory_space<vmem>>, vector<72x128xf32>
    %c0_18 = arith.constant 0 : index
    %c0_19 = arith.constant 0 : index
    %c9 = arith.constant 9 : index
    %c0_20 = arith.constant 0 : index
    %13 = vector.load %arg3[%c0_18, %c0_19, %c9, %c0_20] : memref<1x1x82x128xbf16, #tpu.memory_space<vmem>>, vector<1x1x72x128xbf16>
    %14 = vector.shape_cast %13 : vector<1x1x72x128xbf16> to vector<72x128xbf16>
    %c256 = arith.constant 256 : index
    %c0_21 = arith.constant 0 : index
    %15 = vector.load %arg4[%c256, %c0_21] : memref<512x128xbf16, #tpu.memory_space<vmem>>, vector<128x128xbf16>
    %cst_22 = arith.constant dense<0.000000e+00> : vector<72x128xf32>
    %16 = tpu.matmul %14, %15, %cst_22 {dimension_numbers = #tpu.dot_dimension_numbers<[1], [0], [0], [1], [0, 0, 1, 1], [], []>} : vector<72x128xbf16>, vector<128x128xbf16>, vector<72x128xf32> -> vector<72x128xf32>
    %17 = arith.addf %12, %16 : vector<72x128xf32>
    %c0_23 = arith.constant 0 : index
    %c0_24 = arith.constant 0 : index
    %18 = vector.load %arg8[%c0_23, %c0_24] : memref<72x128xf32, #tpu.memory_space<vmem>>, vector<72x128xf32>
    tpu.vector_store %arg8[%c0_23, %c0_24], %17 {strides = array<i32>} : memref<72x128xf32, #tpu.memory_space<vmem>>, vector<72x128xf32>,
    %c0_25 = arith.constant 0 : index
    %c0_26 = arith.constant 0 : index
    %19 = vector.load %arg8[%c0_25, %c0_26] : memref<72x128xf32, #tpu.memory_space<vmem>>, vector<72x128xf32>
    %c0_27 = arith.constant 0 : index
    %c0_28 = arith.constant 0 : index
    %c10 = arith.constant 10 : index
    %c0_29 = arith.constant 0 : index
    %20 = vector.load %arg3[%c0_27, %c0_28, %c10, %c0_29] : memref<1x1x82x128xbf16, #tpu.memory_space<vmem>>, vector<1x1x72x128xbf16>
    %21 = vector.shape_cast %20 : vector<1x1x72x128xbf16> to vector<72x128xbf16>
    %c384 = arith.constant 384 : index
    %c0_30 = arith.constant 0 : index
    %22 = vector.load %arg4[%c384, %c0_30] : memref<512x128xbf16, #tpu.memory_space<vmem>>, vector<128x128xbf16>
    %cst_31 = arith.constant dense<0.000000e+00> : vector<72x128xf32>
    %23 = tpu.matmul %21, %22, %cst_31 {dimension_numbers = #tpu.dot_dimension_numbers<[1], [0], [0], [1], [0, 0, 1, 1], [], []>} : vector<72x128xbf16>, vector<128x128xbf16>, vector<72x128xf32> -> vector<72x128xf32>
    %24 = arith.addf %19, %23 : vector<72x128xf32>
    %c0_32 = arith.constant 0 : index
    %c0_33 = arith.constant 0 : index
    %25 = vector.load %arg8[%c0_32, %c0_33] : memref<72x128xf32, #tpu.memory_space<vmem>>, vector<72x128xf32>
    tpu.vector_store %arg8[%c0_32, %c0_33], %24 {strides = array<i32>} : memref<72x128xf32, #tpu.memory_space<vmem>>, vector<72x128xf32>,
    %c0_34 = arith.constant 0 : index
    %c0_35 = arith.constant 0 : index
    %26 = vector.load %arg8[%c0_34, %c0_35] : memref<72x128xf32, #tpu.memory_space<vmem>>, vector<72x128xf32>
    %c0_36 = arith.constant 0 : index
    %c0_37 = arith.constant 0 : index
    %27 = vector.load %arg5[%c0_36, %c0_37] : memref<1x128xf32, #tpu.memory_space<vmem>>, vector<1x128xf32>
    %28 = vector.broadcast %27 : vector<1x128xf32> to vector<72x128xf32>
    %29 = arith.mulf %26, %28 : vector<72x128xf32>
    %c0_38 = arith.constant 0 : index
    %c0_39 = arith.constant 0 : index
    %30 = vector.load %arg6[%c0_38, %c0_39] : memref<1x128xf32, #tpu.memory_space<vmem>>, vector<1x128xf32>
    %31 = vector.broadcast %30 : vector<1x128xf32> to vector<72x128xf32>
    %32 = arith.addf %29, %31 : vector<72x128xf32>
    %cst_40 = arith.constant 0.000000e+00 : f32
    %33 = vector.broadcast %cst_40 : f32 to vector<72x128xf32>
    %34 = arith.cmpf oge, %32, %33 : vector<72x128xf32>
    %cst_41 = arith.constant 2.000000e-01 : f32
    %35 = vector.broadcast %cst_41 : f32 to vector<72x128xf32>
    %36 = arith.mulf %35, %32 : vector<72x128xf32>
    %37 = arith.select %34, %32, %36 : vector<72x128xi1>, vector<72x128xf32>
    %38 = arith.truncf %37 : vector<72x128xf32> to vector<72x128xbf16>
    %c0_42 = arith.constant 0 : index
    %c0_43 = arith.constant 0 : index
    %c0_44 = arith.constant 0 : index
    %39 = vector.load %arg7[%c0_42, %c0_43, %c0_44] : memref<1x72x128xbf16, #tpu.memory_space<vmem>>, vector<1x72x128xbf16>
    %40 = vector.shape_cast %39 : vector<1x72x128xbf16> to vector<72x128xbf16>
    %41 = vector.shape_cast %38 : vector<72x128xbf16> to vector<1x72x128xbf16>
    tpu.vector_store %arg7[%c0_42, %c0_43, %c0_44], %41 {strides = array<i32>} : memref<1x72x128xbf16, #tpu.memory_space<vmem>>, vector<1x72x128xbf16>,
    return
  }
  func.func @transform_0(%arg0: i32, %arg1: i32, %arg2: i32) -> (i32, i32, i32, i32) {
    %c0_i32 = arith.constant 0 : i32
    %c0_i32_0 = arith.constant 0 : i32
    %c0_i32_1 = arith.constant 0 : i32
    return %arg0, %arg1, %c0_i32, %c0_i32_0 : i32, i32, i32, i32
  }
  func.func @transform_1(%arg0: i32, %arg1: i32, %arg2: i32) -> (i32, i32) {
    %c0_i32 = arith.constant 0 : i32
    %c0_i32_0 = arith.constant 0 : i32
    return %c0_i32, %arg2 : i32, i32
  }
  func.func @transform_2(%arg0: i32, %arg1: i32, %arg2: i32) -> (i32, i32) {
    %c0_i32 = arith.constant 0 : i32
    %c0_i32_0 = arith.constant 0 : i32
    return %c0_i32, %arg2 : i32, i32
  }
  func.func @transform_3(%arg0: i32, %arg1: i32, %arg2: i32) -> (i32, i32) {
    %c0_i32 = arith.constant 0 : i32
    %c0_i32_0 = arith.constant 0 : i32
    return %c0_i32, %arg2 : i32, i32
  }
  func.func @transform_4(%arg0: i32, %arg1: i32, %arg2: i32) -> (i32, i32, i32) {
    %c0_i32 = arith.constant 0 : i32
    return %arg0, %arg1, %arg2 : i32, i32, i32
  }
}

module attributes {stable_mosaic.version = 11 : i64} {
  func.func @_conv_kernel(%arg0: i32, %arg1: i32, %arg2: i32, %arg3: memref<1x1x26x128xbf16, #tpu.memory_space<vmem>>, %arg4: memref<512x128xbf16, #tpu.memory_space<vmem>>, %arg5: memref<1x128xf32, #tpu.memory_space<vmem>>, %arg6: memref<1x128xf32, #tpu.memory_space<vmem>>, %arg7: memref<1x20x128xbf16, #tpu.memory_space<vmem>>, %arg8: memref<20x128xf32, #tpu.memory_space<vmem>>) attributes {dimension_semantics = [#tpu.dimension_semantics<parallel>, #tpu.dimension_semantics<parallel>, #tpu.dimension_semantics<arbitrary>], iteration_bounds = array<i64: 2, 1, 1>, scalar_prefetch = 0 : i64, scratch_operands = 1 : i64, tpu.core_type = #tpu.core_type<tc>, window_params = [{transform_indices = @transform_0, window_bounds = array<i64: 1, 1, 26, 128>}, {transform_indices = @transform_1, window_bounds = array<i64: 512, 128>}, {transform_indices = @transform_2, window_bounds = array<i64: 1, 128>}, {transform_indices = @transform_3, window_bounds = array<i64: 1, 128>}, {transform_indices = @transform_4, window_bounds = array<i64: 1, 20, 128>}]} {
    %c0 = arith.constant 0 : index
    %c0_0 = arith.constant 0 : index
    %c0_1 = arith.constant 0 : index
    %c0_2 = arith.constant 0 : index
    %0 = vector.load %arg3[%c0, %c0_0, %c0_1, %c0_2] : memref<1x1x26x128xbf16, #tpu.memory_space<vmem>>, vector<1x1x20x128xbf16>
    %1 = vector.shape_cast %0 : vector<1x1x20x128xbf16> to vector<20x128xbf16>
    %c0_3 = arith.constant 0 : index
    %c0_4 = arith.constant 0 : index
    %2 = vector.load %arg4[%c0_3, %c0_4] : memref<512x128xbf16, #tpu.memory_space<vmem>>, vector<128x128xbf16>
    %cst = arith.constant dense<0.000000e+00> : vector<20x128xf32>
    %3 = tpu.matmul %1, %2, %cst {dimension_numbers = #tpu.dot_dimension_numbers<[1], [0], [0], [1], [0, 0, 1, 1], [], []>} : vector<20x128xbf16>, vector<128x128xbf16>, vector<20x128xf32> -> vector<20x128xf32>
    %c0_5 = arith.constant 0 : index
    %c0_6 = arith.constant 0 : index
    %4 = vector.load %arg8[%c0_5, %c0_6] : memref<20x128xf32, #tpu.memory_space<vmem>>, vector<20x128xf32>
    tpu.vector_store %arg8[%c0_5, %c0_6], %3 {strides = array<i32>} : memref<20x128xf32, #tpu.memory_space<vmem>>, vector<20x128xf32>,
    %c0_7 = arith.constant 0 : index
    %c0_8 = arith.constant 0 : index
    %5 = vector.load %arg8[%c0_7, %c0_8] : memref<20x128xf32, #tpu.memory_space<vmem>>, vector<20x128xf32>
    %c0_9 = arith.constant 0 : index
    %c0_10 = arith.constant 0 : index
    %c1 = arith.constant 1 : index
    %c0_11 = arith.constant 0 : index
    %6 = vector.load %arg3[%c0_9, %c0_10, %c1, %c0_11] : memref<1x1x26x128xbf16, #tpu.memory_space<vmem>>, vector<1x1x20x128xbf16>
    %7 = vector.shape_cast %6 : vector<1x1x20x128xbf16> to vector<20x128xbf16>
    %c128 = arith.constant 128 : index
    %c0_12 = arith.constant 0 : index
    %8 = vector.load %arg4[%c128, %c0_12] : memref<512x128xbf16, #tpu.memory_space<vmem>>, vector<128x128xbf16>
    %cst_13 = arith.constant dense<0.000000e+00> : vector<20x128xf32>
    %9 = tpu.matmul %7, %8, %cst_13 {dimension_numbers = #tpu.dot_dimension_numbers<[1], [0], [0], [1], [0, 0, 1, 1], [], []>} : vector<20x128xbf16>, vector<128x128xbf16>, vector<20x128xf32> -> vector<20x128xf32>
    %10 = arith.addf %5, %9 : vector<20x128xf32>
    %c0_14 = arith.constant 0 : index
    %c0_15 = arith.constant 0 : index
    %11 = vector.load %arg8[%c0_14, %c0_15] : memref<20x128xf32, #tpu.memory_space<vmem>>, vector<20x128xf32>
    tpu.vector_store %arg8[%c0_14, %c0_15], %10 {strides = array<i32>} : memref<20x128xf32, #tpu.memory_space<vmem>>, vector<20x128xf32>,
    %c0_16 = arith.constant 0 : index
    %c0_17 = arith.constant 0 : index
    %12 = vector.load %arg8[%c0_16, %c0_17] : memref<20x128xf32, #tpu.memory_space<vmem>>, vector<20x128xf32>
    %c0_18 = arith.constant 0 : index
    %c0_19 = arith.constant 0 : index
    %c5 = arith.constant 5 : index
    %c0_20 = arith.constant 0 : index
    %13 = vector.load %arg3[%c0_18, %c0_19, %c5, %c0_20] : memref<1x1x26x128xbf16, #tpu.memory_space<vmem>>, vector<1x1x20x128xbf16>
    %14 = vector.shape_cast %13 : vector<1x1x20x128xbf16> to vector<20x128xbf16>
    %c256 = arith.constant 256 : index
    %c0_21 = arith.constant 0 : index
    %15 = vector.load %arg4[%c256, %c0_21] : memref<512x128xbf16, #tpu.memory_space<vmem>>, vector<128x128xbf16>
    %cst_22 = arith.constant dense<0.000000e+00> : vector<20x128xf32>
    %16 = tpu.matmul %14, %15, %cst_22 {dimension_numbers = #tpu.dot_dimension_numbers<[1], [0], [0], [1], [0, 0, 1, 1], [], []>} : vector<20x128xbf16>, vector<128x128xbf16>, vector<20x128xf32> -> vector<20x128xf32>
    %17 = arith.addf %12, %16 : vector<20x128xf32>
    %c0_23 = arith.constant 0 : index
    %c0_24 = arith.constant 0 : index
    %18 = vector.load %arg8[%c0_23, %c0_24] : memref<20x128xf32, #tpu.memory_space<vmem>>, vector<20x128xf32>
    tpu.vector_store %arg8[%c0_23, %c0_24], %17 {strides = array<i32>} : memref<20x128xf32, #tpu.memory_space<vmem>>, vector<20x128xf32>,
    %c0_25 = arith.constant 0 : index
    %c0_26 = arith.constant 0 : index
    %19 = vector.load %arg8[%c0_25, %c0_26] : memref<20x128xf32, #tpu.memory_space<vmem>>, vector<20x128xf32>
    %c0_27 = arith.constant 0 : index
    %c0_28 = arith.constant 0 : index
    %c6 = arith.constant 6 : index
    %c0_29 = arith.constant 0 : index
    %20 = vector.load %arg3[%c0_27, %c0_28, %c6, %c0_29] : memref<1x1x26x128xbf16, #tpu.memory_space<vmem>>, vector<1x1x20x128xbf16>
    %21 = vector.shape_cast %20 : vector<1x1x20x128xbf16> to vector<20x128xbf16>
    %c384 = arith.constant 384 : index
    %c0_30 = arith.constant 0 : index
    %22 = vector.load %arg4[%c384, %c0_30] : memref<512x128xbf16, #tpu.memory_space<vmem>>, vector<128x128xbf16>
    %cst_31 = arith.constant dense<0.000000e+00> : vector<20x128xf32>
    %23 = tpu.matmul %21, %22, %cst_31 {dimension_numbers = #tpu.dot_dimension_numbers<[1], [0], [0], [1], [0, 0, 1, 1], [], []>} : vector<20x128xbf16>, vector<128x128xbf16>, vector<20x128xf32> -> vector<20x128xf32>
    %24 = arith.addf %19, %23 : vector<20x128xf32>
    %c0_32 = arith.constant 0 : index
    %c0_33 = arith.constant 0 : index
    %25 = vector.load %arg8[%c0_32, %c0_33] : memref<20x128xf32, #tpu.memory_space<vmem>>, vector<20x128xf32>
    tpu.vector_store %arg8[%c0_32, %c0_33], %24 {strides = array<i32>} : memref<20x128xf32, #tpu.memory_space<vmem>>, vector<20x128xf32>,
    %c0_34 = arith.constant 0 : index
    %c0_35 = arith.constant 0 : index
    %26 = vector.load %arg8[%c0_34, %c0_35] : memref<20x128xf32, #tpu.memory_space<vmem>>, vector<20x128xf32>
    %c0_36 = arith.constant 0 : index
    %c0_37 = arith.constant 0 : index
    %27 = vector.load %arg5[%c0_36, %c0_37] : memref<1x128xf32, #tpu.memory_space<vmem>>, vector<1x128xf32>
    %28 = vector.broadcast %27 : vector<1x128xf32> to vector<20x128xf32>
    %29 = arith.mulf %26, %28 : vector<20x128xf32>
    %c0_38 = arith.constant 0 : index
    %c0_39 = arith.constant 0 : index
    %30 = vector.load %arg6[%c0_38, %c0_39] : memref<1x128xf32, #tpu.memory_space<vmem>>, vector<1x128xf32>
    %31 = vector.broadcast %30 : vector<1x128xf32> to vector<20x128xf32>
    %32 = arith.addf %29, %31 : vector<20x128xf32>
    %cst_40 = arith.constant 0.000000e+00 : f32
    %33 = vector.broadcast %cst_40 : f32 to vector<20x128xf32>
    %34 = arith.cmpf oge, %32, %33 : vector<20x128xf32>
    %cst_41 = arith.constant 2.000000e-01 : f32
    %35 = vector.broadcast %cst_41 : f32 to vector<20x128xf32>
    %36 = arith.mulf %35, %32 : vector<20x128xf32>
    %37 = arith.select %34, %32, %36 : vector<20x128xi1>, vector<20x128xf32>
    %38 = arith.truncf %37 : vector<20x128xf32> to vector<20x128xbf16>
    %c0_42 = arith.constant 0 : index
    %c0_43 = arith.constant 0 : index
    %c0_44 = arith.constant 0 : index
    %39 = vector.load %arg7[%c0_42, %c0_43, %c0_44] : memref<1x20x128xbf16, #tpu.memory_space<vmem>>, vector<1x20x128xbf16>
    %40 = vector.shape_cast %39 : vector<1x20x128xbf16> to vector<20x128xbf16>
    %41 = vector.shape_cast %38 : vector<20x128xbf16> to vector<1x20x128xbf16>
    tpu.vector_store %arg7[%c0_42, %c0_43, %c0_44], %41 {strides = array<i32>} : memref<1x20x128xbf16, #tpu.memory_space<vmem>>, vector<1x20x128xbf16>,
    return
  }
  func.func @transform_0(%arg0: i32, %arg1: i32, %arg2: i32) -> (i32, i32, i32, i32) {
    %c0_i32 = arith.constant 0 : i32
    %c0_i32_0 = arith.constant 0 : i32
    %c0_i32_1 = arith.constant 0 : i32
    return %arg0, %arg1, %c0_i32, %c0_i32_0 : i32, i32, i32, i32
  }
  func.func @transform_1(%arg0: i32, %arg1: i32, %arg2: i32) -> (i32, i32) {
    %c0_i32 = arith.constant 0 : i32
    %c0_i32_0 = arith.constant 0 : i32
    return %c0_i32, %arg2 : i32, i32
  }
  func.func @transform_2(%arg0: i32, %arg1: i32, %arg2: i32) -> (i32, i32) {
    %c0_i32 = arith.constant 0 : i32
    %c0_i32_0 = arith.constant 0 : i32
    return %c0_i32, %arg2 : i32, i32
  }
  func.func @transform_3(%arg0: i32, %arg1: i32, %arg2: i32) -> (i32, i32) {
    %c0_i32 = arith.constant 0 : i32
    %c0_i32_0 = arith.constant 0 : i32
    return %c0_i32, %arg2 : i32, i32
  }
  func.func @transform_4(%arg0: i32, %arg1: i32, %arg2: i32) -> (i32, i32, i32) {
    %c0_i32 = arith.constant 0 : i32
    return %arg0, %arg1, %arg2 : i32, i32, i32
  }
}

module attributes {stable_mosaic.version = 11 : i64} {
  func.func @_conv_kernel(%arg0: i32, %arg1: i32, %arg2: i32, %arg3: memref<1x1x39x128xbf16, #tpu.memory_space<vmem>>, %arg4: memref<2048x128xbf16, #tpu.memory_space<vmem>>, %arg5: memref<1x128xf32, #tpu.memory_space<vmem>>, %arg6: memref<1x128xf32, #tpu.memory_space<vmem>>, %arg7: memref<1x18x128xbf16, #tpu.memory_space<vmem>>, %arg8: memref<18x128xf32, #tpu.memory_space<vmem>>) attributes {dimension_semantics = [#tpu.dimension_semantics<parallel>, #tpu.dimension_semantics<parallel>, #tpu.dimension_semantics<arbitrary>], iteration_bounds = array<i64: 2, 1, 1>, scalar_prefetch = 0 : i64, scratch_operands = 1 : i64, tpu.core_type = #tpu.core_type<tc>, window_params = [{transform_indices = @transform_0, window_bounds = array<i64: 1, 1, 39, 128>}, {transform_indices = @transform_1, window_bounds = array<i64: 2048, 128>}, {transform_indices = @transform_2, window_bounds = array<i64: 1, 128>}, {transform_indices = @transform_3, window_bounds = array<i64: 1, 128>}, {transform_indices = @transform_4, window_bounds = array<i64: 1, 18, 128>}]} {
    %c0 = arith.constant 0 : index
    %c0_0 = arith.constant 0 : index
    %c0_1 = arith.constant 0 : index
    %c0_2 = arith.constant 0 : index
    %0 = vector.load %arg3[%c0, %c0_0, %c0_1, %c0_2] : memref<1x1x39x128xbf16, #tpu.memory_space<vmem>>, vector<1x1x18x128xbf16>
    %1 = vector.shape_cast %0 : vector<1x1x18x128xbf16> to vector<18x128xbf16>
    %c0_3 = arith.constant 0 : index
    %c0_4 = arith.constant 0 : index
    %2 = vector.load %arg4[%c0_3, %c0_4] : memref<2048x128xbf16, #tpu.memory_space<vmem>>, vector<128x128xbf16>
    %cst = arith.constant dense<0.000000e+00> : vector<18x128xf32>
    %3 = tpu.matmul %1, %2, %cst {dimension_numbers = #tpu.dot_dimension_numbers<[1], [0], [0], [1], [0, 0, 1, 1], [], []>} : vector<18x128xbf16>, vector<128x128xbf16>, vector<18x128xf32> -> vector<18x128xf32>
    %c0_5 = arith.constant 0 : index
    %c0_6 = arith.constant 0 : index
    %4 = vector.load %arg8[%c0_5, %c0_6] : memref<18x128xf32, #tpu.memory_space<vmem>>, vector<18x128xf32>
    tpu.vector_store %arg8[%c0_5, %c0_6], %3 {strides = array<i32>} : memref<18x128xf32, #tpu.memory_space<vmem>>, vector<18x128xf32>,
    %c0_7 = arith.constant 0 : index
    %c0_8 = arith.constant 0 : index
    %5 = vector.load %arg8[%c0_7, %c0_8] : memref<18x128xf32, #tpu.memory_space<vmem>>, vector<18x128xf32>
    %c0_9 = arith.constant 0 : index
    %c0_10 = arith.constant 0 : index
    %c1 = arith.constant 1 : index
    %c0_11 = arith.constant 0 : index
    %6 = vector.load %arg3[%c0_9, %c0_10, %c1, %c0_11] : memref<1x1x39x128xbf16, #tpu.memory_space<vmem>>, vector<1x1x18x128xbf16>
    %7 = vector.shape_cast %6 : vector<1x1x18x128xbf16> to vector<18x128xbf16>
    %c128 = arith.constant 128 : index
    %c0_12 = arith.constant 0 : index
    %8 = vector.load %arg4[%c128, %c0_12] : memref<2048x128xbf16, #tpu.memory_space<vmem>>, vector<128x128xbf16>
    %cst_13 = arith.constant dense<0.000000e+00> : vector<18x128xf32>
    %9 = tpu.matmul %7, %8, %cst_13 {dimension_numbers = #tpu.dot_dimension_numbers<[1], [0], [0], [1], [0, 0, 1, 1], [], []>} : vector<18x128xbf16>, vector<128x128xbf16>, vector<18x128xf32> -> vector<18x128xf32>
    %10 = arith.addf %5, %9 : vector<18x128xf32>
    %c0_14 = arith.constant 0 : index
    %c0_15 = arith.constant 0 : index
    %11 = vector.load %arg8[%c0_14, %c0_15] : memref<18x128xf32, #tpu.memory_space<vmem>>, vector<18x128xf32>
    tpu.vector_store %arg8[%c0_14, %c0_15], %10 {strides = array<i32>} : memref<18x128xf32, #tpu.memory_space<vmem>>, vector<18x128xf32>,
    %c0_16 = arith.constant 0 : index
    %c0_17 = arith.constant 0 : index
    %12 = vector.load %arg8[%c0_16, %c0_17] : memref<18x128xf32, #tpu.memory_space<vmem>>, vector<18x128xf32>
    %c0_18 = arith.constant 0 : index
    %c0_19 = arith.constant 0 : index
    %c2 = arith.constant 2 : index
    %c0_20 = arith.constant 0 : index
    %13 = vector.load %arg3[%c0_18, %c0_19, %c2, %c0_20] : memref<1x1x39x128xbf16, #tpu.memory_space<vmem>>, vector<1x1x18x128xbf16>
    %14 = vector.shape_cast %13 : vector<1x1x18x128xbf16> to vector<18x128xbf16>
    %c256 = arith.constant 256 : index
    %c0_21 = arith.constant 0 : index
    %15 = vector.load %arg4[%c256, %c0_21] : memref<2048x128xbf16, #tpu.memory_space<vmem>>, vector<128x128xbf16>
    %cst_22 = arith.constant dense<0.000000e+00> : vector<18x128xf32>
    %16 = tpu.matmul %14, %15, %cst_22 {dimension_numbers = #tpu.dot_dimension_numbers<[1], [0], [0], [1], [0, 0, 1, 1], [], []>} : vector<18x128xbf16>, vector<128x128xbf16>, vector<18x128xf32> -> vector<18x128xf32>
    %17 = arith.addf %12, %16 : vector<18x128xf32>
    %c0_23 = arith.constant 0 : index
    %c0_24 = arith.constant 0 : index
    %18 = vector.load %arg8[%c0_23, %c0_24] : memref<18x128xf32, #tpu.memory_space<vmem>>, vector<18x128xf32>
    tpu.vector_store %arg8[%c0_23, %c0_24], %17 {strides = array<i32>} : memref<18x128xf32, #tpu.memory_space<vmem>>, vector<18x128xf32>,
    %c0_25 = arith.constant 0 : index
    %c0_26 = arith.constant 0 : index
    %19 = vector.load %arg8[%c0_25, %c0_26] : memref<18x128xf32, #tpu.memory_space<vmem>>, vector<18x128xf32>
    %c0_27 = arith.constant 0 : index
    %c0_28 = arith.constant 0 : index
    %c3 = arith.constant 3 : index
    %c0_29 = arith.constant 0 : index
    %20 = vector.load %arg3[%c0_27, %c0_28, %c3, %c0_29] : memref<1x1x39x128xbf16, #tpu.memory_space<vmem>>, vector<1x1x18x128xbf16>
    %21 = vector.shape_cast %20 : vector<1x1x18x128xbf16> to vector<18x128xbf16>
    %c384 = arith.constant 384 : index
    %c0_30 = arith.constant 0 : index
    %22 = vector.load %arg4[%c384, %c0_30] : memref<2048x128xbf16, #tpu.memory_space<vmem>>, vector<128x128xbf16>
    %cst_31 = arith.constant dense<0.000000e+00> : vector<18x128xf32>
    %23 = tpu.matmul %21, %22, %cst_31 {dimension_numbers = #tpu.dot_dimension_numbers<[1], [0], [0], [1], [0, 0, 1, 1], [], []>} : vector<18x128xbf16>, vector<128x128xbf16>, vector<18x128xf32> -> vector<18x128xf32>
    %24 = arith.addf %19, %23 : vector<18x128xf32>
    %c0_32 = arith.constant 0 : index
    %c0_33 = arith.constant 0 : index
    %25 = vector.load %arg8[%c0_32, %c0_33] : memref<18x128xf32, #tpu.memory_space<vmem>>, vector<18x128xf32>
    tpu.vector_store %arg8[%c0_32, %c0_33], %24 {strides = array<i32>} : memref<18x128xf32, #tpu.memory_space<vmem>>, vector<18x128xf32>,
    %c0_34 = arith.constant 0 : index
    %c0_35 = arith.constant 0 : index
    %26 = vector.load %arg8[%c0_34, %c0_35] : memref<18x128xf32, #tpu.memory_space<vmem>>, vector<18x128xf32>
    %c0_36 = arith.constant 0 : index
    %c0_37 = arith.constant 0 : index
    %c6 = arith.constant 6 : index
    %c0_38 = arith.constant 0 : index
    %27 = vector.load %arg3[%c0_36, %c0_37, %c6, %c0_38] : memref<1x1x39x128xbf16, #tpu.memory_space<vmem>>, vector<1x1x18x128xbf16>
    %28 = vector.shape_cast %27 : vector<1x1x18x128xbf16> to vector<18x128xbf16>
    %c512 = arith.constant 512 : index
    %c0_39 = arith.constant 0 : index
    %29 = vector.load %arg4[%c512, %c0_39] : memref<2048x128xbf16, #tpu.memory_space<vmem>>, vector<128x128xbf16>
    %cst_40 = arith.constant dense<0.000000e+00> : vector<18x128xf32>
    %30 = tpu.matmul %28, %29, %cst_40 {dimension_numbers = #tpu.dot_dimension_numbers<[1], [0], [0], [1], [0, 0, 1, 1], [], []>} : vector<18x128xbf16>, vector<128x128xbf16>, vector<18x128xf32> -> vector<18x128xf32>
    %31 = arith.addf %26, %30 : vector<18x128xf32>
    %c0_41 = arith.constant 0 : index
    %c0_42 = arith.constant 0 : index
    %32 = vector.load %arg8[%c0_41, %c0_42] : memref<18x128xf32, #tpu.memory_space<vmem>>, vector<18x128xf32>
    tpu.vector_store %arg8[%c0_41, %c0_42], %31 {strides = array<i32>} : memref<18x128xf32, #tpu.memory_space<vmem>>, vector<18x128xf32>,
    %c0_43 = arith.constant 0 : index
    %c0_44 = arith.constant 0 : index
    %33 = vector.load %arg8[%c0_43, %c0_44] : memref<18x128xf32, #tpu.memory_space<vmem>>, vector<18x128xf32>
    %c0_45 = arith.constant 0 : index
    %c0_46 = arith.constant 0 : index
    %c7 = arith.constant 7 : index
    %c0_47 = arith.constant 0 : index
    %34 = vector.load %arg3[%c0_45, %c0_46, %c7, %c0_47] : memref<1x1x39x128xbf16, #tpu.memory_space<vmem>>, vector<1x1x18x128xbf16>
    %35 = vector.shape_cast %34 : vector<1x1x18x128xbf16> to vector<18x128xbf16>
    %c640 = arith.constant 640 : index
    %c0_48 = arith.constant 0 : index
    %36 = vector.load %arg4[%c640, %c0_48] : memref<2048x128xbf16, #tpu.memory_space<vmem>>, vector<128x128xbf16>
    %cst_49 = arith.constant dense<0.000000e+00> : vector<18x128xf32>
    %37 = tpu.matmul %35, %36, %cst_49 {dimension_numbers = #tpu.dot_dimension_numbers<[1], [0], [0], [1], [0, 0, 1, 1], [], []>} : vector<18x128xbf16>, vector<128x128xbf16>, vector<18x128xf32> -> vector<18x128xf32>
    %38 = arith.addf %33, %37 : vector<18x128xf32>
    %c0_50 = arith.constant 0 : index
    %c0_51 = arith.constant 0 : index
    %39 = vector.load %arg8[%c0_50, %c0_51] : memref<18x128xf32, #tpu.memory_space<vmem>>, vector<18x128xf32>
    tpu.vector_store %arg8[%c0_50, %c0_51], %38 {strides = array<i32>} : memref<18x128xf32, #tpu.memory_space<vmem>>, vector<18x128xf32>,
    %c0_52 = arith.constant 0 : index
    %c0_53 = arith.constant 0 : index
    %40 = vector.load %arg8[%c0_52, %c0_53] : memref<18x128xf32, #tpu.memory_space<vmem>>, vector<18x128xf32>
    %c0_54 = arith.constant 0 : index
    %c0_55 = arith.constant 0 : index
    %c8 = arith.constant 8 : index
    %c0_56 = arith.constant 0 : index
    %41 = vector.load %arg3[%c0_54, %c0_55, %c8, %c0_56] : memref<1x1x39x128xbf16, #tpu.memory_space<vmem>>, vector<1x1x18x128xbf16>
    %42 = vector.shape_cast %41 : vector<1x1x18x128xbf16> to vector<18x128xbf16>
    %c768 = arith.constant 768 : index
    %c0_57 = arith.constant 0 : index
    %43 = vector.load %arg4[%c768, %c0_57] : memref<2048x128xbf16, #tpu.memory_space<vmem>>, vector<128x128xbf16>
    %cst_58 = arith.constant dense<0.000000e+00> : vector<18x128xf32>
    %44 = tpu.matmul %42, %43, %cst_58 {dimension_numbers = #tpu.dot_dimension_numbers<[1], [0], [0], [1], [0, 0, 1, 1], [], []>} : vector<18x128xbf16>, vector<128x128xbf16>, vector<18x128xf32> -> vector<18x128xf32>
    %45 = arith.addf %40, %44 : vector<18x128xf32>
    %c0_59 = arith.constant 0 : index
    %c0_60 = arith.constant 0 : index
    %46 = vector.load %arg8[%c0_59, %c0_60] : memref<18x128xf32, #tpu.memory_space<vmem>>, vector<18x128xf32>
    tpu.vector_store %arg8[%c0_59, %c0_60], %45 {strides = array<i32>} : memref<18x128xf32, #tpu.memory_space<vmem>>, vector<18x128xf32>,
    %c0_61 = arith.constant 0 : index
    %c0_62 = arith.constant 0 : index
    %47 = vector.load %arg8[%c0_61, %c0_62] : memref<18x128xf32, #tpu.memory_space<vmem>>, vector<18x128xf32>
    %c0_63 = arith.constant 0 : index
    %c0_64 = arith.constant 0 : index
    %c9 = arith.constant 9 : index
    %c0_65 = arith.constant 0 : index
    %48 = vector.load %arg3[%c0_63, %c0_64, %c9, %c0_65] : memref<1x1x39x128xbf16, #tpu.memory_space<vmem>>, vector<1x1x18x128xbf16>
    %49 = vector.shape_cast %48 : vector<1x1x18x128xbf16> to vector<18x128xbf16>
    %c896 = arith.constant 896 : index
    %c0_66 = arith.constant 0 : index
    %50 = vector.load %arg4[%c896, %c0_66] : memref<2048x128xbf16, #tpu.memory_space<vmem>>, vector<128x128xbf16>
    %cst_67 = arith.constant dense<0.000000e+00> : vector<18x128xf32>
    %51 = tpu.matmul %49, %50, %cst_67 {dimension_numbers = #tpu.dot_dimension_numbers<[1], [0], [0], [1], [0, 0, 1, 1], [], []>} : vector<18x128xbf16>, vector<128x128xbf16>, vector<18x128xf32> -> vector<18x128xf32>
    %52 = arith.addf %47, %51 : vector<18x128xf32>
    %c0_68 = arith.constant 0 : index
    %c0_69 = arith.constant 0 : index
    %53 = vector.load %arg8[%c0_68, %c0_69] : memref<18x128xf32, #tpu.memory_space<vmem>>, vector<18x128xf32>
    tpu.vector_store %arg8[%c0_68, %c0_69], %52 {strides = array<i32>} : memref<18x128xf32, #tpu.memory_space<vmem>>, vector<18x128xf32>,
    %c0_70 = arith.constant 0 : index
    %c0_71 = arith.constant 0 : index
    %54 = vector.load %arg8[%c0_70, %c0_71] : memref<18x128xf32, #tpu.memory_space<vmem>>, vector<18x128xf32>
    %c0_72 = arith.constant 0 : index
    %c0_73 = arith.constant 0 : index
    %c12 = arith.constant 12 : index
    %c0_74 = arith.constant 0 : index
    %55 = vector.load %arg3[%c0_72, %c0_73, %c12, %c0_74] : memref<1x1x39x128xbf16, #tpu.memory_space<vmem>>, vector<1x1x18x128xbf16>
    %56 = vector.shape_cast %55 : vector<1x1x18x128xbf16> to vector<18x128xbf16>
    %c1024 = arith.constant 1024 : index
    %c0_75 = arith.constant 0 : index
    %57 = vector.load %arg4[%c1024, %c0_75] : memref<2048x128xbf16, #tpu.memory_space<vmem>>, vector<128x128xbf16>
    %cst_76 = arith.constant dense<0.000000e+00> : vector<18x128xf32>
    %58 = tpu.matmul %56, %57, %cst_76 {dimension_numbers = #tpu.dot_dimension_numbers<[1], [0], [0], [1], [0, 0, 1, 1], [], []>} : vector<18x128xbf16>, vector<128x128xbf16>, vector<18x128xf32> -> vector<18x128xf32>
    %59 = arith.addf %54, %58 : vector<18x128xf32>
    %c0_77 = arith.constant 0 : index
    %c0_78 = arith.constant 0 : index
    %60 = vector.load %arg8[%c0_77, %c0_78] : memref<18x128xf32, #tpu.memory_space<vmem>>, vector<18x128xf32>
    tpu.vector_store %arg8[%c0_77, %c0_78], %59 {strides = array<i32>} : memref<18x128xf32, #tpu.memory_space<vmem>>, vector<18x128xf32>,
    %c0_79 = arith.constant 0 : index
    %c0_80 = arith.constant 0 : index
    %61 = vector.load %arg8[%c0_79, %c0_80] : memref<18x128xf32, #tpu.memory_space<vmem>>, vector<18x128xf32>
    %c0_81 = arith.constant 0 : index
    %c0_82 = arith.constant 0 : index
    %c13 = arith.constant 13 : index
    %c0_83 = arith.constant 0 : index
    %62 = vector.load %arg3[%c0_81, %c0_82, %c13, %c0_83] : memref<1x1x39x128xbf16, #tpu.memory_space<vmem>>, vector<1x1x18x128xbf16>
    %63 = vector.shape_cast %62 : vector<1x1x18x128xbf16> to vector<18x128xbf16>
    %c1152 = arith.constant 1152 : index
    %c0_84 = arith.constant 0 : index
    %64 = vector.load %arg4[%c1152, %c0_84] : memref<2048x128xbf16, #tpu.memory_space<vmem>>, vector<128x128xbf16>
    %cst_85 = arith.constant dense<0.000000e+00> : vector<18x128xf32>
    %65 = tpu.matmul %63, %64, %cst_85 {dimension_numbers = #tpu.dot_dimension_numbers<[1], [0], [0], [1], [0, 0, 1, 1], [], []>} : vector<18x128xbf16>, vector<128x128xbf16>, vector<18x128xf32> -> vector<18x128xf32>
    %66 = arith.addf %61, %65 : vector<18x128xf32>
    %c0_86 = arith.constant 0 : index
    %c0_87 = arith.constant 0 : index
    %67 = vector.load %arg8[%c0_86, %c0_87] : memref<18x128xf32, #tpu.memory_space<vmem>>, vector<18x128xf32>
    tpu.vector_store %arg8[%c0_86, %c0_87], %66 {strides = array<i32>} : memref<18x128xf32, #tpu.memory_space<vmem>>, vector<18x128xf32>,
    %c0_88 = arith.constant 0 : index
    %c0_89 = arith.constant 0 : index
    %68 = vector.load %arg8[%c0_88, %c0_89] : memref<18x128xf32, #tpu.memory_space<vmem>>, vector<18x128xf32>
    %c0_90 = arith.constant 0 : index
    %c0_91 = arith.constant 0 : index
    %c14 = arith.constant 14 : index
    %c0_92 = arith.constant 0 : index
    %69 = vector.load %arg3[%c0_90, %c0_91, %c14, %c0_92] : memref<1x1x39x128xbf16, #tpu.memory_space<vmem>>, vector<1x1x18x128xbf16>
    %70 = vector.shape_cast %69 : vector<1x1x18x128xbf16> to vector<18x128xbf16>
    %c1280 = arith.constant 1280 : index
    %c0_93 = arith.constant 0 : index
    %71 = vector.load %arg4[%c1280, %c0_93] : memref<2048x128xbf16, #tpu.memory_space<vmem>>, vector<128x128xbf16>
    %cst_94 = arith.constant dense<0.000000e+00> : vector<18x128xf32>
    %72 = tpu.matmul %70, %71, %cst_94 {dimension_numbers = #tpu.dot_dimension_numbers<[1], [0], [0], [1], [0, 0, 1, 1], [], []>} : vector<18x128xbf16>, vector<128x128xbf16>, vector<18x128xf32> -> vector<18x128xf32>
    %73 = arith.addf %68, %72 : vector<18x128xf32>
    %c0_95 = arith.constant 0 : index
    %c0_96 = arith.constant 0 : index
    %74 = vector.load %arg8[%c0_95, %c0_96] : memref<18x128xf32, #tpu.memory_space<vmem>>, vector<18x128xf32>
    tpu.vector_store %arg8[%c0_95, %c0_96], %73 {strides = array<i32>} : memref<18x128xf32, #tpu.memory_space<vmem>>, vector<18x128xf32>,
    %c0_97 = arith.constant 0 : index
    %c0_98 = arith.constant 0 : index
    %75 = vector.load %arg8[%c0_97, %c0_98] : memref<18x128xf32, #tpu.memory_space<vmem>>, vector<18x128xf32>
    %c0_99 = arith.constant 0 : index
    %c0_100 = arith.constant 0 : index
    %c15 = arith.constant 15 : index
    %c0_101 = arith.constant 0 : index
    %76 = vector.load %arg3[%c0_99, %c0_100, %c15, %c0_101] : memref<1x1x39x128xbf16, #tpu.memory_space<vmem>>, vector<1x1x18x128xbf16>
    %77 = vector.shape_cast %76 : vector<1x1x18x128xbf16> to vector<18x128xbf16>
    %c1408 = arith.constant 1408 : index
    %c0_102 = arith.constant 0 : index
    %78 = vector.load %arg4[%c1408, %c0_102] : memref<2048x128xbf16, #tpu.memory_space<vmem>>, vector<128x128xbf16>
    %cst_103 = arith.constant dense<0.000000e+00> : vector<18x128xf32>
    %79 = tpu.matmul %77, %78, %cst_103 {dimension_numbers = #tpu.dot_dimension_numbers<[1], [0], [0], [1], [0, 0, 1, 1], [], []>} : vector<18x128xbf16>, vector<128x128xbf16>, vector<18x128xf32> -> vector<18x128xf32>
    %80 = arith.addf %75, %79 : vector<18x128xf32>
    %c0_104 = arith.constant 0 : index
    %c0_105 = arith.constant 0 : index
    %81 = vector.load %arg8[%c0_104, %c0_105] : memref<18x128xf32, #tpu.memory_space<vmem>>, vector<18x128xf32>
    tpu.vector_store %arg8[%c0_104, %c0_105], %80 {strides = array<i32>} : memref<18x128xf32, #tpu.memory_space<vmem>>, vector<18x128xf32>,
    %c0_106 = arith.constant 0 : index
    %c0_107 = arith.constant 0 : index
    %82 = vector.load %arg8[%c0_106, %c0_107] : memref<18x128xf32, #tpu.memory_space<vmem>>, vector<18x128xf32>
    %c0_108 = arith.constant 0 : index
    %c0_109 = arith.constant 0 : index
    %c18 = arith.constant 18 : index
    %c0_110 = arith.constant 0 : index
    %83 = vector.load %arg3[%c0_108, %c0_109, %c18, %c0_110] : memref<1x1x39x128xbf16, #tpu.memory_space<vmem>>, vector<1x1x18x128xbf16>
    %84 = vector.shape_cast %83 : vector<1x1x18x128xbf16> to vector<18x128xbf16>
    %c1536 = arith.constant 1536 : index
    %c0_111 = arith.constant 0 : index
    %85 = vector.load %arg4[%c1536, %c0_111] : memref<2048x128xbf16, #tpu.memory_space<vmem>>, vector<128x128xbf16>
    %cst_112 = arith.constant dense<0.000000e+00> : vector<18x128xf32>
    %86 = tpu.matmul %84, %85, %cst_112 {dimension_numbers = #tpu.dot_dimension_numbers<[1], [0], [0], [1], [0, 0, 1, 1], [], []>} : vector<18x128xbf16>, vector<128x128xbf16>, vector<18x128xf32> -> vector<18x128xf32>
    %87 = arith.addf %82, %86 : vector<18x128xf32>
    %c0_113 = arith.constant 0 : index
    %c0_114 = arith.constant 0 : index
    %88 = vector.load %arg8[%c0_113, %c0_114] : memref<18x128xf32, #tpu.memory_space<vmem>>, vector<18x128xf32>
    tpu.vector_store %arg8[%c0_113, %c0_114], %87 {strides = array<i32>} : memref<18x128xf32, #tpu.memory_space<vmem>>, vector<18x128xf32>,
    %c0_115 = arith.constant 0 : index
    %c0_116 = arith.constant 0 : index
    %89 = vector.load %arg8[%c0_115, %c0_116] : memref<18x128xf32, #tpu.memory_space<vmem>>, vector<18x128xf32>
    %c0_117 = arith.constant 0 : index
    %c0_118 = arith.constant 0 : index
    %c19 = arith.constant 19 : index
    %c0_119 = arith.constant 0 : index
    %90 = vector.load %arg3[%c0_117, %c0_118, %c19, %c0_119] : memref<1x1x39x128xbf16, #tpu.memory_space<vmem>>, vector<1x1x18x128xbf16>
    %91 = vector.shape_cast %90 : vector<1x1x18x128xbf16> to vector<18x128xbf16>
    %c1664 = arith.constant 1664 : index
    %c0_120 = arith.constant 0 : index
    %92 = vector.load %arg4[%c1664, %c0_120] : memref<2048x128xbf16, #tpu.memory_space<vmem>>, vector<128x128xbf16>
    %cst_121 = arith.constant dense<0.000000e+00> : vector<18x128xf32>
    %93 = tpu.matmul %91, %92, %cst_121 {dimension_numbers = #tpu.dot_dimension_numbers<[1], [0], [0], [1], [0, 0, 1, 1], [], []>} : vector<18x128xbf16>, vector<128x128xbf16>, vector<18x128xf32> -> vector<18x128xf32>
    %94 = arith.addf %89, %93 : vector<18x128xf32>
    %c0_122 = arith.constant 0 : index
    %c0_123 = arith.constant 0 : index
    %95 = vector.load %arg8[%c0_122, %c0_123] : memref<18x128xf32, #tpu.memory_space<vmem>>, vector<18x128xf32>
    tpu.vector_store %arg8[%c0_122, %c0_123], %94 {strides = array<i32>} : memref<18x128xf32, #tpu.memory_space<vmem>>, vector<18x128xf32>,
    %c0_124 = arith.constant 0 : index
    %c0_125 = arith.constant 0 : index
    %96 = vector.load %arg8[%c0_124, %c0_125] : memref<18x128xf32, #tpu.memory_space<vmem>>, vector<18x128xf32>
    %c0_126 = arith.constant 0 : index
    %c0_127 = arith.constant 0 : index
    %c20 = arith.constant 20 : index
    %c0_128 = arith.constant 0 : index
    %97 = vector.load %arg3[%c0_126, %c0_127, %c20, %c0_128] : memref<1x1x39x128xbf16, #tpu.memory_space<vmem>>, vector<1x1x18x128xbf16>
    %98 = vector.shape_cast %97 : vector<1x1x18x128xbf16> to vector<18x128xbf16>
    %c1792 = arith.constant 1792 : index
    %c0_129 = arith.constant 0 : index
    %99 = vector.load %arg4[%c1792, %c0_129] : memref<2048x128xbf16, #tpu.memory_space<vmem>>, vector<128x128xbf16>
    %cst_130 = arith.constant dense<0.000000e+00> : vector<18x128xf32>
    %100 = tpu.matmul %98, %99, %cst_130 {dimension_numbers = #tpu.dot_dimension_numbers<[1], [0], [0], [1], [0, 0, 1, 1], [], []>} : vector<18x128xbf16>, vector<128x128xbf16>, vector<18x128xf32> -> vector<18x128xf32>
    %101 = arith.addf %96, %100 : vector<18x128xf32>
    %c0_131 = arith.constant 0 : index
    %c0_132 = arith.constant 0 : index
    %102 = vector.load %arg8[%c0_131, %c0_132] : memref<18x128xf32, #tpu.memory_space<vmem>>, vector<18x128xf32>
    tpu.vector_store %arg8[%c0_131, %c0_132], %101 {strides = array<i32>} : memref<18x128xf32, #tpu.memory_space<vmem>>, vector<18x128xf32>,
    %c0_133 = arith.constant 0 : index
    %c0_134 = arith.constant 0 : index
    %103 = vector.load %arg8[%c0_133, %c0_134] : memref<18x128xf32, #tpu.memory_space<vmem>>, vector<18x128xf32>
    %c0_135 = arith.constant 0 : index
    %c0_136 = arith.constant 0 : index
    %c21 = arith.constant 21 : index
    %c0_137 = arith.constant 0 : index
    %104 = vector.load %arg3[%c0_135, %c0_136, %c21, %c0_137] : memref<1x1x39x128xbf16, #tpu.memory_space<vmem>>, vector<1x1x18x128xbf16>
    %105 = vector.shape_cast %104 : vector<1x1x18x128xbf16> to vector<18x128xbf16>
    %c1920 = arith.constant 1920 : index
    %c0_138 = arith.constant 0 : index
    %106 = vector.load %arg4[%c1920, %c0_138] : memref<2048x128xbf16, #tpu.memory_space<vmem>>, vector<128x128xbf16>
    %cst_139 = arith.constant dense<0.000000e+00> : vector<18x128xf32>
    %107 = tpu.matmul %105, %106, %cst_139 {dimension_numbers = #tpu.dot_dimension_numbers<[1], [0], [0], [1], [0, 0, 1, 1], [], []>} : vector<18x128xbf16>, vector<128x128xbf16>, vector<18x128xf32> -> vector<18x128xf32>
    %108 = arith.addf %103, %107 : vector<18x128xf32>
    %c0_140 = arith.constant 0 : index
    %c0_141 = arith.constant 0 : index
    %109 = vector.load %arg8[%c0_140, %c0_141] : memref<18x128xf32, #tpu.memory_space<vmem>>, vector<18x128xf32>
    tpu.vector_store %arg8[%c0_140, %c0_141], %108 {strides = array<i32>} : memref<18x128xf32, #tpu.memory_space<vmem>>, vector<18x128xf32>,
    %c0_142 = arith.constant 0 : index
    %c0_143 = arith.constant 0 : index
    %110 = vector.load %arg8[%c0_142, %c0_143] : memref<18x128xf32, #tpu.memory_space<vmem>>, vector<18x128xf32>
    %c0_144 = arith.constant 0 : index
    %c0_145 = arith.constant 0 : index
    %111 = vector.load %arg5[%c0_144, %c0_145] : memref<1x128xf32, #tpu.memory_space<vmem>>, vector<1x128xf32>
    %112 = vector.broadcast %111 : vector<1x128xf32> to vector<18x128xf32>
    %113 = arith.mulf %110, %112 : vector<18x128xf32>
    %c0_146 = arith.constant 0 : index
    %c0_147 = arith.constant 0 : index
    %114 = vector.load %arg6[%c0_146, %c0_147] : memref<1x128xf32, #tpu.memory_space<vmem>>, vector<1x128xf32>
    %115 = vector.broadcast %114 : vector<1x128xf32> to vector<18x128xf32>
    %116 = arith.addf %113, %115 : vector<18x128xf32>
    %cst_148 = arith.constant 0.000000e+00 : f32
    %117 = vector.broadcast %cst_148 : f32 to vector<18x128xf32>
    %118 = arith.cmpf oge, %116, %117 : vector<18x128xf32>
    %cst_149 = arith.constant 2.000000e-01 : f32
    %119 = vector.broadcast %cst_149 : f32 to vector<18x128xf32>
    %120 = arith.mulf %119, %116 : vector<18x128xf32>
    %121 = arith.select %118, %116, %120 : vector<18x128xi1>, vector<18x128xf32>
    %122 = arith.truncf %121 : vector<18x128xf32> to vector<18x128xbf16>
    %c0_150 = arith.constant 0 : index
    %c0_151 = arith.constant 0 : index
    %c0_152 = arith.constant 0 : index
    %123 = vector.load %arg7[%c0_150, %c0_151, %c0_152] : memref<1x18x128xbf16, #tpu.memory_space<vmem>>, vector<1x18x128xbf16>
    %124 = vector.shape_cast %123 : vector<1x18x128xbf16> to vector<18x128xbf16>
    %125 = vector.shape_cast %122 : vector<18x128xbf16> to vector<1x18x128xbf16>
    tpu.vector_store %arg7[%c0_150, %c0_151, %c0_152], %125 {strides = array<i32>} : memref<1x18x128xbf16, #tpu.memory_space<vmem>>, vector<1x18x128xbf16>,
    return
  }
  func.func @transform_0(%arg0: i32, %arg1: i32, %arg2: i32) -> (i32, i32, i32, i32) {
    %c0_i32 = arith.constant 0 : i32
    %c0_i32_0 = arith.constant 0 : i32
    %c0_i32_1 = arith.constant 0 : i32
    return %arg0, %arg1, %c0_i32, %c0_i32_0 : i32, i32, i32, i32
  }
  func.func @transform_1(%arg0: i32, %arg1: i32, %arg2: i32) -> (i32, i32) {
    %c0_i32 = arith.constant 0 : i32
    %c0_i32_0 = arith.constant 0 : i32
    return %c0_i32, %arg2 : i32, i32
  }
  func.func @transform_2(%arg0: i32, %arg1: i32, %arg2: i32) -> (i32, i32) {
    %c0_i32 = arith.constant 0 : i32
    %c0_i32_0 = arith.constant 0 : i32
    return %c0_i32, %arg2 : i32, i32
  }
  func.func @transform_3(%arg0: i32, %arg1: i32, %arg2: i32) -> (i32, i32) {
    %c0_i32 = arith.constant 0 : i32
    %c0_i32_0 = arith.constant 0 : i32
    return %c0_i32, %arg2 : i32, i32
  }
  func.func @transform_4(%arg0: i32, %arg1: i32, %arg2: i32) -> (i32, i32, i32) {
    %c0_i32 = arith.constant 0 : i32
    return %arg0, %arg1, %arg2 : i32, i32, i32
  }
}

module attributes {stable_mosaic.version = 11 : i64} {
  func.func @_conv_kernel(%arg0: i32, %arg1: i32, %arg2: i32, %arg3: memref<1x1x28x128xbf16, #tpu.memory_space<vmem>>, %arg4: memref<2048x128xbf16, #tpu.memory_space<vmem>>, %arg5: memref<1x128xf32, #tpu.memory_space<vmem>>, %arg6: memref<1x128xf32, #tpu.memory_space<vmem>>, %arg7: memref<1x10x128xbf16, #tpu.memory_space<vmem>>, %arg8: memref<10x128xf32, #tpu.memory_space<vmem>>) attributes {dimension_semantics = [#tpu.dimension_semantics<parallel>, #tpu.dimension_semantics<parallel>, #tpu.dimension_semantics<arbitrary>], iteration_bounds = array<i64: 2, 1, 1>, scalar_prefetch = 0 : i64, scratch_operands = 1 : i64, tpu.core_type = #tpu.core_type<tc>, window_params = [{transform_indices = @transform_0, window_bounds = array<i64: 1, 1, 28, 128>}, {transform_indices = @transform_1, window_bounds = array<i64: 2048, 128>}, {transform_indices = @transform_2, window_bounds = array<i64: 1, 128>}, {transform_indices = @transform_3, window_bounds = array<i64: 1, 128>}, {transform_indices = @transform_4, window_bounds = array<i64: 1, 10, 128>}]} {
    %c0 = arith.constant 0 : index
    %c0_0 = arith.constant 0 : index
    %c0_1 = arith.constant 0 : index
    %c0_2 = arith.constant 0 : index
    %0 = vector.load %arg3[%c0, %c0_0, %c0_1, %c0_2] : memref<1x1x28x128xbf16, #tpu.memory_space<vmem>>, vector<1x1x10x128xbf16>
    %1 = vector.shape_cast %0 : vector<1x1x10x128xbf16> to vector<10x128xbf16>
    %c0_3 = arith.constant 0 : index
    %c0_4 = arith.constant 0 : index
    %2 = vector.load %arg4[%c0_3, %c0_4] : memref<2048x128xbf16, #tpu.memory_space<vmem>>, vector<128x128xbf16>
    %cst = arith.constant dense<0.000000e+00> : vector<10x128xf32>
    %3 = tpu.matmul %1, %2, %cst {dimension_numbers = #tpu.dot_dimension_numbers<[1], [0], [0], [1], [0, 0, 1, 1], [], []>} : vector<10x128xbf16>, vector<128x128xbf16>, vector<10x128xf32> -> vector<10x128xf32>
    %c0_5 = arith.constant 0 : index
    %c0_6 = arith.constant 0 : index
    %4 = vector.load %arg8[%c0_5, %c0_6] : memref<10x128xf32, #tpu.memory_space<vmem>>, vector<10x128xf32>
    tpu.vector_store %arg8[%c0_5, %c0_6], %3 {strides = array<i32>} : memref<10x128xf32, #tpu.memory_space<vmem>>, vector<10x128xf32>,
    %c0_7 = arith.constant 0 : index
    %c0_8 = arith.constant 0 : index
    %5 = vector.load %arg8[%c0_7, %c0_8] : memref<10x128xf32, #tpu.memory_space<vmem>>, vector<10x128xf32>
    %c0_9 = arith.constant 0 : index
    %c0_10 = arith.constant 0 : index
    %c1 = arith.constant 1 : index
    %c0_11 = arith.constant 0 : index
    %6 = vector.load %arg3[%c0_9, %c0_10, %c1, %c0_11] : memref<1x1x28x128xbf16, #tpu.memory_space<vmem>>, vector<1x1x10x128xbf16>
    %7 = vector.shape_cast %6 : vector<1x1x10x128xbf16> to vector<10x128xbf16>
    %c128 = arith.constant 128 : index
    %c0_12 = arith.constant 0 : index
    %8 = vector.load %arg4[%c128, %c0_12] : memref<2048x128xbf16, #tpu.memory_space<vmem>>, vector<128x128xbf16>
    %cst_13 = arith.constant dense<0.000000e+00> : vector<10x128xf32>
    %9 = tpu.matmul %7, %8, %cst_13 {dimension_numbers = #tpu.dot_dimension_numbers<[1], [0], [0], [1], [0, 0, 1, 1], [], []>} : vector<10x128xbf16>, vector<128x128xbf16>, vector<10x128xf32> -> vector<10x128xf32>
    %10 = arith.addf %5, %9 : vector<10x128xf32>
    %c0_14 = arith.constant 0 : index
    %c0_15 = arith.constant 0 : index
    %11 = vector.load %arg8[%c0_14, %c0_15] : memref<10x128xf32, #tpu.memory_space<vmem>>, vector<10x128xf32>
    tpu.vector_store %arg8[%c0_14, %c0_15], %10 {strides = array<i32>} : memref<10x128xf32, #tpu.memory_space<vmem>>, vector<10x128xf32>,
    %c0_16 = arith.constant 0 : index
    %c0_17 = arith.constant 0 : index
    %12 = vector.load %arg8[%c0_16, %c0_17] : memref<10x128xf32, #tpu.memory_space<vmem>>, vector<10x128xf32>
    %c0_18 = arith.constant 0 : index
    %c0_19 = arith.constant 0 : index
    %c2 = arith.constant 2 : index
    %c0_20 = arith.constant 0 : index
    %13 = vector.load %arg3[%c0_18, %c0_19, %c2, %c0_20] : memref<1x1x28x128xbf16, #tpu.memory_space<vmem>>, vector<1x1x10x128xbf16>
    %14 = vector.shape_cast %13 : vector<1x1x10x128xbf16> to vector<10x128xbf16>
    %c256 = arith.constant 256 : index
    %c0_21 = arith.constant 0 : index
    %15 = vector.load %arg4[%c256, %c0_21] : memref<2048x128xbf16, #tpu.memory_space<vmem>>, vector<128x128xbf16>
    %cst_22 = arith.constant dense<0.000000e+00> : vector<10x128xf32>
    %16 = tpu.matmul %14, %15, %cst_22 {dimension_numbers = #tpu.dot_dimension_numbers<[1], [0], [0], [1], [0, 0, 1, 1], [], []>} : vector<10x128xbf16>, vector<128x128xbf16>, vector<10x128xf32> -> vector<10x128xf32>
    %17 = arith.addf %12, %16 : vector<10x128xf32>
    %c0_23 = arith.constant 0 : index
    %c0_24 = arith.constant 0 : index
    %18 = vector.load %arg8[%c0_23, %c0_24] : memref<10x128xf32, #tpu.memory_space<vmem>>, vector<10x128xf32>
    tpu.vector_store %arg8[%c0_23, %c0_24], %17 {strides = array<i32>} : memref<10x128xf32, #tpu.memory_space<vmem>>, vector<10x128xf32>,
    %c0_25 = arith.constant 0 : index
    %c0_26 = arith.constant 0 : index
    %19 = vector.load %arg8[%c0_25, %c0_26] : memref<10x128xf32, #tpu.memory_space<vmem>>, vector<10x128xf32>
    %c0_27 = arith.constant 0 : index
    %c0_28 = arith.constant 0 : index
    %c3 = arith.constant 3 : index
    %c0_29 = arith.constant 0 : index
    %20 = vector.load %arg3[%c0_27, %c0_28, %c3, %c0_29] : memref<1x1x28x128xbf16, #tpu.memory_space<vmem>>, vector<1x1x10x128xbf16>
    %21 = vector.shape_cast %20 : vector<1x1x10x128xbf16> to vector<10x128xbf16>
    %c384 = arith.constant 384 : index
    %c0_30 = arith.constant 0 : index
    %22 = vector.load %arg4[%c384, %c0_30] : memref<2048x128xbf16, #tpu.memory_space<vmem>>, vector<128x128xbf16>
    %cst_31 = arith.constant dense<0.000000e+00> : vector<10x128xf32>
    %23 = tpu.matmul %21, %22, %cst_31 {dimension_numbers = #tpu.dot_dimension_numbers<[1], [0], [0], [1], [0, 0, 1, 1], [], []>} : vector<10x128xbf16>, vector<128x128xbf16>, vector<10x128xf32> -> vector<10x128xf32>
    %24 = arith.addf %19, %23 : vector<10x128xf32>
    %c0_32 = arith.constant 0 : index
    %c0_33 = arith.constant 0 : index
    %25 = vector.load %arg8[%c0_32, %c0_33] : memref<10x128xf32, #tpu.memory_space<vmem>>, vector<10x128xf32>
    tpu.vector_store %arg8[%c0_32, %c0_33], %24 {strides = array<i32>} : memref<10x128xf32, #tpu.memory_space<vmem>>, vector<10x128xf32>,
    %c0_34 = arith.constant 0 : index
    %c0_35 = arith.constant 0 : index
    %26 = vector.load %arg8[%c0_34, %c0_35] : memref<10x128xf32, #tpu.memory_space<vmem>>, vector<10x128xf32>
    %c0_36 = arith.constant 0 : index
    %c0_37 = arith.constant 0 : index
    %c5 = arith.constant 5 : index
    %c0_38 = arith.constant 0 : index
    %27 = vector.load %arg3[%c0_36, %c0_37, %c5, %c0_38] : memref<1x1x28x128xbf16, #tpu.memory_space<vmem>>, vector<1x1x10x128xbf16>
    %28 = vector.shape_cast %27 : vector<1x1x10x128xbf16> to vector<10x128xbf16>
    %c512 = arith.constant 512 : index
    %c0_39 = arith.constant 0 : index
    %29 = vector.load %arg4[%c512, %c0_39] : memref<2048x128xbf16, #tpu.memory_space<vmem>>, vector<128x128xbf16>
    %cst_40 = arith.constant dense<0.000000e+00> : vector<10x128xf32>
    %30 = tpu.matmul %28, %29, %cst_40 {dimension_numbers = #tpu.dot_dimension_numbers<[1], [0], [0], [1], [0, 0, 1, 1], [], []>} : vector<10x128xbf16>, vector<128x128xbf16>, vector<10x128xf32> -> vector<10x128xf32>
    %31 = arith.addf %26, %30 : vector<10x128xf32>
    %c0_41 = arith.constant 0 : index
    %c0_42 = arith.constant 0 : index
    %32 = vector.load %arg8[%c0_41, %c0_42] : memref<10x128xf32, #tpu.memory_space<vmem>>, vector<10x128xf32>
    tpu.vector_store %arg8[%c0_41, %c0_42], %31 {strides = array<i32>} : memref<10x128xf32, #tpu.memory_space<vmem>>, vector<10x128xf32>,
    %c0_43 = arith.constant 0 : index
    %c0_44 = arith.constant 0 : index
    %33 = vector.load %arg8[%c0_43, %c0_44] : memref<10x128xf32, #tpu.memory_space<vmem>>, vector<10x128xf32>
    %c0_45 = arith.constant 0 : index
    %c0_46 = arith.constant 0 : index
    %c6 = arith.constant 6 : index
    %c0_47 = arith.constant 0 : index
    %34 = vector.load %arg3[%c0_45, %c0_46, %c6, %c0_47] : memref<1x1x28x128xbf16, #tpu.memory_space<vmem>>, vector<1x1x10x128xbf16>
    %35 = vector.shape_cast %34 : vector<1x1x10x128xbf16> to vector<10x128xbf16>
    %c640 = arith.constant 640 : index
    %c0_48 = arith.constant 0 : index
    %36 = vector.load %arg4[%c640, %c0_48] : memref<2048x128xbf16, #tpu.memory_space<vmem>>, vector<128x128xbf16>
    %cst_49 = arith.constant dense<0.000000e+00> : vector<10x128xf32>
    %37 = tpu.matmul %35, %36, %cst_49 {dimension_numbers = #tpu.dot_dimension_numbers<[1], [0], [0], [1], [0, 0, 1, 1], [], []>} : vector<10x128xbf16>, vector<128x128xbf16>, vector<10x128xf32> -> vector<10x128xf32>
    %38 = arith.addf %33, %37 : vector<10x128xf32>
    %c0_50 = arith.constant 0 : index
    %c0_51 = arith.constant 0 : index
    %39 = vector.load %arg8[%c0_50, %c0_51] : memref<10x128xf32, #tpu.memory_space<vmem>>, vector<10x128xf32>
    tpu.vector_store %arg8[%c0_50, %c0_51], %38 {strides = array<i32>} : memref<10x128xf32, #tpu.memory_space<vmem>>, vector<10x128xf32>,
    %c0_52 = arith.constant 0 : index
    %c0_53 = arith.constant 0 : index
    %40 = vector.load %arg8[%c0_52, %c0_53] : memref<10x128xf32, #tpu.memory_space<vmem>>, vector<10x128xf32>
    %c0_54 = arith.constant 0 : index
    %c0_55 = arith.constant 0 : index
    %c7 = arith.constant 7 : index
    %c0_56 = arith.constant 0 : index
    %41 = vector.load %arg3[%c0_54, %c0_55, %c7, %c0_56] : memref<1x1x28x128xbf16, #tpu.memory_space<vmem>>, vector<1x1x10x128xbf16>
    %42 = vector.shape_cast %41 : vector<1x1x10x128xbf16> to vector<10x128xbf16>
    %c768 = arith.constant 768 : index
    %c0_57 = arith.constant 0 : index
    %43 = vector.load %arg4[%c768, %c0_57] : memref<2048x128xbf16, #tpu.memory_space<vmem>>, vector<128x128xbf16>
    %cst_58 = arith.constant dense<0.000000e+00> : vector<10x128xf32>
    %44 = tpu.matmul %42, %43, %cst_58 {dimension_numbers = #tpu.dot_dimension_numbers<[1], [0], [0], [1], [0, 0, 1, 1], [], []>} : vector<10x128xbf16>, vector<128x128xbf16>, vector<10x128xf32> -> vector<10x128xf32>
    %45 = arith.addf %40, %44 : vector<10x128xf32>
    %c0_59 = arith.constant 0 : index
    %c0_60 = arith.constant 0 : index
    %46 = vector.load %arg8[%c0_59, %c0_60] : memref<10x128xf32, #tpu.memory_space<vmem>>, vector<10x128xf32>
    tpu.vector_store %arg8[%c0_59, %c0_60], %45 {strides = array<i32>} : memref<10x128xf32, #tpu.memory_space<vmem>>, vector<10x128xf32>,
    %c0_61 = arith.constant 0 : index
    %c0_62 = arith.constant 0 : index
    %47 = vector.load %arg8[%c0_61, %c0_62] : memref<10x128xf32, #tpu.memory_space<vmem>>, vector<10x128xf32>
    %c0_63 = arith.constant 0 : index
    %c0_64 = arith.constant 0 : index
    %c8 = arith.constant 8 : index
    %c0_65 = arith.constant 0 : index
    %48 = vector.load %arg3[%c0_63, %c0_64, %c8, %c0_65] : memref<1x1x28x128xbf16, #tpu.memory_space<vmem>>, vector<1x1x10x128xbf16>
    %49 = vector.shape_cast %48 : vector<1x1x10x128xbf16> to vector<10x128xbf16>
    %c896 = arith.constant 896 : index
    %c0_66 = arith.constant 0 : index
    %50 = vector.load %arg4[%c896, %c0_66] : memref<2048x128xbf16, #tpu.memory_space<vmem>>, vector<128x128xbf16>
    %cst_67 = arith.constant dense<0.000000e+00> : vector<10x128xf32>
    %51 = tpu.matmul %49, %50, %cst_67 {dimension_numbers = #tpu.dot_dimension_numbers<[1], [0], [0], [1], [0, 0, 1, 1], [], []>} : vector<10x128xbf16>, vector<128x128xbf16>, vector<10x128xf32> -> vector<10x128xf32>
    %52 = arith.addf %47, %51 : vector<10x128xf32>
    %c0_68 = arith.constant 0 : index
    %c0_69 = arith.constant 0 : index
    %53 = vector.load %arg8[%c0_68, %c0_69] : memref<10x128xf32, #tpu.memory_space<vmem>>, vector<10x128xf32>
    tpu.vector_store %arg8[%c0_68, %c0_69], %52 {strides = array<i32>} : memref<10x128xf32, #tpu.memory_space<vmem>>, vector<10x128xf32>,
    %c0_70 = arith.constant 0 : index
    %c0_71 = arith.constant 0 : index
    %54 = vector.load %arg8[%c0_70, %c0_71] : memref<10x128xf32, #tpu.memory_space<vmem>>, vector<10x128xf32>
    %c0_72 = arith.constant 0 : index
    %c0_73 = arith.constant 0 : index
    %c10 = arith.constant 10 : index
    %c0_74 = arith.constant 0 : index
    %55 = vector.load %arg3[%c0_72, %c0_73, %c10, %c0_74] : memref<1x1x28x128xbf16, #tpu.memory_space<vmem>>, vector<1x1x10x128xbf16>
    %56 = vector.shape_cast %55 : vector<1x1x10x128xbf16> to vector<10x128xbf16>
    %c1024 = arith.constant 1024 : index
    %c0_75 = arith.constant 0 : index
    %57 = vector.load %arg4[%c1024, %c0_75] : memref<2048x128xbf16, #tpu.memory_space<vmem>>, vector<128x128xbf16>
    %cst_76 = arith.constant dense<0.000000e+00> : vector<10x128xf32>
    %58 = tpu.matmul %56, %57, %cst_76 {dimension_numbers = #tpu.dot_dimension_numbers<[1], [0], [0], [1], [0, 0, 1, 1], [], []>} : vector<10x128xbf16>, vector<128x128xbf16>, vector<10x128xf32> -> vector<10x128xf32>
    %59 = arith.addf %54, %58 : vector<10x128xf32>
    %c0_77 = arith.constant 0 : index
    %c0_78 = arith.constant 0 : index
    %60 = vector.load %arg8[%c0_77, %c0_78] : memref<10x128xf32, #tpu.memory_space<vmem>>, vector<10x128xf32>
    tpu.vector_store %arg8[%c0_77, %c0_78], %59 {strides = array<i32>} : memref<10x128xf32, #tpu.memory_space<vmem>>, vector<10x128xf32>,
    %c0_79 = arith.constant 0 : index
    %c0_80 = arith.constant 0 : index
    %61 = vector.load %arg8[%c0_79, %c0_80] : memref<10x128xf32, #tpu.memory_space<vmem>>, vector<10x128xf32>
    %c0_81 = arith.constant 0 : index
    %c0_82 = arith.constant 0 : index
    %c11 = arith.constant 11 : index
    %c0_83 = arith.constant 0 : index
    %62 = vector.load %arg3[%c0_81, %c0_82, %c11, %c0_83] : memref<1x1x28x128xbf16, #tpu.memory_space<vmem>>, vector<1x1x10x128xbf16>
    %63 = vector.shape_cast %62 : vector<1x1x10x128xbf16> to vector<10x128xbf16>
    %c1152 = arith.constant 1152 : index
    %c0_84 = arith.constant 0 : index
    %64 = vector.load %arg4[%c1152, %c0_84] : memref<2048x128xbf16, #tpu.memory_space<vmem>>, vector<128x128xbf16>
    %cst_85 = arith.constant dense<0.000000e+00> : vector<10x128xf32>
    %65 = tpu.matmul %63, %64, %cst_85 {dimension_numbers = #tpu.dot_dimension_numbers<[1], [0], [0], [1], [0, 0, 1, 1], [], []>} : vector<10x128xbf16>, vector<128x128xbf16>, vector<10x128xf32> -> vector<10x128xf32>
    %66 = arith.addf %61, %65 : vector<10x128xf32>
    %c0_86 = arith.constant 0 : index
    %c0_87 = arith.constant 0 : index
    %67 = vector.load %arg8[%c0_86, %c0_87] : memref<10x128xf32, #tpu.memory_space<vmem>>, vector<10x128xf32>
    tpu.vector_store %arg8[%c0_86, %c0_87], %66 {strides = array<i32>} : memref<10x128xf32, #tpu.memory_space<vmem>>, vector<10x128xf32>,
    %c0_88 = arith.constant 0 : index
    %c0_89 = arith.constant 0 : index
    %68 = vector.load %arg8[%c0_88, %c0_89] : memref<10x128xf32, #tpu.memory_space<vmem>>, vector<10x128xf32>
    %c0_90 = arith.constant 0 : index
    %c0_91 = arith.constant 0 : index
    %c12 = arith.constant 12 : index
    %c0_92 = arith.constant 0 : index
    %69 = vector.load %arg3[%c0_90, %c0_91, %c12, %c0_92] : memref<1x1x28x128xbf16, #tpu.memory_space<vmem>>, vector<1x1x10x128xbf16>
    %70 = vector.shape_cast %69 : vector<1x1x10x128xbf16> to vector<10x128xbf16>
    %c1280 = arith.constant 1280 : index
    %c0_93 = arith.constant 0 : index
    %71 = vector.load %arg4[%c1280, %c0_93] : memref<2048x128xbf16, #tpu.memory_space<vmem>>, vector<128x128xbf16>
    %cst_94 = arith.constant dense<0.000000e+00> : vector<10x128xf32>
    %72 = tpu.matmul %70, %71, %cst_94 {dimension_numbers = #tpu.dot_dimension_numbers<[1], [0], [0], [1], [0, 0, 1, 1], [], []>} : vector<10x128xbf16>, vector<128x128xbf16>, vector<10x128xf32> -> vector<10x128xf32>
    %73 = arith.addf %68, %72 : vector<10x128xf32>
    %c0_95 = arith.constant 0 : index
    %c0_96 = arith.constant 0 : index
    %74 = vector.load %arg8[%c0_95, %c0_96] : memref<10x128xf32, #tpu.memory_space<vmem>>, vector<10x128xf32>
    tpu.vector_store %arg8[%c0_95, %c0_96], %73 {strides = array<i32>} : memref<10x128xf32, #tpu.memory_space<vmem>>, vector<10x128xf32>,
    %c0_97 = arith.constant 0 : index
    %c0_98 = arith.constant 0 : index
    %75 = vector.load %arg8[%c0_97, %c0_98] : memref<10x128xf32, #tpu.memory_space<vmem>>, vector<10x128xf32>
    %c0_99 = arith.constant 0 : index
    %c0_100 = arith.constant 0 : index
    %c13 = arith.constant 13 : index
    %c0_101 = arith.constant 0 : index
    %76 = vector.load %arg3[%c0_99, %c0_100, %c13, %c0_101] : memref<1x1x28x128xbf16, #tpu.memory_space<vmem>>, vector<1x1x10x128xbf16>
    %77 = vector.shape_cast %76 : vector<1x1x10x128xbf16> to vector<10x128xbf16>
    %c1408 = arith.constant 1408 : index
    %c0_102 = arith.constant 0 : index
    %78 = vector.load %arg4[%c1408, %c0_102] : memref<2048x128xbf16, #tpu.memory_space<vmem>>, vector<128x128xbf16>
    %cst_103 = arith.constant dense<0.000000e+00> : vector<10x128xf32>
    %79 = tpu.matmul %77, %78, %cst_103 {dimension_numbers = #tpu.dot_dimension_numbers<[1], [0], [0], [1], [0, 0, 1, 1], [], []>} : vector<10x128xbf16>, vector<128x128xbf16>, vector<10x128xf32> -> vector<10x128xf32>
    %80 = arith.addf %75, %79 : vector<10x128xf32>
    %c0_104 = arith.constant 0 : index
    %c0_105 = arith.constant 0 : index
    %81 = vector.load %arg8[%c0_104, %c0_105] : memref<10x128xf32, #tpu.memory_space<vmem>>, vector<10x128xf32>
    tpu.vector_store %arg8[%c0_104, %c0_105], %80 {strides = array<i32>} : memref<10x128xf32, #tpu.memory_space<vmem>>, vector<10x128xf32>,
    %c0_106 = arith.constant 0 : index
    %c0_107 = arith.constant 0 : index
    %82 = vector.load %arg8[%c0_106, %c0_107] : memref<10x128xf32, #tpu.memory_space<vmem>>, vector<10x128xf32>
    %c0_108 = arith.constant 0 : index
    %c0_109 = arith.constant 0 : index
    %c15 = arith.constant 15 : index
    %c0_110 = arith.constant 0 : index
    %83 = vector.load %arg3[%c0_108, %c0_109, %c15, %c0_110] : memref<1x1x28x128xbf16, #tpu.memory_space<vmem>>, vector<1x1x10x128xbf16>
    %84 = vector.shape_cast %83 : vector<1x1x10x128xbf16> to vector<10x128xbf16>
    %c1536 = arith.constant 1536 : index
    %c0_111 = arith.constant 0 : index
    %85 = vector.load %arg4[%c1536, %c0_111] : memref<2048x128xbf16, #tpu.memory_space<vmem>>, vector<128x128xbf16>
    %cst_112 = arith.constant dense<0.000000e+00> : vector<10x128xf32>
    %86 = tpu.matmul %84, %85, %cst_112 {dimension_numbers = #tpu.dot_dimension_numbers<[1], [0], [0], [1], [0, 0, 1, 1], [], []>} : vector<10x128xbf16>, vector<128x128xbf16>, vector<10x128xf32> -> vector<10x128xf32>
    %87 = arith.addf %82, %86 : vector<10x128xf32>
    %c0_113 = arith.constant 0 : index
    %c0_114 = arith.constant 0 : index
    %88 = vector.load %arg8[%c0_113, %c0_114] : memref<10x128xf32, #tpu.memory_space<vmem>>, vector<10x128xf32>
    tpu.vector_store %arg8[%c0_113, %c0_114], %87 {strides = array<i32>} : memref<10x128xf32, #tpu.memory_space<vmem>>, vector<10x128xf32>,
    %c0_115 = arith.constant 0 : index
    %c0_116 = arith.constant 0 : index
    %89 = vector.load %arg8[%c0_115, %c0_116] : memref<10x128xf32, #tpu.memory_space<vmem>>, vector<10x128xf32>
    %c0_117 = arith.constant 0 : index
    %c0_118 = arith.constant 0 : index
    %c16 = arith.constant 16 : index
    %c0_119 = arith.constant 0 : index
    %90 = vector.load %arg3[%c0_117, %c0_118, %c16, %c0_119] : memref<1x1x28x128xbf16, #tpu.memory_space<vmem>>, vector<1x1x10x128xbf16>
    %91 = vector.shape_cast %90 : vector<1x1x10x128xbf16> to vector<10x128xbf16>
    %c1664 = arith.constant 1664 : index
    %c0_120 = arith.constant 0 : index
    %92 = vector.load %arg4[%c1664, %c0_120] : memref<2048x128xbf16, #tpu.memory_space<vmem>>, vector<128x128xbf16>
    %cst_121 = arith.constant dense<0.000000e+00> : vector<10x128xf32>
    %93 = tpu.matmul %91, %92, %cst_121 {dimension_numbers = #tpu.dot_dimension_numbers<[1], [0], [0], [1], [0, 0, 1, 1], [], []>} : vector<10x128xbf16>, vector<128x128xbf16>, vector<10x128xf32> -> vector<10x128xf32>
    %94 = arith.addf %89, %93 : vector<10x128xf32>
    %c0_122 = arith.constant 0 : index
    %c0_123 = arith.constant 0 : index
    %95 = vector.load %arg8[%c0_122, %c0_123] : memref<10x128xf32, #tpu.memory_space<vmem>>, vector<10x128xf32>
    tpu.vector_store %arg8[%c0_122, %c0_123], %94 {strides = array<i32>} : memref<10x128xf32, #tpu.memory_space<vmem>>, vector<10x128xf32>,
    %c0_124 = arith.constant 0 : index
    %c0_125 = arith.constant 0 : index
    %96 = vector.load %arg8[%c0_124, %c0_125] : memref<10x128xf32, #tpu.memory_space<vmem>>, vector<10x128xf32>
    %c0_126 = arith.constant 0 : index
    %c0_127 = arith.constant 0 : index
    %c17 = arith.constant 17 : index
    %c0_128 = arith.constant 0 : index
    %97 = vector.load %arg3[%c0_126, %c0_127, %c17, %c0_128] : memref<1x1x28x128xbf16, #tpu.memory_space<vmem>>, vector<1x1x10x128xbf16>
    %98 = vector.shape_cast %97 : vector<1x1x10x128xbf16> to vector<10x128xbf16>
    %c1792 = arith.constant 1792 : index
    %c0_129 = arith.constant 0 : index
    %99 = vector.load %arg4[%c1792, %c0_129] : memref<2048x128xbf16, #tpu.memory_space<vmem>>, vector<128x128xbf16>
    %cst_130 = arith.constant dense<0.000000e+00> : vector<10x128xf32>
    %100 = tpu.matmul %98, %99, %cst_130 {dimension_numbers = #tpu.dot_dimension_numbers<[1], [0], [0], [1], [0, 0, 1, 1], [], []>} : vector<10x128xbf16>, vector<128x128xbf16>, vector<10x128xf32> -> vector<10x128xf32>
    %101 = arith.addf %96, %100 : vector<10x128xf32>
    %c0_131 = arith.constant 0 : index
    %c0_132 = arith.constant 0 : index
    %102 = vector.load %arg8[%c0_131, %c0_132] : memref<10x128xf32, #tpu.memory_space<vmem>>, vector<10x128xf32>
    tpu.vector_store %arg8[%c0_131, %c0_132], %101 {strides = array<i32>} : memref<10x128xf32, #tpu.memory_space<vmem>>, vector<10x128xf32>,
    %c0_133 = arith.constant 0 : index
    %c0_134 = arith.constant 0 : index
    %103 = vector.load %arg8[%c0_133, %c0_134] : memref<10x128xf32, #tpu.memory_space<vmem>>, vector<10x128xf32>
    %c0_135 = arith.constant 0 : index
    %c0_136 = arith.constant 0 : index
    %c18 = arith.constant 18 : index
    %c0_137 = arith.constant 0 : index
    %104 = vector.load %arg3[%c0_135, %c0_136, %c18, %c0_137] : memref<1x1x28x128xbf16, #tpu.memory_space<vmem>>, vector<1x1x10x128xbf16>
    %105 = vector.shape_cast %104 : vector<1x1x10x128xbf16> to vector<10x128xbf16>
    %c1920 = arith.constant 1920 : index
    %c0_138 = arith.constant 0 : index
    %106 = vector.load %arg4[%c1920, %c0_138] : memref<2048x128xbf16, #tpu.memory_space<vmem>>, vector<128x128xbf16>
    %cst_139 = arith.constant dense<0.000000e+00> : vector<10x128xf32>
    %107 = tpu.matmul %105, %106, %cst_139 {dimension_numbers = #tpu.dot_dimension_numbers<[1], [0], [0], [1], [0, 0, 1, 1], [], []>} : vector<10x128xbf16>, vector<128x128xbf16>, vector<10x128xf32> -> vector<10x128xf32>
    %108 = arith.addf %103, %107 : vector<10x128xf32>
    %c0_140 = arith.constant 0 : index
    %c0_141 = arith.constant 0 : index
    %109 = vector.load %arg8[%c0_140, %c0_141] : memref<10x128xf32, #tpu.memory_space<vmem>>, vector<10x128xf32>
    tpu.vector_store %arg8[%c0_140, %c0_141], %108 {strides = array<i32>} : memref<10x128xf32, #tpu.memory_space<vmem>>, vector<10x128xf32>,
    %c0_142 = arith.constant 0 : index
    %c0_143 = arith.constant 0 : index
    %110 = vector.load %arg8[%c0_142, %c0_143] : memref<10x128xf32, #tpu.memory_space<vmem>>, vector<10x128xf32>
    %c0_144 = arith.constant 0 : index
    %c0_145 = arith.constant 0 : index
    %111 = vector.load %arg5[%c0_144, %c0_145] : memref<1x128xf32, #tpu.memory_space<vmem>>, vector<1x128xf32>
    %112 = vector.broadcast %111 : vector<1x128xf32> to vector<10x128xf32>
    %113 = arith.mulf %110, %112 : vector<10x128xf32>
    %c0_146 = arith.constant 0 : index
    %c0_147 = arith.constant 0 : index
    %114 = vector.load %arg6[%c0_146, %c0_147] : memref<1x128xf32, #tpu.memory_space<vmem>>, vector<1x128xf32>
    %115 = vector.broadcast %114 : vector<1x128xf32> to vector<10x128xf32>
    %116 = arith.addf %113, %115 : vector<10x128xf32>
    %117 = arith.truncf %116 : vector<10x128xf32> to vector<10x128xbf16>
    %c0_148 = arith.constant 0 : index
    %c0_149 = arith.constant 0 : index
    %c0_150 = arith.constant 0 : index
    %118 = vector.load %arg7[%c0_148, %c0_149, %c0_150] : memref<1x10x128xbf16, #tpu.memory_space<vmem>>, vector<1x10x128xbf16>
    %119 = vector.shape_cast %118 : vector<1x10x128xbf16> to vector<10x128xbf16>
    %120 = vector.shape_cast %117 : vector<10x128xbf16> to vector<1x10x128xbf16>
    tpu.vector_store %arg7[%c0_148, %c0_149, %c0_150], %120 {strides = array<i32>} : memref<1x10x128xbf16, #tpu.memory_space<vmem>>, vector<1x10x128xbf16>,
    return
  }
  func.func @transform_0(%arg0: i32, %arg1: i32, %arg2: i32) -> (i32, i32, i32, i32) {
    %c0_i32 = arith.constant 0 : i32
    %c0_i32_0 = arith.constant 0 : i32
    %c0_i32_1 = arith.constant 0 : i32
    return %arg0, %arg1, %c0_i32, %c0_i32_0 : i32, i32, i32, i32
  }
  func.func @transform_1(%arg0: i32, %arg1: i32, %arg2: i32) -> (i32, i32) {
    %c0_i32 = arith.constant 0 : i32
    %c0_i32_0 = arith.constant 0 : i32
    return %c0_i32, %arg2 : i32, i32
  }
  func.func @transform_2(%arg0: i32, %arg1: i32, %arg2: i32) -> (i32, i32) {
    %c0_i32 = arith.constant 0 : i32
    %c0_i32_0 = arith.constant 0 : i32
    return %c0_i32, %arg2 : i32, i32
  }
  func.func @transform_3(%arg0: i32, %arg1: i32, %arg2: i32) -> (i32, i32) {
    %c0_i32 = arith.constant 0 : i32
    %c0_i32_0 = arith.constant 0 : i32
    return %c0_i32, %arg2 : i32, i32
  }
  func.func @transform_4(%arg0: i32, %arg1: i32, %arg2: i32) -> (i32, i32, i32) {
    %c0_i32 = arith.constant 0 : i32
    return %arg0, %arg1, %arg2 : i32, i32, i32
  }
}

</mosaic_0001>

<llo_original>
// kernel: _lambda_.5
$region0: #{_lambda_.5}
  #allocation0 [shape = 'u32[]', space=smem, size = 0x4, offset = 0x4, fixed_abs, tag = 'smem constant byte address 0x4 - core index']
  #allocation1 [shape = 'u32[144,128]{1,0:T(1,128)}', space=vmem, size = 0x12000, scoped, tag = 'internal scratch']
  %s0 = inlined_call_operand.vmem [shape: bf16[2,1,256,128], index: 0, kind: input, shape index: {}]
  %s1 = inlined_call_operand.vmem [shape: bf16[128,128], index: 1, kind: input, shape index: {}]
  %s2 = inlined_call_operand.vmem [shape: f32[1,128], index: 2, kind: input, shape index: {}]
  %s3 = inlined_call_operand.vmem [shape: f32[1,128], index: 3, kind: input, shape index: {}]
  %s4 = inlined_call_operand.vmem [shape: bf16[2,256,128], index: 4, kind: output, shape index: {}]
  %s5 = sld [smem:[#allocation0]]
  $region49: #{_lambda_.5} parent=0
    _
  %s7 = ssub.s32 1, %s5
  %s8 = scalar_select 0, %s7, %s5
  loop: start=0, step=1, limit=4
  $region2: #{_lambda_.5} parent=0 // loop_pre_header
    _
  $region3: #{_lambda_.5} parent=0 // loop_header
    %s10 = sphi 0, %s14
    %p11 = scmp.ge.s32.totalorder %s10, 4
    %s17 = sphi 0, %s36
    %s18 = sphi 0, %s32
    %s19 = sphi 0, %s28
    %s20 = sphi 0, %s17
    %s21 = sphi 0, %s18
    %s22 = sphi 0, %s19
    %s23 = sphi 0, %s20
    %s24 = sphi 0, %s21
    %s25 = sphi 0, %s22
    %s41 = sphi 0, %s43
    %s44 = sphi 0, %s41
    %s45 = sphi 0, %s44
    %s61 = sphi 0, %s45
    %s67 = sphi 0, %s69
    %s70 = sphi 0, %s67
    %s71 = sphi 0, %s70
    %s87 = sphi 0, %s71
    %s93 = sphi 0, %s95
    %s96 = sphi 0, %s93
    %s97 = sphi 0, %s96
    %s113 = sphi 0, %s97
    %s119 = sphi 0, %s121
    %s122 = sphi 0, %s119
    %s123 = sphi 0, %s122
    %s139 = sphi 0, %s123
    %s149 = sphi 0, %s151
    %s152 = sphi 0, %s149
    %s153 = sphi 0, %s152
    %s169 = sphi 0, %s153
  $region4: #{_lambda_.5} parent=0 // loop_header_branch
    %13 = sbr.rel (%p11) target = $region8
  $region5: #{_lambda_.5} parent=0 // loop_body
    %s15 = ssub.s32 %s10, 1
    %s16 = ssub.s32 %s10, 2
    %s26 = sadd.s32 1, %s19
    %p27 = scmp.ge.s32.totalorder %s26, 1
    %s28 = scalar_select %p27, 0, %s26
    %s29 = sadd.s32 1, %s18
    %s30 = scalar_select %p27, %s29, %s18
    %p31 = scmp.ge.s32.totalorder %s30, 1
    %s32 = scalar_select %p31, 0, %s30
    %s33 = sadd.s32 1, %s17
    %s34 = scalar_select %p31, %s33, %s17
    %p35 = scmp.ge.s32.totalorder %s34, 2
    %s36 = scalar_select %p35, 0, %s34
    %s37 = ssub.s32 %s17, %s36
    %s38 = ssub.s32 %s18, %s32
    %s39 = sor.u32 %s37, %s38
    %p40 = scmp.eq.s32.totalorder %s39, 0
    %s42 = sadd.s32 %s41, 1
    %s43 = scalar_select %p40, %s41, %s42
    %p46 = pneg %p40
    %p47 = scmp.eq.s32.totalorder %s10, 1
    %p48 = por %p46, %p47
    %p49 = scmp.ne.s32.totalorder %s41, %s44
    %p50 = scmp.eq.s32.totalorder %s10, 0
    %p51 = por %p49, %p50
    %p52 = scmp.ne.s32.totalorder %s41, %s44
    %p53 = scmp.eq.s32.totalorder %s15, 1
    %p54 = por %p52, %p53
    %p55 = scmp.ne.s32.totalorder %s44, %s45
    %p56 = scmp.eq.s32.totalorder %s15, 0
    %p57 = por %p55, %p56
    %p58 = scmp.ne.s32.totalorder %s44, %s45
    %p59 = scmp.eq.s32.totalorder %s16, 1
    %p60 = por %p58, %p59
    %p62 = scmp.ne.s32.totalorder %s45, %s61
    %p63 = scmp.eq.s32.totalorder %s16, 0
    %p64 = por %p62, %p63
    %s65 = ssub.s32 %s19, %s28
    %p66 = scmp.eq.s32.totalorder %s65, 0
    %s68 = sadd.s32 %s67, 1
    %s69 = scalar_select %p66, %s67, %s68
    %p72 = pneg %p66
    %p73 = scmp.eq.s32.totalorder %s10, 1
    %p74 = por %p72, %p73
    %p75 = scmp.ne.s32.totalorder %s67, %s70
    %p76 = scmp.eq.s32.totalorder %s10, 0
    %p77 = por %p75, %p76
    %p78 = scmp.ne.s32.totalorder %s67, %s70
    %p79 = scmp.eq.s32.totalorder %s15, 1
    %p80 = por %p78, %p79
    %p81 = scmp.ne.s32.totalorder %s70, %s71
    %p82 = scmp.eq.s32.totalorder %s15, 0
    %p83 = por %p81, %p82
    %p84 = scmp.ne.s32.totalorder %s70, %s71
    %p85 = scmp.eq.s32.totalorder %s16, 1
    %p86 = por %p84, %p85
    %p88 = scmp.ne.s32.totalorder %s71, %s87
    %p89 = scmp.eq.s32.totalorder %s16, 0
    %p90 = por %p88, %p89
    %s91 = ssub.s32 %s19, %s28
    %p92 = scmp.eq.s32.totalorder %s91, 0
    %s94 = sadd.s32 %s93, 1
    %s95 = scalar_select %p92, %s93, %s94
    %p98 = pneg %p92
    %p99 = scmp.eq.s32.totalorder %s10, 1
    %p100 = por %p98, %p99
    %p101 = scmp.ne.s32.totalorder %s93, %s96
    %p102 = scmp.eq.s32.totalorder %s10, 0
    %p103 = por %p101, %p102
    %p104 = scmp.ne.s32.totalorder %s93, %s96
    %p105 = scmp.eq.s32.totalorder %s15, 1
    %p106 = por %p104, %p105
    %p107 = scmp.ne.s32.totalorder %s96, %s97
    %p108 = scmp.eq.s32.totalorder %s15, 0
    %p109 = por %p107, %p108
    %p110 = scmp.ne.s32.totalorder %s96, %s97
    %p111 = scmp.eq.s32.totalorder %s16, 1
    %p112 = por %p110, %p111
    %p114 = scmp.ne.s32.totalorder %s97, %s113
    %p115 = scmp.eq.s32.totalorder %s16, 0
    %p116 = por %p114, %p115
    %s117 = ssub.s32 %s19, %s28
    %p118 = scmp.eq.s32.totalorder %s117, 0
    %s120 = sadd.s32 %s119, 1
    %s121 = scalar_select %p118, %s119, %s120
    %p124 = pneg %p118
    %p125 = scmp.eq.s32.totalorder %s10, 1
    %p126 = por %p124, %p125
    %p127 = scmp.ne.s32.totalorder %s119, %s122
    %p128 = scmp.eq.s32.totalorder %s10, 0
    %p129 = por %p127, %p128
    %p130 = scmp.ne.s32.totalorder %s119, %s122
    %p131 = scmp.eq.s32.totalorder %s15, 1
    %p132 = por %p130, %p131
    %p133 = scmp.ne.s32.totalorder %s122, %s123
    %p134 = scmp.eq.s32.totalorder %s15, 0
    %p135 = por %p133, %p134
    %p136 = scmp.ne.s32.totalorder %s122, %s123
    %p137 = scmp.eq.s32.totalorder %s16, 1
    %p138 = por %p136, %p137
    %p140 = scmp.ne.s32.totalorder %s123, %s139
    %p141 = scmp.eq.s32.totalorder %s16, 0
    %p142 = por %p140, %p141
    %s143 = ssub.s32 %s17, %s36
    %s144 = ssub.s32 %s18, %s32
    %s145 = sor.u32 %s143, %s144
    %s146 = ssub.s32 %s19, %s28
    %s147 = sor.u32 %s145, %s146
    %p148 = scmp.eq.s32.totalorder %s147, 0
    %s150 = sadd.s32 %s149, 1
    %s151 = scalar_select %p148, %s149, %s150
    %p154 = pneg %p148
    %p155 = scmp.eq.s32.totalorder %s10, 1
    %p156 = por %p154, %p155
    %p157 = scmp.ne.s32.totalorder %s149, %s152
    %p158 = scmp.eq.s32.totalorder %s10, 0
    %p159 = por %p157, %p158
    %p160 = scmp.ne.s32.totalorder %s149, %s152
    %p161 = scmp.eq.s32.totalorder %s15, 1
    %p162 = por %p160, %p161
    %p163 = scmp.ne.s32.totalorder %s152, %s153
    %p164 = scmp.eq.s32.totalorder %s15, 0
    %p165 = por %p163, %p164
    %p166 = scmp.ne.s32.totalorder %s152, %s153
    %p167 = scmp.eq.s32.totalorder %s16, 1
    %p168 = por %p166, %p167
    %p170 = scmp.ne.s32.totalorder %s153, %s169
    %p171 = scmp.eq.s32.totalorder %s16, 0
    %p172 = por %p170, %p171
    %p173 = scmp.le.s32.totalorder 1, %s10
    %p174 = scmp.lt.s32.totalorder %s10, 3
    %p175 = pnand %p173, %p174
    %p176 = pneg %p175
    // Predicated region
    $region9: #{_lambda_.5} parent=5 // pred_check
      _
    $region10: #{_lambda_.5} parent=5 // pred_check_branch
      %178 = sbr.rel (%p175) target = $region12
    $region11: #{_lambda_.5} parent=5 // pred_region
      %s179 = ssub.s32 %s10, 1
      // Predicated region
      $region13: #{_lambda_.5} parent=11 // pred_check
        %p180 = pneg %p83
      $region14: #{_lambda_.5} parent=11 // pred_check_branch
        %182 = sbr.rel (%p180) target = $region16
      $region15: #{_lambda_.5} parent=11 // pred_region
        %p183 = scmp.lt.s32.totalorder %s22, 0
        %s184 = scalar_select %p183, %s22, 0
        %s185 = smul.addr %s184, 4
        %s186 = scalar_lea.vmem %s1, %s185
      $region16: #{_lambda_.5} parent=11 // pred_fallthru
        _
      // Predicated region
      $region17: #{_lambda_.5} parent=11 // pred_check
        %p187 = pneg %p109
      $region18: #{_lambda_.5} parent=11 // pred_check_branch
        %189 = sbr.rel (%p187) target = $region20
      $region19: #{_lambda_.5} parent=11 // pred_region
        %p190 = scmp.lt.s32.totalorder %s22, 0
        %s191 = scalar_select %p190, %s22, 0
        %s192 = scalar_lea.vmem %s2, %s191
      $region20: #{_lambda_.5} parent=11 // pred_fallthru
        _
      // Predicated region
      $region21: #{_lambda_.5} parent=11 // pred_check
        %p193 = pneg %p135
      $region22: #{_lambda_.5} parent=11 // pred_check_branch
        %195 = sbr.rel (%p193) target = $region24
      $region23: #{_lambda_.5} parent=11 // pred_region
        %p196 = scmp.lt.s32.totalorder %s22, 0
        %s197 = scalar_select %p196, %s22, 0
        %s198 = scalar_lea.vmem %s3, %s197
      $region24: #{_lambda_.5} parent=11 // pred_fallthru
        _
    $region12: #{_lambda_.5} parent=5 // pred_fallthru
      _
    %p199 = scmp.lt.s32.totalorder %s10, 2
    // Predicated region
    $region25: #{_lambda_.5} parent=5 // pred_check
      %p200 = pneg %p199
    $region26: #{_lambda_.5} parent=5 // pred_check_branch
      %202 = sbr.rel (%p200) target = $region28
    $region27: #{_lambda_.5} parent=5 // pred_region
      // Predicated region
      $region29: #{_lambda_.5} parent=27 // pred_check
        %p203 = pneg %p51
      $region30: #{_lambda_.5} parent=27 // pred_check_branch
        %205 = sbr.rel (%p203) target = $region32
      $region31: #{_lambda_.5} parent=27 // pred_region
        %p206 = scmp.lt.s32.totalorder %s17, 1
        %s207 = scalar_select %p206, %s17, 1
        %p208 = scmp.lt.s32.totalorder %s18, 0
        %s209 = scalar_select %p208, %s18, 0
        %s210 = smul.addr %s209, 32
        %s211 = smul.addr %s207, 32
        %s212 = sadd.s32 %s210, %s211
        %s213 = smul.addr %s212, 4
        %s214 = scalar_lea.vmem %s0, %s213
      $region32: #{_lambda_.5} parent=27 // pred_fallthru
        _
    $region28: #{_lambda_.5} parent=5 // pred_fallthru
      _
    %p215 = scmp.le.s32.totalorder 1, %s10
    %p216 = scmp.lt.s32.totalorder %s10, 3
    %p217 = pnand %p215, %p216
    %p218 = pneg %p217
    // Predicated region
    $region33: #{_lambda_.5} parent=5 // pred_check
      _
    $region34: #{_lambda_.5} parent=5 // pred_check_branch
      %220 = sbr.rel (%p217) target = $region36
    $region35: #{_lambda_.5} parent=5 // pred_region
      %s221 = ssub.s32 %s10, 1
      %p222 = scmp.lt.s32.totalorder %s20, 1
      %s223 = scalar_select %p222, %s20, 1
      %p224 = scmp.lt.s32.totalorder %s21, 0
      %s225 = scalar_select %p224, %s21, 0
      %s226 = smul.addr %s225, 32
      %s227 = smul.addr %s223, 32
      %s228 = sadd.s32 %s226, %s227
      %s229 = smul.addr %s228, 4
      %s230 = scalar_lea.vmem %s0, %s229
      %p231 = pneg %p57
      %p232 = pneg %p54
      %p233 = scmp.lt.s32.totalorder %s22, 0
      %s234 = scalar_select %p233, %s22, 0
      %s235 = smul.addr %s234, 4
      %s236 = scalar_lea.vmem %s1, %s235
      %p237 = pneg %p83
      %p238 = pneg %p80
      %p239 = scmp.lt.s32.totalorder %s22, 0
      %s240 = scalar_select %p239, %s22, 0
      %s241 = scalar_lea.vmem %s2, %s240
      %p242 = pneg %p109
      %p243 = pneg %p106
      %p244 = scmp.lt.s32.totalorder %s22, 0
      %s245 = scalar_select %p244, %s22, 0
      %s246 = scalar_lea.vmem %s3, %s245
      %p247 = pneg %p135
      %p248 = pneg %p132
      %p249 = pneg %p165
      %p250 = pneg %p162
      %s251 = smul.u32 32, %s21
      %p252 = scmp.lt.s32.totalorder %s20, 1
      %s253 = scalar_select %p252, %s20, 1
      %p254 = scmp.lt.s32.totalorder %s251, 31
      %s255 = scalar_select %p254, %s251, 31
      %p256 = scmp.lt.s32.totalorder %s22, 0
      %s257 = scalar_select %p256, %s22, 0
      %s258 = sadd.s32 %s257, %s255
      %s259 = smul.addr %s253, 32
      %s260 = sadd.s32 %s258, %s259
      %s261 = smul.addr %s260, 4
      %s262 = scalar_lea.vmem %s4, %s261
      %p263 = scmp.lt.s32.totalorder %s20, 1
      %s264 = scalar_select %p263, %s20, 1
      %p265 = scmp.lt.s32.totalorder %s21, 0
      %s266 = scalar_select %p265, %s21, 0
      %s267 = smul.addr %s266, 32
      %s268 = smul.addr %s264, 32
      %s269 = sadd.s32 %s267, %s268
      %s270 = smul.addr %s269, 4
      %s271 = scalar_lea.vmem %s0, %s270
      %p272 = scmp.lt.s32.totalorder %s22, 0
      %s273 = scalar_select %p272, %s22, 0
      %s274 = smul.addr %s273, 4
      %s275 = scalar_lea.vmem %s1, %s274
      %p276 = scmp.lt.s32.totalorder %s22, 0
      %s277 = scalar_select %p276, %s22, 0
      %s278 = scalar_lea.vmem %s2, %s277
      %p279 = scmp.lt.s32.totalorder %s22, 0
      %s280 = scalar_select %p279, %s22, 0
      %s281 = scalar_lea.vmem %s3, %s280
      %s282 = smul.u32 32, %s21
      %p283 = scmp.lt.s32.totalorder %s20, 1
      %s284 = scalar_select %p283, %s20, 1
      %p285 = scmp.lt.s32.totalorder %s282, 31
      %s286 = scalar_select %p285, %s282, 31
      %p287 = scmp.lt.s32.totalorder %s22, 0
      %s288 = scalar_select %p287, %s22, 0
      %s289 = sadd.s32 %s288, %s286
      %s290 = smul.addr %s284, 32
      %s291 = sadd.s32 %s289, %s290
      %s292 = smul.addr %s291, 4
      %s293 = scalar_lea.vmem %s4, %s292
      %s294 = smul.u32 32, %s21
      %v296 = vld [vmem:[%s271] sm:$0xf]
      %v297 = vld [vmem:[%s271 + $0x4] sm:$0xf]
      %v298 = vld [vmem:[%s271 + $0x8] sm:$0xf]
      %v299 = vld [vmem:[%s271 + $0xc] sm:$0xf]
      %v300 = vld [vmem:[%s271 + $0x10] sm:$0xf]
      %v301 = vld [vmem:[%s271 + $0x14] sm:$0xf]
      %v302 = vld [vmem:[%s271 + $0x18] sm:$0xf]
      %v303 = vld [vmem:[%s271 + $0x1c] sm:$0xf]
      %v304 = vld [vmem:[%s271 + $0x20] sm:$0xf]
      %v305 = vld [vmem:[%s271 + $0x24] sm:$0xf]
      %v306 = vld [vmem:[%s271 + $0x28] sm:$0xf]
      %v307 = vld [vmem:[%s271 + $0x2c] sm:$0xf]
      %v308 = vld [vmem:[%s271 + $0x30] sm:$0xf]
      %v309 = vld [vmem:[%s271 + $0x34] sm:$0xf]
      %v310 = vld [vmem:[%s271 + $0x38] sm:$0xf]
      %v311 = vld [vmem:[%s271 + $0x3c] sm:$0xf]
      %v312 = vld [vmem:[%s271 + $0x40] sm:$0xf]
      %v313 = vld [vmem:[%s271 + $0x44] sm:$0xf]
      %v314 = vld [vmem:[%s271 + $0x48] sm:$0xf]
      %v315 = vld [vmem:[%s271 + $0x4c] sm:$0xf]
      %v316 = vld [vmem:[%s271 + $0x50] sm:$0xf]
      %v317 = vld [vmem:[%s271 + $0x54] sm:$0xf]
      %v318 = vld [vmem:[%s271 + $0x58] sm:$0xf]
      %v319 = vld [vmem:[%s271 + $0x5c] sm:$0xf]
      %v320 = vld [vmem:[%s271 + $0x60] sm:$0xf]
      %v321 = vld [vmem:[%s271 + $0x64] sm:$0xf]
      %v322 = vld [vmem:[%s271 + $0x68] sm:$0xf]
      %v323 = vld [vmem:[%s271 + $0x6c] sm:$0xf]
      %v324 = vld [vmem:[%s271 + $0x70] sm:$0xf]
      %v325 = vld [vmem:[%s271 + $0x74] sm:$0xf]
      %v326 = vld [vmem:[%s271 + $0x78] sm:$0xf]
      %v327 = vld [vmem:[%s271 + $0x7c] sm:$0xf]
      %v328 = vld [vmem:[%s275] sm:$0xf]
      %v329 = vld [vmem:[%s275 + $0x4] sm:$0xf]
      %v330 = vld [vmem:[%s275 + $0x8] sm:$0xf]
      %v331 = vld [vmem:[%s275 + $0xc] sm:$0xf]
      %v332 = vld [vmem:[%s275 + $0x10] sm:$0xf]
      %v333 = vld [vmem:[%s275 + $0x14] sm:$0xf]
      %v334 = vld [vmem:[%s275 + $0x18] sm:$0xf]
      %v335 = vld [vmem:[%s275 + $0x1c] sm:$0xf]
      %v336 = vld [vmem:[%s275 + $0x20] sm:$0xf]
      %v337 = vld [vmem:[%s275 + $0x24] sm:$0xf]
      %v338 = vld [vmem:[%s275 + $0x28] sm:$0xf]
      %v339 = vld [vmem:[%s275 + $0x2c] sm:$0xf]
      %v340 = vld [vmem:[%s275 + $0x30] sm:$0xf]
      %v341 = vld [vmem:[%s275 + $0x34] sm:$0xf]
      %v342 = vld [vmem:[%s275 + $0x38] sm:$0xf]
      %v343 = vld [vmem:[%s275 + $0x3c] sm:$0xf]
      %v376 = vunpack.c.l.b16 %v296
      %v377 = vunpack.c.l.b16 %v297
      %v378 = vunpack.c.l.b16 %v298
      %v379 = vunpack.c.l.b16 %v299
      %v380 = vunpack.c.l.b16 %v300
      %v381 = vunpack.c.l.b16 %v301
      %v382 = vunpack.c.l.b16 %v302
      %v383 = vunpack.c.l.b16 %v303
      %v384 = vunpack.c.l.b16 %v304
      %v385 = vunpack.c.l.b16 %v305
      %v386 = vunpack.c.l.b16 %v306
      %v387 = vunpack.c.l.b16 %v307
      %v388 = vunpack.c.l.b16 %v308
      %v389 = vunpack.c.l.b16 %v309
      %v390 = vunpack.c.l.b16 %v310
      %v391 = vunpack.c.l.b16 %v311
      %v392 = vunpack.c.l.b16 %v312
      %v393 = vunpack.c.l.b16 %v313
      %v394 = vunpack.c.l.b16 %v314
      %v395 = vunpack.c.l.b16 %v315
      %v396 = vunpack.c.l.b16 %v316
      %v397 = vunpack.c.l.b16 %v317
      %v398 = vunpack.c.l.b16 %v318
      %v399 = vunpack.c.l.b16 %v319
      %v400 = vunpack.c.l.b16 %v320
      %v401 = vunpack.c.l.b16 %v321
      %v402 = vunpack.c.l.b16 %v322
      %v403 = vunpack.c.l.b16 %v323
      %v404 = vunpack.c.l.b16 %v324
      %v405 = vunpack.c.l.b16 %v325
      %v406 = vunpack.c.l.b16 %v326
      %v407 = vunpack.c.l.b16 %v327
      %v408 = vpack.c.b16 %v377, %v376
      %v409 = vpack.c.b16 %v379, %v378
      %v410 = vpack.c.b16 %v381, %v380
      %v411 = vpack.c.b16 %v383, %v382
      %v412 = vpack.c.b16 %v385, %v384
      %v413 = vpack.c.b16 %v387, %v386
      %v414 = vpack.c.b16 %v389, %v388
      %v415 = vpack.c.b16 %v391, %v390
      %v416 = vpack.c.b16 %v393, %v392
      %v417 = vpack.c.b16 %v395, %v394
      %v418 = vpack.c.b16 %v397, %v396
      %v419 = vpack.c.b16 %v399, %v398
      %v420 = vpack.c.b16 %v401, %v400
      %v421 = vpack.c.b16 %v403, %v402
      %v422 = vpack.c.b16 %v405, %v404
      %v423 = vpack.c.b16 %v407, %v406
      %v456 = vunpack.c.l.b16 %v328
      %v457 = vunpack.c.l.b16 %v329
      %v458 = vunpack.c.l.b16 %v330
      %v459 = vunpack.c.l.b16 %v331
      %v460 = vunpack.c.l.b16 %v332
      %v461 = vunpack.c.l.b16 %v333
      %v462 = vunpack.c.l.b16 %v334
      %v463 = vunpack.c.l.b16 %v335
      %v464 = vunpack.c.l.b16 %v336
      %v465 = vunpack.c.l.b16 %v337
      %v466 = vunpack.c.l.b16 %v338
      %v467 = vunpack.c.l.b16 %v339
      %v468 = vunpack.c.l.b16 %v340
      %v469 = vunpack.c.l.b16 %v341
      %v470 = vunpack.c.l.b16 %v342
      %v471 = vunpack.c.l.b16 %v343
      %v472 = vpack.c.b16 %v457, %v456
      %v473 = vpack.c.b16 %v459, %v458
      %v474 = vpack.c.b16 %v461, %v460
      %v475 = vpack.c.b16 %v463, %v462
      %v476 = vpack.c.b16 %v465, %v464
      %v477 = vpack.c.b16 %v467, %v466
      %v478 = vpack.c.b16 %v469, %v468
      %v479 = vpack.c.b16 %v471, %v470
      %488 = vmatprep.subr.bf16.mxu0 0
      %489 = vmatpush1.bf16.msra.mxu0 %v472
      %490 = vmatprep.subr.bf16.mxu0 0
      %491 = vmatpush1.bf16.msra.mxu0 %v473
      %492 = vmatprep.subr.bf16.mxu0 0
      %493 = vmatpush1.bf16.msra.mxu0 %v474
      %494 = vmatprep.subr.bf16.mxu0 0
      %495 = vmatpush1.bf16.msra.mxu0 %v475
      %496 = vmatprep.subr.bf16.mxu0 0
      %497 = vmatpush1.bf16.msra.mxu0 %v476
      %498 = vmatprep.subr.bf16.mxu0 0
      %499 = vmatpush1.bf16.msra.mxu0 %v477
      %500 = vmatprep.subr.bf16.mxu0 0
      %501 = vmatpush1.bf16.msra.mxu0 %v478
      %502 = vmatprep.subr.bf16.mxu0 0
      %503 = vmatpush1.bf16.msra.mxu0 %v479
      %504 = vmatprep.subr.bf16.mxu0 0
      %505 = vmatpush1.bf16.msra.mxu0 0
      %506 = vmatprep.subr.bf16.mxu0 0
      %507 = vmatpush1.bf16.msra.mxu0 0
      %508 = vmatprep.subr.bf16.mxu0 0
      %509 = vmatpush1.bf16.msra.mxu0 0
      %510 = vmatprep.subr.bf16.mxu0 0
      %511 = vmatpush1.bf16.msra.mxu0 0
      %512 = vmatprep.subr.bf16.mxu0 0
      %513 = vmatpush1.bf16.msra.mxu0 0
      %514 = vmatprep.subr.bf16.mxu0 0
      %515 = vmatpush1.bf16.msra.mxu0 0
      %516 = vmatprep.subr.bf16.mxu0 0
      %517 = vmatpush1.bf16.msra.mxu0 0
      %518 = vmatprep.subr.bf16.mxu0 0
      %519 = vmatpush1.bf16.msra.mxu0 0
      %520 = vmatprep.mubr.bf16.mxu0 0
      %521 = vmatmul.mubr.bf16.gmra.mrb[0].mxu0 %v408
      %v522 = vpop.f32.mrb[0].mxu0
      %v523 = vadd.f32 0.0, %v522
      %v524 = vpop.f32.mrb[0].mxu0
      %v525 = vpop.f32.mrb[0].mxu0
      %v526 = vadd.f32 0.0, %v525
      %v527 = vpop.f32.mrb[0].mxu0
      %528 = vmatprep.mubr.bf16.mxu0 0
      %529 = vmatmul.mubr.bf16.gmra.mrb[0].mxu0 %v409
      %v530 = vpop.f32.mrb[0].mxu0
      %v531 = vadd.f32 0.0, %v530
      %v532 = vpop.f32.mrb[0].mxu0
      %v533 = vpop.f32.mrb[0].mxu0
      %v534 = vadd.f32 0.0, %v533
      %v535 = vpop.f32.mrb[0].mxu0
      %536 = vmatprep.mubr.bf16.mxu0 0
      %537 = vmatmul.mubr.bf16.gmra.mrb[0].mxu0 %v410
      %v538 = vpop.f32.mrb[0].mxu0
      %v539 = vadd.f32 0.0, %v538
      %v540 = vpop.f32.mrb[0].mxu0
      %v541 = vpop.f32.mrb[0].mxu0
      %v542 = vadd.f32 0.0, %v541
      %v543 = vpop.f32.mrb[0].mxu0
      %544 = vmatprep.mubr.bf16.mxu0 0
      %545 = vmatmul.mubr.bf16.gmra.mrb[0].mxu0 %v411
      %v546 = vpop.f32.mrb[0].mxu0
      %v547 = vadd.f32 0.0, %v546
      %v548 = vpop.f32.mrb[0].mxu0
      %v549 = vpop.f32.mrb[0].mxu0
      %v550 = vadd.f32 0.0, %v549
      %v551 = vpop.f32.mrb[0].mxu0
      %552 = vmatprep.mubr.bf16.mxu0 0
      %553 = vmatmul.mubr.bf16.gmra.mrb[0].mxu0 %v412
      %v554 = vpop.f32.mrb[0].mxu0
      %v555 = vadd.f32 0.0, %v554
      %v556 = vpop.f32.mrb[0].mxu0
      %v557 = vpop.f32.mrb[0].mxu0
      %v558 = vadd.f32 0.0, %v557
      %v559 = vpop.f32.mrb[0].mxu0
      %560 = vmatprep.mubr.bf16.mxu0 0
      %561 = vmatmul.mubr.bf16.gmra.mrb[0].mxu0 %v413
      %v562 = vpop.f32.mrb[0].mxu0
      %v563 = vadd.f32 0.0, %v562
      %v564 = vpop.f32.mrb[0].mxu0
      %v565 = vpop.f32.mrb[0].mxu0
      %v566 = vadd.f32 0.0, %v565
      %v567 = vpop.f32.mrb[0].mxu0
      %568 = vmatprep.mubr.bf16.mxu0 0
      %569 = vmatmul.mubr.bf16.gmra.mrb[0].mxu0 %v414
      %v570 = vpop.f32.mrb[0].mxu0
      %v571 = vadd.f32 0.0, %v570
      %v572 = vpop.f32.mrb[0].mxu0
      %v573 = vpop.f32.mrb[0].mxu0
      %v574 = vadd.f32 0.0, %v573
      %v575 = vpop.f32.mrb[0].mxu0
      %576 = vmatprep.mubr.bf16.mxu0 0
      %577 = vmatmul.mubr.bf16.gmra.mrb[0].mxu0 %v415
      %v578 = vpop.f32.mrb[0].mxu0
      %v579 = vadd.f32 0.0, %v578
      %v580 = vpop.f32.mrb[0].mxu0
      %v581 = vpop.f32.mrb[0].mxu0
      %v582 = vadd.f32 0.0, %v581
      %v583 = vpop.f32.mrb[0].mxu0
      %584 = vmatprep.mubr.bf16.mxu0 0
      %585 = vmatmul.mubr.bf16.gmra.mrb[0].mxu0 %v416
      %v586 = vpop.f32.mrb[0].mxu0
      %v587 = vadd.f32 0.0, %v586
      %v588 = vpop.f32.mrb[0].mxu0
      %v589 = vpop.f32.mrb[0].mxu0
      %v590 = vadd.f32 0.0, %v589
      %v591 = vpop.f32.mrb[0].mxu0
      %592 = vmatprep.mubr.bf16.mxu0 0
      %593 = vmatmul.mubr.bf16.gmra.mrb[0].mxu0 %v417
      %v594 = vpop.f32.mrb[0].mxu0
      %v595 = vadd.f32 0.0, %v594
      %v596 = vpop.f32.mrb[0].mxu0
      %v597 = vpop.f32.mrb[0].mxu0
      %v598 = vadd.f32 0.0, %v597
      %v599 = vpop.f32.mrb[0].mxu0
      %600 = vmatprep.mubr.bf16.mxu0 0
      %601 = vmatmul.mubr.bf16.gmra.mrb[0].mxu0 %v418
      %v602 = vpop.f32.mrb[0].mxu0
      %v603 = vadd.f32 0.0, %v602
      %v604 = vpop.f32.mrb[0].mxu0
      %v605 = vpop.f32.mrb[0].mxu0
      %v606 = vadd.f32 0.0, %v605
      %v607 = vpop.f32.mrb[0].mxu0
      %608 = vmatprep.mubr.bf16.mxu0 0
      %609 = vmatmul.mubr.bf16.gmra.mrb[0].mxu0 %v419
      %v610 = vpop.f32.mrb[0].mxu0
      %v611 = vadd.f32 0.0, %v610
      %v612 = vpop.f32.mrb[0].mxu0
      %v613 = vpop.f32.mrb[0].mxu0
      %v614 = vadd.f32 0.0, %v613
      %v615 = vpop.f32.mrb[0].mxu0
      %616 = vmatprep.mubr.bf16.mxu0 0
      %617 = vmatmul.mubr.bf16.gmra.mrb[0].mxu0 %v420
      %v618 = vpop.f32.mrb[0].mxu0
      %v619 = vadd.f32 0.0, %v618
      %v620 = vpop.f32.mrb[0].mxu0
      %v621 = vpop.f32.mrb[0].mxu0
      %v622 = vadd.f32 0.0, %v621
      %v623 = vpop.f32.mrb[0].mxu0
      %624 = vmatprep.mubr.bf16.mxu0 0
      %625 = vmatmul.mubr.bf16.gmra.mrb[0].mxu0 %v421
      %v626 = vpop.f32.mrb[0].mxu0
      %v627 = vadd.f32 0.0, %v626
      %v628 = vpop.f32.mrb[0].mxu0
      %v629 = vpop.f32.mrb[0].mxu0
      %v630 = vadd.f32 0.0, %v629
      %v631 = vpop.f32.mrb[0].mxu0
      %632 = vmatprep.mubr.bf16.mxu0 0
      %633 = vmatmul.mubr.bf16.gmra.mrb[0].mxu0 %v422
      %v634 = vpop.f32.mrb[0].mxu0
      %v635 = vadd.f32 0.0, %v634
      %v636 = vpop.f32.mrb[0].mxu0
      %v637 = vpop.f32.mrb[0].mxu0
      %v638 = vadd.f32 0.0, %v637
      %v639 = vpop.f32.mrb[0].mxu0
      %640 = vmatprep.mubr.bf16.mxu0 0
      %641 = vmatmul.mubr.bf16.gmra.mrb[0].mxu0 %v423
      %v642 = vpop.f32.mrb[0].mxu0
      %v643 = vadd.f32 0.0, %v642
      %v644 = vpop.f32.mrb[0].mxu0
      %v645 = vpop.f32.mrb[0].mxu0
      %v646 = vadd.f32 0.0, %v645
      %v647 = vpop.f32.mrb[0].mxu0
      %648 = vdwg.mxu0
      %v649 = vld [vmem:[%s278] sm:$0x1]
      %v651 = vlaneseq
      %v652 = vshrl.u32 %v651, 7
      %v653 = vsub.s32 0, %v652
      %v654 = vrot.slane %v649, %v653
      %v656 = vmul.f32 %v523, %v654
      %v657 = vmul.f32 %v526, %v654
      %v658 = vmul.f32 %v531, %v654
      %v659 = vmul.f32 %v534, %v654
      %v660 = vmul.f32 %v539, %v654
      %v661 = vmul.f32 %v542, %v654
      %v662 = vmul.f32 %v547, %v654
      %v663 = vmul.f32 %v550, %v654
      %v664 = vmul.f32 %v555, %v654
      %v665 = vmul.f32 %v558, %v654
      %v666 = vmul.f32 %v563, %v654
      %v667 = vmul.f32 %v566, %v654
      %v668 = vmul.f32 %v571, %v654
      %v669 = vmul.f32 %v574, %v654
      %v670 = vmul.f32 %v579, %v654
      %v671 = vmul.f32 %v582, %v654
      %v672 = vmul.f32 %v587, %v654
      %v673 = vmul.f32 %v590, %v654
      %v674 = vmul.f32 %v595, %v654
      %v675 = vmul.f32 %v598, %v654
      %v676 = vmul.f32 %v603, %v654
      %v677 = vmul.f32 %v606, %v654
      %v678 = vmul.f32 %v611, %v654
      %v679 = vmul.f32 %v614, %v654
      %v680 = vmul.f32 %v619, %v654
      %v681 = vmul.f32 %v622, %v654
      %v682 = vmul.f32 %v627, %v654
      %v683 = vmul.f32 %v630, %v654
      %v684 = vmul.f32 %v635, %v654
      %v685 = vmul.f32 %v638, %v654
      %v686 = vmul.f32 %v643, %v654
      %v687 = vmul.f32 %v646, %v654
      %v688 = vld [vmem:[%s281] sm:$0x1]
      %v690 = vlaneseq
      %v691 = vshrl.u32 %v690, 7
      %v692 = vsub.s32 0, %v691
      %v693 = vrot.slane %v688, %v692
      %v695 = vadd.f32 %v656, %v693
      %v696 = vadd.f32 %v657, %v693
      %v697 = vadd.f32 %v658, %v693
      %v698 = vadd.f32 %v659, %v693
      %v699 = vadd.f32 %v660, %v693
      %v700 = vadd.f32 %v661, %v693
      %v701 = vadd.f32 %v662, %v693
      %v702 = vadd.f32 %v663, %v693
      %v703 = vadd.f32 %v664, %v693
      %v704 = vadd.f32 %v665, %v693
      %v705 = vadd.f32 %v666, %v693
      %v706 = vadd.f32 %v667, %v693
      %v707 = vadd.f32 %v668, %v693
      %v708 = vadd.f32 %v669, %v693
      %v709 = vadd.f32 %v670, %v693
      %v710 = vadd.f32 %v671, %v693
      %v711 = vadd.f32 %v672, %v693
      %v712 = vadd.f32 %v673, %v693
      %v713 = vadd.f32 %v674, %v693
      %v714 = vadd.f32 %v675, %v693
      %v715 = vadd.f32 %v676, %v693
      %v716 = vadd.f32 %v677, %v693
      %v717 = vadd.f32 %v678, %v693
      %v718 = vadd.f32 %v679, %v693
      %v719 = vadd.f32 %v680, %v693
      %v720 = vadd.f32 %v681, %v693
      %v721 = vadd.f32 %v682, %v693
      %v722 = vadd.f32 %v683, %v693
      %v723 = vadd.f32 %v684, %v693
      %v724 = vadd.f32 %v685, %v693
      %v725 = vadd.f32 %v686, %v693
      %v726 = vadd.f32 %v687, %v693
      %vm727 = vcmp.ge.f32.partialorder %v695, 0.0
      %vm728 = vcmp.ge.f32.partialorder %v696, 0.0
      %vm729 = vcmp.ge.f32.partialorder %v697, 0.0
      %vm730 = vcmp.ge.f32.partialorder %v698, 0.0
      %vm731 = vcmp.ge.f32.partialorder %v699, 0.0
      %vm732 = vcmp.ge.f32.partialorder %v700, 0.0
      %vm733 = vcmp.ge.f32.partialorder %v701, 0.0
      %vm734 = vcmp.ge.f32.partialorder %v702, 0.0
      %vm735 = vcmp.ge.f32.partialorder %v703, 0.0
      %vm736 = vcmp.ge.f32.partialorder %v704, 0.0
      %vm737 = vcmp.ge.f32.partialorder %v705, 0.0
      %vm738 = vcmp.ge.f32.partialorder %v706, 0.0
      %vm739 = vcmp.ge.f32.partialorder %v707, 0.0
      %vm740 = vcmp.ge.f32.partialorder %v708, 0.0
      %vm741 = vcmp.ge.f32.partialorder %v709, 0.0
      %vm742 = vcmp.ge.f32.partialorder %v710, 0.0
      %vm743 = vcmp.ge.f32.partialorder %v711, 0.0
      %vm744 = vcmp.ge.f32.partialorder %v712, 0.0
      %vm745 = vcmp.ge.f32.partialorder %v713, 0.0
      %vm746 = vcmp.ge.f32.partialorder %v714, 0.0
      %vm747 = vcmp.ge.f32.partialorder %v715, 0.0
      %vm748 = vcmp.ge.f32.partialorder %v716, 0.0
      %vm749 = vcmp.ge.f32.partialorder %v717, 0.0
      %vm750 = vcmp.ge.f32.partialorder %v718, 0.0
      %vm751 = vcmp.ge.f32.partialorder %v719, 0.0
      %vm752 = vcmp.ge.f32.partialorder %v720, 0.0
      %vm753 = vcmp.ge.f32.partialorder %v721, 0.0
      %vm754 = vcmp.ge.f32.partialorder %v722, 0.0
      %vm755 = vcmp.ge.f32.partialorder %v723, 0.0
      %vm756 = vcmp.ge.f32.partialorder %v724, 0.0
      %vm757 = vcmp.ge.f32.partialorder %v725, 0.0
      %vm758 = vcmp.ge.f32.partialorder %v726, 0.0
      %v759 = vmul.f32 %v695, 0.2
      %v760 = vmul.f32 %v696, 0.2
      %v761 = vmul.f32 %v697, 0.2
      %v762 = vmul.f32 %v698, 0.2
      %v763 = vmul.f32 %v699, 0.2
      %v764 = vmul.f32 %v700, 0.2
      %v765 = vmul.f32 %v701, 0.2
      %v766 = vmul.f32 %v702, 0.2
      %v767 = vmul.f32 %v703, 0.2
      %v768 = vmul.f32 %v704, 0.2
      %v769 = vmul.f32 %v705, 0.2
      %v770 = vmul.f32 %v706, 0.2
      %v771 = vmul.f32 %v707, 0.2
      %v772 = vmul.f32 %v708, 0.2
      %v773 = vmul.f32 %v709, 0.2
      %v774 = vmul.f32 %v710, 0.2
      %v775 = vmul.f32 %v711, 0.2
      %v776 = vmul.f32 %v712, 0.2
      %v777 = vmul.f32 %v713, 0.2
      %v778 = vmul.f32 %v714, 0.2
      %v779 = vmul.f32 %v715, 0.2
      %v780 = vmul.f32 %v716, 0.2
      %v781 = vmul.f32 %v717, 0.2
      %v782 = vmul.f32 %v718, 0.2
      %v783 = vmul.f32 %v719, 0.2
      %v784 = vmul.f32 %v720, 0.2
      %v785 = vmul.f32 %v721, 0.2
      %v786 = vmul.f32 %v722, 0.2
      %v787 = vmul.f32 %v723, 0.2
      %v788 = vmul.f32 %v724, 0.2
      %v789 = vmul.f32 %v725, 0.2
      %v790 = vmul.f32 %v726, 0.2
      %v791 = vsel %vm727, %v695, %v759
      %v792 = vsel %vm728, %v696, %v760
      %v793 = vsel %vm729, %v697, %v761
      %v794 = vsel %vm730, %v698, %v762
      %v795 = vsel %vm731, %v699, %v763
      %v796 = vsel %vm732, %v700, %v764
      %v797 = vsel %vm733, %v701, %v765
      %v798 = vsel %vm734, %v702, %v766
      %v799 = vsel %vm735, %v703, %v767
      %v800 = vsel %vm736, %v704, %v768
      %v801 = vsel %vm737, %v705, %v769
      %v802 = vsel %vm738, %v706, %v770
      %v803 = vsel %vm739, %v707, %v771
      %v804 = vsel %vm740, %v708, %v772
      %v805 = vsel %vm741, %v709, %v773
      %v806 = vsel %vm742, %v710, %v774
      %v807 = vsel %vm743, %v711, %v775
      %v808 = vsel %vm744, %v712, %v776
      %v809 = vsel %vm745, %v713, %v777
      %v810 = vsel %vm746, %v714, %v778
      %v811 = vsel %vm747, %v715, %v779
      %v812 = vsel %vm748, %v716, %v780
      %v813 = vsel %vm749, %v717, %v781
      %v814 = vsel %vm750, %v718, %v782
      %v815 = vsel %vm751, %v719, %v783
      %v816 = vsel %vm752, %v720, %v784
      %v817 = vsel %vm753, %v721, %v785
      %v818 = vsel %vm754, %v722, %v786
      %v819 = vsel %vm755, %v723, %v787
      %v820 = vsel %vm756, %v724, %v788
      %v821 = vsel %vm757, %v725, %v789
      %v822 = vsel %vm758, %v726, %v790
      %v823 = vpack.c.bf16 %v792, %v791
      %v824 = vpack.c.bf16 %v794, %v793
      %v825 = vpack.c.bf16 %v796, %v795
      %v826 = vpack.c.bf16 %v798, %v797
      %v827 = vpack.c.bf16 %v800, %v799
      %v828 = vpack.c.bf16 %v802, %v801
      %v829 = vpack.c.bf16 %v804, %v803
      %v830 = vpack.c.bf16 %v806, %v805
      %v831 = vpack.c.bf16 %v808, %v807
      %v832 = vpack.c.bf16 %v810, %v809
      %v833 = vpack.c.bf16 %v812, %v811
      %v834 = vpack.c.bf16 %v814, %v813
      %v835 = vpack.c.bf16 %v816, %v815
      %v836 = vpack.c.bf16 %v818, %v817
      %v837 = vpack.c.bf16 %v820, %v819
      %v838 = vpack.c.bf16 %v822, %v821
      %v855 = vunpack.c.l.b16 %v823
      %v856 = vunpack.c.h.b16 %v823
      %v857 = vunpack.c.l.b16 %v824
      %v858 = vunpack.c.h.b16 %v824
      %v859 = vunpack.c.l.b16 %v825
      %v860 = vunpack.c.h.b16 %v825
      %v861 = vunpack.c.l.b16 %v826
      %v862 = vunpack.c.h.b16 %v826
      %v863 = vunpack.c.l.b16 %v827
      %v864 = vunpack.c.h.b16 %v827
      %v865 = vunpack.c.l.b16 %v828
      %v866 = vunpack.c.h.b16 %v828
      %v867 = vunpack.c.l.b16 %v829
      %v868 = vunpack.c.h.b16 %v829
      %v869 = vunpack.c.l.b16 %v830
      %v870 = vunpack.c.h.b16 %v830
      %v871 = vunpack.c.l.b16 %v831
      %v872 = vunpack.c.h.b16 %v831
      %v873 = vunpack.c.l.b16 %v832
      %v874 = vunpack.c.h.b16 %v832
      %v875 = vunpack.c.l.b16 %v833
      %v876 = vunpack.c.h.b16 %v833
      %v877 = vunpack.c.l.b16 %v834
      %v878 = vunpack.c.h.b16 %v834
      %v879 = vunpack.c.l.b16 %v835
      %v880 = vunpack.c.h.b16 %v835
      %v881 = vunpack.c.l.b16 %v836
      %v882 = vunpack.c.h.b16 %v836
      %v883 = vunpack.c.l.b16 %v837
      %v884 = vunpack.c.h.b16 %v837
      %v885 = vunpack.c.l.b16 %v838
      %v886 = vunpack.c.h.b16 %v838
      %v887 = vpack.c.b16 %v855, %v855
      %v888 = vpack.c.b16 %v856, %v856
      %v889 = vpack.c.b16 %v857, %v857
      %v890 = vpack.c.b16 %v858, %v858
      %v891 = vpack.c.b16 %v859, %v859
      %v892 = vpack.c.b16 %v860, %v860
      %v893 = vpack.c.b16 %v861, %v861
      %v894 = vpack.c.b16 %v862, %v862
      %v895 = vpack.c.b16 %v863, %v863
      %v896 = vpack.c.b16 %v864, %v864
      %v897 = vpack.c.b16 %v865, %v865
      %v898 = vpack.c.b16 %v866, %v866
      %v899 = vpack.c.b16 %v867, %v867
      %v900 = vpack.c.b16 %v868, %v868
      %v901 = vpack.c.b16 %v869, %v869
      %v902 = vpack.c.b16 %v870, %v870
      %v903 = vpack.c.b16 %v871, %v871
      %v904 = vpack.c.b16 %v872, %v872
      %v905 = vpack.c.b16 %v873, %v873
      %v906 = vpack.c.b16 %v874, %v874
      %v907 = vpack.c.b16 %v875, %v875
      %v908 = vpack.c.b16 %v876, %v876
      %v909 = vpack.c.b16 %v877, %v877
      %v910 = vpack.c.b16 %v878, %v878
      %v911 = vpack.c.b16 %v879, %v879
      %v912 = vpack.c.b16 %v880, %v880
      %v913 = vpack.c.b16 %v881, %v881
      %v914 = vpack.c.b16 %v882, %v882
      %v915 = vpack.c.b16 %v883, %v883
      %v916 = vpack.c.b16 %v884, %v884
      %v917 = vpack.c.b16 %v885, %v885
      %v918 = vpack.c.b16 %v886, %v886
      %951 = vst [vmem:[%s293] sm:$0xf] %v887
      %952 = vst [vmem:[%s293 + $0x4] sm:$0xf] %v888
      %953 = vst [vmem:[%s293 + $0x8] sm:$0xf] %v889
      %954 = vst [vmem:[%s293 + $0xc] sm:$0xf] %v890
      %955 = vst [vmem:[%s293 + $0x10] sm:$0xf] %v891
      %956 = vst [vmem:[%s293 + $0x14] sm:$0xf] %v892
      %957 = vst [vmem:[%s293 + $0x18] sm:$0xf] %v893
      %958 = vst [vmem:[%s293 + $0x1c] sm:$0xf] %v894
      %959 = vst [vmem:[%s293 + $0x20] sm:$0xf] %v895
      %960 = vst [vmem:[%s293 + $0x24] sm:$0xf] %v896
      %961 = vst [vmem:[%s293 + $0x28] sm:$0xf] %v897
      %962 = vst [vmem:[%s293 + $0x2c] sm:$0xf] %v898
      %963 = vst [vmem:[%s293 + $0x30] sm:$0xf] %v899
      %964 = vst [vmem:[%s293 + $0x34] sm:$0xf] %v900
      %965 = vst [vmem:[%s293 + $0x38] sm:$0xf] %v901
      %966 = vst [vmem:[%s293 + $0x3c] sm:$0xf] %v902
      %967 = vst [vmem:[%s293 + $0x40] sm:$0xf] %v903
      %968 = vst [vmem:[%s293 + $0x44] sm:$0xf] %v904
      %969 = vst [vmem:[%s293 + $0x48] sm:$0xf] %v905
      %970 = vst [vmem:[%s293 + $0x4c] sm:$0xf] %v906
      %971 = vst [vmem:[%s293 + $0x50] sm:$0xf] %v907
      %972 = vst [vmem:[%s293 + $0x54] sm:$0xf] %v908
      %973 = vst [vmem:[%s293 + $0x58] sm:$0xf] %v909
      %974 = vst [vmem:[%s293 + $0x5c] sm:$0xf] %v910
      %975 = vst [vmem:[%s293 + $0x60] sm:$0xf] %v911
      %976 = vst [vmem:[%s293 + $0x64] sm:$0xf] %v912
      %977 = vst [vmem:[%s293 + $0x68] sm:$0xf] %v913
      %978 = vst [vmem:[%s293 + $0x6c] sm:$0xf] %v914
      %979 = vst [vmem:[%s293 + $0x70] sm:$0xf] %v915
      %980 = vst [vmem:[%s293 + $0x74] sm:$0xf] %v916
      %981 = vst [vmem:[%s293 + $0x78] sm:$0xf] %v917
      %982 = vst [vmem:[%s293 + $0x7c] sm:$0xf] %v918
      %s983 = smul.u32 32, %s21
      %p984 = scmp.lt.s32.totalorder %s20, 1
      %s985 = scalar_select %p984, %s20, 1
      %p986 = scmp.lt.s32.totalorder %s983, 31
      %s987 = scalar_select %p986, %s983, 31
      %p988 = scmp.lt.s32.totalorder %s22, 0
      %s989 = scalar_select %p988, %s22, 0
      %s990 = sadd.s32 %s989, %s987
      %s991 = smul.addr %s985, 32
      %s992 = sadd.s32 %s990, %s991
      %s993 = smul.addr %s992, 4
      %s994 = scalar_lea.vmem %s4, %s993
      // Predicated region
      $region37: #{_lambda_.5} parent=35 // pred_check
        %p995 = pneg %p162
      $region38: #{_lambda_.5} parent=35 // pred_check_branch
        %997 = sbr.rel (%p995) target = $region40
      $region39: #{_lambda_.5} parent=35 // pred_region
        %s998 = smul.u32 32, %s21
      $region40: #{_lambda_.5} parent=35 // pred_fallthru
        _
    $region36: #{_lambda_.5} parent=5 // pred_fallthru
      _
    %p999 = scmp.le.s32.totalorder 2, %s10
    // Predicated region
    $region41: #{_lambda_.5} parent=5 // pred_check
      %p1000 = pneg %p999
    $region42: #{_lambda_.5} parent=5 // pred_check_branch
      %1002 = sbr.rel (%p1000) target = $region44
    $region43: #{_lambda_.5} parent=5 // pred_region
      %s1003 = ssub.s32 %s10, 2
      // Predicated region
      $region45: #{_lambda_.5} parent=43 // pred_check
        %p1004 = pneg %p168
      $region46: #{_lambda_.5} parent=43 // pred_check_branch
        %1006 = sbr.rel (%p1004) target = $region48
      $region47: #{_lambda_.5} parent=43 // pred_region
        %s1007 = smul.u32 32, %s24
        %p1008 = scmp.lt.s32.totalorder %s23, 1
        %s1009 = scalar_select %p1008, %s23, 1
        %p1010 = scmp.lt.s32.totalorder %s1007, 31
        %s1011 = scalar_select %p1010, %s1007, 31
        %p1012 = scmp.lt.s32.totalorder %s25, 0
        %s1013 = scalar_select %p1012, %s25, 0
        %s1014 = sadd.s32 %s1013, %s1011
        %s1015 = smul.addr %s1009, 32
        %s1016 = sadd.s32 %s1014, %s1015
        %s1017 = smul.addr %s1016, 4
        %s1018 = scalar_lea.vmem %s4, %s1017
      $region48: #{_lambda_.5} parent=43 // pred_fallthru
        _
    $region44: #{_lambda_.5} parent=5 // pred_fallthru
      _
  $region6: #{_lambda_.5} parent=0 // loop_footer
    %s14 = sadd.s32 1, %s10
  $region7: #{_lambda_.5} parent=0 // loop_footer_branch
    %9 = sbr.rel target = $region3
  $region8: #{_lambda_.5} parent=0 // loop_exit
    _

// kernel: _lambda_.6
$region0: #{_lambda_.6}
  #allocation0 [shape = 'u32[]', space=smem, size = 0x4, offset = 0x4, fixed_abs, tag = 'smem constant byte address 0x4 - core index']
  #allocation1 [shape = 'u32[144,128]{1,0:T(1,128)}', space=vmem, size = 0x12000, scoped, tag = 'internal scratch']
  #allocation2 [shape = 'f32[72,128]{1,0:T(8,128)}', space=vmem, size = 0x9000, scoped, tag = 'scratch operand']
  %s0 = inlined_call_operand.vmem [shape: bf16[2,1,82,128], index: 0, kind: input, shape index: {}]
  %s1 = inlined_call_operand.vmem [shape: bf16[512,128], index: 1, kind: input, shape index: {}]
  %s2 = inlined_call_operand.vmem [shape: f32[1,128], index: 2, kind: input, shape index: {}]
  %s3 = inlined_call_operand.vmem [shape: f32[1,128], index: 3, kind: input, shape index: {}]
  %s4 = inlined_call_operand.vmem [shape: bf16[2,72,128], index: 4, kind: output, shape index: {}]
  %s5 = sld [smem:[#allocation0]]
  $region49: #{_lambda_.6} parent=0
    _
  %s7 = ssub.s32 1, %s5
  %s8 = scalar_select 0, %s7, %s5
  loop: start=0, step=1, limit=4
  $region2: #{_lambda_.6} parent=0 // loop_pre_header
    _
  $region3: #{_lambda_.6} parent=0 // loop_header
    %s10 = sphi 0, %s14
    %p11 = scmp.ge.s32.totalorder %s10, 4
    %s17 = sphi 0, %s36
    %s18 = sphi 0, %s32
    %s19 = sphi 0, %s28
    %s20 = sphi 0, %s17
    %s21 = sphi 0, %s18
    %s22 = sphi 0, %s19
    %s23 = sphi 0, %s20
    %s24 = sphi 0, %s21
    %s25 = sphi 0, %s22
    %s41 = sphi 0, %s43
    %s44 = sphi 0, %s41
    %s45 = sphi 0, %s44
    %s61 = sphi 0, %s45
    %s67 = sphi 0, %s69
    %s70 = sphi 0, %s67
    %s71 = sphi 0, %s70
    %s87 = sphi 0, %s71
    %s93 = sphi 0, %s95
    %s96 = sphi 0, %s93
    %s97 = sphi 0, %s96
    %s113 = sphi 0, %s97
    %s119 = sphi 0, %s121
    %s122 = sphi 0, %s119
    %s123 = sphi 0, %s122
    %s139 = sphi 0, %s123
    %s149 = sphi 0, %s151
    %s152 = sphi 0, %s149
    %s153 = sphi 0, %s152
    %s169 = sphi 0, %s153
  $region4: #{_lambda_.6} parent=0 // loop_header_branch
    %13 = sbr.rel (%p11) target = $region8
  $region5: #{_lambda_.6} parent=0 // loop_body
    %s15 = ssub.s32 %s10, 1
    %s16 = ssub.s32 %s10, 2
    %s26 = sadd.s32 1, %s19
    %p27 = scmp.ge.s32.totalorder %s26, 1
    %s28 = scalar_select %p27, 0, %s26
    %s29 = sadd.s32 1, %s18
    %s30 = scalar_select %p27, %s29, %s18
    %p31 = scmp.ge.s32.totalorder %s30, 1
    %s32 = scalar_select %p31, 0, %s30
    %s33 = sadd.s32 1, %s17
    %s34 = scalar_select %p31, %s33, %s17
    %p35 = scmp.ge.s32.totalorder %s34, 2
    %s36 = scalar_select %p35, 0, %s34
    %s37 = ssub.s32 %s17, %s36
    %s38 = ssub.s32 %s18, %s32
    %s39 = sor.u32 %s37, %s38
    %p40 = scmp.eq.s32.totalorder %s39, 0
    %s42 = sadd.s32 %s41, 1
    %s43 = scalar_select %p40, %s41, %s42
    %p46 = pneg %p40
    %p47 = scmp.eq.s32.totalorder %s10, 1
    %p48 = por %p46, %p47
    %p49 = scmp.ne.s32.totalorder %s41, %s44
    %p50 = scmp.eq.s32.totalorder %s10, 0
    %p51 = por %p49, %p50
    %p52 = scmp.ne.s32.totalorder %s41, %s44
    %p53 = scmp.eq.s32.totalorder %s15, 1
    %p54 = por %p52, %p53
    %p55 = scmp.ne.s32.totalorder %s44, %s45
    %p56 = scmp.eq.s32.totalorder %s15, 0
    %p57 = por %p55, %p56
    %p58 = scmp.ne.s32.totalorder %s44, %s45
    %p59 = scmp.eq.s32.totalorder %s16, 1
    %p60 = por %p58, %p59
    %p62 = scmp.ne.s32.totalorder %s45, %s61
    %p63 = scmp.eq.s32.totalorder %s16, 0
    %p64 = por %p62, %p63
    %s65 = ssub.s32 %s19, %s28
    %p66 = scmp.eq.s32.totalorder %s65, 0
    %s68 = sadd.s32 %s67, 1
    %s69 = scalar_select %p66, %s67, %s68
    %p72 = pneg %p66
    %p73 = scmp.eq.s32.totalorder %s10, 1
    %p74 = por %p72, %p73
    %p75 = scmp.ne.s32.totalorder %s67, %s70
    %p76 = scmp.eq.s32.totalorder %s10, 0
    %p77 = por %p75, %p76
    %p78 = scmp.ne.s32.totalorder %s67, %s70
    %p79 = scmp.eq.s32.totalorder %s15, 1
    %p80 = por %p78, %p79
    %p81 = scmp.ne.s32.totalorder %s70, %s71
    %p82 = scmp.eq.s32.totalorder %s15, 0
    %p83 = por %p81, %p82
    %p84 = scmp.ne.s32.totalorder %s70, %s71
    %p85 = scmp.eq.s32.totalorder %s16, 1
    %p86 = por %p84, %p85
    %p88 = scmp.ne.s32.totalorder %s71, %s87
    %p89 = scmp.eq.s32.totalorder %s16, 0
    %p90 = por %p88, %p89
    %s91 = ssub.s32 %s19, %s28
    %p92 = scmp.eq.s32.totalorder %s91, 0
    %s94 = sadd.s32 %s93, 1
    %s95 = scalar_select %p92, %s93, %s94
    %p98 = pneg %p92
    %p99 = scmp.eq.s32.totalorder %s10, 1
    %p100 = por %p98, %p99
    %p101 = scmp.ne.s32.totalorder %s93, %s96
    %p102 = scmp.eq.s32.totalorder %s10, 0
    %p103 = por %p101, %p102
    %p104 = scmp.ne.s32.totalorder %s93, %s96
    %p105 = scmp.eq.s32.totalorder %s15, 1
    %p106 = por %p104, %p105
    %p107 = scmp.ne.s32.totalorder %s96, %s97
    %p108 = scmp.eq.s32.totalorder %s15, 0
    %p109 = por %p107, %p108
    %p110 = scmp.ne.s32.totalorder %s96, %s97
    %p111 = scmp.eq.s32.totalorder %s16, 1
    %p112 = por %p110, %p111
    %p114 = scmp.ne.s32.totalorder %s97, %s113
    %p115 = scmp.eq.s32.totalorder %s16, 0
    %p116 = por %p114, %p115
    %s117 = ssub.s32 %s19, %s28
    %p118 = scmp.eq.s32.totalorder %s117, 0
    %s120 = sadd.s32 %s119, 1
    %s121 = scalar_select %p118, %s119, %s120
    %p124 = pneg %p118
    %p125 = scmp.eq.s32.totalorder %s10, 1
    %p126 = por %p124, %p125
    %p127 = scmp.ne.s32.totalorder %s119, %s122
    %p128 = scmp.eq.s32.totalorder %s10, 0
    %p129 = por %p127, %p128
    %p130 = scmp.ne.s32.totalorder %s119, %s122
    %p131 = scmp.eq.s32.totalorder %s15, 1
    %p132 = por %p130, %p131
    %p133 = scmp.ne.s32.totalorder %s122, %s123
    %p134 = scmp.eq.s32.totalorder %s15, 0
    %p135 = por %p133, %p134
    %p136 = scmp.ne.s32.totalorder %s122, %s123
    %p137 = scmp.eq.s32.totalorder %s16, 1
    %p138 = por %p136, %p137
    %p140 = scmp.ne.s32.totalorder %s123, %s139
    %p141 = scmp.eq.s32.totalorder %s16, 0
    %p142 = por %p140, %p141
    %s143 = ssub.s32 %s17, %s36
    %s144 = ssub.s32 %s18, %s32
    %s145 = sor.u32 %s143, %s144
    %s146 = ssub.s32 %s19, %s28
    %s147 = sor.u32 %s145, %s146
    %p148 = scmp.eq.s32.totalorder %s147, 0
    %s150 = sadd.s32 %s149, 1
    %s151 = scalar_select %p148, %s149, %s150
    %p154 = pneg %p148
    %p155 = scmp.eq.s32.totalorder %s10, 1
    %p156 = por %p154, %p155
    %p157 = scmp.ne.s32.totalorder %s149, %s152
    %p158 = scmp.eq.s32.totalorder %s10, 0
    %p159 = por %p157, %p158
    %p160 = scmp.ne.s32.totalorder %s149, %s152
    %p161 = scmp.eq.s32.totalorder %s15, 1
    %p162 = por %p160, %p161
    %p163 = scmp.ne.s32.totalorder %s152, %s153
    %p164 = scmp.eq.s32.totalorder %s15, 0
    %p165 = por %p163, %p164
    %p166 = scmp.ne.s32.totalorder %s152, %s153
    %p167 = scmp.eq.s32.totalorder %s16, 1
    %p168 = por %p166, %p167
    %p170 = scmp.ne.s32.totalorder %s153, %s169
    %p171 = scmp.eq.s32.totalorder %s16, 0
    %p172 = por %p170, %p171
    %p173 = scmp.le.s32.totalorder 1, %s10
    %p174 = scmp.lt.s32.totalorder %s10, 3
    %p175 = pnand %p173, %p174
    %p176 = pneg %p175
    // Predicated region
    $region9: #{_lambda_.6} parent=5 // pred_check
      _
    $region10: #{_lambda_.6} parent=5 // pred_check_branch
      %178 = sbr.rel (%p175) target = $region12
    $region11: #{_lambda_.6} parent=5 // pred_region
      %s179 = ssub.s32 %s10, 1
      // Predicated region
      $region13: #{_lambda_.6} parent=11 // pred_check
        %p180 = pneg %p83
      $region14: #{_lambda_.6} parent=11 // pred_check_branch
        %182 = sbr.rel (%p180) target = $region16
      $region15: #{_lambda_.6} parent=11 // pred_region
        %p183 = scmp.lt.s32.totalorder %s22, 0
        %s184 = scalar_select %p183, %s22, 0
        %s185 = smul.addr %s184, 4
        %s186 = scalar_lea.vmem %s1, %s185
      $region16: #{_lambda_.6} parent=11 // pred_fallthru
        _
      // Predicated region
      $region17: #{_lambda_.6} parent=11 // pred_check
        %p187 = pneg %p109
      $region18: #{_lambda_.6} parent=11 // pred_check_branch
        %189 = sbr.rel (%p187) target = $region20
      $region19: #{_lambda_.6} parent=11 // pred_region
        %p190 = scmp.lt.s32.totalorder %s22, 0
        %s191 = scalar_select %p190, %s22, 0
        %s192 = scalar_lea.vmem %s2, %s191
      $region20: #{_lambda_.6} parent=11 // pred_fallthru
        _
      // Predicated region
      $region21: #{_lambda_.6} parent=11 // pred_check
        %p193 = pneg %p135
      $region22: #{_lambda_.6} parent=11 // pred_check_branch
        %195 = sbr.rel (%p193) target = $region24
      $region23: #{_lambda_.6} parent=11 // pred_region
        %p196 = scmp.lt.s32.totalorder %s22, 0
        %s197 = scalar_select %p196, %s22, 0
        %s198 = scalar_lea.vmem %s3, %s197
      $region24: #{_lambda_.6} parent=11 // pred_fallthru
        _
    $region12: #{_lambda_.6} parent=5 // pred_fallthru
      _
    %p199 = scmp.lt.s32.totalorder %s10, 2
    // Predicated region
    $region25: #{_lambda_.6} parent=5 // pred_check
      %p200 = pneg %p199
    $region26: #{_lambda_.6} parent=5 // pred_check_branch
      %202 = sbr.rel (%p200) target = $region28
    $region27: #{_lambda_.6} parent=5 // pred_region
      // Predicated region
      $region29: #{_lambda_.6} parent=27 // pred_check
        %p203 = pneg %p51
      $region30: #{_lambda_.6} parent=27 // pred_check_branch
        %205 = sbr.rel (%p203) target = $region32
      $region31: #{_lambda_.6} parent=27 // pred_region
        %p206 = scmp.lt.s32.totalorder %s17, 1
        %s207 = scalar_select %p206, %s17, 1
        %p208 = scmp.lt.s32.totalorder %s18, 0
        %s209 = scalar_select %p208, %s18, 0
        %s210 = smul.addr %s209, 11
        %s211 = smul.addr %s207, 11
        %s212 = sadd.s32 %s210, %s211
        %s213 = smul.addr %s212, 4
        %s214 = scalar_lea.vmem %s0, %s213
      $region32: #{_lambda_.6} parent=27 // pred_fallthru
        _
    $region28: #{_lambda_.6} parent=5 // pred_fallthru
      _
    %p215 = scmp.le.s32.totalorder 1, %s10
    %p216 = scmp.lt.s32.totalorder %s10, 3
    %p217 = pnand %p215, %p216
    %p218 = pneg %p217
    // Predicated region
    $region33: #{_lambda_.6} parent=5 // pred_check
      _
    $region34: #{_lambda_.6} parent=5 // pred_check_branch
      %220 = sbr.rel (%p217) target = $region36
    $region35: #{_lambda_.6} parent=5 // pred_region
      %s221 = ssub.s32 %s10, 1
      %p222 = scmp.lt.s32.totalorder %s20, 1
      %s223 = scalar_select %p222, %s20, 1
      %p224 = scmp.lt.s32.totalorder %s21, 0
      %s225 = scalar_select %p224, %s21, 0
      %s226 = smul.addr %s225, 11
      %s227 = smul.addr %s223, 11
      %s228 = sadd.s32 %s226, %s227
      %s229 = smul.addr %s228, 4
      %s230 = scalar_lea.vmem %s0, %s229
      %p231 = pneg %p57
      %p232 = pneg %p54
      %p233 = scmp.lt.s32.totalorder %s22, 0
      %s234 = scalar_select %p233, %s22, 0
      %s235 = smul.addr %s234, 4
      %s236 = scalar_lea.vmem %s1, %s235
      %p237 = pneg %p83
      %p238 = pneg %p80
      %p239 = scmp.lt.s32.totalorder %s22, 0
      %s240 = scalar_select %p239, %s22, 0
      %s241 = scalar_lea.vmem %s2, %s240
      %p242 = pneg %p109
      %p243 = pneg %p106
      %p244 = scmp.lt.s32.totalorder %s22, 0
      %s245 = scalar_select %p244, %s22, 0
      %s246 = scalar_lea.vmem %s3, %s245
      %p247 = pneg %p135
      %p248 = pneg %p132
      %p249 = pneg %p165
      %p250 = pneg %p162
      %s251 = smul.u32 9, %s21
      %p252 = scmp.lt.s32.totalorder %s20, 1
      %s253 = scalar_select %p252, %s20, 1
      %p254 = scmp.lt.s32.totalorder %s251, 8
      %s255 = scalar_select %p254, %s251, 8
      %p256 = scmp.lt.s32.totalorder %s22, 0
      %s257 = scalar_select %p256, %s22, 0
      %s258 = sadd.s32 %s257, %s255
      %s259 = smul.addr %s253, 9
      %s260 = sadd.s32 %s258, %s259
      %s261 = smul.addr %s260, 4
      %s262 = scalar_lea.vmem %s4, %s261
      %p263 = scmp.lt.s32.totalorder %s20, 1
      %s264 = scalar_select %p263, %s20, 1
      %p265 = scmp.lt.s32.totalorder %s21, 0
      %s266 = scalar_select %p265, %s21, 0
      %s267 = smul.addr %s266, 11
      %s268 = smul.addr %s264, 11
      %s269 = sadd.s32 %s267, %s268
      %s270 = smul.addr %s269, 4
      %s271 = scalar_lea.vmem %s0, %s270
      %p272 = scmp.lt.s32.totalorder %s22, 0
      %s273 = scalar_select %p272, %s22, 0
      %s274 = smul.addr %s273, 4
      %s275 = scalar_lea.vmem %s1, %s274
      %p276 = scmp.lt.s32.totalorder %s22, 0
      %s277 = scalar_select %p276, %s22, 0
      %s278 = scalar_lea.vmem %s2, %s277
      %p279 = scmp.lt.s32.totalorder %s22, 0
      %s280 = scalar_select %p279, %s22, 0
      %s281 = scalar_lea.vmem %s3, %s280
      %s282 = smul.u32 9, %s21
      %p283 = scmp.lt.s32.totalorder %s20, 1
      %s284 = scalar_select %p283, %s20, 1
      %p285 = scmp.lt.s32.totalorder %s282, 8
      %s286 = scalar_select %p285, %s282, 8
      %p287 = scmp.lt.s32.totalorder %s22, 0
      %s288 = scalar_select %p287, %s22, 0
      %s289 = sadd.s32 %s288, %s286
      %s290 = smul.addr %s284, 9
      %s291 = sadd.s32 %s289, %s290
      %s292 = smul.addr %s291, 4
      %s293 = scalar_lea.vmem %s4, %s292
      %s294 = smul.u32 9, %s21
      %v296 = vld [vmem:[%s271] sm:$0xf]
      %v297 = vld [vmem:[%s271 + $0x4] sm:$0xf]
      %v298 = vld [vmem:[%s271 + $0x8] sm:$0xf]
      %v299 = vld [vmem:[%s271 + $0xc] sm:$0xf]
      %v300 = vld [vmem:[%s271 + $0x10] sm:$0xf]
      %v301 = vld [vmem:[%s271 + $0x14] sm:$0xf]
      %v302 = vld [vmem:[%s271 + $0x18] sm:$0xf]
      %v303 = vld [vmem:[%s271 + $0x1c] sm:$0xf]
      %v304 = vld [vmem:[%s271 + $0x20] sm:$0xf]
      %v305 = vld [vmem:[%s275] sm:$0xf]
      %v306 = vld [vmem:[%s275 + $0x4] sm:$0xf]
      %v307 = vld [vmem:[%s275 + $0x8] sm:$0xf]
      %v308 = vld [vmem:[%s275 + $0xc] sm:$0xf]
      %v309 = vld [vmem:[%s275 + $0x10] sm:$0xf]
      %v310 = vld [vmem:[%s275 + $0x14] sm:$0xf]
      %v311 = vld [vmem:[%s275 + $0x18] sm:$0xf]
      %v312 = vld [vmem:[%s275 + $0x1c] sm:$0xf]
      %v313 = vld [vmem:[%s275 + $0x20] sm:$0xf]
      %v314 = vld [vmem:[%s275 + $0x24] sm:$0xf]
      %v315 = vld [vmem:[%s275 + $0x28] sm:$0xf]
      %v316 = vld [vmem:[%s275 + $0x2c] sm:$0xf]
      %v317 = vld [vmem:[%s275 + $0x30] sm:$0xf]
      %v318 = vld [vmem:[%s275 + $0x34] sm:$0xf]
      %v319 = vld [vmem:[%s275 + $0x38] sm:$0xf]
      %v320 = vld [vmem:[%s275 + $0x3c] sm:$0xf]
      %v330 = vunpack.c.l.b16 %v296
      %v331 = vunpack.c.l.b16 %v297
      %v332 = vunpack.c.l.b16 %v298
      %v333 = vunpack.c.l.b16 %v299
      %v334 = vunpack.c.l.b16 %v300
      %v335 = vunpack.c.l.b16 %v301
      %v336 = vunpack.c.l.b16 %v302
      %v337 = vunpack.c.l.b16 %v303
      %v338 = vunpack.c.l.b16 %v304
      %v339 = vpack.c.b16 %v331, %v330
      %v340 = vpack.c.b16 %v333, %v332
      %v341 = vpack.c.b16 %v335, %v334
      %v342 = vpack.c.b16 %v337, %v336
      %v343 = vpack.c.b16 %v338, %v338
      %v365 = vunpack.c.l.b16 %v305
      %v366 = vunpack.c.l.b16 %v306
      %v367 = vunpack.c.l.b16 %v307
      %v368 = vunpack.c.l.b16 %v308
      %v369 = vunpack.c.l.b16 %v309
      %v370 = vunpack.c.l.b16 %v310
      %v371 = vunpack.c.l.b16 %v311
      %v372 = vunpack.c.l.b16 %v312
      %v373 = vunpack.c.l.b16 %v313
      %v374 = vunpack.c.l.b16 %v314
      %v375 = vunpack.c.l.b16 %v315
      %v376 = vunpack.c.l.b16 %v316
      %v377 = vunpack.c.l.b16 %v317
      %v378 = vunpack.c.l.b16 %v318
      %v379 = vunpack.c.l.b16 %v319
      %v380 = vunpack.c.l.b16 %v320
      %v381 = vpack.c.b16 %v366, %v365
      %v382 = vpack.c.b16 %v368, %v367
      %v383 = vpack.c.b16 %v370, %v369
      %v384 = vpack.c.b16 %v372, %v371
      %v385 = vpack.c.b16 %v374, %v373
      %v386 = vpack.c.b16 %v376, %v375
      %v387 = vpack.c.b16 %v378, %v377
      %v388 = vpack.c.b16 %v380, %v379
      %397 = vmatprep.subr.bf16.mxu0 0
      %398 = vmatpush1.bf16.msra.mxu0 %v381
      %399 = vmatprep.subr.bf16.mxu0 0
      %400 = vmatpush1.bf16.msra.mxu0 %v382
      %401 = vmatprep.subr.bf16.mxu0 0
      %402 = vmatpush1.bf16.msra.mxu0 %v383
      %403 = vmatprep.subr.bf16.mxu0 0
      %404 = vmatpush1.bf16.msra.mxu0 %v384
      %405 = vmatprep.subr.bf16.mxu0 0
      %406 = vmatpush1.bf16.msra.mxu0 %v385
      %407 = vmatprep.subr.bf16.mxu0 0
      %408 = vmatpush1.bf16.msra.mxu0 %v386
      %409 = vmatprep.subr.bf16.mxu0 0
      %410 = vmatpush1.bf16.msra.mxu0 %v387
      %411 = vmatprep.subr.bf16.mxu0 0
      %412 = vmatpush1.bf16.msra.mxu0 %v388
      %413 = vmatprep.subr.bf16.mxu0 0
      %414 = vmatpush1.bf16.msra.mxu0 0
      %415 = vmatprep.subr.bf16.mxu0 0
      %416 = vmatpush1.bf16.msra.mxu0 0
      %417 = vmatprep.subr.bf16.mxu0 0
      %418 = vmatpush1.bf16.msra.mxu0 0
      %419 = vmatprep.subr.bf16.mxu0 0
      %420 = vmatpush1.bf16.msra.mxu0 0
      %421 = vmatprep.subr.bf16.mxu0 0
      %422 = vmatpush1.bf16.msra.mxu0 0
      %423 = vmatprep.subr.bf16.mxu0 0
      %424 = vmatpush1.bf16.msra.mxu0 0
      %425 = vmatprep.subr.bf16.mxu0 0
      %426 = vmatpush1.bf16.msra.mxu0 0
      %427 = vmatprep.subr.bf16.mxu0 0
      %428 = vmatpush1.bf16.msra.mxu0 0
      %429 = vmatprep.mubr.bf16.mxu0 0
      %430 = vmatmul.mubr.bf16.gmra.mrb[0].mxu0 %v339
      %v431 = vpop.f32.mrb[0].mxu0
      %v432 = vadd.f32 0.0, %v431
      %v433 = vpop.f32.mrb[0].mxu0
      %v434 = vpop.f32.mrb[0].mxu0
      %v435 = vadd.f32 0.0, %v434
      %v436 = vpop.f32.mrb[0].mxu0
      %437 = vmatprep.mubr.bf16.mxu0 0
      %438 = vmatmul.mubr.bf16.gmra.mrb[0].mxu0 %v340
      %v439 = vpop.f32.mrb[0].mxu0
      %v440 = vadd.f32 0.0, %v439
      %v441 = vpop.f32.mrb[0].mxu0
      %v442 = vpop.f32.mrb[0].mxu0
      %v443 = vadd.f32 0.0, %v442
      %v444 = vpop.f32.mrb[0].mxu0
      %445 = vmatprep.mubr.bf16.mxu0 0
      %446 = vmatmul.mubr.bf16.gmra.mrb[0].mxu0 %v341
      %v447 = vpop.f32.mrb[0].mxu0
      %v448 = vadd.f32 0.0, %v447
      %v449 = vpop.f32.mrb[0].mxu0
      %v450 = vpop.f32.mrb[0].mxu0
      %v451 = vadd.f32 0.0, %v450
      %v452 = vpop.f32.mrb[0].mxu0
      %453 = vmatprep.mubr.bf16.mxu0 0
      %454 = vmatmul.mubr.bf16.gmra.mrb[0].mxu0 %v342
      %v455 = vpop.f32.mrb[0].mxu0
      %v456 = vadd.f32 0.0, %v455
      %v457 = vpop.f32.mrb[0].mxu0
      %v458 = vpop.f32.mrb[0].mxu0
      %v459 = vadd.f32 0.0, %v458
      %v460 = vpop.f32.mrb[0].mxu0
      %461 = vmatprep.mubr.bf16.mxu0 0
      %462 = vmatmul.mubr.bf16.gmra.mrb[0].mxu0 %v343
      %v463 = vpop.f32.mrb[0].mxu0
      %v464 = vadd.f32 0.0, %v463
      %v465 = vpop.f32.mrb[0].mxu0
      %v466 = vpop.f32.mrb[0].mxu0
      %v467 = vpop.f32.mrb[0].mxu0
      %468 = vdwg.mxu0
      %469 = vst [vmem:[#allocation2] sm:$0xff] %v432
      %470 = vst [vmem:[#allocation2 + $0x8] sm:$0xff] %v435
      %471 = vst [vmem:[#allocation2 + $0x10] sm:$0xff] %v440
      %472 = vst [vmem:[#allocation2 + $0x18] sm:$0xff] %v443
      %473 = vst [vmem:[#allocation2 + $0x20] sm:$0xff] %v448
      %474 = vst [vmem:[#allocation2 + $0x28] sm:$0xff] %v451
      %475 = vst [vmem:[#allocation2 + $0x30] sm:$0xff] %v456
      %476 = vst [vmem:[#allocation2 + $0x38] sm:$0xff] %v459
      %477 = vst [vmem:[#allocation2 + $0x40] sm:$0xff] %v464
      %v478 = vld [vmem:[#allocation2] sm:$0xff]
      %v479 = vld [vmem:[#allocation2 + $0x8] sm:$0xff]
      %v480 = vld [vmem:[#allocation2 + $0x10] sm:$0xff]
      %v481 = vld [vmem:[#allocation2 + $0x18] sm:$0xff]
      %v482 = vld [vmem:[#allocation2 + $0x20] sm:$0xff]
      %v483 = vld [vmem:[#allocation2 + $0x28] sm:$0xff]
      %v484 = vld [vmem:[#allocation2 + $0x30] sm:$0xff]
      %v485 = vld [vmem:[#allocation2 + $0x38] sm:$0xff]
      %v486 = vld [vmem:[#allocation2 + $0x40] sm:$0xff]
      %v487 = vld [vmem:[%s271] sm:$0xf]
      %v488 = vld [vmem:[%s271 + $0x4] sm:$0xf]
      %v489 = vld [vmem:[%s271 + $0x8] sm:$0xf]
      %v490 = vld [vmem:[%s271 + $0xc] sm:$0xf]
      %v491 = vld [vmem:[%s271 + $0x10] sm:$0xf]
      %v492 = vld [vmem:[%s271 + $0x14] sm:$0xf]
      %v493 = vld [vmem:[%s271 + $0x18] sm:$0xf]
      %v494 = vld [vmem:[%s271 + $0x1c] sm:$0xf]
      %v495 = vld [vmem:[%s271 + $0x20] sm:$0xf]
      %v496 = vld [vmem:[%s271 + $0x24] sm:$0x1]
      %v497 = vld [vmem:[%s275 + $0x40] sm:$0xf]
      %v498 = vld [vmem:[%s275 + $0x44] sm:$0xf]
      %v499 = vld [vmem:[%s275 + $0x48] sm:$0xf]
      %v500 = vld [vmem:[%s275 + $0x4c] sm:$0xf]
      %v501 = vld [vmem:[%s275 + $0x50] sm:$0xf]
      %v502 = vld [vmem:[%s275 + $0x54] sm:$0xf]
      %v503 = vld [vmem:[%s275 + $0x58] sm:$0xf]
      %v504 = vld [vmem:[%s275 + $0x5c] sm:$0xf]
      %v505 = vld [vmem:[%s275 + $0x60] sm:$0xf]
      %v506 = vld [vmem:[%s275 + $0x64] sm:$0xf]
      %v507 = vld [vmem:[%s275 + $0x68] sm:$0xf]
      %v508 = vld [vmem:[%s275 + $0x6c] sm:$0xf]
      %v509 = vld [vmem:[%s275 + $0x70] sm:$0xf]
      %v510 = vld [vmem:[%s275 + $0x74] sm:$0xf]
      %v511 = vld [vmem:[%s275 + $0x78] sm:$0xf]
      %v512 = vld [vmem:[%s275 + $0x7c] sm:$0xf]
      %v523 = vunpack.c.l.b16 %v487
      %v524 = vunpack.c.l.b16 %v488
      %v525 = vunpack.c.l.b16 %v489
      %v526 = vunpack.c.l.b16 %v490
      %v527 = vunpack.c.l.b16 %v491
      %v528 = vunpack.c.l.b16 %v492
      %v529 = vunpack.c.l.b16 %v493
      %v530 = vunpack.c.l.b16 %v494
      %v531 = vunpack.c.l.b16 %v495
      %v532 = vunpack.c.l.b16 %v496
      %v533 = vpack.c.b16 %v524, %v523
      %v534 = vpack.c.b16 %v526, %v525
      %v535 = vpack.c.b16 %v528, %v527
      %v536 = vpack.c.b16 %v530, %v529
      %v537 = vpack.c.b16 %v532, %v531
      %vm538 = vsmask.f32 7424
      %v540 = vshrl.u32 %v533, 16
      %v542 = vshll.u32 %v533, 16
      %v544 = vrot.slane %v542, 1
      %v545 = vor.u32 %v540, %v544
      %v547 = vshll.u32 %v534, 16
      %v549 = vrot.slane %v547, 1
      %v550 = vsel %vm538, %v545, %v549
      %v551 = vshrl.u32 %v534, 16
      %v553 = vor.u32 %v551, %v549
      %v555 = vshll.u32 %v535, 16
      %v557 = vrot.slane %v555, 1
      %v558 = vsel %vm538, %v553, %v557
      %v559 = vshrl.u32 %v535, 16
      %v561 = vor.u32 %v559, %v557
      %v563 = vshll.u32 %v536, 16
      %v565 = vrot.slane %v563, 1
      %v566 = vsel %vm538, %v561, %v565
      %v567 = vshrl.u32 %v536, 16
      %v569 = vor.u32 %v567, %v565
      %v571 = vshll.u32 %v537, 16
      %v573 = vrot.slane %v571, 1
      %v574 = vsel %vm538, %v569, %v573
      %v575 = vshrl.u32 %v537, 16
      %v577 = vor.u32 %v575, %v573
      %v599 = vunpack.c.l.b16 %v497
      %v600 = vunpack.c.l.b16 %v498
      %v601 = vunpack.c.l.b16 %v499
      %v602 = vunpack.c.l.b16 %v500
      %v603 = vunpack.c.l.b16 %v501
      %v604 = vunpack.c.l.b16 %v502
      %v605 = vunpack.c.l.b16 %v503
      %v606 = vunpack.c.l.b16 %v504
      %v607 = vunpack.c.l.b16 %v505
      %v608 = vunpack.c.l.b16 %v506
      %v609 = vunpack.c.l.b16 %v507
      %v610 = vunpack.c.l.b16 %v508
      %v611 = vunpack.c.l.b16 %v509
      %v612 = vunpack.c.l.b16 %v510
      %v613 = vunpack.c.l.b16 %v511
      %v614 = vunpack.c.l.b16 %v512
      %v615 = vpack.c.b16 %v600, %v599
      %v616 = vpack.c.b16 %v602, %v601
      %v617 = vpack.c.b16 %v604, %v603
      %v618 = vpack.c.b16 %v606, %v605
      %v619 = vpack.c.b16 %v608, %v607
      %v620 = vpack.c.b16 %v610, %v609
      %v621 = vpack.c.b16 %v612, %v611
      %v622 = vpack.c.b16 %v614, %v613
      %631 = vmatprep.subr.bf16.mxu0 0
      %632 = vmatpush1.bf16.msra.mxu0 %v615
      %633 = vmatprep.subr.bf16.mxu0 0
      %634 = vmatpush1.bf16.msra.mxu0 %v616
      %635 = vmatprep.subr.bf16.mxu0 0
      %636 = vmatpush1.bf16.msra.mxu0 %v617
      %637 = vmatprep.subr.bf16.mxu0 0
      %638 = vmatpush1.bf16.msra.mxu0 %v618
      %639 = vmatprep.subr.bf16.mxu0 0
      %640 = vmatpush1.bf16.msra.mxu0 %v619
      %641 = vmatprep.subr.bf16.mxu0 0
      %642 = vmatpush1.bf16.msra.mxu0 %v620
      %643 = vmatprep.subr.bf16.mxu0 0
      %644 = vmatpush1.bf16.msra.mxu0 %v621
      %645 = vmatprep.subr.bf16.mxu0 0
      %646 = vmatpush1.bf16.msra.mxu0 %v622
      %647 = vmatprep.subr.bf16.mxu0 0
      %648 = vmatpush1.bf16.msra.mxu0 0
      %649 = vmatprep.subr.bf16.mxu0 0
      %650 = vmatpush1.bf16.msra.mxu0 0
      %651 = vmatprep.subr.bf16.mxu0 0
      %652 = vmatpush1.bf16.msra.mxu0 0
      %653 = vmatprep.subr.bf16.mxu0 0
      %654 = vmatpush1.bf16.msra.mxu0 0
      %655 = vmatprep.subr.bf16.mxu0 0
      %656 = vmatpush1.bf16.msra.mxu0 0
      %657 = vmatprep.subr.bf16.mxu0 0
      %658 = vmatpush1.bf16.msra.mxu0 0
      %659 = vmatprep.subr.bf16.mxu0 0
      %660 = vmatpush1.bf16.msra.mxu0 0
      %661 = vmatprep.subr.bf16.mxu0 0
      %662 = vmatpush1.bf16.msra.mxu0 0
      %663 = vmatprep.mubr.bf16.mxu0 0
      %664 = vmatmul.mubr.bf16.gmra.mrb[0].mxu0 %v550
      %v665 = vpop.f32.mrb[0].mxu0
      %v666 = vadd.f32 0.0, %v665
      %v667 = vpop.f32.mrb[0].mxu0
      %v668 = vpop.f32.mrb[0].mxu0
      %v669 = vadd.f32 0.0, %v668
      %v670 = vpop.f32.mrb[0].mxu0
      %671 = vmatprep.mubr.bf16.mxu0 0
      %672 = vmatmul.mubr.bf16.gmra.mrb[0].mxu0 %v558
      %v673 = vpop.f32.mrb[0].mxu0
      %v674 = vadd.f32 0.0, %v673
      %v675 = vpop.f32.mrb[0].mxu0
      %v676 = vpop.f32.mrb[0].mxu0
      %v677 = vadd.f32 0.0, %v676
      %v678 = vpop.f32.mrb[0].mxu0
      %679 = vmatprep.mubr.bf16.mxu0 0
      %680 = vmatmul.mubr.bf16.gmra.mrb[0].mxu0 %v566
      %v681 = vpop.f32.mrb[0].mxu0
      %v682 = vadd.f32 0.0, %v681
      %v683 = vpop.f32.mrb[0].mxu0
      %v684 = vpop.f32.mrb[0].mxu0
      %v685 = vadd.f32 0.0, %v684
      %v686 = vpop.f32.mrb[0].mxu0
      %687 = vmatprep.mubr.bf16.mxu0 0
      %688 = vmatmul.mubr.bf16.gmra.mrb[0].mxu0 %v574
      %v689 = vpop.f32.mrb[0].mxu0
      %v690 = vadd.f32 0.0, %v689
      %v691 = vpop.f32.mrb[0].mxu0
      %v692 = vpop.f32.mrb[0].mxu0
      %v693 = vadd.f32 0.0, %v692
      %v694 = vpop.f32.mrb[0].mxu0
      %695 = vmatprep.mubr.bf16.mxu0 0
      %696 = vmatmul.mubr.bf16.gmra.mrb[0].mxu0 %v577
      %v697 = vpop.f32.mrb[0].mxu0
      %v698 = vadd.f32 0.0, %v697
      %v699 = vpop.f32.mrb[0].mxu0
      %v700 = vpop.f32.mrb[0].mxu0
      %v701 = vpop.f32.mrb[0].mxu0
      %702 = vdwg.mxu0
      %v703 = vadd.f32 %v478, %v666
      %v704 = vadd.f32 %v479, %v669
      %v705 = vadd.f32 %v480, %v674
      %v706 = vadd.f32 %v481, %v677
      %v707 = vadd.f32 %v482, %v682
      %v708 = vadd.f32 %v483, %v685
      %v709 = vadd.f32 %v484, %v690
      %v710 = vadd.f32 %v485, %v693
      %v711 = vadd.f32 %v486, %v698
      %712 = vst [vmem:[#allocation2] sm:$0xff] %v703
      %713 = vst [vmem:[#allocation2 + $0x8] sm:$0xff] %v704
      %714 = vst [vmem:[#allocation2 + $0x10] sm:$0xff] %v705
      %715 = vst [vmem:[#allocation2 + $0x18] sm:$0xff] %v706
      %716 = vst [vmem:[#allocation2 + $0x20] sm:$0xff] %v707
      %717 = vst [vmem:[#allocation2 + $0x28] sm:$0xff] %v708
      %718 = vst [vmem:[#allocation2 + $0x30] sm:$0xff] %v709
      %719 = vst [vmem:[#allocation2 + $0x38] sm:$0xff] %v710
      %720 = vst [vmem:[#allocation2 + $0x40] sm:$0xff] %v711
      %v721 = vld [vmem:[#allocation2] sm:$0xff]
      %v722 = vld [vmem:[#allocation2 + $0x8] sm:$0xff]
      %v723 = vld [vmem:[#allocation2 + $0x10] sm:$0xff]
      %v724 = vld [vmem:[#allocation2 + $0x18] sm:$0xff]
      %v725 = vld [vmem:[#allocation2 + $0x20] sm:$0xff]
      %v726 = vld [vmem:[#allocation2 + $0x28] sm:$0xff]
      %v727 = vld [vmem:[#allocation2 + $0x30] sm:$0xff]
      %v728 = vld [vmem:[#allocation2 + $0x38] sm:$0xff]
      %v729 = vld [vmem:[#allocation2 + $0x40] sm:$0xff]
      %v730 = vld [vmem:[%s271 + $0x4] sm:$0xf]
      %v731 = vld [vmem:[%s271 + $0x8] sm:$0xf]
      %v732 = vld [vmem:[%s271 + $0xc] sm:$0xf]
      %v733 = vld [vmem:[%s271 + $0x10] sm:$0xf]
      %v734 = vld [vmem:[%s271 + $0x14] sm:$0xf]
      %v735 = vld [vmem:[%s271 + $0x18] sm:$0xf]
      %v736 = vld [vmem:[%s271 + $0x1c] sm:$0xf]
      %v737 = vld [vmem:[%s271 + $0x20] sm:$0xf]
      %v738 = vld [vmem:[%s271 + $0x24] sm:$0xf]
      %v739 = vld [vmem:[%s271 + $0x28] sm:$0x1]
      %v740 = vld [vmem:[%s275 + $0x80] sm:$0xf]
      %v741 = vld [vmem:[%s275 + $0x84] sm:$0xf]
      %v742 = vld [vmem:[%s275 + $0x88] sm:$0xf]
      %v743 = vld [vmem:[%s275 + $0x8c] sm:$0xf]
      %v744 = vld [vmem:[%s275 + $0x90] sm:$0xf]
      %v745 = vld [vmem:[%s275 + $0x94] sm:$0xf]
      %v746 = vld [vmem:[%s275 + $0x98] sm:$0xf]
      %v747 = vld [vmem:[%s275 + $0x9c] sm:$0xf]
      %v748 = vld [vmem:[%s275 + $0xa0] sm:$0xf]
      %v749 = vld [vmem:[%s275 + $0xa4] sm:$0xf]
      %v750 = vld [vmem:[%s275 + $0xa8] sm:$0xf]
      %v751 = vld [vmem:[%s275 + $0xac] sm:$0xf]
      %v752 = vld [vmem:[%s275 + $0xb0] sm:$0xf]
      %v753 = vld [vmem:[%s275 + $0xb4] sm:$0xf]
      %v754 = vld [vmem:[%s275 + $0xb8] sm:$0xf]
      %v755 = vld [vmem:[%s275 + $0xbc] sm:$0xf]
      %v766 = vunpack.c.l.b16 %v730
      %v767 = vunpack.c.l.b16 %v731
      %v768 = vunpack.c.l.b16 %v732
      %v769 = vunpack.c.l.b16 %v733
      %v770 = vunpack.c.l.b16 %v734
      %v771 = vunpack.c.l.b16 %v735
      %v772 = vunpack.c.l.b16 %v736
      %v773 = vunpack.c.l.b16 %v737
      %v774 = vunpack.c.l.b16 %v738
      %v775 = vunpack.c.l.b16 %v739
      %v776 = vpack.c.b16 %v767, %v766
      %v777 = vpack.c.b16 %v769, %v768
      %v778 = vpack.c.b16 %v771, %v770
      %v779 = vpack.c.b16 %v773, %v772
      %v780 = vpack.c.b16 %v775, %v774
      %v782 = vshrl.u32 %v776, 16
      %v784 = vshll.u32 %v776, 16
      %v786 = vrot.slane %v784, 1
      %v787 = vor.u32 %v782, %v786
      %v789 = vshll.u32 %v777, 16
      %v791 = vrot.slane %v789, 1
      %v792 = vsel %vm538, %v787, %v791
      %v793 = vshrl.u32 %v777, 16
      %v795 = vor.u32 %v793, %v791
      %v797 = vshll.u32 %v778, 16
      %v799 = vrot.slane %v797, 1
      %v800 = vsel %vm538, %v795, %v799
      %v801 = vshrl.u32 %v778, 16
      %v803 = vor.u32 %v801, %v799
      %v805 = vshll.u32 %v779, 16
      %v807 = vrot.slane %v805, 1
      %v808 = vsel %vm538, %v803, %v807
      %v809 = vshrl.u32 %v779, 16
      %v811 = vor.u32 %v809, %v807
      %v813 = vshll.u32 %v780, 16
      %v815 = vrot.slane %v813, 1
      %v816 = vsel %vm538, %v811, %v815
      %v817 = vshrl.u32 %v780, 16
      %v819 = vor.u32 %v817, %v815
      %v841 = vunpack.c.l.b16 %v740
      %v842 = vunpack.c.l.b16 %v741
      %v843 = vunpack.c.l.b16 %v742
      %v844 = vunpack.c.l.b16 %v743
      %v845 = vunpack.c.l.b16 %v744
      %v846 = vunpack.c.l.b16 %v745
      %v847 = vunpack.c.l.b16 %v746
      %v848 = vunpack.c.l.b16 %v747
      %v849 = vunpack.c.l.b16 %v748
      %v850 = vunpack.c.l.b16 %v749
      %v851 = vunpack.c.l.b16 %v750
      %v852 = vunpack.c.l.b16 %v751
      %v853 = vunpack.c.l.b16 %v752
      %v854 = vunpack.c.l.b16 %v753
      %v855 = vunpack.c.l.b16 %v754
      %v856 = vunpack.c.l.b16 %v755
      %v857 = vpack.c.b16 %v842, %v841
      %v858 = vpack.c.b16 %v844, %v843
      %v859 = vpack.c.b16 %v846, %v845
      %v860 = vpack.c.b16 %v848, %v847
      %v861 = vpack.c.b16 %v850, %v849
      %v862 = vpack.c.b16 %v852, %v851
      %v863 = vpack.c.b16 %v854, %v853
      %v864 = vpack.c.b16 %v856, %v855
      %873 = vmatprep.subr.bf16.mxu0 0
      %874 = vmatpush1.bf16.msra.mxu0 %v857
      %875 = vmatprep.subr.bf16.mxu0 0
      %876 = vmatpush1.bf16.msra.mxu0 %v858
      %877 = vmatprep.subr.bf16.mxu0 0
      %878 = vmatpush1.bf16.msra.mxu0 %v859
      %879 = vmatprep.subr.bf16.mxu0 0
      %880 = vmatpush1.bf16.msra.mxu0 %v860
      %881 = vmatprep.subr.bf16.mxu0 0
      %882 = vmatpush1.bf16.msra.mxu0 %v861
      %883 = vmatprep.subr.bf16.mxu0 0
      %884 = vmatpush1.bf16.msra.mxu0 %v862
      %885 = vmatprep.subr.bf16.mxu0 0
      %886 = vmatpush1.bf16.msra.mxu0 %v863
      %887 = vmatprep.subr.bf16.mxu0 0
      %888 = vmatpush1.bf16.msra.mxu0 %v864
      %889 = vmatprep.subr.bf16.mxu0 0
      %890 = vmatpush1.bf16.msra.mxu0 0
      %891 = vmatprep.subr.bf16.mxu0 0
      %892 = vmatpush1.bf16.msra.mxu0 0
      %893 = vmatprep.subr.bf16.mxu0 0
      %894 = vmatpush1.bf16.msra.mxu0 0
      %895 = vmatprep.subr.bf16.mxu0 0
      %896 = vmatpush1.bf16.msra.mxu0 0
      %897 = vmatprep.subr.bf16.mxu0 0
      %898 = vmatpush1.bf16.msra.mxu0 0
      %899 = vmatprep.subr.bf16.mxu0 0
      %900 = vmatpush1.bf16.msra.mxu0 0
      %901 = vmatprep.subr.bf16.mxu0 0
      %902 = vmatpush1.bf16.msra.mxu0 0
      %903 = vmatprep.subr.bf16.mxu0 0
      %904 = vmatpush1.bf16.msra.mxu0 0
      %905 = vmatprep.mubr.bf16.mxu0 0
      %906 = vmatmul.mubr.bf16.gmra.mrb[0].mxu0 %v792
      %v907 = vpop.f32.mrb[0].mxu0
      %v908 = vadd.f32 0.0, %v907
      %v909 = vpop.f32.mrb[0].mxu0
      %v910 = vpop.f32.mrb[0].mxu0
      %v911 = vadd.f32 0.0, %v910
      %v912 = vpop.f32.mrb[0].mxu0
      %913 = vmatprep.mubr.bf16.mxu0 0
      %914 = vmatmul.mubr.bf16.gmra.mrb[0].mxu0 %v800
      %v915 = vpop.f32.mrb[0].mxu0
      %v916 = vadd.f32 0.0, %v915
      %v917 = vpop.f32.mrb[0].mxu0
      %v918 = vpop.f32.mrb[0].mxu0
      %v919 = vadd.f32 0.0, %v918
      %v920 = vpop.f32.mrb[0].mxu0
      %921 = vmatprep.mubr.bf16.mxu0 0
      %922 = vmatmul.mubr.bf16.gmra.mrb[0].mxu0 %v808
      %v923 = vpop.f32.mrb[0].mxu0
      %v924 = vadd.f32 0.0, %v923
      %v925 = vpop.f32.mrb[0].mxu0
      %v926 = vpop.f32.mrb[0].mxu0
      %v927 = vadd.f32 0.0, %v926
      %v928 = vpop.f32.mrb[0].mxu0
      %929 = vmatprep.mubr.bf16.mxu0 0
      %930 = vmatmul.mubr.bf16.gmra.mrb[0].mxu0 %v816
      %v931 = vpop.f32.mrb[0].mxu0
      %v932 = vadd.f32 0.0, %v931
      %v933 = vpop.f32.mrb[0].mxu0
      %v934 = vpop.f32.mrb[0].mxu0
      %v935 = vadd.f32 0.0, %v934
      %v936 = vpop.f32.mrb[0].mxu0
      %937 = vmatprep.mubr.bf16.mxu0 0
      %938 = vmatmul.mubr.bf16.gmra.mrb[0].mxu0 %v819
      %v939 = vpop.f32.mrb[0].mxu0
      %v940 = vadd.f32 0.0, %v939
      %v941 = vpop.f32.mrb[0].mxu0
      %v942 = vpop.f32.mrb[0].mxu0
      %v943 = vpop.f32.mrb[0].mxu0
      %944 = vdwg.mxu0
      %v945 = vadd.f32 %v721, %v908
      %v946 = vadd.f32 %v722, %v911
      %v947 = vadd.f32 %v723, %v916
      %v948 = vadd.f32 %v724, %v919
      %v949 = vadd.f32 %v725, %v924
      %v950 = vadd.f32 %v726, %v927
      %v951 = vadd.f32 %v727, %v932
      %v952 = vadd.f32 %v728, %v935
      %v953 = vadd.f32 %v729, %v940
      %954 = vst [vmem:[#allocation2] sm:$0xff] %v945
      %955 = vst [vmem:[#allocation2 + $0x8] sm:$0xff] %v946
      %956 = vst [vmem:[#allocation2 + $0x10] sm:$0xff] %v947
      %957 = vst [vmem:[#allocation2 + $0x18] sm:$0xff] %v948
      %958 = vst [vmem:[#allocation2 + $0x20] sm:$0xff] %v949
      %959 = vst [vmem:[#allocation2 + $0x28] sm:$0xff] %v950
      %960 = vst [vmem:[#allocation2 + $0x30] sm:$0xff] %v951
      %961 = vst [vmem:[#allocation2 + $0x38] sm:$0xff] %v952
      %962 = vst [vmem:[#allocation2 + $0x40] sm:$0xff] %v953
      %v963 = vld [vmem:[#allocation2] sm:$0xff]
      %v964 = vld [vmem:[#allocation2 + $0x8] sm:$0xff]
      %v965 = vld [vmem:[#allocation2 + $0x10] sm:$0xff]
      %v966 = vld [vmem:[#allocation2 + $0x18] sm:$0xff]
      %v967 = vld [vmem:[#allocation2 + $0x20] sm:$0xff]
      %v968 = vld [vmem:[#allocation2 + $0x28] sm:$0xff]
      %v969 = vld [vmem:[#allocation2 + $0x30] sm:$0xff]
      %v970 = vld [vmem:[#allocation2 + $0x38] sm:$0xff]
      %v971 = vld [vmem:[#allocation2 + $0x40] sm:$0xff]
      %v972 = vld [vmem:[%s271 + $0x4] sm:$0xe]
      %v973 = vld [vmem:[%s271 + $0x8] sm:$0xf]
      %v974 = vld [vmem:[%s271 + $0xc] sm:$0xf]
      %v975 = vld [vmem:[%s271 + $0x10] sm:$0xf]
      %v976 = vld [vmem:[%s271 + $0x14] sm:$0xf]
      %v977 = vld [vmem:[%s271 + $0x18] sm:$0xf]
      %v978 = vld [vmem:[%s271 + $0x1c] sm:$0xf]
      %v979 = vld [vmem:[%s271 + $0x20] sm:$0xf]
      %v980 = vld [vmem:[%s271 + $0x24] sm:$0xf]
      %v981 = vld [vmem:[%s271 + $0x28] sm:$0x1]
      %v982 = vld [vmem:[%s275 + $0xc0] sm:$0xf]
      %v983 = vld [vmem:[%s275 + $0xc4] sm:$0xf]
      %v984 = vld [vmem:[%s275 + $0xc8] sm:$0xf]
      %v985 = vld [vmem:[%s275 + $0xcc] sm:$0xf]
      %v986 = vld [vmem:[%s275 + $0xd0] sm:$0xf]
      %v987 = vld [vmem:[%s275 + $0xd4] sm:$0xf]
      %v988 = vld [vmem:[%s275 + $0xd8] sm:$0xf]
      %v989 = vld [vmem:[%s275 + $0xdc] sm:$0xf]
      %v990 = vld [vmem:[%s275 + $0xe0] sm:$0xf]
      %v991 = vld [vmem:[%s275 + $0xe4] sm:$0xf]
      %v992 = vld [vmem:[%s275 + $0xe8] sm:$0xf]
      %v993 = vld [vmem:[%s275 + $0xec] sm:$0xf]
      %v994 = vld [vmem:[%s275 + $0xf0] sm:$0xf]
      %v995 = vld [vmem:[%s275 + $0xf4] sm:$0xf]
      %v996 = vld [vmem:[%s275 + $0xf8] sm:$0xf]
      %v997 = vld [vmem:[%s275 + $0xfc] sm:$0xf]
      %v1008 = vunpack.c.l.b16 %v972
      %v1009 = vunpack.c.l.b16 %v973
      %v1010 = vunpack.c.l.b16 %v974
      %v1011 = vunpack.c.l.b16 %v975
      %v1012 = vunpack.c.l.b16 %v976
      %v1013 = vunpack.c.l.b16 %v977
      %v1014 = vunpack.c.l.b16 %v978
      %v1015 = vunpack.c.l.b16 %v979
      %v1016 = vunpack.c.l.b16 %v980
      %v1017 = vunpack.c.l.b16 %v981
      %v1018 = vpack.c.b16 %v1009, %v1008
      %v1019 = vpack.c.b16 %v1011, %v1010
      %v1020 = vpack.c.b16 %v1013, %v1012
      %v1021 = vpack.c.b16 %v1015, %v1014
      %v1022 = vpack.c.b16 %v1017, %v1016
      %vm1023 = vcmask 1046528
      %v1024 = vrot.slane %v1018, 1
      %v1025 = vrot.slane %v1019, 1
      %v1026 = vsel %vm1023, %v1024, %v1025
      %v1027 = vrot.slane %v1020, 1
      %v1028 = vsel %vm1023, %v1025, %v1027
      %v1029 = vrot.slane %v1021, 1
      %v1030 = vsel %vm1023, %v1027, %v1029
      %v1031 = vrot.slane %v1022, 1
      %v1032 = vsel %vm1023, %v1029, %v1031
      %v1054 = vunpack.c.l.b16 %v982
      %v1055 = vunpack.c.l.b16 %v983
      %v1056 = vunpack.c.l.b16 %v984
      %v1057 = vunpack.c.l.b16 %v985
      %v1058 = vunpack.c.l.b16 %v986
      %v1059 = vunpack.c.l.b16 %v987
      %v1060 = vunpack.c.l.b16 %v988
      %v1061 = vunpack.c.l.b16 %v989
      %v1062 = vunpack.c.l.b16 %v990
      %v1063 = vunpack.c.l.b16 %v991
      %v1064 = vunpack.c.l.b16 %v992
      %v1065 = vunpack.c.l.b16 %v993
      %v1066 = vunpack.c.l.b16 %v994
      %v1067 = vunpack.c.l.b16 %v995
      %v1068 = vunpack.c.l.b16 %v996
      %v1069 = vunpack.c.l.b16 %v997
      %v1070 = vpack.c.b16 %v1055, %v1054
      %v1071 = vpack.c.b16 %v1057, %v1056
      %v1072 = vpack.c.b16 %v1059, %v1058
      %v1073 = vpack.c.b16 %v1061, %v1060
      %v1074 = vpack.c.b16 %v1063, %v1062
      %v1075 = vpack.c.b16 %v1065, %v1064
      %v1076 = vpack.c.b16 %v1067, %v1066
      %v1077 = vpack.c.b16 %v1069, %v1068
      %1086 = vmatprep.subr.bf16.mxu0 0
      %1087 = vmatpush1.bf16.msra.mxu0 %v1070
      %1088 = vmatprep.subr.bf16.mxu0 0
      %1089 = vmatpush1.bf16.msra.mxu0 %v1071
      %1090 = vmatprep.subr.bf16.mxu0 0
      %1091 = vmatpush1.bf16.msra.mxu0 %v1072
      %1092 = vmatprep.subr.bf16.mxu0 0
      %1093 = vmatpush1.bf16.msra.mxu0 %v1073
      %1094 = vmatprep.subr.bf16.mxu0 0
      %1095 = vmatpush1.bf16.msra.mxu0 %v1074
      %1096 = vmatprep.subr.bf16.mxu0 0
      %1097 = vmatpush1.bf16.msra.mxu0 %v1075
      %1098 = vmatprep.subr.bf16.mxu0 0
      %1099 = vmatpush1.bf16.msra.mxu0 %v1076
      %1100 = vmatprep.subr.bf16.mxu0 0
      %1101 = vmatpush1.bf16.msra.mxu0 %v1077
      %1102 = vmatprep.subr.bf16.mxu0 0
      %1103 = vmatpush1.bf16.msra.mxu0 0
      %1104 = vmatprep.subr.bf16.mxu0 0
      %1105 = vmatpush1.bf16.msra.mxu0 0
      %1106 = vmatprep.subr.bf16.mxu0 0
      %1107 = vmatpush1.bf16.msra.mxu0 0
      %1108 = vmatprep.subr.bf16.mxu0 0
      %1109 = vmatpush1.bf16.msra.mxu0 0
      %1110 = vmatprep.subr.bf16.mxu0 0
      %1111 = vmatpush1.bf16.msra.mxu0 0
      %1112 = vmatprep.subr.bf16.mxu0 0
      %1113 = vmatpush1.bf16.msra.mxu0 0
      %1114 = vmatprep.subr.bf16.mxu0 0
      %1115 = vmatpush1.bf16.msra.mxu0 0
      %1116 = vmatprep.subr.bf16.mxu0 0
      %1117 = vmatpush1.bf16.msra.mxu0 0
      %1118 = vmatprep.mubr.bf16.mxu0 0
      %1119 = vmatmul.mubr.bf16.gmra.mrb[0].mxu0 %v1026
      %v1120 = vpop.f32.mrb[0].mxu0
      %v1121 = vadd.f32 0.0, %v1120
      %v1122 = vpop.f32.mrb[0].mxu0
      %v1123 = vpop.f32.mrb[0].mxu0
      %v1124 = vadd.f32 0.0, %v1123
      %v1125 = vpop.f32.mrb[0].mxu0
      %1126 = vmatprep.mubr.bf16.mxu0 0
      %1127 = vmatmul.mubr.bf16.gmra.mrb[0].mxu0 %v1028
      %v1128 = vpop.f32.mrb[0].mxu0
      %v1129 = vadd.f32 0.0, %v1128
      %v1130 = vpop.f32.mrb[0].mxu0
      %v1131 = vpop.f32.mrb[0].mxu0
      %v1132 = vadd.f32 0.0, %v1131
      %v1133 = vpop.f32.mrb[0].mxu0
      %1134 = vmatprep.mubr.bf16.mxu0 0
      %1135 = vmatmul.mubr.bf16.gmra.mrb[0].mxu0 %v1030
      %v1136 = vpop.f32.mrb[0].mxu0
      %v1137 = vadd.f32 0.0, %v1136
      %v1138 = vpop.f32.mrb[0].mxu0
      %v1139 = vpop.f32.mrb[0].mxu0
      %v1140 = vadd.f32 0.0, %v1139
      %v1141 = vpop.f32.mrb[0].mxu0
      %1142 = vmatprep.mubr.bf16.mxu0 0
      %1143 = vmatmul.mubr.bf16.gmra.mrb[0].mxu0 %v1032
      %v1144 = vpop.f32.mrb[0].mxu0
      %v1145 = vadd.f32 0.0, %v1144
      %v1146 = vpop.f32.mrb[0].mxu0
      %v1147 = vpop.f32.mrb[0].mxu0
      %v1148 = vadd.f32 0.0, %v1147
      %v1149 = vpop.f32.mrb[0].mxu0
      %1150 = vmatprep.mubr.bf16.mxu0 0
      %1151 = vmatmul.mubr.bf16.gmra.mrb[0].mxu0 %v1031
      %v1152 = vpop.f32.mrb[0].mxu0
      %v1153 = vadd.f32 0.0, %v1152
      %v1154 = vpop.f32.mrb[0].mxu0
      %v1155 = vpop.f32.mrb[0].mxu0
      %v1156 = vpop.f32.mrb[0].mxu0
      %1157 = vdwg.mxu0
      %v1158 = vadd.f32 %v963, %v1121
      %v1159 = vadd.f32 %v964, %v1124
      %v1160 = vadd.f32 %v965, %v1129
      %v1161 = vadd.f32 %v966, %v1132
      %v1162 = vadd.f32 %v967, %v1137
      %v1163 = vadd.f32 %v968, %v1140
      %v1164 = vadd.f32 %v969, %v1145
      %v1165 = vadd.f32 %v970, %v1148
      %v1166 = vadd.f32 %v971, %v1153
      %1167 = vst [vmem:[#allocation2] sm:$0xff] %v1158
      %1168 = vst [vmem:[#allocation2 + $0x8] sm:$0xff] %v1159
      %1169 = vst [vmem:[#allocation2 + $0x10] sm:$0xff] %v1160
      %1170 = vst [vmem:[#allocation2 + $0x18] sm:$0xff] %v1161
      %1171 = vst [vmem:[#allocation2 + $0x20] sm:$0xff] %v1162
      %1172 = vst [vmem:[#allocation2 + $0x28] sm:$0xff] %v1163
      %1173 = vst [vmem:[#allocation2 + $0x30] sm:$0xff] %v1164
      %1174 = vst [vmem:[#allocation2 + $0x38] sm:$0xff] %v1165
      %1175 = vst [vmem:[#allocation2 + $0x40] sm:$0xff] %v1166
      %v1176 = vld [vmem:[#allocation2] sm:$0xff]
      %v1177 = vld [vmem:[#allocation2 + $0x8] sm:$0xff]
      %v1178 = vld [vmem:[#allocation2 + $0x10] sm:$0xff]
      %v1179 = vld [vmem:[#allocation2 + $0x18] sm:$0xff]
      %v1180 = vld [vmem:[#allocation2 + $0x20] sm:$0xff]
      %v1181 = vld [vmem:[#allocation2 + $0x28] sm:$0xff]
      %v1182 = vld [vmem:[#allocation2 + $0x30] sm:$0xff]
      %v1183 = vld [vmem:[#allocation2 + $0x38] sm:$0xff]
      %v1184 = vld [vmem:[#allocation2 + $0x40] sm:$0xff]
      %v1185 = vld [vmem:[%s278] sm:$0x1]
      %v1187 = vlaneseq
      %v1188 = vshrl.u32 %v1187, 7
      %v1189 = vsub.s32 0, %v1188
      %v1190 = vrot.slane %v1185, %v1189
      %v1192 = vmul.f32 %v1176, %v1190
      %v1193 = vmul.f32 %v1177, %v1190
      %v1194 = vmul.f32 %v1178, %v1190
      %v1195 = vmul.f32 %v1179, %v1190
      %v1196 = vmul.f32 %v1180, %v1190
      %v1197 = vmul.f32 %v1181, %v1190
      %v1198 = vmul.f32 %v1182, %v1190
      %v1199 = vmul.f32 %v1183, %v1190
      %v1200 = vmul.f32 %v1184, %v1190
      %v1201 = vld [vmem:[%s281] sm:$0x1]
      %v1203 = vlaneseq
      %v1204 = vshrl.u32 %v1203, 7
      %v1205 = vsub.s32 0, %v1204
      %v1206 = vrot.slane %v1201, %v1205
      %v1208 = vadd.f32 %v1192, %v1206
      %v1209 = vadd.f32 %v1193, %v1206
      %v1210 = vadd.f32 %v1194, %v1206
      %v1211 = vadd.f32 %v1195, %v1206
      %v1212 = vadd.f32 %v1196, %v1206
      %v1213 = vadd.f32 %v1197, %v1206
      %v1214 = vadd.f32 %v1198, %v1206
      %v1215 = vadd.f32 %v1199, %v1206
      %v1216 = vadd.f32 %v1200, %v1206
      %vm1217 = vcmp.ge.f32.partialorder %v1208, 0.0
      %vm1218 = vcmp.ge.f32.partialorder %v1209, 0.0
      %vm1219 = vcmp.ge.f32.partialorder %v1210, 0.0
      %vm1220 = vcmp.ge.f32.partialorder %v1211, 0.0
      %vm1221 = vcmp.ge.f32.partialorder %v1212, 0.0
      %vm1222 = vcmp.ge.f32.partialorder %v1213, 0.0
      %vm1223 = vcmp.ge.f32.partialorder %v1214, 0.0
      %vm1224 = vcmp.ge.f32.partialorder %v1215, 0.0
      %vm1225 = vcmp.ge.f32.partialorder %v1216, 0.0
      %v1226 = vmul.f32 %v1208, 0.2
      %v1227 = vmul.f32 %v1209, 0.2
      %v1228 = vmul.f32 %v1210, 0.2
      %v1229 = vmul.f32 %v1211, 0.2
      %v1230 = vmul.f32 %v1212, 0.2
      %v1231 = vmul.f32 %v1213, 0.2
      %v1232 = vmul.f32 %v1214, 0.2
      %v1233 = vmul.f32 %v1215, 0.2
      %v1234 = vmul.f32 %v1216, 0.2
      %v1235 = vsel %vm1217, %v1208, %v1226
      %v1236 = vsel %vm1218, %v1209, %v1227
      %v1237 = vsel %vm1219, %v1210, %v1228
      %v1238 = vsel %vm1220, %v1211, %v1229
      %v1239 = vsel %vm1221, %v1212, %v1230
      %v1240 = vsel %vm1222, %v1213, %v1231
      %v1241 = vsel %vm1223, %v1214, %v1232
      %v1242 = vsel %vm1224, %v1215, %v1233
      %v1243 = vsel %vm1225, %v1216, %v1234
      %v1244 = vpack.c.bf16 %v1236, %v1235
      %v1245 = vpack.c.bf16 %v1238, %v1237
      %v1246 = vpack.c.bf16 %v1240, %v1239
      %v1247 = vpack.c.bf16 %v1242, %v1241
      %v1248 = vpack.c.bf16 %v1243, %v1243
      %v1254 = vunpack.c.l.b16 %v1244
      %v1255 = vunpack.c.h.b16 %v1244
      %v1256 = vunpack.c.l.b16 %v1245
      %v1257 = vunpack.c.h.b16 %v1245
      %v1258 = vunpack.c.l.b16 %v1246
      %v1259 = vunpack.c.h.b16 %v1246
      %v1260 = vunpack.c.l.b16 %v1247
      %v1261 = vunpack.c.h.b16 %v1247
      %v1262 = vunpack.c.l.b16 %v1248
      %v1263 = vpack.c.b16 %v1254, %v1254
      %v1264 = vpack.c.b16 %v1255, %v1255
      %v1265 = vpack.c.b16 %v1256, %v1256
      %v1266 = vpack.c.b16 %v1257, %v1257
      %v1267 = vpack.c.b16 %v1258, %v1258
      %v1268 = vpack.c.b16 %v1259, %v1259
      %v1269 = vpack.c.b16 %v1260, %v1260
      %v1270 = vpack.c.b16 %v1261, %v1261
      %v1271 = vpack.c.b16 %v1262, %v1262
      %1281 = vst [vmem:[%s293] sm:$0xf] %v1263
      %1282 = vst [vmem:[%s293 + $0x4] sm:$0xf] %v1264
      %1283 = vst [vmem:[%s293 + $0x8] sm:$0xf] %v1265
      %1284 = vst [vmem:[%s293 + $0xc] sm:$0xf] %v1266
      %1285 = vst [vmem:[%s293 + $0x10] sm:$0xf] %v1267
      %1286 = vst [vmem:[%s293 + $0x14] sm:$0xf] %v1268
      %1287 = vst [vmem:[%s293 + $0x18] sm:$0xf] %v1269
      %1288 = vst [vmem:[%s293 + $0x1c] sm:$0xf] %v1270
      %1289 = vst [vmem:[%s293 + $0x20] sm:$0xf] %v1271
      %s1290 = smul.u32 9, %s21
      %p1291 = scmp.lt.s32.totalorder %s20, 1
      %s1292 = scalar_select %p1291, %s20, 1
      %p1293 = scmp.lt.s32.totalorder %s1290, 8
      %s1294 = scalar_select %p1293, %s1290, 8
      %p1295 = scmp.lt.s32.totalorder %s22, 0
      %s1296 = scalar_select %p1295, %s22, 0
      %s1297 = sadd.s32 %s1296, %s1294
      %s1298 = smul.addr %s1292, 9
      %s1299 = sadd.s32 %s1297, %s1298
      %s1300 = smul.addr %s1299, 4
      %s1301 = scalar_lea.vmem %s4, %s1300
      // Predicated region
      $region37: #{_lambda_.6} parent=35 // pred_check
        %p1302 = pneg %p162
      $region38: #{_lambda_.6} parent=35 // pred_check_branch
        %1304 = sbr.rel (%p1302) target = $region40
      $region39: #{_lambda_.6} parent=35 // pred_region
        %s1305 = smul.u32 9, %s21
      $region40: #{_lambda_.6} parent=35 // pred_fallthru
        _
    $region36: #{_lambda_.6} parent=5 // pred_fallthru
      _
    %p1306 = scmp.le.s32.totalorder 2, %s10
    // Predicated region
    $region41: #{_lambda_.6} parent=5 // pred_check
      %p1307 = pneg %p1306
    $region42: #{_lambda_.6} parent=5 // pred_check_branch
      %1309 = sbr.rel (%p1307) target = $region44
    $region43: #{_lambda_.6} parent=5 // pred_region
      %s1310 = ssub.s32 %s10, 2
      // Predicated region
      $region45: #{_lambda_.6} parent=43 // pred_check
        %p1311 = pneg %p168
      $region46: #{_lambda_.6} parent=43 // pred_check_branch
        %1313 = sbr.rel (%p1311) target = $region48
      $region47: #{_lambda_.6} parent=43 // pred_region
        %s1314 = smul.u32 9, %s24
        %p1315 = scmp.lt.s32.totalorder %s23, 1
        %s1316 = scalar_select %p1315, %s23, 1
        %p1317 = scmp.lt.s32.totalorder %s1314, 8
        %s1318 = scalar_select %p1317, %s1314, 8
        %p1319 = scmp.lt.s32.totalorder %s25, 0
        %s1320 = scalar_select %p1319, %s25, 0
        %s1321 = sadd.s32 %s1320, %s1318
        %s1322 = smul.addr %s1316, 9
        %s1323 = sadd.s32 %s1321, %s1322
        %s1324 = smul.addr %s1323, 4
        %s1325 = scalar_lea.vmem %s4, %s1324
      $region48: #{_lambda_.6} parent=43 // pred_fallthru
        _
    $region44: #{_lambda_.6} parent=5 // pred_fallthru
      _
  $region6: #{_lambda_.6} parent=0 // loop_footer
    %s14 = sadd.s32 1, %s10
  $region7: #{_lambda_.6} parent=0 // loop_footer_branch
    %9 = sbr.rel target = $region3
  $region8: #{_lambda_.6} parent=0 // loop_exit
    _

// kernel: _lambda_.7
$region0: #{_lambda_.7}
  #allocation0 [shape = 'u32[]', space=smem, size = 0x4, offset = 0x4, fixed_abs, tag = 'smem constant byte address 0x4 - core index']
  #allocation1 [shape = 'u32[144,128]{1,0:T(1,128)}', space=vmem, size = 0x12000, scoped, tag = 'internal scratch']
  #allocation2 [shape = 'f32[20,128]{1,0:T(8,128)}', space=vmem, size = 0x3000, scoped, tag = 'scratch operand']
  %s0 = inlined_call_operand.vmem [shape: bf16[2,1,26,128], index: 0, kind: input, shape index: {}]
  %s1 = inlined_call_operand.vmem [shape: bf16[512,128], index: 1, kind: input, shape index: {}]
  %s2 = inlined_call_operand.vmem [shape: f32[1,128], index: 2, kind: input, shape index: {}]
  %s3 = inlined_call_operand.vmem [shape: f32[1,128], index: 3, kind: input, shape index: {}]
  %s4 = inlined_call_operand.vmem [shape: bf16[2,20,128], index: 4, kind: output, shape index: {}]
  %s5 = sld [smem:[#allocation0]]
  $region49: #{_lambda_.7} parent=0
    _
  %s7 = ssub.s32 1, %s5
  %s8 = scalar_select 0, %s7, %s5
  loop: start=0, step=1, limit=4
  $region2: #{_lambda_.7} parent=0 // loop_pre_header
    _
  $region3: #{_lambda_.7} parent=0 // loop_header
    %s10 = sphi 0, %s14
    %p11 = scmp.ge.s32.totalorder %s10, 4
    %s17 = sphi 0, %s36
    %s18 = sphi 0, %s32
    %s19 = sphi 0, %s28
    %s20 = sphi 0, %s17
    %s21 = sphi 0, %s18
    %s22 = sphi 0, %s19
    %s23 = sphi 0, %s20
    %s24 = sphi 0, %s21
    %s25 = sphi 0, %s22
    %s41 = sphi 0, %s43
    %s44 = sphi 0, %s41
    %s45 = sphi 0, %s44
    %s61 = sphi 0, %s45
    %s67 = sphi 0, %s69
    %s70 = sphi 0, %s67
    %s71 = sphi 0, %s70
    %s87 = sphi 0, %s71
    %s93 = sphi 0, %s95
    %s96 = sphi 0, %s93
    %s97 = sphi 0, %s96
    %s113 = sphi 0, %s97
    %s119 = sphi 0, %s121
    %s122 = sphi 0, %s119
    %s123 = sphi 0, %s122
    %s139 = sphi 0, %s123
    %s149 = sphi 0, %s151
    %s152 = sphi 0, %s149
    %s153 = sphi 0, %s152
    %s169 = sphi 0, %s153
  $region4: #{_lambda_.7} parent=0 // loop_header_branch
    %13 = sbr.rel (%p11) target = $region8
  $region5: #{_lambda_.7} parent=0 // loop_body
    %s15 = ssub.s32 %s10, 1
    %s16 = ssub.s32 %s10, 2
    %s26 = sadd.s32 1, %s19
    %p27 = scmp.ge.s32.totalorder %s26, 1
    %s28 = scalar_select %p27, 0, %s26
    %s29 = sadd.s32 1, %s18
    %s30 = scalar_select %p27, %s29, %s18
    %p31 = scmp.ge.s32.totalorder %s30, 1
    %s32 = scalar_select %p31, 0, %s30
    %s33 = sadd.s32 1, %s17
    %s34 = scalar_select %p31, %s33, %s17
    %p35 = scmp.ge.s32.totalorder %s34, 2
    %s36 = scalar_select %p35, 0, %s34
    %s37 = ssub.s32 %s17, %s36
    %s38 = ssub.s32 %s18, %s32
    %s39 = sor.u32 %s37, %s38
    %p40 = scmp.eq.s32.totalorder %s39, 0
    %s42 = sadd.s32 %s41, 1
    %s43 = scalar_select %p40, %s41, %s42
    %p46 = pneg %p40
    %p47 = scmp.eq.s32.totalorder %s10, 1
    %p48 = por %p46, %p47
    %p49 = scmp.ne.s32.totalorder %s41, %s44
    %p50 = scmp.eq.s32.totalorder %s10, 0
    %p51 = por %p49, %p50
    %p52 = scmp.ne.s32.totalorder %s41, %s44
    %p53 = scmp.eq.s32.totalorder %s15, 1
    %p54 = por %p52, %p53
    %p55 = scmp.ne.s32.totalorder %s44, %s45
    %p56 = scmp.eq.s32.totalorder %s15, 0
    %p57 = por %p55, %p56
    %p58 = scmp.ne.s32.totalorder %s44, %s45
    %p59 = scmp.eq.s32.totalorder %s16, 1
    %p60 = por %p58, %p59
    %p62 = scmp.ne.s32.totalorder %s45, %s61
    %p63 = scmp.eq.s32.totalorder %s16, 0
    %p64 = por %p62, %p63
    %s65 = ssub.s32 %s19, %s28
    %p66 = scmp.eq.s32.totalorder %s65, 0
    %s68 = sadd.s32 %s67, 1
    %s69 = scalar_select %p66, %s67, %s68
    %p72 = pneg %p66
    %p73 = scmp.eq.s32.totalorder %s10, 1
    %p74 = por %p72, %p73
    %p75 = scmp.ne.s32.totalorder %s67, %s70
    %p76 = scmp.eq.s32.totalorder %s10, 0
    %p77 = por %p75, %p76
    %p78 = scmp.ne.s32.totalorder %s67, %s70
    %p79 = scmp.eq.s32.totalorder %s15, 1
    %p80 = por %p78, %p79
    %p81 = scmp.ne.s32.totalorder %s70, %s71
    %p82 = scmp.eq.s32.totalorder %s15, 0
    %p83 = por %p81, %p82
    %p84 = scmp.ne.s32.totalorder %s70, %s71
    %p85 = scmp.eq.s32.totalorder %s16, 1
    %p86 = por %p84, %p85
    %p88 = scmp.ne.s32.totalorder %s71, %s87
    %p89 = scmp.eq.s32.totalorder %s16, 0
    %p90 = por %p88, %p89
    %s91 = ssub.s32 %s19, %s28
    %p92 = scmp.eq.s32.totalorder %s91, 0
    %s94 = sadd.s32 %s93, 1
    %s95 = scalar_select %p92, %s93, %s94
    %p98 = pneg %p92
    %p99 = scmp.eq.s32.totalorder %s10, 1
    %p100 = por %p98, %p99
    %p101 = scmp.ne.s32.totalorder %s93, %s96
    %p102 = scmp.eq.s32.totalorder %s10, 0
    %p103 = por %p101, %p102
    %p104 = scmp.ne.s32.totalorder %s93, %s96
    %p105 = scmp.eq.s32.totalorder %s15, 1
    %p106 = por %p104, %p105
    %p107 = scmp.ne.s32.totalorder %s96, %s97
    %p108 = scmp.eq.s32.totalorder %s15, 0
    %p109 = por %p107, %p108
    %p110 = scmp.ne.s32.totalorder %s96, %s97
    %p111 = scmp.eq.s32.totalorder %s16, 1
    %p112 = por %p110, %p111
    %p114 = scmp.ne.s32.totalorder %s97, %s113
    %p115 = scmp.eq.s32.totalorder %s16, 0
    %p116 = por %p114, %p115
    %s117 = ssub.s32 %s19, %s28
    %p118 = scmp.eq.s32.totalorder %s117, 0
    %s120 = sadd.s32 %s119, 1
    %s121 = scalar_select %p118, %s119, %s120
    %p124 = pneg %p118
    %p125 = scmp.eq.s32.totalorder %s10, 1
    %p126 = por %p124, %p125
    %p127 = scmp.ne.s32.totalorder %s119, %s122
    %p128 = scmp.eq.s32.totalorder %s10, 0
    %p129 = por %p127, %p128
    %p130 = scmp.ne.s32.totalorder %s119, %s122
    %p131 = scmp.eq.s32.totalorder %s15, 1
    %p132 = por %p130, %p131
    %p133 = scmp.ne.s32.totalorder %s122, %s123
    %p134 = scmp.eq.s32.totalorder %s15, 0
    %p135 = por %p133, %p134
    %p136 = scmp.ne.s32.totalorder %s122, %s123
    %p137 = scmp.eq.s32.totalorder %s16, 1
    %p138 = por %p136, %p137
    %p140 = scmp.ne.s32.totalorder %s123, %s139
    %p141 = scmp.eq.s32.totalorder %s16, 0
    %p142 = por %p140, %p141
    %s143 = ssub.s32 %s17, %s36
    %s144 = ssub.s32 %s18, %s32
    %s145 = sor.u32 %s143, %s144
    %s146 = ssub.s32 %s19, %s28
    %s147 = sor.u32 %s145, %s146
    %p148 = scmp.eq.s32.totalorder %s147, 0
    %s150 = sadd.s32 %s149, 1
    %s151 = scalar_select %p148, %s149, %s150
    %p154 = pneg %p148
    %p155 = scmp.eq.s32.totalorder %s10, 1
    %p156 = por %p154, %p155
    %p157 = scmp.ne.s32.totalorder %s149, %s152
    %p158 = scmp.eq.s32.totalorder %s10, 0
    %p159 = por %p157, %p158
    %p160 = scmp.ne.s32.totalorder %s149, %s152
    %p161 = scmp.eq.s32.totalorder %s15, 1
    %p162 = por %p160, %p161
    %p163 = scmp.ne.s32.totalorder %s152, %s153
    %p164 = scmp.eq.s32.totalorder %s15, 0
    %p165 = por %p163, %p164
    %p166 = scmp.ne.s32.totalorder %s152, %s153
    %p167 = scmp.eq.s32.totalorder %s16, 1
    %p168 = por %p166, %p167
    %p170 = scmp.ne.s32.totalorder %s153, %s169
    %p171 = scmp.eq.s32.totalorder %s16, 0
    %p172 = por %p170, %p171
    %p173 = scmp.le.s32.totalorder 1, %s10
    %p174 = scmp.lt.s32.totalorder %s10, 3
    %p175 = pnand %p173, %p174
    %p176 = pneg %p175
    // Predicated region
    $region9: #{_lambda_.7} parent=5 // pred_check
      _
    $region10: #{_lambda_.7} parent=5 // pred_check_branch
      %178 = sbr.rel (%p175) target = $region12
    $region11: #{_lambda_.7} parent=5 // pred_region
      %s179 = ssub.s32 %s10, 1
      // Predicated region
      $region13: #{_lambda_.7} parent=11 // pred_check
        %p180 = pneg %p83
      $region14: #{_lambda_.7} parent=11 // pred_check_branch
        %182 = sbr.rel (%p180) target = $region16
      $region15: #{_lambda_.7} parent=11 // pred_region
        %p183 = scmp.lt.s32.totalorder %s22, 0
        %s184 = scalar_select %p183, %s22, 0
        %s185 = smul.addr %s184, 4
        %s186 = scalar_lea.vmem %s1, %s185
      $region16: #{_lambda_.7} parent=11 // pred_fallthru
        _
      // Predicated region
      $region17: #{_lambda_.7} parent=11 // pred_check
        %p187 = pneg %p109
      $region18: #{_lambda_.7} parent=11 // pred_check_branch
        %189 = sbr.rel (%p187) target = $region20
      $region19: #{_lambda_.7} parent=11 // pred_region
        %p190 = scmp.lt.s32.totalorder %s22, 0
        %s191 = scalar_select %p190, %s22, 0
        %s192 = scalar_lea.vmem %s2, %s191
      $region20: #{_lambda_.7} parent=11 // pred_fallthru
        _
      // Predicated region
      $region21: #{_lambda_.7} parent=11 // pred_check
        %p193 = pneg %p135
      $region22: #{_lambda_.7} parent=11 // pred_check_branch
        %195 = sbr.rel (%p193) target = $region24
      $region23: #{_lambda_.7} parent=11 // pred_region
        %p196 = scmp.lt.s32.totalorder %s22, 0
        %s197 = scalar_select %p196, %s22, 0
        %s198 = scalar_lea.vmem %s3, %s197
      $region24: #{_lambda_.7} parent=11 // pred_fallthru
        _
    $region12: #{_lambda_.7} parent=5 // pred_fallthru
      _
    %p199 = scmp.lt.s32.totalorder %s10, 2
    // Predicated region
    $region25: #{_lambda_.7} parent=5 // pred_check
      %p200 = pneg %p199
    $region26: #{_lambda_.7} parent=5 // pred_check_branch
      %202 = sbr.rel (%p200) target = $region28
    $region27: #{_lambda_.7} parent=5 // pred_region
      // Predicated region
      $region29: #{_lambda_.7} parent=27 // pred_check
        %p203 = pneg %p51
      $region30: #{_lambda_.7} parent=27 // pred_check_branch
        %205 = sbr.rel (%p203) target = $region32
      $region31: #{_lambda_.7} parent=27 // pred_region
        %p206 = scmp.lt.s32.totalorder %s17, 1
        %s207 = scalar_select %p206, %s17, 1
        %p208 = scmp.lt.s32.totalorder %s18, 0
        %s209 = scalar_select %p208, %s18, 0
        %s210 = smul.addr %s209, 4
        %s211 = smul.addr %s207, 4
        %s212 = sadd.s32 %s210, %s211
        %s213 = smul.addr %s212, 4
        %s214 = scalar_lea.vmem %s0, %s213
      $region32: #{_lambda_.7} parent=27 // pred_fallthru
        _
    $region28: #{_lambda_.7} parent=5 // pred_fallthru
      _
    %p215 = scmp.le.s32.totalorder 1, %s10
    %p216 = scmp.lt.s32.totalorder %s10, 3
    %p217 = pnand %p215, %p216
    %p218 = pneg %p217
    // Predicated region
    $region33: #{_lambda_.7} parent=5 // pred_check
      _
    $region34: #{_lambda_.7} parent=5 // pred_check_branch
      %220 = sbr.rel (%p217) target = $region36
    $region35: #{_lambda_.7} parent=5 // pred_region
      %s221 = ssub.s32 %s10, 1
      %p222 = scmp.lt.s32.totalorder %s20, 1
      %s223 = scalar_select %p222, %s20, 1
      %p224 = scmp.lt.s32.totalorder %s21, 0
      %s225 = scalar_select %p224, %s21, 0
      %s226 = smul.addr %s225, 4
      %s227 = smul.addr %s223, 4
      %s228 = sadd.s32 %s226, %s227
      %s229 = smul.addr %s228, 4
      %s230 = scalar_lea.vmem %s0, %s229
      %p231 = pneg %p57
      %p232 = pneg %p54
      %p233 = scmp.lt.s32.totalorder %s22, 0
      %s234 = scalar_select %p233, %s22, 0
      %s235 = smul.addr %s234, 4
      %s236 = scalar_lea.vmem %s1, %s235
      %p237 = pneg %p83
      %p238 = pneg %p80
      %p239 = scmp.lt.s32.totalorder %s22, 0
      %s240 = scalar_select %p239, %s22, 0
      %s241 = scalar_lea.vmem %s2, %s240
      %p242 = pneg %p109
      %p243 = pneg %p106
      %p244 = scmp.lt.s32.totalorder %s22, 0
      %s245 = scalar_select %p244, %s22, 0
      %s246 = scalar_lea.vmem %s3, %s245
      %p247 = pneg %p135
      %p248 = pneg %p132
      %p249 = pneg %p165
      %p250 = pneg %p162
      %s251 = smul.u32 3, %s21
      %p252 = scmp.lt.s32.totalorder %s20, 1
      %s253 = scalar_select %p252, %s20, 1
      %p254 = scmp.lt.s32.totalorder %s251, 2
      %s255 = scalar_select %p254, %s251, 2
      %p256 = scmp.lt.s32.totalorder %s22, 0
      %s257 = scalar_select %p256, %s22, 0
      %s258 = sadd.s32 %s257, %s255
      %s259 = smul.addr %s253, 3
      %s260 = sadd.s32 %s258, %s259
      %s261 = smul.addr %s260, 4
      %s262 = scalar_lea.vmem %s4, %s261
      %p263 = scmp.lt.s32.totalorder %s20, 1
      %s264 = scalar_select %p263, %s20, 1
      %p265 = scmp.lt.s32.totalorder %s21, 0
      %s266 = scalar_select %p265, %s21, 0
      %s267 = smul.addr %s266, 4
      %s268 = smul.addr %s264, 4
      %s269 = sadd.s32 %s267, %s268
      %s270 = smul.addr %s269, 4
      %s271 = scalar_lea.vmem %s0, %s270
      %p272 = scmp.lt.s32.totalorder %s22, 0
      %s273 = scalar_select %p272, %s22, 0
      %s274 = smul.addr %s273, 4
      %s275 = scalar_lea.vmem %s1, %s274
      %p276 = scmp.lt.s32.totalorder %s22, 0
      %s277 = scalar_select %p276, %s22, 0
      %s278 = scalar_lea.vmem %s2, %s277
      %p279 = scmp.lt.s32.totalorder %s22, 0
      %s280 = scalar_select %p279, %s22, 0
      %s281 = scalar_lea.vmem %s3, %s280
      %s282 = smul.u32 3, %s21
      %p283 = scmp.lt.s32.totalorder %s20, 1
      %s284 = scalar_select %p283, %s20, 1
      %p285 = scmp.lt.s32.totalorder %s282, 2
      %s286 = scalar_select %p285, %s282, 2
      %p287 = scmp.lt.s32.totalorder %s22, 0
      %s288 = scalar_select %p287, %s22, 0
      %s289 = sadd.s32 %s288, %s286
      %s290 = smul.addr %s284, 3
      %s291 = sadd.s32 %s289, %s290
      %s292 = smul.addr %s291, 4
      %s293 = scalar_lea.vmem %s4, %s292
      %s294 = smul.u32 3, %s21
      %v296 = vld [vmem:[%s271] sm:$0xf]
      %v297 = vld [vmem:[%s271 + $0x4] sm:$0xf]
      %v298 = vld [vmem:[%s271 + $0x8] sm:$0x3]
      %v299 = vld [vmem:[%s275] sm:$0xf]
      %v300 = vld [vmem:[%s275 + $0x4] sm:$0xf]
      %v301 = vld [vmem:[%s275 + $0x8] sm:$0xf]
      %v302 = vld [vmem:[%s275 + $0xc] sm:$0xf]
      %v303 = vld [vmem:[%s275 + $0x10] sm:$0xf]
      %v304 = vld [vmem:[%s275 + $0x14] sm:$0xf]
      %v305 = vld [vmem:[%s275 + $0x18] sm:$0xf]
      %v306 = vld [vmem:[%s275 + $0x1c] sm:$0xf]
      %v307 = vld [vmem:[%s275 + $0x20] sm:$0xf]
      %v308 = vld [vmem:[%s275 + $0x24] sm:$0xf]
      %v309 = vld [vmem:[%s275 + $0x28] sm:$0xf]
      %v310 = vld [vmem:[%s275 + $0x2c] sm:$0xf]
      %v311 = vld [vmem:[%s275 + $0x30] sm:$0xf]
      %v312 = vld [vmem:[%s275 + $0x34] sm:$0xf]
      %v313 = vld [vmem:[%s275 + $0x38] sm:$0xf]
      %v314 = vld [vmem:[%s275 + $0x3c] sm:$0xf]
      %v318 = vunpack.c.l.b16 %v296
      %v319 = vunpack.c.l.b16 %v297
      %v320 = vunpack.c.l.b16 %v298
      %v321 = vpack.c.b16 %v319, %v318
      %v322 = vpack.c.b16 %v320, %v320
      %v341 = vunpack.c.l.b16 %v299
      %v342 = vunpack.c.l.b16 %v300
      %v343 = vunpack.c.l.b16 %v301
      %v344 = vunpack.c.l.b16 %v302
      %v345 = vunpack.c.l.b16 %v303
      %v346 = vunpack.c.l.b16 %v304
      %v347 = vunpack.c.l.b16 %v305
      %v348 = vunpack.c.l.b16 %v306
      %v349 = vunpack.c.l.b16 %v307
      %v350 = vunpack.c.l.b16 %v308
      %v351 = vunpack.c.l.b16 %v309
      %v352 = vunpack.c.l.b16 %v310
      %v353 = vunpack.c.l.b16 %v311
      %v354 = vunpack.c.l.b16 %v312
      %v355 = vunpack.c.l.b16 %v313
      %v356 = vunpack.c.l.b16 %v314
      %v357 = vpack.c.b16 %v342, %v341
      %v358 = vpack.c.b16 %v344, %v343
      %v359 = vpack.c.b16 %v346, %v345
      %v360 = vpack.c.b16 %v348, %v347
      %v361 = vpack.c.b16 %v350, %v349
      %v362 = vpack.c.b16 %v352, %v351
      %v363 = vpack.c.b16 %v354, %v353
      %v364 = vpack.c.b16 %v356, %v355
      %373 = vmatprep.subr.bf16.mxu0 0
      %374 = vmatpush1.bf16.msra.mxu0 %v357
      %375 = vmatprep.subr.bf16.mxu0 0
      %376 = vmatpush1.bf16.msra.mxu0 %v358
      %377 = vmatprep.subr.bf16.mxu0 0
      %378 = vmatpush1.bf16.msra.mxu0 %v359
      %379 = vmatprep.subr.bf16.mxu0 0
      %380 = vmatpush1.bf16.msra.mxu0 %v360
      %381 = vmatprep.subr.bf16.mxu0 0
      %382 = vmatpush1.bf16.msra.mxu0 %v361
      %383 = vmatprep.subr.bf16.mxu0 0
      %384 = vmatpush1.bf16.msra.mxu0 %v362
      %385 = vmatprep.subr.bf16.mxu0 0
      %386 = vmatpush1.bf16.msra.mxu0 %v363
      %387 = vmatprep.subr.bf16.mxu0 0
      %388 = vmatpush1.bf16.msra.mxu0 %v364
      %389 = vmatprep.subr.bf16.mxu0 0
      %390 = vmatpush1.bf16.msra.mxu0 0
      %391 = vmatprep.subr.bf16.mxu0 0
      %392 = vmatpush1.bf16.msra.mxu0 0
      %393 = vmatprep.subr.bf16.mxu0 0
      %394 = vmatpush1.bf16.msra.mxu0 0
      %395 = vmatprep.subr.bf16.mxu0 0
      %396 = vmatpush1.bf16.msra.mxu0 0
      %397 = vmatprep.subr.bf16.mxu0 0
      %398 = vmatpush1.bf16.msra.mxu0 0
      %399 = vmatprep.subr.bf16.mxu0 0
      %400 = vmatpush1.bf16.msra.mxu0 0
      %401 = vmatprep.subr.bf16.mxu0 0
      %402 = vmatpush1.bf16.msra.mxu0 0
      %403 = vmatprep.subr.bf16.mxu0 0
      %404 = vmatpush1.bf16.msra.mxu0 0
      %405 = vmatprep.mubr.bf16.mxu0 0
      %406 = vmatmul.mubr.bf16.gmra.mrb[0].mxu0 %v321
      %v407 = vpop.f32.mrb[0].mxu0
      %v408 = vadd.f32 0.0, %v407
      %v409 = vpop.f32.mrb[0].mxu0
      %v410 = vpop.f32.mrb[0].mxu0
      %v411 = vadd.f32 0.0, %v410
      %v412 = vpop.f32.mrb[0].mxu0
      %413 = vmatprep.mubr.bf16.mxu0 0
      %414 = vmatmul.mubr.bf16.gmra.mrb[0].mxu0 %v322
      %v415 = vpop.f32.mrb[0].mxu0
      %v416 = vadd.f32 0.0, %v415
      %v417 = vpop.f32.mrb[0].mxu0
      %v418 = vpop.f32.mrb[0].mxu0
      %v419 = vpop.f32.mrb[0].mxu0
      %420 = vdwg.mxu0
      %421 = vst [vmem:[#allocation2] sm:$0xff] %v408
      %422 = vst [vmem:[#allocation2 + $0x8] sm:$0xff] %v411
      %423 = vst [vmem:[#allocation2 + $0x10] sm:$0xf] %v416
      %v424 = vld [vmem:[#allocation2] sm:$0xff]
      %v425 = vld [vmem:[#allocation2 + $0x8] sm:$0xff]
      %v426 = vld [vmem:[#allocation2 + $0x10] sm:$0xf]
      %v427 = vld [vmem:[%s271] sm:$0xf]
      %v428 = vld [vmem:[%s271 + $0x4] sm:$0xf]
      %v429 = vld [vmem:[%s271 + $0x8] sm:$0x7]
      %v430 = vld [vmem:[%s275 + $0x40] sm:$0xf]
      %v431 = vld [vmem:[%s275 + $0x44] sm:$0xf]
      %v432 = vld [vmem:[%s275 + $0x48] sm:$0xf]
      %v433 = vld [vmem:[%s275 + $0x4c] sm:$0xf]
      %v434 = vld [vmem:[%s275 + $0x50] sm:$0xf]
      %v435 = vld [vmem:[%s275 + $0x54] sm:$0xf]
      %v436 = vld [vmem:[%s275 + $0x58] sm:$0xf]
      %v437 = vld [vmem:[%s275 + $0x5c] sm:$0xf]
      %v438 = vld [vmem:[%s275 + $0x60] sm:$0xf]
      %v439 = vld [vmem:[%s275 + $0x64] sm:$0xf]
      %v440 = vld [vmem:[%s275 + $0x68] sm:$0xf]
      %v441 = vld [vmem:[%s275 + $0x6c] sm:$0xf]
      %v442 = vld [vmem:[%s275 + $0x70] sm:$0xf]
      %v443 = vld [vmem:[%s275 + $0x74] sm:$0xf]
      %v444 = vld [vmem:[%s275 + $0x78] sm:$0xf]
      %v445 = vld [vmem:[%s275 + $0x7c] sm:$0xf]
      %v449 = vunpack.c.l.b16 %v427
      %v450 = vunpack.c.l.b16 %v428
      %v451 = vunpack.c.l.b16 %v429
      %v452 = vpack.c.b16 %v450, %v449
      %v453 = vpack.c.b16 %v451, %v451
      %vm454 = vsmask.f32 7424
      %v456 = vshrl.u32 %v452, 16
      %v458 = vshll.u32 %v452, 16
      %v460 = vrot.slane %v458, 1
      %v461 = vor.u32 %v456, %v460
      %v463 = vshll.u32 %v453, 16
      %v465 = vrot.slane %v463, 1
      %v466 = vsel %vm454, %v461, %v465
      %v467 = vshrl.u32 %v453, 16
      %v469 = vor.u32 %v467, %v465
      %v488 = vunpack.c.l.b16 %v430
      %v489 = vunpack.c.l.b16 %v431
      %v490 = vunpack.c.l.b16 %v432
      %v491 = vunpack.c.l.b16 %v433
      %v492 = vunpack.c.l.b16 %v434
      %v493 = vunpack.c.l.b16 %v435
      %v494 = vunpack.c.l.b16 %v436
      %v495 = vunpack.c.l.b16 %v437
      %v496 = vunpack.c.l.b16 %v438
      %v497 = vunpack.c.l.b16 %v439
      %v498 = vunpack.c.l.b16 %v440
      %v499 = vunpack.c.l.b16 %v441
      %v500 = vunpack.c.l.b16 %v442
      %v501 = vunpack.c.l.b16 %v443
      %v502 = vunpack.c.l.b16 %v444
      %v503 = vunpack.c.l.b16 %v445
      %v504 = vpack.c.b16 %v489, %v488
      %v505 = vpack.c.b16 %v491, %v490
      %v506 = vpack.c.b16 %v493, %v492
      %v507 = vpack.c.b16 %v495, %v494
      %v508 = vpack.c.b16 %v497, %v496
      %v509 = vpack.c.b16 %v499, %v498
      %v510 = vpack.c.b16 %v501, %v500
      %v511 = vpack.c.b16 %v503, %v502
      %520 = vmatprep.subr.bf16.mxu0 0
      %521 = vmatpush1.bf16.msra.mxu0 %v504
      %522 = vmatprep.subr.bf16.mxu0 0
      %523 = vmatpush1.bf16.msra.mxu0 %v505
      %524 = vmatprep.subr.bf16.mxu0 0
      %525 = vmatpush1.bf16.msra.mxu0 %v506
      %526 = vmatprep.subr.bf16.mxu0 0
      %527 = vmatpush1.bf16.msra.mxu0 %v507
      %528 = vmatprep.subr.bf16.mxu0 0
      %529 = vmatpush1.bf16.msra.mxu0 %v508
      %530 = vmatprep.subr.bf16.mxu0 0
      %531 = vmatpush1.bf16.msra.mxu0 %v509
      %532 = vmatprep.subr.bf16.mxu0 0
      %533 = vmatpush1.bf16.msra.mxu0 %v510
      %534 = vmatprep.subr.bf16.mxu0 0
      %535 = vmatpush1.bf16.msra.mxu0 %v511
      %536 = vmatprep.subr.bf16.mxu0 0
      %537 = vmatpush1.bf16.msra.mxu0 0
      %538 = vmatprep.subr.bf16.mxu0 0
      %539 = vmatpush1.bf16.msra.mxu0 0
      %540 = vmatprep.subr.bf16.mxu0 0
      %541 = vmatpush1.bf16.msra.mxu0 0
      %542 = vmatprep.subr.bf16.mxu0 0
      %543 = vmatpush1.bf16.msra.mxu0 0
      %544 = vmatprep.subr.bf16.mxu0 0
      %545 = vmatpush1.bf16.msra.mxu0 0
      %546 = vmatprep.subr.bf16.mxu0 0
      %547 = vmatpush1.bf16.msra.mxu0 0
      %548 = vmatprep.subr.bf16.mxu0 0
      %549 = vmatpush1.bf16.msra.mxu0 0
      %550 = vmatprep.subr.bf16.mxu0 0
      %551 = vmatpush1.bf16.msra.mxu0 0
      %552 = vmatprep.mubr.bf16.mxu0 0
      %553 = vmatmul.mubr.bf16.gmra.mrb[0].mxu0 %v466
      %v554 = vpop.f32.mrb[0].mxu0
      %v555 = vadd.f32 0.0, %v554
      %v556 = vpop.f32.mrb[0].mxu0
      %v557 = vpop.f32.mrb[0].mxu0
      %v558 = vadd.f32 0.0, %v557
      %v559 = vpop.f32.mrb[0].mxu0
      %560 = vmatprep.mubr.bf16.mxu0 0
      %561 = vmatmul.mubr.bf16.gmra.mrb[0].mxu0 %v469
      %v562 = vpop.f32.mrb[0].mxu0
      %v563 = vadd.f32 0.0, %v562
      %v564 = vpop.f32.mrb[0].mxu0
      %v565 = vpop.f32.mrb[0].mxu0
      %v566 = vpop.f32.mrb[0].mxu0
      %567 = vdwg.mxu0
      %v568 = vadd.f32 %v424, %v555
      %v569 = vadd.f32 %v425, %v558
      %v570 = vadd.f32 %v426, %v563
      %571 = vst [vmem:[#allocation2] sm:$0xff] %v568
      %572 = vst [vmem:[#allocation2 + $0x8] sm:$0xff] %v569
      %573 = vst [vmem:[#allocation2 + $0x10] sm:$0xf] %v570
      %v574 = vld [vmem:[#allocation2] sm:$0xff]
      %v575 = vld [vmem:[#allocation2 + $0x8] sm:$0xff]
      %v576 = vld [vmem:[#allocation2 + $0x10] sm:$0xf]
      %v577 = vld [vmem:[%s271] sm:$0xc]
      %v578 = vld [vmem:[%s271 + $0x4] sm:$0xf]
      %v579 = vld [vmem:[%s271 + $0x8] sm:$0xf]
      %v580 = vld [vmem:[%s271 + $0xc] sm:$0x1]
      %v581 = vld [vmem:[%s275 + $0x80] sm:$0xf]
      %v582 = vld [vmem:[%s275 + $0x84] sm:$0xf]
      %v583 = vld [vmem:[%s275 + $0x88] sm:$0xf]
      %v584 = vld [vmem:[%s275 + $0x8c] sm:$0xf]
      %v585 = vld [vmem:[%s275 + $0x90] sm:$0xf]
      %v586 = vld [vmem:[%s275 + $0x94] sm:$0xf]
      %v587 = vld [vmem:[%s275 + $0x98] sm:$0xf]
      %v588 = vld [vmem:[%s275 + $0x9c] sm:$0xf]
      %v589 = vld [vmem:[%s275 + $0xa0] sm:$0xf]
      %v590 = vld [vmem:[%s275 + $0xa4] sm:$0xf]
      %v591 = vld [vmem:[%s275 + $0xa8] sm:$0xf]
      %v592 = vld [vmem:[%s275 + $0xac] sm:$0xf]
      %v593 = vld [vmem:[%s275 + $0xb0] sm:$0xf]
      %v594 = vld [vmem:[%s275 + $0xb4] sm:$0xf]
      %v595 = vld [vmem:[%s275 + $0xb8] sm:$0xf]
      %v596 = vld [vmem:[%s275 + $0xbc] sm:$0xf]
      %v601 = vunpack.c.l.b16 %v577
      %v602 = vunpack.c.l.b16 %v578
      %v603 = vunpack.c.l.b16 %v579
      %v604 = vunpack.c.l.b16 %v580
      %v605 = vpack.c.b16 %v602, %v601
      %v606 = vpack.c.b16 %v604, %v603
      %vm607 = vsmask.f32 5376
      %v609 = vshrl.u32 %v605, 16
      %v611 = vrot.slane %v609, 2
      %v612 = vshll.u32 %v605, 16
      %v614 = vrot.slane %v612, 3
      %v615 = vor.u32 %v611, %v614
      %v617 = vshrl.u32 %v606, 16
      %v619 = vrot.slane %v617, 2
      %v620 = vshll.u32 %v606, 16
      %v622 = vrot.slane %v620, 3
      %v623 = vor.u32 %v619, %v622
      %v624 = vsel %vm607, %v615, %v623
      %v643 = vunpack.c.l.b16 %v581
      %v644 = vunpack.c.l.b16 %v582
      %v645 = vunpack.c.l.b16 %v583
      %v646 = vunpack.c.l.b16 %v584
      %v647 = vunpack.c.l.b16 %v585
      %v648 = vunpack.c.l.b16 %v586
      %v649 = vunpack.c.l.b16 %v587
      %v650 = vunpack.c.l.b16 %v588
      %v651 = vunpack.c.l.b16 %v589
      %v652 = vunpack.c.l.b16 %v590
      %v653 = vunpack.c.l.b16 %v591
      %v654 = vunpack.c.l.b16 %v592
      %v655 = vunpack.c.l.b16 %v593
      %v656 = vunpack.c.l.b16 %v594
      %v657 = vunpack.c.l.b16 %v595
      %v658 = vunpack.c.l.b16 %v596
      %v659 = vpack.c.b16 %v644, %v643
      %v660 = vpack.c.b16 %v646, %v645
      %v661 = vpack.c.b16 %v648, %v647
      %v662 = vpack.c.b16 %v650, %v649
      %v663 = vpack.c.b16 %v652, %v651
      %v664 = vpack.c.b16 %v654, %v653
      %v665 = vpack.c.b16 %v656, %v655
      %v666 = vpack.c.b16 %v658, %v657
      %675 = vmatprep.subr.bf16.mxu0 0
      %676 = vmatpush1.bf16.msra.mxu0 %v659
      %677 = vmatprep.subr.bf16.mxu0 0
      %678 = vmatpush1.bf16.msra.mxu0 %v660
      %679 = vmatprep.subr.bf16.mxu0 0
      %680 = vmatpush1.bf16.msra.mxu0 %v661
      %681 = vmatprep.subr.bf16.mxu0 0
      %682 = vmatpush1.bf16.msra.mxu0 %v662
      %683 = vmatprep.subr.bf16.mxu0 0
      %684 = vmatpush1.bf16.msra.mxu0 %v663
      %685 = vmatprep.subr.bf16.mxu0 0
      %686 = vmatpush1.bf16.msra.mxu0 %v664
      %687 = vmatprep.subr.bf16.mxu0 0
      %688 = vmatpush1.bf16.msra.mxu0 %v665
      %689 = vmatprep.subr.bf16.mxu0 0
      %690 = vmatpush1.bf16.msra.mxu0 %v666
      %691 = vmatprep.subr.bf16.mxu0 0
      %692 = vmatpush1.bf16.msra.mxu0 0
      %693 = vmatprep.subr.bf16.mxu0 0
      %694 = vmatpush1.bf16.msra.mxu0 0
      %695 = vmatprep.subr.bf16.mxu0 0
      %696 = vmatpush1.bf16.msra.mxu0 0
      %697 = vmatprep.subr.bf16.mxu0 0
      %698 = vmatpush1.bf16.msra.mxu0 0
      %699 = vmatprep.subr.bf16.mxu0 0
      %700 = vmatpush1.bf16.msra.mxu0 0
      %701 = vmatprep.subr.bf16.mxu0 0
      %702 = vmatpush1.bf16.msra.mxu0 0
      %703 = vmatprep.subr.bf16.mxu0 0
      %704 = vmatpush1.bf16.msra.mxu0 0
      %705 = vmatprep.subr.bf16.mxu0 0
      %706 = vmatpush1.bf16.msra.mxu0 0
      %707 = vmatprep.mubr.bf16.mxu0 0
      %708 = vmatmul.mubr.bf16.gmra.mrb[0].mxu0 %v624
      %v709 = vpop.f32.mrb[0].mxu0
      %v710 = vadd.f32 0.0, %v709
      %v711 = vpop.f32.mrb[0].mxu0
      %v712 = vpop.f32.mrb[0].mxu0
      %v713 = vadd.f32 0.0, %v712
      %v714 = vpop.f32.mrb[0].mxu0
      %715 = vmatprep.mubr.bf16.mxu0 0
      %716 = vmatmul.mubr.bf16.gmra.mrb[0].mxu0 %v623
      %v717 = vpop.f32.mrb[0].mxu0
      %v718 = vadd.f32 0.0, %v717
      %v719 = vpop.f32.mrb[0].mxu0
      %v720 = vpop.f32.mrb[0].mxu0
      %v721 = vpop.f32.mrb[0].mxu0
      %722 = vdwg.mxu0
      %v723 = vadd.f32 %v574, %v710
      %v724 = vadd.f32 %v575, %v713
      %v725 = vadd.f32 %v576, %v718
      %726 = vst [vmem:[#allocation2] sm:$0xff] %v723
      %727 = vst [vmem:[#allocation2 + $0x8] sm:$0xff] %v724
      %728 = vst [vmem:[#allocation2 + $0x10] sm:$0xf] %v725
      %v729 = vld [vmem:[#allocation2] sm:$0xff]
      %v730 = vld [vmem:[#allocation2 + $0x8] sm:$0xff]
      %v731 = vld [vmem:[#allocation2 + $0x10] sm:$0xf]
      %v732 = vld [vmem:[%s271] sm:$0x8]
      %v733 = vld [vmem:[%s271 + $0x4] sm:$0xf]
      %v734 = vld [vmem:[%s271 + $0x8] sm:$0xf]
      %v735 = vld [vmem:[%s271 + $0xc] sm:$0x1]
      %v736 = vld [vmem:[%s275 + $0xc0] sm:$0xf]
      %v737 = vld [vmem:[%s275 + $0xc4] sm:$0xf]
      %v738 = vld [vmem:[%s275 + $0xc8] sm:$0xf]
      %v739 = vld [vmem:[%s275 + $0xcc] sm:$0xf]
      %v740 = vld [vmem:[%s275 + $0xd0] sm:$0xf]
      %v741 = vld [vmem:[%s275 + $0xd4] sm:$0xf]
      %v742 = vld [vmem:[%s275 + $0xd8] sm:$0xf]
      %v743 = vld [vmem:[%s275 + $0xdc] sm:$0xf]
      %v744 = vld [vmem:[%s275 + $0xe0] sm:$0xf]
      %v745 = vld [vmem:[%s275 + $0xe4] sm:$0xf]
      %v746 = vld [vmem:[%s275 + $0xe8] sm:$0xf]
      %v747 = vld [vmem:[%s275 + $0xec] sm:$0xf]
      %v748 = vld [vmem:[%s275 + $0xf0] sm:$0xf]
      %v749 = vld [vmem:[%s275 + $0xf4] sm:$0xf]
      %v750 = vld [vmem:[%s275 + $0xf8] sm:$0xf]
      %v751 = vld [vmem:[%s275 + $0xfc] sm:$0xf]
      %v756 = vunpack.c.l.b16 %v732
      %v757 = vunpack.c.l.b16 %v733
      %v758 = vunpack.c.l.b16 %v734
      %v759 = vunpack.c.l.b16 %v735
      %v760 = vpack.c.b16 %v757, %v756
      %v761 = vpack.c.b16 %v759, %v758
      %vm762 = vcmask 1044480
      %v763 = vrot.slane %v760, 3
      %v764 = vrot.slane %v761, 3
      %v765 = vsel %vm762, %v763, %v764
      %v784 = vunpack.c.l.b16 %v736
      %v785 = vunpack.c.l.b16 %v737
      %v786 = vunpack.c.l.b16 %v738
      %v787 = vunpack.c.l.b16 %v739
      %v788 = vunpack.c.l.b16 %v740
      %v789 = vunpack.c.l.b16 %v741
      %v790 = vunpack.c.l.b16 %v742
      %v791 = vunpack.c.l.b16 %v743
      %v792 = vunpack.c.l.b16 %v744
      %v793 = vunpack.c.l.b16 %v745
      %v794 = vunpack.c.l.b16 %v746
      %v795 = vunpack.c.l.b16 %v747
      %v796 = vunpack.c.l.b16 %v748
      %v797 = vunpack.c.l.b16 %v749
      %v798 = vunpack.c.l.b16 %v750
      %v799 = vunpack.c.l.b16 %v751
      %v800 = vpack.c.b16 %v785, %v784
      %v801 = vpack.c.b16 %v787, %v786
      %v802 = vpack.c.b16 %v789, %v788
      %v803 = vpack.c.b16 %v791, %v790
      %v804 = vpack.c.b16 %v793, %v792
      %v805 = vpack.c.b16 %v795, %v794
      %v806 = vpack.c.b16 %v797, %v796
      %v807 = vpack.c.b16 %v799, %v798
      %816 = vmatprep.subr.bf16.mxu0 0
      %817 = vmatpush1.bf16.msra.mxu0 %v800
      %818 = vmatprep.subr.bf16.mxu0 0
      %819 = vmatpush1.bf16.msra.mxu0 %v801
      %820 = vmatprep.subr.bf16.mxu0 0
      %821 = vmatpush1.bf16.msra.mxu0 %v802
      %822 = vmatprep.subr.bf16.mxu0 0
      %823 = vmatpush1.bf16.msra.mxu0 %v803
      %824 = vmatprep.subr.bf16.mxu0 0
      %825 = vmatpush1.bf16.msra.mxu0 %v804
      %826 = vmatprep.subr.bf16.mxu0 0
      %827 = vmatpush1.bf16.msra.mxu0 %v805
      %828 = vmatprep.subr.bf16.mxu0 0
      %829 = vmatpush1.bf16.msra.mxu0 %v806
      %830 = vmatprep.subr.bf16.mxu0 0
      %831 = vmatpush1.bf16.msra.mxu0 %v807
      %832 = vmatprep.subr.bf16.mxu0 0
      %833 = vmatpush1.bf16.msra.mxu0 0
      %834 = vmatprep.subr.bf16.mxu0 0
      %835 = vmatpush1.bf16.msra.mxu0 0
      %836 = vmatprep.subr.bf16.mxu0 0
      %837 = vmatpush1.bf16.msra.mxu0 0
      %838 = vmatprep.subr.bf16.mxu0 0
      %839 = vmatpush1.bf16.msra.mxu0 0
      %840 = vmatprep.subr.bf16.mxu0 0
      %841 = vmatpush1.bf16.msra.mxu0 0
      %842 = vmatprep.subr.bf16.mxu0 0
      %843 = vmatpush1.bf16.msra.mxu0 0
      %844 = vmatprep.subr.bf16.mxu0 0
      %845 = vmatpush1.bf16.msra.mxu0 0
      %846 = vmatprep.subr.bf16.mxu0 0
      %847 = vmatpush1.bf16.msra.mxu0 0
      %848 = vmatprep.mubr.bf16.mxu0 0
      %849 = vmatmul.mubr.bf16.gmra.mrb[0].mxu0 %v765
      %v850 = vpop.f32.mrb[0].mxu0
      %v851 = vadd.f32 0.0, %v850
      %v852 = vpop.f32.mrb[0].mxu0
      %v853 = vpop.f32.mrb[0].mxu0
      %v854 = vadd.f32 0.0, %v853
      %v855 = vpop.f32.mrb[0].mxu0
      %856 = vmatprep.mubr.bf16.mxu0 0
      %857 = vmatmul.mubr.bf16.gmra.mrb[0].mxu0 %v764
      %v858 = vpop.f32.mrb[0].mxu0
      %v859 = vadd.f32 0.0, %v858
      %v860 = vpop.f32.mrb[0].mxu0
      %v861 = vpop.f32.mrb[0].mxu0
      %v862 = vpop.f32.mrb[0].mxu0
      %863 = vdwg.mxu0
      %v864 = vadd.f32 %v729, %v851
      %v865 = vadd.f32 %v730, %v854
      %v866 = vadd.f32 %v731, %v859
      %867 = vst [vmem:[#allocation2] sm:$0xff] %v864
      %868 = vst [vmem:[#allocation2 + $0x8] sm:$0xff] %v865
      %869 = vst [vmem:[#allocation2 + $0x10] sm:$0xf] %v866
      %v870 = vld [vmem:[#allocation2] sm:$0xff]
      %v871 = vld [vmem:[#allocation2 + $0x8] sm:$0xff]
      %v872 = vld [vmem:[#allocation2 + $0x10] sm:$0xf]
      %v873 = vld [vmem:[%s278] sm:$0x1]
      %v875 = vlaneseq
      %v876 = vshrl.u32 %v875, 7
      %v877 = vsub.s32 0, %v876
      %v878 = vrot.slane %v873, %v877
      %v880 = vmul.f32 %v870, %v878
      %v881 = vmul.f32 %v871, %v878
      %v882 = vmul.f32 %v872, %v878
      %v883 = vld [vmem:[%s281] sm:$0x1]
      %v885 = vlaneseq
      %v886 = vshrl.u32 %v885, 7
      %v887 = vsub.s32 0, %v886
      %v888 = vrot.slane %v883, %v887
      %v890 = vadd.f32 %v880, %v888
      %v891 = vadd.f32 %v881, %v888
      %v892 = vadd.f32 %v882, %v888
      %vm893 = vcmp.ge.f32.partialorder %v890, 0.0
      %vm894 = vcmp.ge.f32.partialorder %v891, 0.0
      %vm895 = vcmp.ge.f32.partialorder %v892, 0.0
      %v896 = vmul.f32 %v890, 0.2
      %v897 = vmul.f32 %v891, 0.2
      %v898 = vmul.f32 %v892, 0.2
      %v899 = vsel %vm893, %v890, %v896
      %v900 = vsel %vm894, %v891, %v897
      %v901 = vsel %vm895, %v892, %v898
      %v902 = vpack.c.bf16 %v900, %v899
      %v903 = vpack.c.bf16 %v901, %v901
      %v906 = vunpack.c.l.b16 %v902
      %v907 = vunpack.c.h.b16 %v902
      %v908 = vunpack.c.l.b16 %v903
      %v909 = vpack.c.b16 %v906, %v906
      %v910 = vpack.c.b16 %v907, %v907
      %v911 = vpack.c.b16 %v908, %v908
      %915 = vst [vmem:[%s293] sm:$0xf] %v909
      %916 = vst [vmem:[%s293 + $0x4] sm:$0xf] %v910
      %917 = vst [vmem:[%s293 + $0x8] sm:$0x3] %v911
      %s918 = smul.u32 3, %s21
      %p919 = scmp.lt.s32.totalorder %s20, 1
      %s920 = scalar_select %p919, %s20, 1
      %p921 = scmp.lt.s32.totalorder %s918, 2
      %s922 = scalar_select %p921, %s918, 2
      %p923 = scmp.lt.s32.totalorder %s22, 0
      %s924 = scalar_select %p923, %s22, 0
      %s925 = sadd.s32 %s924, %s922
      %s926 = smul.addr %s920, 3
      %s927 = sadd.s32 %s925, %s926
      %s928 = smul.addr %s927, 4
      %s929 = scalar_lea.vmem %s4, %s928
      // Predicated region
      $region37: #{_lambda_.7} parent=35 // pred_check
        %p930 = pneg %p162
      $region38: #{_lambda_.7} parent=35 // pred_check_branch
        %932 = sbr.rel (%p930) target = $region40
      $region39: #{_lambda_.7} parent=35 // pred_region
        %s933 = smul.u32 3, %s21
      $region40: #{_lambda_.7} parent=35 // pred_fallthru
        _
    $region36: #{_lambda_.7} parent=5 // pred_fallthru
      _
    %p934 = scmp.le.s32.totalorder 2, %s10
    // Predicated region
    $region41: #{_lambda_.7} parent=5 // pred_check
      %p935 = pneg %p934
    $region42: #{_lambda_.7} parent=5 // pred_check_branch
      %937 = sbr.rel (%p935) target = $region44
    $region43: #{_lambda_.7} parent=5 // pred_region
      %s938 = ssub.s32 %s10, 2
      // Predicated region
      $region45: #{_lambda_.7} parent=43 // pred_check
        %p939 = pneg %p168
      $region46: #{_lambda_.7} parent=43 // pred_check_branch
        %941 = sbr.rel (%p939) target = $region48
      $region47: #{_lambda_.7} parent=43 // pred_region
        %s942 = smul.u32 3, %s24
        %p943 = scmp.lt.s32.totalorder %s23, 1
        %s944 = scalar_select %p943, %s23, 1
        %p945 = scmp.lt.s32.totalorder %s942, 2
        %s946 = scalar_select %p945, %s942, 2
        %p947 = scmp.lt.s32.totalorder %s25, 0
        %s948 = scalar_select %p947, %s25, 0
        %s949 = sadd.s32 %s948, %s946
        %s950 = smul.addr %s944, 3
        %s951 = sadd.s32 %s949, %s950
        %s952 = smul.addr %s951, 4
        %s953 = scalar_lea.vmem %s4, %s952
      $region48: #{_lambda_.7} parent=43 // pred_fallthru
        _
    $region44: #{_lambda_.7} parent=5 // pred_fallthru
      _
  $region6: #{_lambda_.7} parent=0 // loop_footer
    %s14 = sadd.s32 1, %s10
  $region7: #{_lambda_.7} parent=0 // loop_footer_branch
    %9 = sbr.rel target = $region3
  $region8: #{_lambda_.7} parent=0 // loop_exit
    _

// kernel: _lambda_.8
$region0: #{_lambda_.8}
  #allocation0 [shape = 'u32[]', space=smem, size = 0x4, offset = 0x4, fixed_abs, tag = 'smem constant byte address 0x4 - core index']
  #allocation1 [shape = 'u32[144,128]{1,0:T(1,128)}', space=vmem, size = 0x12000, scoped, tag = 'internal scratch']
  #allocation2 [shape = 'f32[18,128]{1,0:T(8,128)}', space=vmem, size = 0x3000, scoped, tag = 'scratch operand']
  %s0 = inlined_call_operand.vmem [shape: bf16[2,1,39,128], index: 0, kind: input, shape index: {}]
  %s1 = inlined_call_operand.vmem [shape: bf16[2048,128], index: 1, kind: input, shape index: {}]
  %s2 = inlined_call_operand.vmem [shape: f32[1,128], index: 2, kind: input, shape index: {}]
  %s3 = inlined_call_operand.vmem [shape: f32[1,128], index: 3, kind: input, shape index: {}]
  %s4 = inlined_call_operand.vmem [shape: bf16[2,18,128], index: 4, kind: output, shape index: {}]
  %s5 = sld [smem:[#allocation0]]
  $region49: #{_lambda_.8} parent=0
    _
  %s7 = ssub.s32 1, %s5
  %s8 = scalar_select 0, %s7, %s5
  loop: start=0, step=1, limit=4
  $region2: #{_lambda_.8} parent=0 // loop_pre_header
    _
  $region3: #{_lambda_.8} parent=0 // loop_header
    %s10 = sphi 0, %s14
    %p11 = scmp.ge.s32.totalorder %s10, 4
    %s17 = sphi 0, %s36
    %s18 = sphi 0, %s32
    %s19 = sphi 0, %s28
    %s20 = sphi 0, %s17
    %s21 = sphi 0, %s18
    %s22 = sphi 0, %s19
    %s23 = sphi 0, %s20
    %s24 = sphi 0, %s21
    %s25 = sphi 0, %s22
    %s41 = sphi 0, %s43
    %s44 = sphi 0, %s41
    %s45 = sphi 0, %s44
    %s61 = sphi 0, %s45
    %s67 = sphi 0, %s69
    %s70 = sphi 0, %s67
    %s71 = sphi 0, %s70
    %s87 = sphi 0, %s71
    %s93 = sphi 0, %s95
    %s96 = sphi 0, %s93
    %s97 = sphi 0, %s96
    %s113 = sphi 0, %s97
    %s119 = sphi 0, %s121
    %s122 = sphi 0, %s119
    %s123 = sphi 0, %s122
    %s139 = sphi 0, %s123
    %s149 = sphi 0, %s151
    %s152 = sphi 0, %s149
    %s153 = sphi 0, %s152
    %s169 = sphi 0, %s153
  $region4: #{_lambda_.8} parent=0 // loop_header_branch
    %13 = sbr.rel (%p11) target = $region8
  $region5: #{_lambda_.8} parent=0 // loop_body
    %s15 = ssub.s32 %s10, 1
    %s16 = ssub.s32 %s10, 2
    %s26 = sadd.s32 1, %s19
    %p27 = scmp.ge.s32.totalorder %s26, 1
    %s28 = scalar_select %p27, 0, %s26
    %s29 = sadd.s32 1, %s18
    %s30 = scalar_select %p27, %s29, %s18
    %p31 = scmp.ge.s32.totalorder %s30, 1
    %s32 = scalar_select %p31, 0, %s30
    %s33 = sadd.s32 1, %s17
    %s34 = scalar_select %p31, %s33, %s17
    %p35 = scmp.ge.s32.totalorder %s34, 2
    %s36 = scalar_select %p35, 0, %s34
    %s37 = ssub.s32 %s17, %s36
    %s38 = ssub.s32 %s18, %s32
    %s39 = sor.u32 %s37, %s38
    %p40 = scmp.eq.s32.totalorder %s39, 0
    %s42 = sadd.s32 %s41, 1
    %s43 = scalar_select %p40, %s41, %s42
    %p46 = pneg %p40
    %p47 = scmp.eq.s32.totalorder %s10, 1
    %p48 = por %p46, %p47
    %p49 = scmp.ne.s32.totalorder %s41, %s44
    %p50 = scmp.eq.s32.totalorder %s10, 0
    %p51 = por %p49, %p50
    %p52 = scmp.ne.s32.totalorder %s41, %s44
    %p53 = scmp.eq.s32.totalorder %s15, 1
    %p54 = por %p52, %p53
    %p55 = scmp.ne.s32.totalorder %s44, %s45
    %p56 = scmp.eq.s32.totalorder %s15, 0
    %p57 = por %p55, %p56
    %p58 = scmp.ne.s32.totalorder %s44, %s45
    %p59 = scmp.eq.s32.totalorder %s16, 1
    %p60 = por %p58, %p59
    %p62 = scmp.ne.s32.totalorder %s45, %s61
    %p63 = scmp.eq.s32.totalorder %s16, 0
    %p64 = por %p62, %p63
    %s65 = ssub.s32 %s19, %s28
    %p66 = scmp.eq.s32.totalorder %s65, 0
    %s68 = sadd.s32 %s67, 1
    %s69 = scalar_select %p66, %s67, %s68
    %p72 = pneg %p66
    %p73 = scmp.eq.s32.totalorder %s10, 1
    %p74 = por %p72, %p73
    %p75 = scmp.ne.s32.totalorder %s67, %s70
    %p76 = scmp.eq.s32.totalorder %s10, 0
    %p77 = por %p75, %p76
    %p78 = scmp.ne.s32.totalorder %s67, %s70
    %p79 = scmp.eq.s32.totalorder %s15, 1
    %p80 = por %p78, %p79
    %p81 = scmp.ne.s32.totalorder %s70, %s71
    %p82 = scmp.eq.s32.totalorder %s15, 0
    %p83 = por %p81, %p82
    %p84 = scmp.ne.s32.totalorder %s70, %s71
    %p85 = scmp.eq.s32.totalorder %s16, 1
    %p86 = por %p84, %p85
    %p88 = scmp.ne.s32.totalorder %s71, %s87
    %p89 = scmp.eq.s32.totalorder %s16, 0
    %p90 = por %p88, %p89
    %s91 = ssub.s32 %s19, %s28
    %p92 = scmp.eq.s32.totalorder %s91, 0
    %s94 = sadd.s32 %s93, 1
    %s95 = scalar_select %p92, %s93, %s94
    %p98 = pneg %p92
    %p99 = scmp.eq.s32.totalorder %s10, 1
    %p100 = por %p98, %p99
    %p101 = scmp.ne.s32.totalorder %s93, %s96
    %p102 = scmp.eq.s32.totalorder %s10, 0
    %p103 = por %p101, %p102
    %p104 = scmp.ne.s32.totalorder %s93, %s96
    %p105 = scmp.eq.s32.totalorder %s15, 1
    %p106 = por %p104, %p105
    %p107 = scmp.ne.s32.totalorder %s96, %s97
    %p108 = scmp.eq.s32.totalorder %s15, 0
    %p109 = por %p107, %p108
    %p110 = scmp.ne.s32.totalorder %s96, %s97
    %p111 = scmp.eq.s32.totalorder %s16, 1
    %p112 = por %p110, %p111
    %p114 = scmp.ne.s32.totalorder %s97, %s113
    %p115 = scmp.eq.s32.totalorder %s16, 0
    %p116 = por %p114, %p115
    %s117 = ssub.s32 %s19, %s28
    %p118 = scmp.eq.s32.totalorder %s117, 0
    %s120 = sadd.s32 %s119, 1
    %s121 = scalar_select %p118, %s119, %s120
    %p124 = pneg %p118
    %p125 = scmp.eq.s32.totalorder %s10, 1
    %p126 = por %p124, %p125
    %p127 = scmp.ne.s32.totalorder %s119, %s122
    %p128 = scmp.eq.s32.totalorder %s10, 0
    %p129 = por %p127, %p128
    %p130 = scmp.ne.s32.totalorder %s119, %s122
    %p131 = scmp.eq.s32.totalorder %s15, 1
    %p132 = por %p130, %p131
    %p133 = scmp.ne.s32.totalorder %s122, %s123
    %p134 = scmp.eq.s32.totalorder %s15, 0
    %p135 = por %p133, %p134
    %p136 = scmp.ne.s32.totalorder %s122, %s123
    %p137 = scmp.eq.s32.totalorder %s16, 1
    %p138 = por %p136, %p137
    %p140 = scmp.ne.s32.totalorder %s123, %s139
    %p141 = scmp.eq.s32.totalorder %s16, 0
    %p142 = por %p140, %p141
    %s143 = ssub.s32 %s17, %s36
    %s144 = ssub.s32 %s18, %s32
    %s145 = sor.u32 %s143, %s144
    %s146 = ssub.s32 %s19, %s28
    %s147 = sor.u32 %s145, %s146
    %p148 = scmp.eq.s32.totalorder %s147, 0
    %s150 = sadd.s32 %s149, 1
    %s151 = scalar_select %p148, %s149, %s150
    %p154 = pneg %p148
    %p155 = scmp.eq.s32.totalorder %s10, 1
    %p156 = por %p154, %p155
    %p157 = scmp.ne.s32.totalorder %s149, %s152
    %p158 = scmp.eq.s32.totalorder %s10, 0
    %p159 = por %p157, %p158
    %p160 = scmp.ne.s32.totalorder %s149, %s152
    %p161 = scmp.eq.s32.totalorder %s15, 1
    %p162 = por %p160, %p161
    %p163 = scmp.ne.s32.totalorder %s152, %s153
    %p164 = scmp.eq.s32.totalorder %s15, 0
    %p165 = por %p163, %p164
    %p166 = scmp.ne.s32.totalorder %s152, %s153
    %p167 = scmp.eq.s32.totalorder %s16, 1
    %p168 = por %p166, %p167
    %p170 = scmp.ne.s32.totalorder %s153, %s169
    %p171 = scmp.eq.s32.totalorder %s16, 0
    %p172 = por %p170, %p171
    %p173 = scmp.le.s32.totalorder 1, %s10
    %p174 = scmp.lt.s32.totalorder %s10, 3
    %p175 = pnand %p173, %p174
    %p176 = pneg %p175
    // Predicated region
    $region9: #{_lambda_.8} parent=5 // pred_check
      _
    $region10: #{_lambda_.8} parent=5 // pred_check_branch
      %178 = sbr.rel (%p175) target = $region12
    $region11: #{_lambda_.8} parent=5 // pred_region
      %s179 = ssub.s32 %s10, 1
      // Predicated region
      $region13: #{_lambda_.8} parent=11 // pred_check
        %p180 = pneg %p83
      $region14: #{_lambda_.8} parent=11 // pred_check_branch
        %182 = sbr.rel (%p180) target = $region16
      $region15: #{_lambda_.8} parent=11 // pred_region
        %p183 = scmp.lt.s32.totalorder %s22, 0
        %s184 = scalar_select %p183, %s22, 0
        %s185 = smul.addr %s184, 4
        %s186 = scalar_lea.vmem %s1, %s185
      $region16: #{_lambda_.8} parent=11 // pred_fallthru
        _
      // Predicated region
      $region17: #{_lambda_.8} parent=11 // pred_check
        %p187 = pneg %p109
      $region18: #{_lambda_.8} parent=11 // pred_check_branch
        %189 = sbr.rel (%p187) target = $region20
      $region19: #{_lambda_.8} parent=11 // pred_region
        %p190 = scmp.lt.s32.totalorder %s22, 0
        %s191 = scalar_select %p190, %s22, 0
        %s192 = scalar_lea.vmem %s2, %s191
      $region20: #{_lambda_.8} parent=11 // pred_fallthru
        _
      // Predicated region
      $region21: #{_lambda_.8} parent=11 // pred_check
        %p193 = pneg %p135
      $region22: #{_lambda_.8} parent=11 // pred_check_branch
        %195 = sbr.rel (%p193) target = $region24
      $region23: #{_lambda_.8} parent=11 // pred_region
        %p196 = scmp.lt.s32.totalorder %s22, 0
        %s197 = scalar_select %p196, %s22, 0
        %s198 = scalar_lea.vmem %s3, %s197
      $region24: #{_lambda_.8} parent=11 // pred_fallthru
        _
    $region12: #{_lambda_.8} parent=5 // pred_fallthru
      _
    %p199 = scmp.lt.s32.totalorder %s10, 2
    // Predicated region
    $region25: #{_lambda_.8} parent=5 // pred_check
      %p200 = pneg %p199
    $region26: #{_lambda_.8} parent=5 // pred_check_branch
      %202 = sbr.rel (%p200) target = $region28
    $region27: #{_lambda_.8} parent=5 // pred_region
      // Predicated region
      $region29: #{_lambda_.8} parent=27 // pred_check
        %p203 = pneg %p51
      $region30: #{_lambda_.8} parent=27 // pred_check_branch
        %205 = sbr.rel (%p203) target = $region32
      $region31: #{_lambda_.8} parent=27 // pred_region
        %p206 = scmp.lt.s32.totalorder %s17, 1
        %s207 = scalar_select %p206, %s17, 1
        %p208 = scmp.lt.s32.totalorder %s18, 0
        %s209 = scalar_select %p208, %s18, 0
        %s210 = smul.addr %s209, 5
        %s211 = smul.addr %s207, 5
        %s212 = sadd.s32 %s210, %s211
        %s213 = smul.addr %s212, 4
        %s214 = scalar_lea.vmem %s0, %s213
      $region32: #{_lambda_.8} parent=27 // pred_fallthru
        _
    $region28: #{_lambda_.8} parent=5 // pred_fallthru
      _
    %p215 = scmp.le.s32.totalorder 1, %s10
    %p216 = scmp.lt.s32.totalorder %s10, 3
    %p217 = pnand %p215, %p216
    %p218 = pneg %p217
    // Predicated region
    $region33: #{_lambda_.8} parent=5 // pred_check
      _
    $region34: #{_lambda_.8} parent=5 // pred_check_branch
      %220 = sbr.rel (%p217) target = $region36
    $region35: #{_lambda_.8} parent=5 // pred_region
      %s221 = ssub.s32 %s10, 1
      %p222 = scmp.lt.s32.totalorder %s20, 1
      %s223 = scalar_select %p222, %s20, 1
      %p224 = scmp.lt.s32.totalorder %s21, 0
      %s225 = scalar_select %p224, %s21, 0
      %s226 = smul.addr %s225, 5
      %s227 = smul.addr %s223, 5
      %s228 = sadd.s32 %s226, %s227
      %s229 = smul.addr %s228, 4
      %s230 = scalar_lea.vmem %s0, %s229
      %p231 = pneg %p57
      %p232 = pneg %p54
      %p233 = scmp.lt.s32.totalorder %s22, 0
      %s234 = scalar_select %p233, %s22, 0
      %s235 = smul.addr %s234, 4
      %s236 = scalar_lea.vmem %s1, %s235
      %p237 = pneg %p83
      %p238 = pneg %p80
      %p239 = scmp.lt.s32.totalorder %s22, 0
      %s240 = scalar_select %p239, %s22, 0
      %s241 = scalar_lea.vmem %s2, %s240
      %p242 = pneg %p109
      %p243 = pneg %p106
      %p244 = scmp.lt.s32.totalorder %s22, 0
      %s245 = scalar_select %p244, %s22, 0
      %s246 = scalar_lea.vmem %s3, %s245
      %p247 = pneg %p135
      %p248 = pneg %p132
      %p249 = pneg %p165
      %p250 = pneg %p162
      %s251 = smul.u32 3, %s21
      %p252 = scmp.lt.s32.totalorder %s20, 1
      %s253 = scalar_select %p252, %s20, 1
      %p254 = scmp.lt.s32.totalorder %s251, 2
      %s255 = scalar_select %p254, %s251, 2
      %p256 = scmp.lt.s32.totalorder %s22, 0
      %s257 = scalar_select %p256, %s22, 0
      %s258 = sadd.s32 %s257, %s255
      %s259 = smul.addr %s253, 3
      %s260 = sadd.s32 %s258, %s259
      %s261 = smul.addr %s260, 4
      %s262 = scalar_lea.vmem %s4, %s261
      %p263 = scmp.lt.s32.totalorder %s20, 1
      %s264 = scalar_select %p263, %s20, 1
      %p265 = scmp.lt.s32.totalorder %s21, 0
      %s266 = scalar_select %p265, %s21, 0
      %s267 = smul.addr %s266, 5
      %s268 = smul.addr %s264, 5
      %s269 = sadd.s32 %s267, %s268
      %s270 = smul.addr %s269, 4
      %s271 = scalar_lea.vmem %s0, %s270
      %p272 = scmp.lt.s32.totalorder %s22, 0
      %s273 = scalar_select %p272, %s22, 0
      %s274 = smul.addr %s273, 4
      %s275 = scalar_lea.vmem %s1, %s274
      %p276 = scmp.lt.s32.totalorder %s22, 0
      %s277 = scalar_select %p276, %s22, 0
      %s278 = scalar_lea.vmem %s2, %s277
      %p279 = scmp.lt.s32.totalorder %s22, 0
      %s280 = scalar_select %p279, %s22, 0
      %s281 = scalar_lea.vmem %s3, %s280
      %s282 = smul.u32 3, %s21
      %p283 = scmp.lt.s32.totalorder %s20, 1
      %s284 = scalar_select %p283, %s20, 1
      %p285 = scmp.lt.s32.totalorder %s282, 2
      %s286 = scalar_select %p285, %s282, 2
      %p287 = scmp.lt.s32.totalorder %s22, 0
      %s288 = scalar_select %p287, %s22, 0
      %s289 = sadd.s32 %s288, %s286
      %s290 = smul.addr %s284, 3
      %s291 = sadd.s32 %s289, %s290
      %s292 = smul.addr %s291, 4
      %s293 = scalar_lea.vmem %s4, %s292
      %s294 = smul.u32 3, %s21
      %v296 = vld [vmem:[%s271] sm:$0xf]
      %v297 = vld [vmem:[%s271 + $0x4] sm:$0xf]
      %v298 = vld [vmem:[%s271 + $0x8] sm:$0x1]
      %v299 = vld [vmem:[%s275] sm:$0xf]
      %v300 = vld [vmem:[%s275 + $0x4] sm:$0xf]
      %v301 = vld [vmem:[%s275 + $0x8] sm:$0xf]
      %v302 = vld [vmem:[%s275 + $0xc] sm:$0xf]
      %v303 = vld [vmem:[%s275 + $0x10] sm:$0xf]
      %v304 = vld [vmem:[%s275 + $0x14] sm:$0xf]
      %v305 = vld [vmem:[%s275 + $0x18] sm:$0xf]
      %v306 = vld [vmem:[%s275 + $0x1c] sm:$0xf]
      %v307 = vld [vmem:[%s275 + $0x20] sm:$0xf]
      %v308 = vld [vmem:[%s275 + $0x24] sm:$0xf]
      %v309 = vld [vmem:[%s275 + $0x28] sm:$0xf]
      %v310 = vld [vmem:[%s275 + $0x2c] sm:$0xf]
      %v311 = vld [vmem:[%s275 + $0x30] sm:$0xf]
      %v312 = vld [vmem:[%s275 + $0x34] sm:$0xf]
      %v313 = vld [vmem:[%s275 + $0x38] sm:$0xf]
      %v314 = vld [vmem:[%s275 + $0x3c] sm:$0xf]
      %v318 = vunpack.c.l.b16 %v296
      %v319 = vunpack.c.l.b16 %v297
      %v320 = vunpack.c.l.b16 %v298
      %v321 = vpack.c.b16 %v319, %v318
      %v322 = vpack.c.b16 %v320, %v320
      %v341 = vunpack.c.l.b16 %v299
      %v342 = vunpack.c.l.b16 %v300
      %v343 = vunpack.c.l.b16 %v301
      %v344 = vunpack.c.l.b16 %v302
      %v345 = vunpack.c.l.b16 %v303
      %v346 = vunpack.c.l.b16 %v304
      %v347 = vunpack.c.l.b16 %v305
      %v348 = vunpack.c.l.b16 %v306
      %v349 = vunpack.c.l.b16 %v307
      %v350 = vunpack.c.l.b16 %v308
      %v351 = vunpack.c.l.b16 %v309
      %v352 = vunpack.c.l.b16 %v310
      %v353 = vunpack.c.l.b16 %v311
      %v354 = vunpack.c.l.b16 %v312
      %v355 = vunpack.c.l.b16 %v313
      %v356 = vunpack.c.l.b16 %v314
      %v357 = vpack.c.b16 %v342, %v341
      %v358 = vpack.c.b16 %v344, %v343
      %v359 = vpack.c.b16 %v346, %v345
      %v360 = vpack.c.b16 %v348, %v347
      %v361 = vpack.c.b16 %v350, %v349
      %v362 = vpack.c.b16 %v352, %v351
      %v363 = vpack.c.b16 %v354, %v353
      %v364 = vpack.c.b16 %v356, %v355
      %373 = vmatprep.subr.bf16.mxu0 0
      %374 = vmatpush1.bf16.msra.mxu0 %v357
      %375 = vmatprep.subr.bf16.mxu0 0
      %376 = vmatpush1.bf16.msra.mxu0 %v358
      %377 = vmatprep.subr.bf16.mxu0 0
      %378 = vmatpush1.bf16.msra.mxu0 %v359
      %379 = vmatprep.subr.bf16.mxu0 0
      %380 = vmatpush1.bf16.msra.mxu0 %v360
      %381 = vmatprep.subr.bf16.mxu0 0
      %382 = vmatpush1.bf16.msra.mxu0 %v361
      %383 = vmatprep.subr.bf16.mxu0 0
      %384 = vmatpush1.bf16.msra.mxu0 %v362
      %385 = vmatprep.subr.bf16.mxu0 0
      %386 = vmatpush1.bf16.msra.mxu0 %v363
      %387 = vmatprep.subr.bf16.mxu0 0
      %388 = vmatpush1.bf16.msra.mxu0 %v364
      %389 = vmatprep.subr.bf16.mxu0 0
      %390 = vmatpush1.bf16.msra.mxu0 0
      %391 = vmatprep.subr.bf16.mxu0 0
      %392 = vmatpush1.bf16.msra.mxu0 0
      %393 = vmatprep.subr.bf16.mxu0 0
      %394 = vmatpush1.bf16.msra.mxu0 0
      %395 = vmatprep.subr.bf16.mxu0 0
      %396 = vmatpush1.bf16.msra.mxu0 0
      %397 = vmatprep.subr.bf16.mxu0 0
      %398 = vmatpush1.bf16.msra.mxu0 0
      %399 = vmatprep.subr.bf16.mxu0 0
      %400 = vmatpush1.bf16.msra.mxu0 0
      %401 = vmatprep.subr.bf16.mxu0 0
      %402 = vmatpush1.bf16.msra.mxu0 0
      %403 = vmatprep.subr.bf16.mxu0 0
      %404 = vmatpush1.bf16.msra.mxu0 0
      %405 = vmatprep.mubr.bf16.mxu0 0
      %406 = vmatmul.mubr.bf16.gmra.mrb[0].mxu0 %v321
      %v407 = vpop.f32.mrb[0].mxu0
      %v408 = vadd.f32 0.0, %v407
      %v409 = vpop.f32.mrb[0].mxu0
      %v410 = vpop.f32.mrb[0].mxu0
      %v411 = vadd.f32 0.0, %v410
      %v412 = vpop.f32.mrb[0].mxu0
      %413 = vmatprep.mubr.bf16.mxu0 0
      %414 = vmatmul.mubr.bf16.gmra.mrb[0].mxu0 %v322
      %v415 = vpop.f32.mrb[0].mxu0
      %v416 = vadd.f32 0.0, %v415
      %v417 = vpop.f32.mrb[0].mxu0
      %v418 = vpop.f32.mrb[0].mxu0
      %v419 = vpop.f32.mrb[0].mxu0
      %420 = vdwg.mxu0
      %421 = vst [vmem:[#allocation2] sm:$0xff] %v408
      %422 = vst [vmem:[#allocation2 + $0x8] sm:$0xff] %v411
      %423 = vst [vmem:[#allocation2 + $0x10] sm:$0x3] %v416
      %v424 = vld [vmem:[#allocation2] sm:$0xff]
      %v425 = vld [vmem:[#allocation2 + $0x8] sm:$0xff]
      %v426 = vld [vmem:[#allocation2 + $0x10] sm:$0x3]
      %v427 = vld [vmem:[%s271] sm:$0xf]
      %v428 = vld [vmem:[%s271 + $0x4] sm:$0xf]
      %v429 = vld [vmem:[%s271 + $0x8] sm:$0x3]
      %v430 = vld [vmem:[%s275 + $0x40] sm:$0xf]
      %v431 = vld [vmem:[%s275 + $0x44] sm:$0xf]
      %v432 = vld [vmem:[%s275 + $0x48] sm:$0xf]
      %v433 = vld [vmem:[%s275 + $0x4c] sm:$0xf]
      %v434 = vld [vmem:[%s275 + $0x50] sm:$0xf]
      %v435 = vld [vmem:[%s275 + $0x54] sm:$0xf]
      %v436 = vld [vmem:[%s275 + $0x58] sm:$0xf]
      %v437 = vld [vmem:[%s275 + $0x5c] sm:$0xf]
      %v438 = vld [vmem:[%s275 + $0x60] sm:$0xf]
      %v439 = vld [vmem:[%s275 + $0x64] sm:$0xf]
      %v440 = vld [vmem:[%s275 + $0x68] sm:$0xf]
      %v441 = vld [vmem:[%s275 + $0x6c] sm:$0xf]
      %v442 = vld [vmem:[%s275 + $0x70] sm:$0xf]
      %v443 = vld [vmem:[%s275 + $0x74] sm:$0xf]
      %v444 = vld [vmem:[%s275 + $0x78] sm:$0xf]
      %v445 = vld [vmem:[%s275 + $0x7c] sm:$0xf]
      %v449 = vunpack.c.l.b16 %v427
      %v450 = vunpack.c.l.b16 %v428
      %v451 = vunpack.c.l.b16 %v429
      %v452 = vpack.c.b16 %v450, %v449
      %v453 = vpack.c.b16 %v451, %v451
      %vm454 = vsmask.f32 7424
      %v456 = vshrl.u32 %v452, 16
      %v458 = vshll.u32 %v452, 16
      %v460 = vrot.slane %v458, 1
      %v461 = vor.u32 %v456, %v460
      %v463 = vshll.u32 %v453, 16
      %v465 = vrot.slane %v463, 1
      %v466 = vsel %vm454, %v461, %v465
      %v467 = vshrl.u32 %v453, 16
      %v469 = vor.u32 %v467, %v465
      %v488 = vunpack.c.l.b16 %v430
      %v489 = vunpack.c.l.b16 %v431
      %v490 = vunpack.c.l.b16 %v432
      %v491 = vunpack.c.l.b16 %v433
      %v492 = vunpack.c.l.b16 %v434
      %v493 = vunpack.c.l.b16 %v435
      %v494 = vunpack.c.l.b16 %v436
      %v495 = vunpack.c.l.b16 %v437
      %v496 = vunpack.c.l.b16 %v438
      %v497 = vunpack.c.l.b16 %v439
      %v498 = vunpack.c.l.b16 %v440
      %v499 = vunpack.c.l.b16 %v441
      %v500 = vunpack.c.l.b16 %v442
      %v501 = vunpack.c.l.b16 %v443
      %v502 = vunpack.c.l.b16 %v444
      %v503 = vunpack.c.l.b16 %v445
      %v504 = vpack.c.b16 %v489, %v488
      %v505 = vpack.c.b16 %v491, %v490
      %v506 = vpack.c.b16 %v493, %v492
      %v507 = vpack.c.b16 %v495, %v494
      %v508 = vpack.c.b16 %v497, %v496
      %v509 = vpack.c.b16 %v499, %v498
      %v510 = vpack.c.b16 %v501, %v500
      %v511 = vpack.c.b16 %v503, %v502
      %520 = vmatprep.subr.bf16.mxu0 0
      %521 = vmatpush1.bf16.msra.mxu0 %v504
      %522 = vmatprep.subr.bf16.mxu0 0
      %523 = vmatpush1.bf16.msra.mxu0 %v505
      %524 = vmatprep.subr.bf16.mxu0 0
      %525 = vmatpush1.bf16.msra.mxu0 %v506
      %526 = vmatprep.subr.bf16.mxu0 0
      %527 = vmatpush1.bf16.msra.mxu0 %v507
      %528 = vmatprep.subr.bf16.mxu0 0
      %529 = vmatpush1.bf16.msra.mxu0 %v508
      %530 = vmatprep.subr.bf16.mxu0 0
      %531 = vmatpush1.bf16.msra.mxu0 %v509
      %532 = vmatprep.subr.bf16.mxu0 0
      %533 = vmatpush1.bf16.msra.mxu0 %v510
      %534 = vmatprep.subr.bf16.mxu0 0
      %535 = vmatpush1.bf16.msra.mxu0 %v511
      %536 = vmatprep.subr.bf16.mxu0 0
      %537 = vmatpush1.bf16.msra.mxu0 0
      %538 = vmatprep.subr.bf16.mxu0 0
      %539 = vmatpush1.bf16.msra.mxu0 0
      %540 = vmatprep.subr.bf16.mxu0 0
      %541 = vmatpush1.bf16.msra.mxu0 0
      %542 = vmatprep.subr.bf16.mxu0 0
      %543 = vmatpush1.bf16.msra.mxu0 0
      %544 = vmatprep.subr.bf16.mxu0 0
      %545 = vmatpush1.bf16.msra.mxu0 0
      %546 = vmatprep.subr.bf16.mxu0 0
      %547 = vmatpush1.bf16.msra.mxu0 0
      %548 = vmatprep.subr.bf16.mxu0 0
      %549 = vmatpush1.bf16.msra.mxu0 0
      %550 = vmatprep.subr.bf16.mxu0 0
      %551 = vmatpush1.bf16.msra.mxu0 0
      %552 = vmatprep.mubr.bf16.mxu0 0
      %553 = vmatmul.mubr.bf16.gmra.mrb[0].mxu0 %v466
      %v554 = vpop.f32.mrb[0].mxu0
      %v555 = vadd.f32 0.0, %v554
      %v556 = vpop.f32.mrb[0].mxu0
      %v557 = vpop.f32.mrb[0].mxu0
      %v558 = vadd.f32 0.0, %v557
      %v559 = vpop.f32.mrb[0].mxu0
      %560 = vmatprep.mubr.bf16.mxu0 0
      %561 = vmatmul.mubr.bf16.gmra.mrb[0].mxu0 %v469
      %v562 = vpop.f32.mrb[0].mxu0
      %v563 = vadd.f32 0.0, %v562
      %v564 = vpop.f32.mrb[0].mxu0
      %v565 = vpop.f32.mrb[0].mxu0
      %v566 = vpop.f32.mrb[0].mxu0
      %567 = vdwg.mxu0
      %v568 = vadd.f32 %v424, %v555
      %v569 = vadd.f32 %v425, %v558
      %v570 = vadd.f32 %v426, %v563
      %571 = vst [vmem:[#allocation2] sm:$0xff] %v568
      %572 = vst [vmem:[#allocation2 + $0x8] sm:$0xff] %v569
      %573 = vst [vmem:[#allocation2 + $0x10] sm:$0x3] %v570
      %v574 = vld [vmem:[#allocation2] sm:$0xff]
      %v575 = vld [vmem:[#allocation2 + $0x8] sm:$0xff]
      %v576 = vld [vmem:[#allocation2 + $0x10] sm:$0x3]
      %v577 = vld [vmem:[%s271] sm:$0xe]
      %v578 = vld [vmem:[%s271 + $0x4] sm:$0xf]
      %v579 = vld [vmem:[%s271 + $0x8] sm:$0x3]
      %v580 = vld [vmem:[%s275 + $0x80] sm:$0xf]
      %v581 = vld [vmem:[%s275 + $0x84] sm:$0xf]
      %v582 = vld [vmem:[%s275 + $0x88] sm:$0xf]
      %v583 = vld [vmem:[%s275 + $0x8c] sm:$0xf]
      %v584 = vld [vmem:[%s275 + $0x90] sm:$0xf]
      %v585 = vld [vmem:[%s275 + $0x94] sm:$0xf]
      %v586 = vld [vmem:[%s275 + $0x98] sm:$0xf]
      %v587 = vld [vmem:[%s275 + $0x9c] sm:$0xf]
      %v588 = vld [vmem:[%s275 + $0xa0] sm:$0xf]
      %v589 = vld [vmem:[%s275 + $0xa4] sm:$0xf]
      %v590 = vld [vmem:[%s275 + $0xa8] sm:$0xf]
      %v591 = vld [vmem:[%s275 + $0xac] sm:$0xf]
      %v592 = vld [vmem:[%s275 + $0xb0] sm:$0xf]
      %v593 = vld [vmem:[%s275 + $0xb4] sm:$0xf]
      %v594 = vld [vmem:[%s275 + $0xb8] sm:$0xf]
      %v595 = vld [vmem:[%s275 + $0xbc] sm:$0xf]
      %v599 = vunpack.c.l.b16 %v577
      %v600 = vunpack.c.l.b16 %v578
      %v601 = vunpack.c.l.b16 %v579
      %v602 = vpack.c.b16 %v600, %v599
      %v603 = vpack.c.b16 %v601, %v601
      %vm604 = vcmask 1046528
      %v605 = vrot.slane %v602, 1
      %v606 = vrot.slane %v603, 1
      %v607 = vsel %vm604, %v605, %v606
      %v626 = vunpack.c.l.b16 %v580
      %v627 = vunpack.c.l.b16 %v581
      %v628 = vunpack.c.l.b16 %v582
      %v629 = vunpack.c.l.b16 %v583
      %v630 = vunpack.c.l.b16 %v584
      %v631 = vunpack.c.l.b16 %v585
      %v632 = vunpack.c.l.b16 %v586
      %v633 = vunpack.c.l.b16 %v587
      %v634 = vunpack.c.l.b16 %v588
      %v635 = vunpack.c.l.b16 %v589
      %v636 = vunpack.c.l.b16 %v590
      %v637 = vunpack.c.l.b16 %v591
      %v638 = vunpack.c.l.b16 %v592
      %v639 = vunpack.c.l.b16 %v593
      %v640 = vunpack.c.l.b16 %v594
      %v641 = vunpack.c.l.b16 %v595
      %v642 = vpack.c.b16 %v627, %v626
      %v643 = vpack.c.b16 %v629, %v628
      %v644 = vpack.c.b16 %v631, %v630
      %v645 = vpack.c.b16 %v633, %v632
      %v646 = vpack.c.b16 %v635, %v634
      %v647 = vpack.c.b16 %v637, %v636
      %v648 = vpack.c.b16 %v639, %v638
      %v649 = vpack.c.b16 %v641, %v640
      %658 = vmatprep.subr.bf16.mxu0 0
      %659 = vmatpush1.bf16.msra.mxu0 %v642
      %660 = vmatprep.subr.bf16.mxu0 0
      %661 = vmatpush1.bf16.msra.mxu0 %v643
      %662 = vmatprep.subr.bf16.mxu0 0
      %663 = vmatpush1.bf16.msra.mxu0 %v644
      %664 = vmatprep.subr.bf16.mxu0 0
      %665 = vmatpush1.bf16.msra.mxu0 %v645
      %666 = vmatprep.subr.bf16.mxu0 0
      %667 = vmatpush1.bf16.msra.mxu0 %v646
      %668 = vmatprep.subr.bf16.mxu0 0
      %669 = vmatpush1.bf16.msra.mxu0 %v647
      %670 = vmatprep.subr.bf16.mxu0 0
      %671 = vmatpush1.bf16.msra.mxu0 %v648
      %672 = vmatprep.subr.bf16.mxu0 0
      %673 = vmatpush1.bf16.msra.mxu0 %v649
      %674 = vmatprep.subr.bf16.mxu0 0
      %675 = vmatpush1.bf16.msra.mxu0 0
      %676 = vmatprep.subr.bf16.mxu0 0
      %677 = vmatpush1.bf16.msra.mxu0 0
      %678 = vmatprep.subr.bf16.mxu0 0
      %679 = vmatpush1.bf16.msra.mxu0 0
      %680 = vmatprep.subr.bf16.mxu0 0
      %681 = vmatpush1.bf16.msra.mxu0 0
      %682 = vmatprep.subr.bf16.mxu0 0
      %683 = vmatpush1.bf16.msra.mxu0 0
      %684 = vmatprep.subr.bf16.mxu0 0
      %685 = vmatpush1.bf16.msra.mxu0 0
      %686 = vmatprep.subr.bf16.mxu0 0
      %687 = vmatpush1.bf16.msra.mxu0 0
      %688 = vmatprep.subr.bf16.mxu0 0
      %689 = vmatpush1.bf16.msra.mxu0 0
      %690 = vmatprep.mubr.bf16.mxu0 0
      %691 = vmatmul.mubr.bf16.gmra.mrb[0].mxu0 %v607
      %v692 = vpop.f32.mrb[0].mxu0
      %v693 = vadd.f32 0.0, %v692
      %v694 = vpop.f32.mrb[0].mxu0
      %v695 = vpop.f32.mrb[0].mxu0
      %v696 = vadd.f32 0.0, %v695
      %v697 = vpop.f32.mrb[0].mxu0
      %698 = vmatprep.mubr.bf16.mxu0 0
      %699 = vmatmul.mubr.bf16.gmra.mrb[0].mxu0 %v606
      %v700 = vpop.f32.mrb[0].mxu0
      %v701 = vadd.f32 0.0, %v700
      %v702 = vpop.f32.mrb[0].mxu0
      %v703 = vpop.f32.mrb[0].mxu0
      %v704 = vpop.f32.mrb[0].mxu0
      %705 = vdwg.mxu0
      %v706 = vadd.f32 %v574, %v693
      %v707 = vadd.f32 %v575, %v696
      %v708 = vadd.f32 %v576, %v701
      %709 = vst [vmem:[#allocation2] sm:$0xff] %v706
      %710 = vst [vmem:[#allocation2 + $0x8] sm:$0xff] %v707
      %711 = vst [vmem:[#allocation2 + $0x10] sm:$0x3] %v708
      %v712 = vld [vmem:[#allocation2] sm:$0xff]
      %v713 = vld [vmem:[#allocation2 + $0x8] sm:$0xff]
      %v714 = vld [vmem:[#allocation2 + $0x10] sm:$0x3]
      %v715 = vld [vmem:[%s271] sm:$0xe]
      %v716 = vld [vmem:[%s271 + $0x4] sm:$0xf]
      %v717 = vld [vmem:[%s271 + $0x8] sm:$0x7]
      %v718 = vld [vmem:[%s275 + $0xc0] sm:$0xf]
      %v719 = vld [vmem:[%s275 + $0xc4] sm:$0xf]
      %v720 = vld [vmem:[%s275 + $0xc8] sm:$0xf]
      %v721 = vld [vmem:[%s275 + $0xcc] sm:$0xf]
      %v722 = vld [vmem:[%s275 + $0xd0] sm:$0xf]
      %v723 = vld [vmem:[%s275 + $0xd4] sm:$0xf]
      %v724 = vld [vmem:[%s275 + $0xd8] sm:$0xf]
      %v725 = vld [vmem:[%s275 + $0xdc] sm:$0xf]
      %v726 = vld [vmem:[%s275 + $0xe0] sm:$0xf]
      %v727 = vld [vmem:[%s275 + $0xe4] sm:$0xf]
      %v728 = vld [vmem:[%s275 + $0xe8] sm:$0xf]
      %v729 = vld [vmem:[%s275 + $0xec] sm:$0xf]
      %v730 = vld [vmem:[%s275 + $0xf0] sm:$0xf]
      %v731 = vld [vmem:[%s275 + $0xf4] sm:$0xf]
      %v732 = vld [vmem:[%s275 + $0xf8] sm:$0xf]
      %v733 = vld [vmem:[%s275 + $0xfc] sm:$0xf]
      %v737 = vunpack.c.l.b16 %v715
      %v738 = vunpack.c.l.b16 %v716
      %v739 = vunpack.c.l.b16 %v717
      %v740 = vpack.c.b16 %v738, %v737
      %v741 = vpack.c.b16 %v739, %v739
      %vm742 = vsmask.f32 6400
      %v744 = vshrl.u32 %v740, 16
      %v746 = vrot.slane %v744, 1
      %v747 = vshll.u32 %v740, 16
      %v749 = vrot.slane %v747, 2
      %v750 = vor.u32 %v746, %v749
      %v752 = vshrl.u32 %v741, 16
      %v754 = vrot.slane %v752, 1
      %v755 = vshll.u32 %v741, 16
      %v757 = vrot.slane %v755, 2
      %v758 = vor.u32 %v754, %v757
      %v759 = vsel %vm742, %v750, %v758
      %v778 = vunpack.c.l.b16 %v718
      %v779 = vunpack.c.l.b16 %v719
      %v780 = vunpack.c.l.b16 %v720
      %v781 = vunpack.c.l.b16 %v721
      %v782 = vunpack.c.l.b16 %v722
      %v783 = vunpack.c.l.b16 %v723
      %v784 = vunpack.c.l.b16 %v724
      %v785 = vunpack.c.l.b16 %v725
      %v786 = vunpack.c.l.b16 %v726
      %v787 = vunpack.c.l.b16 %v727
      %v788 = vunpack.c.l.b16 %v728
      %v789 = vunpack.c.l.b16 %v729
      %v790 = vunpack.c.l.b16 %v730
      %v791 = vunpack.c.l.b16 %v731
      %v792 = vunpack.c.l.b16 %v732
      %v793 = vunpack.c.l.b16 %v733
      %v794 = vpack.c.b16 %v779, %v778
      %v795 = vpack.c.b16 %v781, %v780
      %v796 = vpack.c.b16 %v783, %v782
      %v797 = vpack.c.b16 %v785, %v784
      %v798 = vpack.c.b16 %v787, %v786
      %v799 = vpack.c.b16 %v789, %v788
      %v800 = vpack.c.b16 %v791, %v790
      %v801 = vpack.c.b16 %v793, %v792
      %810 = vmatprep.subr.bf16.mxu0 0
      %811 = vmatpush1.bf16.msra.mxu0 %v794
      %812 = vmatprep.subr.bf16.mxu0 0
      %813 = vmatpush1.bf16.msra.mxu0 %v795
      %814 = vmatprep.subr.bf16.mxu0 0
      %815 = vmatpush1.bf16.msra.mxu0 %v796
      %816 = vmatprep.subr.bf16.mxu0 0
      %817 = vmatpush1.bf16.msra.mxu0 %v797
      %818 = vmatprep.subr.bf16.mxu0 0
      %819 = vmatpush1.bf16.msra.mxu0 %v798
      %820 = vmatprep.subr.bf16.mxu0 0
      %821 = vmatpush1.bf16.msra.mxu0 %v799
      %822 = vmatprep.subr.bf16.mxu0 0
      %823 = vmatpush1.bf16.msra.mxu0 %v800
      %824 = vmatprep.subr.bf16.mxu0 0
      %825 = vmatpush1.bf16.msra.mxu0 %v801
      %826 = vmatprep.subr.bf16.mxu0 0
      %827 = vmatpush1.bf16.msra.mxu0 0
      %828 = vmatprep.subr.bf16.mxu0 0
      %829 = vmatpush1.bf16.msra.mxu0 0
      %830 = vmatprep.subr.bf16.mxu0 0
      %831 = vmatpush1.bf16.msra.mxu0 0
      %832 = vmatprep.subr.bf16.mxu0 0
      %833 = vmatpush1.bf16.msra.mxu0 0
      %834 = vmatprep.subr.bf16.mxu0 0
      %835 = vmatpush1.bf16.msra.mxu0 0
      %836 = vmatprep.subr.bf16.mxu0 0
      %837 = vmatpush1.bf16.msra.mxu0 0
      %838 = vmatprep.subr.bf16.mxu0 0
      %839 = vmatpush1.bf16.msra.mxu0 0
      %840 = vmatprep.subr.bf16.mxu0 0
      %841 = vmatpush1.bf16.msra.mxu0 0
      %842 = vmatprep.mubr.bf16.mxu0 0
      %843 = vmatmul.mubr.bf16.gmra.mrb[0].mxu0 %v759
      %v844 = vpop.f32.mrb[0].mxu0
      %v845 = vadd.f32 0.0, %v844
      %v846 = vpop.f32.mrb[0].mxu0
      %v847 = vpop.f32.mrb[0].mxu0
      %v848 = vadd.f32 0.0, %v847
      %v849 = vpop.f32.mrb[0].mxu0
      %850 = vmatprep.mubr.bf16.mxu0 0
      %851 = vmatmul.mubr.bf16.gmra.mrb[0].mxu0 %v758
      %v852 = vpop.f32.mrb[0].mxu0
      %v853 = vadd.f32 0.0, %v852
      %v854 = vpop.f32.mrb[0].mxu0
      %v855 = vpop.f32.mrb[0].mxu0
      %v856 = vpop.f32.mrb[0].mxu0
      %857 = vdwg.mxu0
      %v858 = vadd.f32 %v712, %v845
      %v859 = vadd.f32 %v713, %v848
      %v860 = vadd.f32 %v714, %v853
      %861 = vst [vmem:[#allocation2] sm:$0xff] %v858
      %862 = vst [vmem:[#allocation2 + $0x8] sm:$0xff] %v859
      %863 = vst [vmem:[#allocation2 + $0x10] sm:$0x3] %v860
      %v864 = vld [vmem:[#allocation2] sm:$0xff]
      %v865 = vld [vmem:[#allocation2 + $0x8] sm:$0xff]
      %v866 = vld [vmem:[#allocation2 + $0x10] sm:$0x3]
      %v867 = vld [vmem:[%s271] sm:$0x8]
      %v868 = vld [vmem:[%s271 + $0x4] sm:$0xf]
      %v869 = vld [vmem:[%s271 + $0x8] sm:$0xf]
      %v870 = vld [vmem:[%s275 + $0x100] sm:$0xf]
      %v871 = vld [vmem:[%s275 + $0x104] sm:$0xf]
      %v872 = vld [vmem:[%s275 + $0x108] sm:$0xf]
      %v873 = vld [vmem:[%s275 + $0x10c] sm:$0xf]
      %v874 = vld [vmem:[%s275 + $0x110] sm:$0xf]
      %v875 = vld [vmem:[%s275 + $0x114] sm:$0xf]
      %v876 = vld [vmem:[%s275 + $0x118] sm:$0xf]
      %v877 = vld [vmem:[%s275 + $0x11c] sm:$0xf]
      %v878 = vld [vmem:[%s275 + $0x120] sm:$0xf]
      %v879 = vld [vmem:[%s275 + $0x124] sm:$0xf]
      %v880 = vld [vmem:[%s275 + $0x128] sm:$0xf]
      %v881 = vld [vmem:[%s275 + $0x12c] sm:$0xf]
      %v882 = vld [vmem:[%s275 + $0x130] sm:$0xf]
      %v883 = vld [vmem:[%s275 + $0x134] sm:$0xf]
      %v884 = vld [vmem:[%s275 + $0x138] sm:$0xf]
      %v885 = vld [vmem:[%s275 + $0x13c] sm:$0xf]
      %v889 = vunpack.c.l.b16 %v867
      %v890 = vunpack.c.l.b16 %v868
      %v891 = vunpack.c.l.b16 %v869
      %v892 = vpack.c.b16 %v890, %v889
      %v893 = vpack.c.b16 %v891, %v891
      %vm894 = vcmask 1044480
      %v895 = vrot.slane %v892, 3
      %v896 = vrot.slane %v893, 3
      %v897 = vsel %vm894, %v895, %v896
      %v916 = vunpack.c.l.b16 %v870
      %v917 = vunpack.c.l.b16 %v871
      %v918 = vunpack.c.l.b16 %v872
      %v919 = vunpack.c.l.b16 %v873
      %v920 = vunpack.c.l.b16 %v874
      %v921 = vunpack.c.l.b16 %v875
      %v922 = vunpack.c.l.b16 %v876
      %v923 = vunpack.c.l.b16 %v877
      %v924 = vunpack.c.l.b16 %v878
      %v925 = vunpack.c.l.b16 %v879
      %v926 = vunpack.c.l.b16 %v880
      %v927 = vunpack.c.l.b16 %v881
      %v928 = vunpack.c.l.b16 %v882
      %v929 = vunpack.c.l.b16 %v883
      %v930 = vunpack.c.l.b16 %v884
      %v931 = vunpack.c.l.b16 %v885
      %v932 = vpack.c.b16 %v917, %v916
      %v933 = vpack.c.b16 %v919, %v918
      %v934 = vpack.c.b16 %v921, %v920
      %v935 = vpack.c.b16 %v923, %v922
      %v936 = vpack.c.b16 %v925, %v924
      %v937 = vpack.c.b16 %v927, %v926
      %v938 = vpack.c.b16 %v929, %v928
      %v939 = vpack.c.b16 %v931, %v930
      %948 = vmatprep.subr.bf16.mxu0 0
      %949 = vmatpush1.bf16.msra.mxu0 %v932
      %950 = vmatprep.subr.bf16.mxu0 0
      %951 = vmatpush1.bf16.msra.mxu0 %v933
      %952 = vmatprep.subr.bf16.mxu0 0
      %953 = vmatpush1.bf16.msra.mxu0 %v934
      %954 = vmatprep.subr.bf16.mxu0 0
      %955 = vmatpush1.bf16.msra.mxu0 %v935
      %956 = vmatprep.subr.bf16.mxu0 0
      %957 = vmatpush1.bf16.msra.mxu0 %v936
      %958 = vmatprep.subr.bf16.mxu0 0
      %959 = vmatpush1.bf16.msra.mxu0 %v937
      %960 = vmatprep.subr.bf16.mxu0 0
      %961 = vmatpush1.bf16.msra.mxu0 %v938
      %962 = vmatprep.subr.bf16.mxu0 0
      %963 = vmatpush1.bf16.msra.mxu0 %v939
      %964 = vmatprep.subr.bf16.mxu0 0
      %965 = vmatpush1.bf16.msra.mxu0 0
      %966 = vmatprep.subr.bf16.mxu0 0
      %967 = vmatpush1.bf16.msra.mxu0 0
      %968 = vmatprep.subr.bf16.mxu0 0
      %969 = vmatpush1.bf16.msra.mxu0 0
      %970 = vmatprep.subr.bf16.mxu0 0
      %971 = vmatpush1.bf16.msra.mxu0 0
      %972 = vmatprep.subr.bf16.mxu0 0
      %973 = vmatpush1.bf16.msra.mxu0 0
      %974 = vmatprep.subr.bf16.mxu0 0
      %975 = vmatpush1.bf16.msra.mxu0 0
      %976 = vmatprep.subr.bf16.mxu0 0
      %977 = vmatpush1.bf16.msra.mxu0 0
      %978 = vmatprep.subr.bf16.mxu0 0
      %979 = vmatpush1.bf16.msra.mxu0 0
      %980 = vmatprep.mubr.bf16.mxu0 0
      %981 = vmatmul.mubr.bf16.gmra.mrb[0].mxu0 %v897
      %v982 = vpop.f32.mrb[0].mxu0
      %v983 = vadd.f32 0.0, %v982
      %v984 = vpop.f32.mrb[0].mxu0
      %v985 = vpop.f32.mrb[0].mxu0
      %v986 = vadd.f32 0.0, %v985
      %v987 = vpop.f32.mrb[0].mxu0
      %988 = vmatprep.mubr.bf16.mxu0 0
      %989 = vmatmul.mubr.bf16.gmra.mrb[0].mxu0 %v896
      %v990 = vpop.f32.mrb[0].mxu0
      %v991 = vadd.f32 0.0, %v990
      %v992 = vpop.f32.mrb[0].mxu0
      %v993 = vpop.f32.mrb[0].mxu0
      %v994 = vpop.f32.mrb[0].mxu0
      %995 = vdwg.mxu0
      %v996 = vadd.f32 %v864, %v983
      %v997 = vadd.f32 %v865, %v986
      %v998 = vadd.f32 %v866, %v991
      %999 = vst [vmem:[#allocation2] sm:$0xff] %v996
      %1000 = vst [vmem:[#allocation2 + $0x8] sm:$0xff] %v997
      %1001 = vst [vmem:[#allocation2 + $0x10] sm:$0x3] %v998
      %v1002 = vld [vmem:[#allocation2] sm:$0xff]
      %v1003 = vld [vmem:[#allocation2 + $0x8] sm:$0xff]
      %v1004 = vld [vmem:[#allocation2 + $0x10] sm:$0x3]
      %v1005 = vld [vmem:[%s271] sm:$0x8]
      %v1006 = vld [vmem:[%s271 + $0x4] sm:$0xf]
      %v1007 = vld [vmem:[%s271 + $0x8] sm:$0xf]
      %v1008 = vld [vmem:[%s271 + $0xc] sm:$0x1]
      %v1009 = vld [vmem:[%s275 + $0x140] sm:$0xf]
      %v1010 = vld [vmem:[%s275 + $0x144] sm:$0xf]
      %v1011 = vld [vmem:[%s275 + $0x148] sm:$0xf]
      %v1012 = vld [vmem:[%s275 + $0x14c] sm:$0xf]
      %v1013 = vld [vmem:[%s275 + $0x150] sm:$0xf]
      %v1014 = vld [vmem:[%s275 + $0x154] sm:$0xf]
      %v1015 = vld [vmem:[%s275 + $0x158] sm:$0xf]
      %v1016 = vld [vmem:[%s275 + $0x15c] sm:$0xf]
      %v1017 = vld [vmem:[%s275 + $0x160] sm:$0xf]
      %v1018 = vld [vmem:[%s275 + $0x164] sm:$0xf]
      %v1019 = vld [vmem:[%s275 + $0x168] sm:$0xf]
      %v1020 = vld [vmem:[%s275 + $0x16c] sm:$0xf]
      %v1021 = vld [vmem:[%s275 + $0x170] sm:$0xf]
      %v1022 = vld [vmem:[%s275 + $0x174] sm:$0xf]
      %v1023 = vld [vmem:[%s275 + $0x178] sm:$0xf]
      %v1024 = vld [vmem:[%s275 + $0x17c] sm:$0xf]
      %v1029 = vunpack.c.l.b16 %v1005
      %v1030 = vunpack.c.l.b16 %v1006
      %v1031 = vunpack.c.l.b16 %v1007
      %v1032 = vunpack.c.l.b16 %v1008
      %v1033 = vpack.c.b16 %v1030, %v1029
      %v1034 = vpack.c.b16 %v1032, %v1031
      %vm1035 = vsmask.f32 4352
      %v1037 = vshrl.u32 %v1033, 16
      %v1039 = vrot.slane %v1037, 3
      %v1040 = vshll.u32 %v1033, 16
      %v1042 = vrot.slane %v1040, 4
      %v1043 = vor.u32 %v1039, %v1042
      %v1045 = vshrl.u32 %v1034, 16
      %v1047 = vrot.slane %v1045, 3
      %v1048 = vshll.u32 %v1034, 16
      %v1050 = vrot.slane %v1048, 4
      %v1051 = vor.u32 %v1047, %v1050
      %v1052 = vsel %vm1035, %v1043, %v1051
      %v1071 = vunpack.c.l.b16 %v1009
      %v1072 = vunpack.c.l.b16 %v1010
      %v1073 = vunpack.c.l.b16 %v1011
      %v1074 = vunpack.c.l.b16 %v1012
      %v1075 = vunpack.c.l.b16 %v1013
      %v1076 = vunpack.c.l.b16 %v1014
      %v1077 = vunpack.c.l.b16 %v1015
      %v1078 = vunpack.c.l.b16 %v1016
      %v1079 = vunpack.c.l.b16 %v1017
      %v1080 = vunpack.c.l.b16 %v1018
      %v1081 = vunpack.c.l.b16 %v1019
      %v1082 = vunpack.c.l.b16 %v1020
      %v1083 = vunpack.c.l.b16 %v1021
      %v1084 = vunpack.c.l.b16 %v1022
      %v1085 = vunpack.c.l.b16 %v1023
      %v1086 = vunpack.c.l.b16 %v1024
      %v1087 = vpack.c.b16 %v1072, %v1071
      %v1088 = vpack.c.b16 %v1074, %v1073
      %v1089 = vpack.c.b16 %v1076, %v1075
      %v1090 = vpack.c.b16 %v1078, %v1077
      %v1091 = vpack.c.b16 %v1080, %v1079
      %v1092 = vpack.c.b16 %v1082, %v1081
      %v1093 = vpack.c.b16 %v1084, %v1083
      %v1094 = vpack.c.b16 %v1086, %v1085
      %1103 = vmatprep.subr.bf16.mxu0 0
      %1104 = vmatpush1.bf16.msra.mxu0 %v1087
      %1105 = vmatprep.subr.bf16.mxu0 0
      %1106 = vmatpush1.bf16.msra.mxu0 %v1088
      %1107 = vmatprep.subr.bf16.mxu0 0
      %1108 = vmatpush1.bf16.msra.mxu0 %v1089
      %1109 = vmatprep.subr.bf16.mxu0 0
      %1110 = vmatpush1.bf16.msra.mxu0 %v1090
      %1111 = vmatprep.subr.bf16.mxu0 0
      %1112 = vmatpush1.bf16.msra.mxu0 %v1091
      %1113 = vmatprep.subr.bf16.mxu0 0
      %1114 = vmatpush1.bf16.msra.mxu0 %v1092
      %1115 = vmatprep.subr.bf16.mxu0 0
      %1116 = vmatpush1.bf16.msra.mxu0 %v1093
      %1117 = vmatprep.subr.bf16.mxu0 0
      %1118 = vmatpush1.bf16.msra.mxu0 %v1094
      %1119 = vmatprep.subr.bf16.mxu0 0
      %1120 = vmatpush1.bf16.msra.mxu0 0
      %1121 = vmatprep.subr.bf16.mxu0 0
      %1122 = vmatpush1.bf16.msra.mxu0 0
      %1123 = vmatprep.subr.bf16.mxu0 0
      %1124 = vmatpush1.bf16.msra.mxu0 0
      %1125 = vmatprep.subr.bf16.mxu0 0
      %1126 = vmatpush1.bf16.msra.mxu0 0
      %1127 = vmatprep.subr.bf16.mxu0 0
      %1128 = vmatpush1.bf16.msra.mxu0 0
      %1129 = vmatprep.subr.bf16.mxu0 0
      %1130 = vmatpush1.bf16.msra.mxu0 0
      %1131 = vmatprep.subr.bf16.mxu0 0
      %1132 = vmatpush1.bf16.msra.mxu0 0
      %1133 = vmatprep.subr.bf16.mxu0 0
      %1134 = vmatpush1.bf16.msra.mxu0 0
      %1135 = vmatprep.mubr.bf16.mxu0 0
      %1136 = vmatmul.mubr.bf16.gmra.mrb[0].mxu0 %v1052
      %v1137 = vpop.f32.mrb[0].mxu0
      %v1138 = vadd.f32 0.0, %v1137
      %v1139 = vpop.f32.mrb[0].mxu0
      %v1140 = vpop.f32.mrb[0].mxu0
      %v1141 = vadd.f32 0.0, %v1140
      %v1142 = vpop.f32.mrb[0].mxu0
      %1143 = vmatprep.mubr.bf16.mxu0 0
      %1144 = vmatmul.mubr.bf16.gmra.mrb[0].mxu0 %v1051
      %v1145 = vpop.f32.mrb[0].mxu0
      %v1146 = vadd.f32 0.0, %v1145
      %v1147 = vpop.f32.mrb[0].mxu0
      %v1148 = vpop.f32.mrb[0].mxu0
      %v1149 = vpop.f32.mrb[0].mxu0
      %1150 = vdwg.mxu0
      %v1151 = vadd.f32 %v1002, %v1138
      %v1152 = vadd.f32 %v1003, %v1141
      %v1153 = vadd.f32 %v1004, %v1146
      %1154 = vst [vmem:[#allocation2] sm:$0xff] %v1151
      %1155 = vst [vmem:[#allocation2 + $0x8] sm:$0xff] %v1152
      %1156 = vst [vmem:[#allocation2 + $0x10] sm:$0x3] %v1153
      %v1157 = vld [vmem:[#allocation2] sm:$0xff]
      %v1158 = vld [vmem:[#allocation2 + $0x8] sm:$0xff]
      %v1159 = vld [vmem:[#allocation2 + $0x10] sm:$0x3]
      %v1160 = vld [vmem:[%s271 + $0x4] sm:$0xf]
      %v1161 = vld [vmem:[%s271 + $0x8] sm:$0xf]
      %v1162 = vld [vmem:[%s271 + $0xc] sm:$0x1]
      %v1163 = vld [vmem:[%s275 + $0x180] sm:$0xf]
      %v1164 = vld [vmem:[%s275 + $0x184] sm:$0xf]
      %v1165 = vld [vmem:[%s275 + $0x188] sm:$0xf]
      %v1166 = vld [vmem:[%s275 + $0x18c] sm:$0xf]
      %v1167 = vld [vmem:[%s275 + $0x190] sm:$0xf]
      %v1168 = vld [vmem:[%s275 + $0x194] sm:$0xf]
      %v1169 = vld [vmem:[%s275 + $0x198] sm:$0xf]
      %v1170 = vld [vmem:[%s275 + $0x19c] sm:$0xf]
      %v1171 = vld [vmem:[%s275 + $0x1a0] sm:$0xf]
      %v1172 = vld [vmem:[%s275 + $0x1a4] sm:$0xf]
      %v1173 = vld [vmem:[%s275 + $0x1a8] sm:$0xf]
      %v1174 = vld [vmem:[%s275 + $0x1ac] sm:$0xf]
      %v1175 = vld [vmem:[%s275 + $0x1b0] sm:$0xf]
      %v1176 = vld [vmem:[%s275 + $0x1b4] sm:$0xf]
      %v1177 = vld [vmem:[%s275 + $0x1b8] sm:$0xf]
      %v1178 = vld [vmem:[%s275 + $0x1bc] sm:$0xf]
      %v1182 = vunpack.c.l.b16 %v1160
      %v1183 = vunpack.c.l.b16 %v1161
      %v1184 = vunpack.c.l.b16 %v1162
      %v1185 = vpack.c.b16 %v1183, %v1182
      %v1186 = vpack.c.b16 %v1184, %v1184
      %v1205 = vunpack.c.l.b16 %v1163
      %v1206 = vunpack.c.l.b16 %v1164
      %v1207 = vunpack.c.l.b16 %v1165
      %v1208 = vunpack.c.l.b16 %v1166
      %v1209 = vunpack.c.l.b16 %v1167
      %v1210 = vunpack.c.l.b16 %v1168
      %v1211 = vunpack.c.l.b16 %v1169
      %v1212 = vunpack.c.l.b16 %v1170
      %v1213 = vunpack.c.l.b16 %v1171
      %v1214 = vunpack.c.l.b16 %v1172
      %v1215 = vunpack.c.l.b16 %v1173
      %v1216 = vunpack.c.l.b16 %v1174
      %v1217 = vunpack.c.l.b16 %v1175
      %v1218 = vunpack.c.l.b16 %v1176
      %v1219 = vunpack.c.l.b16 %v1177
      %v1220 = vunpack.c.l.b16 %v1178
      %v1221 = vpack.c.b16 %v1206, %v1205
      %v1222 = vpack.c.b16 %v1208, %v1207
      %v1223 = vpack.c.b16 %v1210, %v1209
      %v1224 = vpack.c.b16 %v1212, %v1211
      %v1225 = vpack.c.b16 %v1214, %v1213
      %v1226 = vpack.c.b16 %v1216, %v1215
      %v1227 = vpack.c.b16 %v1218, %v1217
      %v1228 = vpack.c.b16 %v1220, %v1219
      %1237 = vmatprep.subr.bf16.mxu0 0
      %1238 = vmatpush1.bf16.msra.mxu0 %v1221
      %1239 = vmatprep.subr.bf16.mxu0 0
      %1240 = vmatpush1.bf16.msra.mxu0 %v1222
      %1241 = vmatprep.subr.bf16.mxu0 0
      %1242 = vmatpush1.bf16.msra.mxu0 %v1223
      %1243 = vmatprep.subr.bf16.mxu0 0
      %1244 = vmatpush1.bf16.msra.mxu0 %v1224
      %1245 = vmatprep.subr.bf16.mxu0 0
      %1246 = vmatpush1.bf16.msra.mxu0 %v1225
      %1247 = vmatprep.subr.bf16.mxu0 0
      %1248 = vmatpush1.bf16.msra.mxu0 %v1226
      %1249 = vmatprep.subr.bf16.mxu0 0
      %1250 = vmatpush1.bf16.msra.mxu0 %v1227
      %1251 = vmatprep.subr.bf16.mxu0 0
      %1252 = vmatpush1.bf16.msra.mxu0 %v1228
      %1253 = vmatprep.subr.bf16.mxu0 0
      %1254 = vmatpush1.bf16.msra.mxu0 0
      %1255 = vmatprep.subr.bf16.mxu0 0
      %1256 = vmatpush1.bf16.msra.mxu0 0
      %1257 = vmatprep.subr.bf16.mxu0 0
      %1258 = vmatpush1.bf16.msra.mxu0 0
      %1259 = vmatprep.subr.bf16.mxu0 0
      %1260 = vmatpush1.bf16.msra.mxu0 0
      %1261 = vmatprep.subr.bf16.mxu0 0
      %1262 = vmatpush1.bf16.msra.mxu0 0
      %1263 = vmatprep.subr.bf16.mxu0 0
      %1264 = vmatpush1.bf16.msra.mxu0 0
      %1265 = vmatprep.subr.bf16.mxu0 0
      %1266 = vmatpush1.bf16.msra.mxu0 0
      %1267 = vmatprep.subr.bf16.mxu0 0
      %1268 = vmatpush1.bf16.msra.mxu0 0
      %1269 = vmatprep.mubr.bf16.mxu0 0
      %1270 = vmatmul.mubr.bf16.gmra.mrb[0].mxu0 %v1185
      %v1271 = vpop.f32.mrb[0].mxu0
      %v1272 = vadd.f32 0.0, %v1271
      %v1273 = vpop.f32.mrb[0].mxu0
      %v1274 = vpop.f32.mrb[0].mxu0
      %v1275 = vadd.f32 0.0, %v1274
      %v1276 = vpop.f32.mrb[0].mxu0
      %1277 = vmatprep.mubr.bf16.mxu0 0
      %1278 = vmatmul.mubr.bf16.gmra.mrb[0].mxu0 %v1186
      %v1279 = vpop.f32.mrb[0].mxu0
      %v1280 = vadd.f32 0.0, %v1279
      %v1281 = vpop.f32.mrb[0].mxu0
      %v1282 = vpop.f32.mrb[0].mxu0
      %v1283 = vpop.f32.mrb[0].mxu0
      %1284 = vdwg.mxu0
      %v1285 = vadd.f32 %v1157, %v1272
      %v1286 = vadd.f32 %v1158, %v1275
      %v1287 = vadd.f32 %v1159, %v1280
      %1288 = vst [vmem:[#allocation2] sm:$0xff] %v1285
      %1289 = vst [vmem:[#allocation2 + $0x8] sm:$0xff] %v1286
      %1290 = vst [vmem:[#allocation2 + $0x10] sm:$0x3] %v1287
      %v1291 = vld [vmem:[#allocation2] sm:$0xff]
      %v1292 = vld [vmem:[#allocation2 + $0x8] sm:$0xff]
      %v1293 = vld [vmem:[#allocation2 + $0x10] sm:$0x3]
      %v1294 = vld [vmem:[%s271 + $0x4] sm:$0xf]
      %v1295 = vld [vmem:[%s271 + $0x8] sm:$0xf]
      %v1296 = vld [vmem:[%s271 + $0xc] sm:$0x3]
      %v1297 = vld [vmem:[%s275 + $0x1c0] sm:$0xf]
      %v1298 = vld [vmem:[%s275 + $0x1c4] sm:$0xf]
      %v1299 = vld [vmem:[%s275 + $0x1c8] sm:$0xf]
      %v1300 = vld [vmem:[%s275 + $0x1cc] sm:$0xf]
      %v1301 = vld [vmem:[%s275 + $0x1d0] sm:$0xf]
      %v1302 = vld [vmem:[%s275 + $0x1d4] sm:$0xf]
      %v1303 = vld [vmem:[%s275 + $0x1d8] sm:$0xf]
      %v1304 = vld [vmem:[%s275 + $0x1dc] sm:$0xf]
      %v1305 = vld [vmem:[%s275 + $0x1e0] sm:$0xf]
      %v1306 = vld [vmem:[%s275 + $0x1e4] sm:$0xf]
      %v1307 = vld [vmem:[%s275 + $0x1e8] sm:$0xf]
      %v1308 = vld [vmem:[%s275 + $0x1ec] sm:$0xf]
      %v1309 = vld [vmem:[%s275 + $0x1f0] sm:$0xf]
      %v1310 = vld [vmem:[%s275 + $0x1f4] sm:$0xf]
      %v1311 = vld [vmem:[%s275 + $0x1f8] sm:$0xf]
      %v1312 = vld [vmem:[%s275 + $0x1fc] sm:$0xf]
      %v1316 = vunpack.c.l.b16 %v1294
      %v1317 = vunpack.c.l.b16 %v1295
      %v1318 = vunpack.c.l.b16 %v1296
      %v1319 = vpack.c.b16 %v1317, %v1316
      %v1320 = vpack.c.b16 %v1318, %v1318
      %v1322 = vshrl.u32 %v1319, 16
      %v1324 = vshll.u32 %v1319, 16
      %v1326 = vrot.slane %v1324, 1
      %v1327 = vor.u32 %v1322, %v1326
      %v1329 = vshll.u32 %v1320, 16
      %v1331 = vrot.slane %v1329, 1
      %v1332 = vsel %vm454, %v1327, %v1331
      %v1333 = vshrl.u32 %v1320, 16
      %v1335 = vor.u32 %v1333, %v1331
      %v1354 = vunpack.c.l.b16 %v1297
      %v1355 = vunpack.c.l.b16 %v1298
      %v1356 = vunpack.c.l.b16 %v1299
      %v1357 = vunpack.c.l.b16 %v1300
      %v1358 = vunpack.c.l.b16 %v1301
      %v1359 = vunpack.c.l.b16 %v1302
      %v1360 = vunpack.c.l.b16 %v1303
      %v1361 = vunpack.c.l.b16 %v1304
      %v1362 = vunpack.c.l.b16 %v1305
      %v1363 = vunpack.c.l.b16 %v1306
      %v1364 = vunpack.c.l.b16 %v1307
      %v1365 = vunpack.c.l.b16 %v1308
      %v1366 = vunpack.c.l.b16 %v1309
      %v1367 = vunpack.c.l.b16 %v1310
      %v1368 = vunpack.c.l.b16 %v1311
      %v1369 = vunpack.c.l.b16 %v1312
      %v1370 = vpack.c.b16 %v1355, %v1354
      %v1371 = vpack.c.b16 %v1357, %v1356
      %v1372 = vpack.c.b16 %v1359, %v1358
      %v1373 = vpack.c.b16 %v1361, %v1360
      %v1374 = vpack.c.b16 %v1363, %v1362
      %v1375 = vpack.c.b16 %v1365, %v1364
      %v1376 = vpack.c.b16 %v1367, %v1366
      %v1377 = vpack.c.b16 %v1369, %v1368
      %1386 = vmatprep.subr.bf16.mxu0 0
      %1387 = vmatpush1.bf16.msra.mxu0 %v1370
      %1388 = vmatprep.subr.bf16.mxu0 0
      %1389 = vmatpush1.bf16.msra.mxu0 %v1371
      %1390 = vmatprep.subr.bf16.mxu0 0
      %1391 = vmatpush1.bf16.msra.mxu0 %v1372
      %1392 = vmatprep.subr.bf16.mxu0 0
      %1393 = vmatpush1.bf16.msra.mxu0 %v1373
      %1394 = vmatprep.subr.bf16.mxu0 0
      %1395 = vmatpush1.bf16.msra.mxu0 %v1374
      %1396 = vmatprep.subr.bf16.mxu0 0
      %1397 = vmatpush1.bf16.msra.mxu0 %v1375
      %1398 = vmatprep.subr.bf16.mxu0 0
      %1399 = vmatpush1.bf16.msra.mxu0 %v1376
      %1400 = vmatprep.subr.bf16.mxu0 0
      %1401 = vmatpush1.bf16.msra.mxu0 %v1377
      %1402 = vmatprep.subr.bf16.mxu0 0
      %1403 = vmatpush1.bf16.msra.mxu0 0
      %1404 = vmatprep.subr.bf16.mxu0 0
      %1405 = vmatpush1.bf16.msra.mxu0 0
      %1406 = vmatprep.subr.bf16.mxu0 0
      %1407 = vmatpush1.bf16.msra.mxu0 0
      %1408 = vmatprep.subr.bf16.mxu0 0
      %1409 = vmatpush1.bf16.msra.mxu0 0
      %1410 = vmatprep.subr.bf16.mxu0 0
      %1411 = vmatpush1.bf16.msra.mxu0 0
      %1412 = vmatprep.subr.bf16.mxu0 0
      %1413 = vmatpush1.bf16.msra.mxu0 0
      %1414 = vmatprep.subr.bf16.mxu0 0
      %1415 = vmatpush1.bf16.msra.mxu0 0
      %1416 = vmatprep.subr.bf16.mxu0 0
      %1417 = vmatpush1.bf16.msra.mxu0 0
      %1418 = vmatprep.mubr.bf16.mxu0 0
      %1419 = vmatmul.mubr.bf16.gmra.mrb[0].mxu0 %v1332
      %v1420 = vpop.f32.mrb[0].mxu0
      %v1421 = vadd.f32 0.0, %v1420
      %v1422 = vpop.f32.mrb[0].mxu0
      %v1423 = vpop.f32.mrb[0].mxu0
      %v1424 = vadd.f32 0.0, %v1423
      %v1425 = vpop.f32.mrb[0].mxu0
      %1426 = vmatprep.mubr.bf16.mxu0 0
      %1427 = vmatmul.mubr.bf16.gmra.mrb[0].mxu0 %v1335
      %v1428 = vpop.f32.mrb[0].mxu0
      %v1429 = vadd.f32 0.0, %v1428
      %v1430 = vpop.f32.mrb[0].mxu0
      %v1431 = vpop.f32.mrb[0].mxu0
      %v1432 = vpop.f32.mrb[0].mxu0
      %1433 = vdwg.mxu0
      %v1434 = vadd.f32 %v1291, %v1421
      %v1435 = vadd.f32 %v1292, %v1424
      %v1436 = vadd.f32 %v1293, %v1429
      %1437 = vst [vmem:[#allocation2] sm:$0xff] %v1434
      %1438 = vst [vmem:[#allocation2 + $0x8] sm:$0xff] %v1435
      %1439 = vst [vmem:[#allocation2 + $0x10] sm:$0x3] %v1436
      %v1440 = vld [vmem:[#allocation2] sm:$0xff]
      %v1441 = vld [vmem:[#allocation2 + $0x8] sm:$0xff]
      %v1442 = vld [vmem:[#allocation2 + $0x10] sm:$0x3]
      %v1443 = vld [vmem:[%s271 + $0x4] sm:$0xc]
      %v1444 = vld [vmem:[%s271 + $0x8] sm:$0xf]
      %v1445 = vld [vmem:[%s271 + $0xc] sm:$0x7]
      %v1446 = vld [vmem:[%s275 + $0x200] sm:$0xf]
      %v1447 = vld [vmem:[%s275 + $0x204] sm:$0xf]
      %v1448 = vld [vmem:[%s275 + $0x208] sm:$0xf]
      %v1449 = vld [vmem:[%s275 + $0x20c] sm:$0xf]
      %v1450 = vld [vmem:[%s275 + $0x210] sm:$0xf]
      %v1451 = vld [vmem:[%s275 + $0x214] sm:$0xf]
      %v1452 = vld [vmem:[%s275 + $0x218] sm:$0xf]
      %v1453 = vld [vmem:[%s275 + $0x21c] sm:$0xf]
      %v1454 = vld [vmem:[%s275 + $0x220] sm:$0xf]
      %v1455 = vld [vmem:[%s275 + $0x224] sm:$0xf]
      %v1456 = vld [vmem:[%s275 + $0x228] sm:$0xf]
      %v1457 = vld [vmem:[%s275 + $0x22c] sm:$0xf]
      %v1458 = vld [vmem:[%s275 + $0x230] sm:$0xf]
      %v1459 = vld [vmem:[%s275 + $0x234] sm:$0xf]
      %v1460 = vld [vmem:[%s275 + $0x238] sm:$0xf]
      %v1461 = vld [vmem:[%s275 + $0x23c] sm:$0xf]
      %v1465 = vunpack.c.l.b16 %v1443
      %v1466 = vunpack.c.l.b16 %v1444
      %v1467 = vunpack.c.l.b16 %v1445
      %v1468 = vpack.c.b16 %v1466, %v1465
      %v1469 = vpack.c.b16 %v1467, %v1467
      %vm1470 = vcmask 1045504
      %v1471 = vrot.slane %v1468, 2
      %v1472 = vrot.slane %v1469, 2
      %v1473 = vsel %vm1470, %v1471, %v1472
      %v1492 = vunpack.c.l.b16 %v1446
      %v1493 = vunpack.c.l.b16 %v1447
      %v1494 = vunpack.c.l.b16 %v1448
      %v1495 = vunpack.c.l.b16 %v1449
      %v1496 = vunpack.c.l.b16 %v1450
      %v1497 = vunpack.c.l.b16 %v1451
      %v1498 = vunpack.c.l.b16 %v1452
      %v1499 = vunpack.c.l.b16 %v1453
      %v1500 = vunpack.c.l.b16 %v1454
      %v1501 = vunpack.c.l.b16 %v1455
      %v1502 = vunpack.c.l.b16 %v1456
      %v1503 = vunpack.c.l.b16 %v1457
      %v1504 = vunpack.c.l.b16 %v1458
      %v1505 = vunpack.c.l.b16 %v1459
      %v1506 = vunpack.c.l.b16 %v1460
      %v1507 = vunpack.c.l.b16 %v1461
      %v1508 = vpack.c.b16 %v1493, %v1492
      %v1509 = vpack.c.b16 %v1495, %v1494
      %v1510 = vpack.c.b16 %v1497, %v1496
      %v1511 = vpack.c.b16 %v1499, %v1498
      %v1512 = vpack.c.b16 %v1501, %v1500
      %v1513 = vpack.c.b16 %v1503, %v1502
      %v1514 = vpack.c.b16 %v1505, %v1504
      %v1515 = vpack.c.b16 %v1507, %v1506
      %1524 = vmatprep.subr.bf16.mxu0 0
      %1525 = vmatpush1.bf16.msra.mxu0 %v1508
      %1526 = vmatprep.subr.bf16.mxu0 0
      %1527 = vmatpush1.bf16.msra.mxu0 %v1509
      %1528 = vmatprep.subr.bf16.mxu0 0
      %1529 = vmatpush1.bf16.msra.mxu0 %v1510
      %1530 = vmatprep.subr.bf16.mxu0 0
      %1531 = vmatpush1.bf16.msra.mxu0 %v1511
      %1532 = vmatprep.subr.bf16.mxu0 0
      %1533 = vmatpush1.bf16.msra.mxu0 %v1512
      %1534 = vmatprep.subr.bf16.mxu0 0
      %1535 = vmatpush1.bf16.msra.mxu0 %v1513
      %1536 = vmatprep.subr.bf16.mxu0 0
      %1537 = vmatpush1.bf16.msra.mxu0 %v1514
      %1538 = vmatprep.subr.bf16.mxu0 0
      %1539 = vmatpush1.bf16.msra.mxu0 %v1515
      %1540 = vmatprep.subr.bf16.mxu0 0
      %1541 = vmatpush1.bf16.msra.mxu0 0
      %1542 = vmatprep.subr.bf16.mxu0 0
      %1543 = vmatpush1.bf16.msra.mxu0 0
      %1544 = vmatprep.subr.bf16.mxu0 0
      %1545 = vmatpush1.bf16.msra.mxu0 0
      %1546 = vmatprep.subr.bf16.mxu0 0
      %1547 = vmatpush1.bf16.msra.mxu0 0
      %1548 = vmatprep.subr.bf16.mxu0 0
      %1549 = vmatpush1.bf16.msra.mxu0 0
      %1550 = vmatprep.subr.bf16.mxu0 0
      %1551 = vmatpush1.bf16.msra.mxu0 0
      %1552 = vmatprep.subr.bf16.mxu0 0
      %1553 = vmatpush1.bf16.msra.mxu0 0
      %1554 = vmatprep.subr.bf16.mxu0 0
      %1555 = vmatpush1.bf16.msra.mxu0 0
      %1556 = vmatprep.mubr.bf16.mxu0 0
      %1557 = vmatmul.mubr.bf16.gmra.mrb[0].mxu0 %v1473
      %v1558 = vpop.f32.mrb[0].mxu0
      %v1559 = vadd.f32 0.0, %v1558
      %v1560 = vpop.f32.mrb[0].mxu0
      %v1561 = vpop.f32.mrb[0].mxu0
      %v1562 = vadd.f32 0.0, %v1561
      %v1563 = vpop.f32.mrb[0].mxu0
      %1564 = vmatprep.mubr.bf16.mxu0 0
      %1565 = vmatmul.mubr.bf16.gmra.mrb[0].mxu0 %v1472
      %v1566 = vpop.f32.mrb[0].mxu0
      %v1567 = vadd.f32 0.0, %v1566
      %v1568 = vpop.f32.mrb[0].mxu0
      %v1569 = vpop.f32.mrb[0].mxu0
      %v1570 = vpop.f32.mrb[0].mxu0
      %1571 = vdwg.mxu0
      %v1572 = vadd.f32 %v1440, %v1559
      %v1573 = vadd.f32 %v1441, %v1562
      %v1574 = vadd.f32 %v1442, %v1567
      %1575 = vst [vmem:[#allocation2] sm:$0xff] %v1572
      %1576 = vst [vmem:[#allocation2 + $0x8] sm:$0xff] %v1573
      %1577 = vst [vmem:[#allocation2 + $0x10] sm:$0x3] %v1574
      %v1578 = vld [vmem:[#allocation2] sm:$0xff]
      %v1579 = vld [vmem:[#allocation2 + $0x8] sm:$0xff]
      %v1580 = vld [vmem:[#allocation2 + $0x10] sm:$0x3]
      %v1581 = vld [vmem:[%s271 + $0x4] sm:$0xc]
      %v1582 = vld [vmem:[%s271 + $0x8] sm:$0xf]
      %v1583 = vld [vmem:[%s271 + $0xc] sm:$0xf]
      %v1584 = vld [vmem:[%s275 + $0x240] sm:$0xf]
      %v1585 = vld [vmem:[%s275 + $0x244] sm:$0xf]
      %v1586 = vld [vmem:[%s275 + $0x248] sm:$0xf]
      %v1587 = vld [vmem:[%s275 + $0x24c] sm:$0xf]
      %v1588 = vld [vmem:[%s275 + $0x250] sm:$0xf]
      %v1589 = vld [vmem:[%s275 + $0x254] sm:$0xf]
      %v1590 = vld [vmem:[%s275 + $0x258] sm:$0xf]
      %v1591 = vld [vmem:[%s275 + $0x25c] sm:$0xf]
      %v1592 = vld [vmem:[%s275 + $0x260] sm:$0xf]
      %v1593 = vld [vmem:[%s275 + $0x264] sm:$0xf]
      %v1594 = vld [vmem:[%s275 + $0x268] sm:$0xf]
      %v1595 = vld [vmem:[%s275 + $0x26c] sm:$0xf]
      %v1596 = vld [vmem:[%s275 + $0x270] sm:$0xf]
      %v1597 = vld [vmem:[%s275 + $0x274] sm:$0xf]
      %v1598 = vld [vmem:[%s275 + $0x278] sm:$0xf]
      %v1599 = vld [vmem:[%s275 + $0x27c] sm:$0xf]
      %v1603 = vunpack.c.l.b16 %v1581
      %v1604 = vunpack.c.l.b16 %v1582
      %v1605 = vunpack.c.l.b16 %v1583
      %v1606 = vpack.c.b16 %v1604, %v1603
      %v1607 = vpack.c.b16 %v1605, %v1605
      %vm1608 = vsmask.f32 5376
      %v1610 = vshrl.u32 %v1606, 16
      %v1612 = vrot.slane %v1610, 2
      %v1613 = vshll.u32 %v1606, 16
      %v1615 = vrot.slane %v1613, 3
      %v1616 = vor.u32 %v1612, %v1615
      %v1618 = vshrl.u32 %v1607, 16
      %v1620 = vrot.slane %v1618, 2
      %v1621 = vshll.u32 %v1607, 16
      %v1623 = vrot.slane %v1621, 3
      %v1624 = vor.u32 %v1620, %v1623
      %v1625 = vsel %vm1608, %v1616, %v1624
      %v1644 = vunpack.c.l.b16 %v1584
      %v1645 = vunpack.c.l.b16 %v1585
      %v1646 = vunpack.c.l.b16 %v1586
      %v1647 = vunpack.c.l.b16 %v1587
      %v1648 = vunpack.c.l.b16 %v1588
      %v1649 = vunpack.c.l.b16 %v1589
      %v1650 = vunpack.c.l.b16 %v1590
      %v1651 = vunpack.c.l.b16 %v1591
      %v1652 = vunpack.c.l.b16 %v1592
      %v1653 = vunpack.c.l.b16 %v1593
      %v1654 = vunpack.c.l.b16 %v1594
      %v1655 = vunpack.c.l.b16 %v1595
      %v1656 = vunpack.c.l.b16 %v1596
      %v1657 = vunpack.c.l.b16 %v1597
      %v1658 = vunpack.c.l.b16 %v1598
      %v1659 = vunpack.c.l.b16 %v1599
      %v1660 = vpack.c.b16 %v1645, %v1644
      %v1661 = vpack.c.b16 %v1647, %v1646
      %v1662 = vpack.c.b16 %v1649, %v1648
      %v1663 = vpack.c.b16 %v1651, %v1650
      %v1664 = vpack.c.b16 %v1653, %v1652
      %v1665 = vpack.c.b16 %v1655, %v1654
      %v1666 = vpack.c.b16 %v1657, %v1656
      %v1667 = vpack.c.b16 %v1659, %v1658
      %1676 = vmatprep.subr.bf16.mxu0 0
      %1677 = vmatpush1.bf16.msra.mxu0 %v1660
      %1678 = vmatprep.subr.bf16.mxu0 0
      %1679 = vmatpush1.bf16.msra.mxu0 %v1661
      %1680 = vmatprep.subr.bf16.mxu0 0
      %1681 = vmatpush1.bf16.msra.mxu0 %v1662
      %1682 = vmatprep.subr.bf16.mxu0 0
      %1683 = vmatpush1.bf16.msra.mxu0 %v1663
      %1684 = vmatprep.subr.bf16.mxu0 0
      %1685 = vmatpush1.bf16.msra.mxu0 %v1664
      %1686 = vmatprep.subr.bf16.mxu0 0
      %1687 = vmatpush1.bf16.msra.mxu0 %v1665
      %1688 = vmatprep.subr.bf16.mxu0 0
      %1689 = vmatpush1.bf16.msra.mxu0 %v1666
      %1690 = vmatprep.subr.bf16.mxu0 0
      %1691 = vmatpush1.bf16.msra.mxu0 %v1667
      %1692 = vmatprep.subr.bf16.mxu0 0
      %1693 = vmatpush1.bf16.msra.mxu0 0
      %1694 = vmatprep.subr.bf16.mxu0 0
      %1695 = vmatpush1.bf16.msra.mxu0 0
      %1696 = vmatprep.subr.bf16.mxu0 0
      %1697 = vmatpush1.bf16.msra.mxu0 0
      %1698 = vmatprep.subr.bf16.mxu0 0
      %1699 = vmatpush1.bf16.msra.mxu0 0
      %1700 = vmatprep.subr.bf16.mxu0 0
      %1701 = vmatpush1.bf16.msra.mxu0 0
      %1702 = vmatprep.subr.bf16.mxu0 0
      %1703 = vmatpush1.bf16.msra.mxu0 0
      %1704 = vmatprep.subr.bf16.mxu0 0
      %1705 = vmatpush1.bf16.msra.mxu0 0
      %1706 = vmatprep.subr.bf16.mxu0 0
      %1707 = vmatpush1.bf16.msra.mxu0 0
      %1708 = vmatprep.mubr.bf16.mxu0 0
      %1709 = vmatmul.mubr.bf16.gmra.mrb[0].mxu0 %v1625
      %v1710 = vpop.f32.mrb[0].mxu0
      %v1711 = vadd.f32 0.0, %v1710
      %v1712 = vpop.f32.mrb[0].mxu0
      %v1713 = vpop.f32.mrb[0].mxu0
      %v1714 = vadd.f32 0.0, %v1713
      %v1715 = vpop.f32.mrb[0].mxu0
      %1716 = vmatprep.mubr.bf16.mxu0 0
      %1717 = vmatmul.mubr.bf16.gmra.mrb[0].mxu0 %v1624
      %v1718 = vpop.f32.mrb[0].mxu0
      %v1719 = vadd.f32 0.0, %v1718
      %v1720 = vpop.f32.mrb[0].mxu0
      %v1721 = vpop.f32.mrb[0].mxu0
      %v1722 = vpop.f32.mrb[0].mxu0
      %1723 = vdwg.mxu0
      %v1724 = vadd.f32 %v1578, %v1711
      %v1725 = vadd.f32 %v1579, %v1714
      %v1726 = vadd.f32 %v1580, %v1719
      %1727 = vst [vmem:[#allocation2] sm:$0xff] %v1724
      %1728 = vst [vmem:[#allocation2 + $0x8] sm:$0xff] %v1725
      %1729 = vst [vmem:[#allocation2 + $0x10] sm:$0x3] %v1726
      %v1730 = vld [vmem:[#allocation2] sm:$0xff]
      %v1731 = vld [vmem:[#allocation2 + $0x8] sm:$0xff]
      %v1732 = vld [vmem:[#allocation2 + $0x10] sm:$0x3]
      %v1733 = vld [vmem:[%s271 + $0x4] sm:$0x8]
      %v1734 = vld [vmem:[%s271 + $0x8] sm:$0xf]
      %v1735 = vld [vmem:[%s271 + $0xc] sm:$0xf]
      %v1736 = vld [vmem:[%s275 + $0x280] sm:$0xf]
      %v1737 = vld [vmem:[%s275 + $0x284] sm:$0xf]
      %v1738 = vld [vmem:[%s275 + $0x288] sm:$0xf]
      %v1739 = vld [vmem:[%s275 + $0x28c] sm:$0xf]
      %v1740 = vld [vmem:[%s275 + $0x290] sm:$0xf]
      %v1741 = vld [vmem:[%s275 + $0x294] sm:$0xf]
      %v1742 = vld [vmem:[%s275 + $0x298] sm:$0xf]
      %v1743 = vld [vmem:[%s275 + $0x29c] sm:$0xf]
      %v1744 = vld [vmem:[%s275 + $0x2a0] sm:$0xf]
      %v1745 = vld [vmem:[%s275 + $0x2a4] sm:$0xf]
      %v1746 = vld [vmem:[%s275 + $0x2a8] sm:$0xf]
      %v1747 = vld [vmem:[%s275 + $0x2ac] sm:$0xf]
      %v1748 = vld [vmem:[%s275 + $0x2b0] sm:$0xf]
      %v1749 = vld [vmem:[%s275 + $0x2b4] sm:$0xf]
      %v1750 = vld [vmem:[%s275 + $0x2b8] sm:$0xf]
      %v1751 = vld [vmem:[%s275 + $0x2bc] sm:$0xf]
      %v1755 = vunpack.c.l.b16 %v1733
      %v1756 = vunpack.c.l.b16 %v1734
      %v1757 = vunpack.c.l.b16 %v1735
      %v1758 = vpack.c.b16 %v1756, %v1755
      %v1759 = vpack.c.b16 %v1757, %v1757
      %v1760 = vrot.slane %v1758, 3
      %v1761 = vrot.slane %v1759, 3
      %v1762 = vsel %vm894, %v1760, %v1761
      %v1781 = vunpack.c.l.b16 %v1736
      %v1782 = vunpack.c.l.b16 %v1737
      %v1783 = vunpack.c.l.b16 %v1738
      %v1784 = vunpack.c.l.b16 %v1739
      %v1785 = vunpack.c.l.b16 %v1740
      %v1786 = vunpack.c.l.b16 %v1741
      %v1787 = vunpack.c.l.b16 %v1742
      %v1788 = vunpack.c.l.b16 %v1743
      %v1789 = vunpack.c.l.b16 %v1744
      %v1790 = vunpack.c.l.b16 %v1745
      %v1791 = vunpack.c.l.b16 %v1746
      %v1792 = vunpack.c.l.b16 %v1747
      %v1793 = vunpack.c.l.b16 %v1748
      %v1794 = vunpack.c.l.b16 %v1749
      %v1795 = vunpack.c.l.b16 %v1750
      %v1796 = vunpack.c.l.b16 %v1751
      %v1797 = vpack.c.b16 %v1782, %v1781
      %v1798 = vpack.c.b16 %v1784, %v1783
      %v1799 = vpack.c.b16 %v1786, %v1785
      %v1800 = vpack.c.b16 %v1788, %v1787
      %v1801 = vpack.c.b16 %v1790, %v1789
      %v1802 = vpack.c.b16 %v1792, %v1791
      %v1803 = vpack.c.b16 %v1794, %v1793
      %v1804 = vpack.c.b16 %v1796, %v1795
      %1813 = vmatprep.subr.bf16.mxu0 0
      %1814 = vmatpush1.bf16.msra.mxu0 %v1797
      %1815 = vmatprep.subr.bf16.mxu0 0
      %1816 = vmatpush1.bf16.msra.mxu0 %v1798
      %1817 = vmatprep.subr.bf16.mxu0 0
      %1818 = vmatpush1.bf16.msra.mxu0 %v1799
      %1819 = vmatprep.subr.bf16.mxu0 0
      %1820 = vmatpush1.bf16.msra.mxu0 %v1800
      %1821 = vmatprep.subr.bf16.mxu0 0
      %1822 = vmatpush1.bf16.msra.mxu0 %v1801
      %1823 = vmatprep.subr.bf16.mxu0 0
      %1824 = vmatpush1.bf16.msra.mxu0 %v1802
      %1825 = vmatprep.subr.bf16.mxu0 0
      %1826 = vmatpush1.bf16.msra.mxu0 %v1803
      %1827 = vmatprep.subr.bf16.mxu0 0
      %1828 = vmatpush1.bf16.msra.mxu0 %v1804
      %1829 = vmatprep.subr.bf16.mxu0 0
      %1830 = vmatpush1.bf16.msra.mxu0 0
      %1831 = vmatprep.subr.bf16.mxu0 0
      %1832 = vmatpush1.bf16.msra.mxu0 0
      %1833 = vmatprep.subr.bf16.mxu0 0
      %1834 = vmatpush1.bf16.msra.mxu0 0
      %1835 = vmatprep.subr.bf16.mxu0 0
      %1836 = vmatpush1.bf16.msra.mxu0 0
      %1837 = vmatprep.subr.bf16.mxu0 0
      %1838 = vmatpush1.bf16.msra.mxu0 0
      %1839 = vmatprep.subr.bf16.mxu0 0
      %1840 = vmatpush1.bf16.msra.mxu0 0
      %1841 = vmatprep.subr.bf16.mxu0 0
      %1842 = vmatpush1.bf16.msra.mxu0 0
      %1843 = vmatprep.subr.bf16.mxu0 0
      %1844 = vmatpush1.bf16.msra.mxu0 0
      %1845 = vmatprep.mubr.bf16.mxu0 0
      %1846 = vmatmul.mubr.bf16.gmra.mrb[0].mxu0 %v1762
      %v1847 = vpop.f32.mrb[0].mxu0
      %v1848 = vadd.f32 0.0, %v1847
      %v1849 = vpop.f32.mrb[0].mxu0
      %v1850 = vpop.f32.mrb[0].mxu0
      %v1851 = vadd.f32 0.0, %v1850
      %v1852 = vpop.f32.mrb[0].mxu0
      %1853 = vmatprep.mubr.bf16.mxu0 0
      %1854 = vmatmul.mubr.bf16.gmra.mrb[0].mxu0 %v1761
      %v1855 = vpop.f32.mrb[0].mxu0
      %v1856 = vadd.f32 0.0, %v1855
      %v1857 = vpop.f32.mrb[0].mxu0
      %v1858 = vpop.f32.mrb[0].mxu0
      %v1859 = vpop.f32.mrb[0].mxu0
      %1860 = vdwg.mxu0
      %v1861 = vadd.f32 %v1730, %v1848
      %v1862 = vadd.f32 %v1731, %v1851
      %v1863 = vadd.f32 %v1732, %v1856
      %1864 = vst [vmem:[#allocation2] sm:$0xff] %v1861
      %1865 = vst [vmem:[#allocation2 + $0x8] sm:$0xff] %v1862
      %1866 = vst [vmem:[#allocation2 + $0x10] sm:$0x3] %v1863
      %v1867 = vld [vmem:[#allocation2] sm:$0xff]
      %v1868 = vld [vmem:[#allocation2 + $0x8] sm:$0xff]
      %v1869 = vld [vmem:[#allocation2 + $0x10] sm:$0x3]
      %v1870 = vld [vmem:[%s271 + $0x4] sm:$0x8]
      %v1871 = vld [vmem:[%s271 + $0x8] sm:$0xf]
      %v1872 = vld [vmem:[%s271 + $0xc] sm:$0xf]
      %v1873 = vld [vmem:[%s271 + $0x10] sm:$0x1]
      %v1874 = vld [vmem:[%s275 + $0x2c0] sm:$0xf]
      %v1875 = vld [vmem:[%s275 + $0x2c4] sm:$0xf]
      %v1876 = vld [vmem:[%s275 + $0x2c8] sm:$0xf]
      %v1877 = vld [vmem:[%s275 + $0x2cc] sm:$0xf]
      %v1878 = vld [vmem:[%s275 + $0x2d0] sm:$0xf]
      %v1879 = vld [vmem:[%s275 + $0x2d4] sm:$0xf]
      %v1880 = vld [vmem:[%s275 + $0x2d8] sm:$0xf]
      %v1881 = vld [vmem:[%s275 + $0x2dc] sm:$0xf]
      %v1882 = vld [vmem:[%s275 + $0x2e0] sm:$0xf]
      %v1883 = vld [vmem:[%s275 + $0x2e4] sm:$0xf]
      %v1884 = vld [vmem:[%s275 + $0x2e8] sm:$0xf]
      %v1885 = vld [vmem:[%s275 + $0x2ec] sm:$0xf]
      %v1886 = vld [vmem:[%s275 + $0x2f0] sm:$0xf]
      %v1887 = vld [vmem:[%s275 + $0x2f4] sm:$0xf]
      %v1888 = vld [vmem:[%s275 + $0x2f8] sm:$0xf]
      %v1889 = vld [vmem:[%s275 + $0x2fc] sm:$0xf]
      %v1894 = vunpack.c.l.b16 %v1870
      %v1895 = vunpack.c.l.b16 %v1871
      %v1896 = vunpack.c.l.b16 %v1872
      %v1897 = vunpack.c.l.b16 %v1873
      %v1898 = vpack.c.b16 %v1895, %v1894
      %v1899 = vpack.c.b16 %v1897, %v1896
      %v1901 = vshrl.u32 %v1898, 16
      %v1903 = vrot.slane %v1901, 3
      %v1904 = vshll.u32 %v1898, 16
      %v1906 = vrot.slane %v1904, 4
      %v1907 = vor.u32 %v1903, %v1906
      %v1909 = vshrl.u32 %v1899, 16
      %v1911 = vrot.slane %v1909, 3
      %v1912 = vshll.u32 %v1899, 16
      %v1914 = vrot.slane %v1912, 4
      %v1915 = vor.u32 %v1911, %v1914
      %v1916 = vsel %vm1035, %v1907, %v1915
      %v1935 = vunpack.c.l.b16 %v1874
      %v1936 = vunpack.c.l.b16 %v1875
      %v1937 = vunpack.c.l.b16 %v1876
      %v1938 = vunpack.c.l.b16 %v1877
      %v1939 = vunpack.c.l.b16 %v1878
      %v1940 = vunpack.c.l.b16 %v1879
      %v1941 = vunpack.c.l.b16 %v1880
      %v1942 = vunpack.c.l.b16 %v1881
      %v1943 = vunpack.c.l.b16 %v1882
      %v1944 = vunpack.c.l.b16 %v1883
      %v1945 = vunpack.c.l.b16 %v1884
      %v1946 = vunpack.c.l.b16 %v1885
      %v1947 = vunpack.c.l.b16 %v1886
      %v1948 = vunpack.c.l.b16 %v1887
      %v1949 = vunpack.c.l.b16 %v1888
      %v1950 = vunpack.c.l.b16 %v1889
      %v1951 = vpack.c.b16 %v1936, %v1935
      %v1952 = vpack.c.b16 %v1938, %v1937
      %v1953 = vpack.c.b16 %v1940, %v1939
      %v1954 = vpack.c.b16 %v1942, %v1941
      %v1955 = vpack.c.b16 %v1944, %v1943
      %v1956 = vpack.c.b16 %v1946, %v1945
      %v1957 = vpack.c.b16 %v1948, %v1947
      %v1958 = vpack.c.b16 %v1950, %v1949
      %1967 = vmatprep.subr.bf16.mxu0 0
      %1968 = vmatpush1.bf16.msra.mxu0 %v1951
      %1969 = vmatprep.subr.bf16.mxu0 0
      %1970 = vmatpush1.bf16.msra.mxu0 %v1952
      %1971 = vmatprep.subr.bf16.mxu0 0
      %1972 = vmatpush1.bf16.msra.mxu0 %v1953
      %1973 = vmatprep.subr.bf16.mxu0 0
      %1974 = vmatpush1.bf16.msra.mxu0 %v1954
      %1975 = vmatprep.subr.bf16.mxu0 0
      %1976 = vmatpush1.bf16.msra.mxu0 %v1955
      %1977 = vmatprep.subr.bf16.mxu0 0
      %1978 = vmatpush1.bf16.msra.mxu0 %v1956
      %1979 = vmatprep.subr.bf16.mxu0 0
      %1980 = vmatpush1.bf16.msra.mxu0 %v1957
      %1981 = vmatprep.subr.bf16.mxu0 0
      %1982 = vmatpush1.bf16.msra.mxu0 %v1958
      %1983 = vmatprep.subr.bf16.mxu0 0
      %1984 = vmatpush1.bf16.msra.mxu0 0
      %1985 = vmatprep.subr.bf16.mxu0 0
      %1986 = vmatpush1.bf16.msra.mxu0 0
      %1987 = vmatprep.subr.bf16.mxu0 0
      %1988 = vmatpush1.bf16.msra.mxu0 0
      %1989 = vmatprep.subr.bf16.mxu0 0
      %1990 = vmatpush1.bf16.msra.mxu0 0
      %1991 = vmatprep.subr.bf16.mxu0 0
      %1992 = vmatpush1.bf16.msra.mxu0 0
      %1993 = vmatprep.subr.bf16.mxu0 0
      %1994 = vmatpush1.bf16.msra.mxu0 0
      %1995 = vmatprep.subr.bf16.mxu0 0
      %1996 = vmatpush1.bf16.msra.mxu0 0
      %1997 = vmatprep.subr.bf16.mxu0 0
      %1998 = vmatpush1.bf16.msra.mxu0 0
      %1999 = vmatprep.mubr.bf16.mxu0 0
      %2000 = vmatmul.mubr.bf16.gmra.mrb[0].mxu0 %v1916
      %v2001 = vpop.f32.mrb[0].mxu0
      %v2002 = vadd.f32 0.0, %v2001
      %v2003 = vpop.f32.mrb[0].mxu0
      %v2004 = vpop.f32.mrb[0].mxu0
      %v2005 = vadd.f32 0.0, %v2004
      %v2006 = vpop.f32.mrb[0].mxu0
      %2007 = vmatprep.mubr.bf16.mxu0 0
      %2008 = vmatmul.mubr.bf16.gmra.mrb[0].mxu0 %v1915
      %v2009 = vpop.f32.mrb[0].mxu0
      %v2010 = vadd.f32 0.0, %v2009
      %v2011 = vpop.f32.mrb[0].mxu0
      %v2012 = vpop.f32.mrb[0].mxu0
      %v2013 = vpop.f32.mrb[0].mxu0
      %2014 = vdwg.mxu0
      %v2015 = vadd.f32 %v1867, %v2002
      %v2016 = vadd.f32 %v1868, %v2005
      %v2017 = vadd.f32 %v1869, %v2010
      %2018 = vst [vmem:[#allocation2] sm:$0xff] %v2015
      %2019 = vst [vmem:[#allocation2 + $0x8] sm:$0xff] %v2016
      %2020 = vst [vmem:[#allocation2 + $0x10] sm:$0x3] %v2017
      %v2021 = vld [vmem:[#allocation2] sm:$0xff]
      %v2022 = vld [vmem:[#allocation2 + $0x8] sm:$0xff]
      %v2023 = vld [vmem:[#allocation2 + $0x10] sm:$0x3]
      %v2024 = vld [vmem:[%s271 + $0x8] sm:$0xe]
      %v2025 = vld [vmem:[%s271 + $0xc] sm:$0xf]
      %v2026 = vld [vmem:[%s271 + $0x10] sm:$0x3]
      %v2027 = vld [vmem:[%s275 + $0x300] sm:$0xf]
      %v2028 = vld [vmem:[%s275 + $0x304] sm:$0xf]
      %v2029 = vld [vmem:[%s275 + $0x308] sm:$0xf]
      %v2030 = vld [vmem:[%s275 + $0x30c] sm:$0xf]
      %v2031 = vld [vmem:[%s275 + $0x310] sm:$0xf]
      %v2032 = vld [vmem:[%s275 + $0x314] sm:$0xf]
      %v2033 = vld [vmem:[%s275 + $0x318] sm:$0xf]
      %v2034 = vld [vmem:[%s275 + $0x31c] sm:$0xf]
      %v2035 = vld [vmem:[%s275 + $0x320] sm:$0xf]
      %v2036 = vld [vmem:[%s275 + $0x324] sm:$0xf]
      %v2037 = vld [vmem:[%s275 + $0x328] sm:$0xf]
      %v2038 = vld [vmem:[%s275 + $0x32c] sm:$0xf]
      %v2039 = vld [vmem:[%s275 + $0x330] sm:$0xf]
      %v2040 = vld [vmem:[%s275 + $0x334] sm:$0xf]
      %v2041 = vld [vmem:[%s275 + $0x338] sm:$0xf]
      %v2042 = vld [vmem:[%s275 + $0x33c] sm:$0xf]
      %v2046 = vunpack.c.l.b16 %v2024
      %v2047 = vunpack.c.l.b16 %v2025
      %v2048 = vunpack.c.l.b16 %v2026
      %v2049 = vpack.c.b16 %v2047, %v2046
      %v2050 = vpack.c.b16 %v2048, %v2048
      %v2051 = vrot.slane %v2049, 1
      %v2052 = vrot.slane %v2050, 1
      %v2053 = vsel %vm604, %v2051, %v2052
      %v2072 = vunpack.c.l.b16 %v2027
      %v2073 = vunpack.c.l.b16 %v2028
      %v2074 = vunpack.c.l.b16 %v2029
      %v2075 = vunpack.c.l.b16 %v2030
      %v2076 = vunpack.c.l.b16 %v2031
      %v2077 = vunpack.c.l.b16 %v2032
      %v2078 = vunpack.c.l.b16 %v2033
      %v2079 = vunpack.c.l.b16 %v2034
      %v2080 = vunpack.c.l.b16 %v2035
      %v2081 = vunpack.c.l.b16 %v2036
      %v2082 = vunpack.c.l.b16 %v2037
      %v2083 = vunpack.c.l.b16 %v2038
      %v2084 = vunpack.c.l.b16 %v2039
      %v2085 = vunpack.c.l.b16 %v2040
      %v2086 = vunpack.c.l.b16 %v2041
      %v2087 = vunpack.c.l.b16 %v2042
      %v2088 = vpack.c.b16 %v2073, %v2072
      %v2089 = vpack.c.b16 %v2075, %v2074
      %v2090 = vpack.c.b16 %v2077, %v2076
      %v2091 = vpack.c.b16 %v2079, %v2078
      %v2092 = vpack.c.b16 %v2081, %v2080
      %v2093 = vpack.c.b16 %v2083, %v2082
      %v2094 = vpack.c.b16 %v2085, %v2084
      %v2095 = vpack.c.b16 %v2087, %v2086
      %2104 = vmatprep.subr.bf16.mxu0 0
      %2105 = vmatpush1.bf16.msra.mxu0 %v2088
      %2106 = vmatprep.subr.bf16.mxu0 0
      %2107 = vmatpush1.bf16.msra.mxu0 %v2089
      %2108 = vmatprep.subr.bf16.mxu0 0
      %2109 = vmatpush1.bf16.msra.mxu0 %v2090
      %2110 = vmatprep.subr.bf16.mxu0 0
      %2111 = vmatpush1.bf16.msra.mxu0 %v2091
      %2112 = vmatprep.subr.bf16.mxu0 0
      %2113 = vmatpush1.bf16.msra.mxu0 %v2092
      %2114 = vmatprep.subr.bf16.mxu0 0
      %2115 = vmatpush1.bf16.msra.mxu0 %v2093
      %2116 = vmatprep.subr.bf16.mxu0 0
      %2117 = vmatpush1.bf16.msra.mxu0 %v2094
      %2118 = vmatprep.subr.bf16.mxu0 0
      %2119 = vmatpush1.bf16.msra.mxu0 %v2095
      %2120 = vmatprep.subr.bf16.mxu0 0
      %2121 = vmatpush1.bf16.msra.mxu0 0
      %2122 = vmatprep.subr.bf16.mxu0 0
      %2123 = vmatpush1.bf16.msra.mxu0 0
      %2124 = vmatprep.subr.bf16.mxu0 0
      %2125 = vmatpush1.bf16.msra.mxu0 0
      %2126 = vmatprep.subr.bf16.mxu0 0
      %2127 = vmatpush1.bf16.msra.mxu0 0
      %2128 = vmatprep.subr.bf16.mxu0 0
      %2129 = vmatpush1.bf16.msra.mxu0 0
      %2130 = vmatprep.subr.bf16.mxu0 0
      %2131 = vmatpush1.bf16.msra.mxu0 0
      %2132 = vmatprep.subr.bf16.mxu0 0
      %2133 = vmatpush1.bf16.msra.mxu0 0
      %2134 = vmatprep.subr.bf16.mxu0 0
      %2135 = vmatpush1.bf16.msra.mxu0 0
      %2136 = vmatprep.mubr.bf16.mxu0 0
      %2137 = vmatmul.mubr.bf16.gmra.mrb[0].mxu0 %v2053
      %v2138 = vpop.f32.mrb[0].mxu0
      %v2139 = vadd.f32 0.0, %v2138
      %v2140 = vpop.f32.mrb[0].mxu0
      %v2141 = vpop.f32.mrb[0].mxu0
      %v2142 = vadd.f32 0.0, %v2141
      %v2143 = vpop.f32.mrb[0].mxu0
      %2144 = vmatprep.mubr.bf16.mxu0 0
      %2145 = vmatmul.mubr.bf16.gmra.mrb[0].mxu0 %v2052
      %v2146 = vpop.f32.mrb[0].mxu0
      %v2147 = vadd.f32 0.0, %v2146
      %v2148 = vpop.f32.mrb[0].mxu0
      %v2149 = vpop.f32.mrb[0].mxu0
      %v2150 = vpop.f32.mrb[0].mxu0
      %2151 = vdwg.mxu0
      %v2152 = vadd.f32 %v2021, %v2139
      %v2153 = vadd.f32 %v2022, %v2142
      %v2154 = vadd.f32 %v2023, %v2147
      %2155 = vst [vmem:[#allocation2] sm:$0xff] %v2152
      %2156 = vst [vmem:[#allocation2 + $0x8] sm:$0xff] %v2153
      %2157 = vst [vmem:[#allocation2 + $0x10] sm:$0x3] %v2154
      %v2158 = vld [vmem:[#allocation2] sm:$0xff]
      %v2159 = vld [vmem:[#allocation2 + $0x8] sm:$0xff]
      %v2160 = vld [vmem:[#allocation2 + $0x10] sm:$0x3]
      %v2161 = vld [vmem:[%s271 + $0x8] sm:$0xe]
      %v2162 = vld [vmem:[%s271 + $0xc] sm:$0xf]
      %v2163 = vld [vmem:[%s271 + $0x10] sm:$0x7]
      %v2164 = vld [vmem:[%s275 + $0x340] sm:$0xf]
      %v2165 = vld [vmem:[%s275 + $0x344] sm:$0xf]
      %v2166 = vld [vmem:[%s275 + $0x348] sm:$0xf]
      %v2167 = vld [vmem:[%s275 + $0x34c] sm:$0xf]
      %v2168 = vld [vmem:[%s275 + $0x350] sm:$0xf]
      %v2169 = vld [vmem:[%s275 + $0x354] sm:$0xf]
      %v2170 = vld [vmem:[%s275 + $0x358] sm:$0xf]
      %v2171 = vld [vmem:[%s275 + $0x35c] sm:$0xf]
      %v2172 = vld [vmem:[%s275 + $0x360] sm:$0xf]
      %v2173 = vld [vmem:[%s275 + $0x364] sm:$0xf]
      %v2174 = vld [vmem:[%s275 + $0x368] sm:$0xf]
      %v2175 = vld [vmem:[%s275 + $0x36c] sm:$0xf]
      %v2176 = vld [vmem:[%s275 + $0x370] sm:$0xf]
      %v2177 = vld [vmem:[%s275 + $0x374] sm:$0xf]
      %v2178 = vld [vmem:[%s275 + $0x378] sm:$0xf]
      %v2179 = vld [vmem:[%s275 + $0x37c] sm:$0xf]
      %v2183 = vunpack.c.l.b16 %v2161
      %v2184 = vunpack.c.l.b16 %v2162
      %v2185 = vunpack.c.l.b16 %v2163
      %v2186 = vpack.c.b16 %v2184, %v2183
      %v2187 = vpack.c.b16 %v2185, %v2185
      %v2189 = vshrl.u32 %v2186, 16
      %v2191 = vrot.slane %v2189, 1
      %v2192 = vshll.u32 %v2186, 16
      %v2194 = vrot.slane %v2192, 2
      %v2195 = vor.u32 %v2191, %v2194
      %v2197 = vshrl.u32 %v2187, 16
      %v2199 = vrot.slane %v2197, 1
      %v2200 = vshll.u32 %v2187, 16
      %v2202 = vrot.slane %v2200, 2
      %v2203 = vor.u32 %v2199, %v2202
      %v2204 = vsel %vm742, %v2195, %v2203
      %v2223 = vunpack.c.l.b16 %v2164
      %v2224 = vunpack.c.l.b16 %v2165
      %v2225 = vunpack.c.l.b16 %v2166
      %v2226 = vunpack.c.l.b16 %v2167
      %v2227 = vunpack.c.l.b16 %v2168
      %v2228 = vunpack.c.l.b16 %v2169
      %v2229 = vunpack.c.l.b16 %v2170
      %v2230 = vunpack.c.l.b16 %v2171
      %v2231 = vunpack.c.l.b16 %v2172
      %v2232 = vunpack.c.l.b16 %v2173
      %v2233 = vunpack.c.l.b16 %v2174
      %v2234 = vunpack.c.l.b16 %v2175
      %v2235 = vunpack.c.l.b16 %v2176
      %v2236 = vunpack.c.l.b16 %v2177
      %v2237 = vunpack.c.l.b16 %v2178
      %v2238 = vunpack.c.l.b16 %v2179
      %v2239 = vpack.c.b16 %v2224, %v2223
      %v2240 = vpack.c.b16 %v2226, %v2225
      %v2241 = vpack.c.b16 %v2228, %v2227
      %v2242 = vpack.c.b16 %v2230, %v2229
      %v2243 = vpack.c.b16 %v2232, %v2231
      %v2244 = vpack.c.b16 %v2234, %v2233
      %v2245 = vpack.c.b16 %v2236, %v2235
      %v2246 = vpack.c.b16 %v2238, %v2237
      %2255 = vmatprep.subr.bf16.mxu0 0
      %2256 = vmatpush1.bf16.msra.mxu0 %v2239
      %2257 = vmatprep.subr.bf16.mxu0 0
      %2258 = vmatpush1.bf16.msra.mxu0 %v2240
      %2259 = vmatprep.subr.bf16.mxu0 0
      %2260 = vmatpush1.bf16.msra.mxu0 %v2241
      %2261 = vmatprep.subr.bf16.mxu0 0
      %2262 = vmatpush1.bf16.msra.mxu0 %v2242
      %2263 = vmatprep.subr.bf16.mxu0 0
      %2264 = vmatpush1.bf16.msra.mxu0 %v2243
      %2265 = vmatprep.subr.bf16.mxu0 0
      %2266 = vmatpush1.bf16.msra.mxu0 %v2244
      %2267 = vmatprep.subr.bf16.mxu0 0
      %2268 = vmatpush1.bf16.msra.mxu0 %v2245
      %2269 = vmatprep.subr.bf16.mxu0 0
      %2270 = vmatpush1.bf16.msra.mxu0 %v2246
      %2271 = vmatprep.subr.bf16.mxu0 0
      %2272 = vmatpush1.bf16.msra.mxu0 0
      %2273 = vmatprep.subr.bf16.mxu0 0
      %2274 = vmatpush1.bf16.msra.mxu0 0
      %2275 = vmatprep.subr.bf16.mxu0 0
      %2276 = vmatpush1.bf16.msra.mxu0 0
      %2277 = vmatprep.subr.bf16.mxu0 0
      %2278 = vmatpush1.bf16.msra.mxu0 0
      %2279 = vmatprep.subr.bf16.mxu0 0
      %2280 = vmatpush1.bf16.msra.mxu0 0
      %2281 = vmatprep.subr.bf16.mxu0 0
      %2282 = vmatpush1.bf16.msra.mxu0 0
      %2283 = vmatprep.subr.bf16.mxu0 0
      %2284 = vmatpush1.bf16.msra.mxu0 0
      %2285 = vmatprep.subr.bf16.mxu0 0
      %2286 = vmatpush1.bf16.msra.mxu0 0
      %2287 = vmatprep.mubr.bf16.mxu0 0
      %2288 = vmatmul.mubr.bf16.gmra.mrb[0].mxu0 %v2204
      %v2289 = vpop.f32.mrb[0].mxu0
      %v2290 = vadd.f32 0.0, %v2289
      %v2291 = vpop.f32.mrb[0].mxu0
      %v2292 = vpop.f32.mrb[0].mxu0
      %v2293 = vadd.f32 0.0, %v2292
      %v2294 = vpop.f32.mrb[0].mxu0
      %2295 = vmatprep.mubr.bf16.mxu0 0
      %2296 = vmatmul.mubr.bf16.gmra.mrb[0].mxu0 %v2203
      %v2297 = vpop.f32.mrb[0].mxu0
      %v2298 = vadd.f32 0.0, %v2297
      %v2299 = vpop.f32.mrb[0].mxu0
      %v2300 = vpop.f32.mrb[0].mxu0
      %v2301 = vpop.f32.mrb[0].mxu0
      %2302 = vdwg.mxu0
      %v2303 = vadd.f32 %v2158, %v2290
      %v2304 = vadd.f32 %v2159, %v2293
      %v2305 = vadd.f32 %v2160, %v2298
      %2306 = vst [vmem:[#allocation2] sm:$0xff] %v2303
      %2307 = vst [vmem:[#allocation2 + $0x8] sm:$0xff] %v2304
      %2308 = vst [vmem:[#allocation2 + $0x10] sm:$0x3] %v2305
      %v2309 = vld [vmem:[#allocation2] sm:$0xff]
      %v2310 = vld [vmem:[#allocation2 + $0x8] sm:$0xff]
      %v2311 = vld [vmem:[#allocation2 + $0x10] sm:$0x3]
      %v2312 = vld [vmem:[%s271 + $0x8] sm:$0xc]
      %v2313 = vld [vmem:[%s271 + $0xc] sm:$0xf]
      %v2314 = vld [vmem:[%s271 + $0x10] sm:$0x7]
      %v2315 = vld [vmem:[%s275 + $0x380] sm:$0xf]
      %v2316 = vld [vmem:[%s275 + $0x384] sm:$0xf]
      %v2317 = vld [vmem:[%s275 + $0x388] sm:$0xf]
      %v2318 = vld [vmem:[%s275 + $0x38c] sm:$0xf]
      %v2319 = vld [vmem:[%s275 + $0x390] sm:$0xf]
      %v2320 = vld [vmem:[%s275 + $0x394] sm:$0xf]
      %v2321 = vld [vmem:[%s275 + $0x398] sm:$0xf]
      %v2322 = vld [vmem:[%s275 + $0x39c] sm:$0xf]
      %v2323 = vld [vmem:[%s275 + $0x3a0] sm:$0xf]
      %v2324 = vld [vmem:[%s275 + $0x3a4] sm:$0xf]
      %v2325 = vld [vmem:[%s275 + $0x3a8] sm:$0xf]
      %v2326 = vld [vmem:[%s275 + $0x3ac] sm:$0xf]
      %v2327 = vld [vmem:[%s275 + $0x3b0] sm:$0xf]
      %v2328 = vld [vmem:[%s275 + $0x3b4] sm:$0xf]
      %v2329 = vld [vmem:[%s275 + $0x3b8] sm:$0xf]
      %v2330 = vld [vmem:[%s275 + $0x3bc] sm:$0xf]
      %v2334 = vunpack.c.l.b16 %v2312
      %v2335 = vunpack.c.l.b16 %v2313
      %v2336 = vunpack.c.l.b16 %v2314
      %v2337 = vpack.c.b16 %v2335, %v2334
      %v2338 = vpack.c.b16 %v2336, %v2336
      %v2339 = vrot.slane %v2337, 2
      %v2340 = vrot.slane %v2338, 2
      %v2341 = vsel %vm1470, %v2339, %v2340
      %v2360 = vunpack.c.l.b16 %v2315
      %v2361 = vunpack.c.l.b16 %v2316
      %v2362 = vunpack.c.l.b16 %v2317
      %v2363 = vunpack.c.l.b16 %v2318
      %v2364 = vunpack.c.l.b16 %v2319
      %v2365 = vunpack.c.l.b16 %v2320
      %v2366 = vunpack.c.l.b16 %v2321
      %v2367 = vunpack.c.l.b16 %v2322
      %v2368 = vunpack.c.l.b16 %v2323
      %v2369 = vunpack.c.l.b16 %v2324
      %v2370 = vunpack.c.l.b16 %v2325
      %v2371 = vunpack.c.l.b16 %v2326
      %v2372 = vunpack.c.l.b16 %v2327
      %v2373 = vunpack.c.l.b16 %v2328
      %v2374 = vunpack.c.l.b16 %v2329
      %v2375 = vunpack.c.l.b16 %v2330
      %v2376 = vpack.c.b16 %v2361, %v2360
      %v2377 = vpack.c.b16 %v2363, %v2362
      %v2378 = vpack.c.b16 %v2365, %v2364
      %v2379 = vpack.c.b16 %v2367, %v2366
      %v2380 = vpack.c.b16 %v2369, %v2368
      %v2381 = vpack.c.b16 %v2371, %v2370
      %v2382 = vpack.c.b16 %v2373, %v2372
      %v2383 = vpack.c.b16 %v2375, %v2374
      %2392 = vmatprep.subr.bf16.mxu0 0
      %2393 = vmatpush1.bf16.msra.mxu0 %v2376
      %2394 = vmatprep.subr.bf16.mxu0 0
      %2395 = vmatpush1.bf16.msra.mxu0 %v2377
      %2396 = vmatprep.subr.bf16.mxu0 0
      %2397 = vmatpush1.bf16.msra.mxu0 %v2378
      %2398 = vmatprep.subr.bf16.mxu0 0
      %2399 = vmatpush1.bf16.msra.mxu0 %v2379
      %2400 = vmatprep.subr.bf16.mxu0 0
      %2401 = vmatpush1.bf16.msra.mxu0 %v2380
      %2402 = vmatprep.subr.bf16.mxu0 0
      %2403 = vmatpush1.bf16.msra.mxu0 %v2381
      %2404 = vmatprep.subr.bf16.mxu0 0
      %2405 = vmatpush1.bf16.msra.mxu0 %v2382
      %2406 = vmatprep.subr.bf16.mxu0 0
      %2407 = vmatpush1.bf16.msra.mxu0 %v2383
      %2408 = vmatprep.subr.bf16.mxu0 0
      %2409 = vmatpush1.bf16.msra.mxu0 0
      %2410 = vmatprep.subr.bf16.mxu0 0
      %2411 = vmatpush1.bf16.msra.mxu0 0
      %2412 = vmatprep.subr.bf16.mxu0 0
      %2413 = vmatpush1.bf16.msra.mxu0 0
      %2414 = vmatprep.subr.bf16.mxu0 0
      %2415 = vmatpush1.bf16.msra.mxu0 0
      %2416 = vmatprep.subr.bf16.mxu0 0
      %2417 = vmatpush1.bf16.msra.mxu0 0
      %2418 = vmatprep.subr.bf16.mxu0 0
      %2419 = vmatpush1.bf16.msra.mxu0 0
      %2420 = vmatprep.subr.bf16.mxu0 0
      %2421 = vmatpush1.bf16.msra.mxu0 0
      %2422 = vmatprep.subr.bf16.mxu0 0
      %2423 = vmatpush1.bf16.msra.mxu0 0
      %2424 = vmatprep.mubr.bf16.mxu0 0
      %2425 = vmatmul.mubr.bf16.gmra.mrb[0].mxu0 %v2341
      %v2426 = vpop.f32.mrb[0].mxu0
      %v2427 = vadd.f32 0.0, %v2426
      %v2428 = vpop.f32.mrb[0].mxu0
      %v2429 = vpop.f32.mrb[0].mxu0
      %v2430 = vadd.f32 0.0, %v2429
      %v2431 = vpop.f32.mrb[0].mxu0
      %2432 = vmatprep.mubr.bf16.mxu0 0
      %2433 = vmatmul.mubr.bf16.gmra.mrb[0].mxu0 %v2340
      %v2434 = vpop.f32.mrb[0].mxu0
      %v2435 = vadd.f32 0.0, %v2434
      %v2436 = vpop.f32.mrb[0].mxu0
      %v2437 = vpop.f32.mrb[0].mxu0
      %v2438 = vpop.f32.mrb[0].mxu0
      %2439 = vdwg.mxu0
      %v2440 = vadd.f32 %v2309, %v2427
      %v2441 = vadd.f32 %v2310, %v2430
      %v2442 = vadd.f32 %v2311, %v2435
      %2443 = vst [vmem:[#allocation2] sm:$0xff] %v2440
      %2444 = vst [vmem:[#allocation2 + $0x8] sm:$0xff] %v2441
      %2445 = vst [vmem:[#allocation2 + $0x10] sm:$0x3] %v2442
      %v2446 = vld [vmem:[#allocation2] sm:$0xff]
      %v2447 = vld [vmem:[#allocation2 + $0x8] sm:$0xff]
      %v2448 = vld [vmem:[#allocation2 + $0x10] sm:$0x3]
      %v2449 = vld [vmem:[%s271 + $0x8] sm:$0xc]
      %v2450 = vld [vmem:[%s271 + $0xc] sm:$0xf]
      %v2451 = vld [vmem:[%s271 + $0x10] sm:$0xf]
      %v2452 = vld [vmem:[%s275 + $0x3c0] sm:$0xf]
      %v2453 = vld [vmem:[%s275 + $0x3c4] sm:$0xf]
      %v2454 = vld [vmem:[%s275 + $0x3c8] sm:$0xf]
      %v2455 = vld [vmem:[%s275 + $0x3cc] sm:$0xf]
      %v2456 = vld [vmem:[%s275 + $0x3d0] sm:$0xf]
      %v2457 = vld [vmem:[%s275 + $0x3d4] sm:$0xf]
      %v2458 = vld [vmem:[%s275 + $0x3d8] sm:$0xf]
      %v2459 = vld [vmem:[%s275 + $0x3dc] sm:$0xf]
      %v2460 = vld [vmem:[%s275 + $0x3e0] sm:$0xf]
      %v2461 = vld [vmem:[%s275 + $0x3e4] sm:$0xf]
      %v2462 = vld [vmem:[%s275 + $0x3e8] sm:$0xf]
      %v2463 = vld [vmem:[%s275 + $0x3ec] sm:$0xf]
      %v2464 = vld [vmem:[%s275 + $0x3f0] sm:$0xf]
      %v2465 = vld [vmem:[%s275 + $0x3f4] sm:$0xf]
      %v2466 = vld [vmem:[%s275 + $0x3f8] sm:$0xf]
      %v2467 = vld [vmem:[%s275 + $0x3fc] sm:$0xf]
      %v2471 = vunpack.c.l.b16 %v2449
      %v2472 = vunpack.c.l.b16 %v2450
      %v2473 = vunpack.c.l.b16 %v2451
      %v2474 = vpack.c.b16 %v2472, %v2471
      %v2475 = vpack.c.b16 %v2473, %v2473
      %v2477 = vshrl.u32 %v2474, 16
      %v2479 = vrot.slane %v2477, 2
      %v2480 = vshll.u32 %v2474, 16
      %v2482 = vrot.slane %v2480, 3
      %v2483 = vor.u32 %v2479, %v2482
      %v2485 = vshrl.u32 %v2475, 16
      %v2487 = vrot.slane %v2485, 2
      %v2488 = vshll.u32 %v2475, 16
      %v2490 = vrot.slane %v2488, 3
      %v2491 = vor.u32 %v2487, %v2490
      %v2492 = vsel %vm1608, %v2483, %v2491
      %v2511 = vunpack.c.l.b16 %v2452
      %v2512 = vunpack.c.l.b16 %v2453
      %v2513 = vunpack.c.l.b16 %v2454
      %v2514 = vunpack.c.l.b16 %v2455
      %v2515 = vunpack.c.l.b16 %v2456
      %v2516 = vunpack.c.l.b16 %v2457
      %v2517 = vunpack.c.l.b16 %v2458
      %v2518 = vunpack.c.l.b16 %v2459
      %v2519 = vunpack.c.l.b16 %v2460
      %v2520 = vunpack.c.l.b16 %v2461
      %v2521 = vunpack.c.l.b16 %v2462
      %v2522 = vunpack.c.l.b16 %v2463
      %v2523 = vunpack.c.l.b16 %v2464
      %v2524 = vunpack.c.l.b16 %v2465
      %v2525 = vunpack.c.l.b16 %v2466
      %v2526 = vunpack.c.l.b16 %v2467
      %v2527 = vpack.c.b16 %v2512, %v2511
      %v2528 = vpack.c.b16 %v2514, %v2513
      %v2529 = vpack.c.b16 %v2516, %v2515
      %v2530 = vpack.c.b16 %v2518, %v2517
      %v2531 = vpack.c.b16 %v2520, %v2519
      %v2532 = vpack.c.b16 %v2522, %v2521
      %v2533 = vpack.c.b16 %v2524, %v2523
      %v2534 = vpack.c.b16 %v2526, %v2525
      %2543 = vmatprep.subr.bf16.mxu0 0
      %2544 = vmatpush1.bf16.msra.mxu0 %v2527
      %2545 = vmatprep.subr.bf16.mxu0 0
      %2546 = vmatpush1.bf16.msra.mxu0 %v2528
      %2547 = vmatprep.subr.bf16.mxu0 0
      %2548 = vmatpush1.bf16.msra.mxu0 %v2529
      %2549 = vmatprep.subr.bf16.mxu0 0
      %2550 = vmatpush1.bf16.msra.mxu0 %v2530
      %2551 = vmatprep.subr.bf16.mxu0 0
      %2552 = vmatpush1.bf16.msra.mxu0 %v2531
      %2553 = vmatprep.subr.bf16.mxu0 0
      %2554 = vmatpush1.bf16.msra.mxu0 %v2532
      %2555 = vmatprep.subr.bf16.mxu0 0
      %2556 = vmatpush1.bf16.msra.mxu0 %v2533
      %2557 = vmatprep.subr.bf16.mxu0 0
      %2558 = vmatpush1.bf16.msra.mxu0 %v2534
      %2559 = vmatprep.subr.bf16.mxu0 0
      %2560 = vmatpush1.bf16.msra.mxu0 0
      %2561 = vmatprep.subr.bf16.mxu0 0
      %2562 = vmatpush1.bf16.msra.mxu0 0
      %2563 = vmatprep.subr.bf16.mxu0 0
      %2564 = vmatpush1.bf16.msra.mxu0 0
      %2565 = vmatprep.subr.bf16.mxu0 0
      %2566 = vmatpush1.bf16.msra.mxu0 0
      %2567 = vmatprep.subr.bf16.mxu0 0
      %2568 = vmatpush1.bf16.msra.mxu0 0
      %2569 = vmatprep.subr.bf16.mxu0 0
      %2570 = vmatpush1.bf16.msra.mxu0 0
      %2571 = vmatprep.subr.bf16.mxu0 0
      %2572 = vmatpush1.bf16.msra.mxu0 0
      %2573 = vmatprep.subr.bf16.mxu0 0
      %2574 = vmatpush1.bf16.msra.mxu0 0
      %2575 = vmatprep.mubr.bf16.mxu0 0
      %2576 = vmatmul.mubr.bf16.gmra.mrb[0].mxu0 %v2492
      %v2577 = vpop.f32.mrb[0].mxu0
      %v2578 = vadd.f32 0.0, %v2577
      %v2579 = vpop.f32.mrb[0].mxu0
      %v2580 = vpop.f32.mrb[0].mxu0
      %v2581 = vadd.f32 0.0, %v2580
      %v2582 = vpop.f32.mrb[0].mxu0
      %2583 = vmatprep.mubr.bf16.mxu0 0
      %2584 = vmatmul.mubr.bf16.gmra.mrb[0].mxu0 %v2491
      %v2585 = vpop.f32.mrb[0].mxu0
      %v2586 = vadd.f32 0.0, %v2585
      %v2587 = vpop.f32.mrb[0].mxu0
      %v2588 = vpop.f32.mrb[0].mxu0
      %v2589 = vpop.f32.mrb[0].mxu0
      %2590 = vdwg.mxu0
      %v2591 = vadd.f32 %v2446, %v2578
      %v2592 = vadd.f32 %v2447, %v2581
      %v2593 = vadd.f32 %v2448, %v2586
      %2594 = vst [vmem:[#allocation2] sm:$0xff] %v2591
      %2595 = vst [vmem:[#allocation2 + $0x8] sm:$0xff] %v2592
      %2596 = vst [vmem:[#allocation2 + $0x10] sm:$0x3] %v2593
      %v2597 = vld [vmem:[#allocation2] sm:$0xff]
      %v2598 = vld [vmem:[#allocation2 + $0x8] sm:$0xff]
      %v2599 = vld [vmem:[#allocation2 + $0x10] sm:$0x3]
      %v2600 = vld [vmem:[%s278] sm:$0x1]
      %v2602 = vlaneseq
      %v2603 = vshrl.u32 %v2602, 7
      %v2604 = vsub.s32 0, %v2603
      %v2605 = vrot.slane %v2600, %v2604
      %v2607 = vmul.f32 %v2597, %v2605
      %v2608 = vmul.f32 %v2598, %v2605
      %v2609 = vmul.f32 %v2599, %v2605
      %v2610 = vld [vmem:[%s281] sm:$0x1]
      %v2612 = vlaneseq
      %v2613 = vshrl.u32 %v2612, 7
      %v2614 = vsub.s32 0, %v2613
      %v2615 = vrot.slane %v2610, %v2614
      %v2617 = vadd.f32 %v2607, %v2615
      %v2618 = vadd.f32 %v2608, %v2615
      %v2619 = vadd.f32 %v2609, %v2615
      %vm2620 = vcmp.ge.f32.partialorder %v2617, 0.0
      %vm2621 = vcmp.ge.f32.partialorder %v2618, 0.0
      %vm2622 = vcmp.ge.f32.partialorder %v2619, 0.0
      %v2623 = vmul.f32 %v2617, 0.2
      %v2624 = vmul.f32 %v2618, 0.2
      %v2625 = vmul.f32 %v2619, 0.2
      %v2626 = vsel %vm2620, %v2617, %v2623
      %v2627 = vsel %vm2621, %v2618, %v2624
      %v2628 = vsel %vm2622, %v2619, %v2625
      %v2629 = vpack.c.bf16 %v2627, %v2626
      %v2630 = vpack.c.bf16 %v2628, %v2628
      %v2633 = vunpack.c.l.b16 %v2629
      %v2634 = vunpack.c.h.b16 %v2629
      %v2635 = vunpack.c.l.b16 %v2630
      %v2636 = vpack.c.b16 %v2633, %v2633
      %v2637 = vpack.c.b16 %v2634, %v2634
      %v2638 = vpack.c.b16 %v2635, %v2635
      %2642 = vst [vmem:[%s293] sm:$0xf] %v2636
      %2643 = vst [vmem:[%s293 + $0x4] sm:$0xf] %v2637
      %2644 = vst [vmem:[%s293 + $0x8] sm:$0x1] %v2638
      %s2645 = smul.u32 3, %s21
      %p2646 = scmp.lt.s32.totalorder %s20, 1
      %s2647 = scalar_select %p2646, %s20, 1
      %p2648 = scmp.lt.s32.totalorder %s2645, 2
      %s2649 = scalar_select %p2648, %s2645, 2
      %p2650 = scmp.lt.s32.totalorder %s22, 0
      %s2651 = scalar_select %p2650, %s22, 0
      %s2652 = sadd.s32 %s2651, %s2649
      %s2653 = smul.addr %s2647, 3
      %s2654 = sadd.s32 %s2652, %s2653
      %s2655 = smul.addr %s2654, 4
      %s2656 = scalar_lea.vmem %s4, %s2655
      // Predicated region
      $region37: #{_lambda_.8} parent=35 // pred_check
        %p2657 = pneg %p162
      $region38: #{_lambda_.8} parent=35 // pred_check_branch
        %2659 = sbr.rel (%p2657) target = $region40
      $region39: #{_lambda_.8} parent=35 // pred_region
        %s2660 = smul.u32 3, %s21
      $region40: #{_lambda_.8} parent=35 // pred_fallthru
        _
    $region36: #{_lambda_.8} parent=5 // pred_fallthru
      _
    %p2661 = scmp.le.s32.totalorder 2, %s10
    // Predicated region
    $region41: #{_lambda_.8} parent=5 // pred_check
      %p2662 = pneg %p2661
    $region42: #{_lambda_.8} parent=5 // pred_check_branch
      %2664 = sbr.rel (%p2662) target = $region44
    $region43: #{_lambda_.8} parent=5 // pred_region
      %s2665 = ssub.s32 %s10, 2
      // Predicated region
      $region45: #{_lambda_.8} parent=43 // pred_check
        %p2666 = pneg %p168
      $region46: #{_lambda_.8} parent=43 // pred_check_branch
        %2668 = sbr.rel (%p2666) target = $region48
      $region47: #{_lambda_.8} parent=43 // pred_region
        %s2669 = smul.u32 3, %s24
        %p2670 = scmp.lt.s32.totalorder %s23, 1
        %s2671 = scalar_select %p2670, %s23, 1
        %p2672 = scmp.lt.s32.totalorder %s2669, 2
        %s2673 = scalar_select %p2672, %s2669, 2
        %p2674 = scmp.lt.s32.totalorder %s25, 0
        %s2675 = scalar_select %p2674, %s25, 0
        %s2676 = sadd.s32 %s2675, %s2673
        %s2677 = smul.addr %s2671, 3
        %s2678 = sadd.s32 %s2676, %s2677
        %s2679 = smul.addr %s2678, 4
        %s2680 = scalar_lea.vmem %s4, %s2679
      $region48: #{_lambda_.8} parent=43 // pred_fallthru
        _
    $region44: #{_lambda_.8} parent=5 // pred_fallthru
      _
  $region6: #{_lambda_.8} parent=0 // loop_footer
    %s14 = sadd.s32 1, %s10
  $region7: #{_lambda_.8} parent=0 // loop_footer_branch
    %9 = sbr.rel target = $region3
  $region8: #{_lambda_.8} parent=0 // loop_exit
    _

// kernel: _lambda_.9
$region0: #{_lambda_.9}
  #allocation0 [shape = 'u32[]', space=smem, size = 0x4, offset = 0x4, fixed_abs, tag = 'smem constant byte address 0x4 - core index']
  #allocation1 [shape = 'u32[144,128]{1,0:T(1,128)}', space=vmem, size = 0x12000, scoped, tag = 'internal scratch']
  #allocation2 [shape = 'f32[10,128]{1,0:T(8,128)}', space=vmem, size = 0x2000, scoped, tag = 'scratch operand']
  %s0 = inlined_call_operand.vmem [shape: bf16[2,1,28,128], index: 0, kind: input, shape index: {}]
  %s1 = inlined_call_operand.vmem [shape: bf16[2048,128], index: 1, kind: input, shape index: {}]
  %s2 = inlined_call_operand.vmem [shape: f32[1,128], index: 2, kind: input, shape index: {}]
  %s3 = inlined_call_operand.vmem [shape: f32[1,128], index: 3, kind: input, shape index: {}]
  %s4 = inlined_call_operand.vmem [shape: bf16[2,10,128], index: 4, kind: output, shape index: {}]
  %s5 = sld [smem:[#allocation0]]
  $region49: #{_lambda_.9} parent=0
    _
  %s7 = ssub.s32 1, %s5
  %s8 = scalar_select 0, %s7, %s5
  loop: start=0, step=1, limit=4
  $region2: #{_lambda_.9} parent=0 // loop_pre_header
    _
  $region3: #{_lambda_.9} parent=0 // loop_header
    %s10 = sphi 0, %s14
    %p11 = scmp.ge.s32.totalorder %s10, 4
    %s17 = sphi 0, %s36
    %s18 = sphi 0, %s32
    %s19 = sphi 0, %s28
    %s20 = sphi 0, %s17
    %s21 = sphi 0, %s18
    %s22 = sphi 0, %s19
    %s23 = sphi 0, %s20
    %s24 = sphi 0, %s21
    %s25 = sphi 0, %s22
    %s41 = sphi 0, %s43
    %s44 = sphi 0, %s41
    %s45 = sphi 0, %s44
    %s61 = sphi 0, %s45
    %s67 = sphi 0, %s69
    %s70 = sphi 0, %s67
    %s71 = sphi 0, %s70
    %s87 = sphi 0, %s71
    %s93 = sphi 0, %s95
    %s96 = sphi 0, %s93
    %s97 = sphi 0, %s96
    %s113 = sphi 0, %s97
    %s119 = sphi 0, %s121
    %s122 = sphi 0, %s119
    %s123 = sphi 0, %s122
    %s139 = sphi 0, %s123
    %s149 = sphi 0, %s151
    %s152 = sphi 0, %s149
    %s153 = sphi 0, %s152
    %s169 = sphi 0, %s153
  $region4: #{_lambda_.9} parent=0 // loop_header_branch
    %13 = sbr.rel (%p11) target = $region8
  $region5: #{_lambda_.9} parent=0 // loop_body
    %s15 = ssub.s32 %s10, 1
    %s16 = ssub.s32 %s10, 2
    %s26 = sadd.s32 1, %s19
    %p27 = scmp.ge.s32.totalorder %s26, 1
    %s28 = scalar_select %p27, 0, %s26
    %s29 = sadd.s32 1, %s18
    %s30 = scalar_select %p27, %s29, %s18
    %p31 = scmp.ge.s32.totalorder %s30, 1
    %s32 = scalar_select %p31, 0, %s30
    %s33 = sadd.s32 1, %s17
    %s34 = scalar_select %p31, %s33, %s17
    %p35 = scmp.ge.s32.totalorder %s34, 2
    %s36 = scalar_select %p35, 0, %s34
    %s37 = ssub.s32 %s17, %s36
    %s38 = ssub.s32 %s18, %s32
    %s39 = sor.u32 %s37, %s38
    %p40 = scmp.eq.s32.totalorder %s39, 0
    %s42 = sadd.s32 %s41, 1
    %s43 = scalar_select %p40, %s41, %s42
    %p46 = pneg %p40
    %p47 = scmp.eq.s32.totalorder %s10, 1
    %p48 = por %p46, %p47
    %p49 = scmp.ne.s32.totalorder %s41, %s44
    %p50 = scmp.eq.s32.totalorder %s10, 0
    %p51 = por %p49, %p50
    %p52 = scmp.ne.s32.totalorder %s41, %s44
    %p53 = scmp.eq.s32.totalorder %s15, 1
    %p54 = por %p52, %p53
    %p55 = scmp.ne.s32.totalorder %s44, %s45
    %p56 = scmp.eq.s32.totalorder %s15, 0
    %p57 = por %p55, %p56
    %p58 = scmp.ne.s32.totalorder %s44, %s45
    %p59 = scmp.eq.s32.totalorder %s16, 1
    %p60 = por %p58, %p59
    %p62 = scmp.ne.s32.totalorder %s45, %s61
    %p63 = scmp.eq.s32.totalorder %s16, 0
    %p64 = por %p62, %p63
    %s65 = ssub.s32 %s19, %s28
    %p66 = scmp.eq.s32.totalorder %s65, 0
    %s68 = sadd.s32 %s67, 1
    %s69 = scalar_select %p66, %s67, %s68
    %p72 = pneg %p66
    %p73 = scmp.eq.s32.totalorder %s10, 1
    %p74 = por %p72, %p73
    %p75 = scmp.ne.s32.totalorder %s67, %s70
    %p76 = scmp.eq.s32.totalorder %s10, 0
    %p77 = por %p75, %p76
    %p78 = scmp.ne.s32.totalorder %s67, %s70
    %p79 = scmp.eq.s32.totalorder %s15, 1
    %p80 = por %p78, %p79
    %p81 = scmp.ne.s32.totalorder %s70, %s71
    %p82 = scmp.eq.s32.totalorder %s15, 0
    %p83 = por %p81, %p82
    %p84 = scmp.ne.s32.totalorder %s70, %s71
    %p85 = scmp.eq.s32.totalorder %s16, 1
    %p86 = por %p84, %p85
    %p88 = scmp.ne.s32.totalorder %s71, %s87
    %p89 = scmp.eq.s32.totalorder %s16, 0
    %p90 = por %p88, %p89
    %s91 = ssub.s32 %s19, %s28
    %p92 = scmp.eq.s32.totalorder %s91, 0
    %s94 = sadd.s32 %s93, 1
    %s95 = scalar_select %p92, %s93, %s94
    %p98 = pneg %p92
    %p99 = scmp.eq.s32.totalorder %s10, 1
    %p100 = por %p98, %p99
    %p101 = scmp.ne.s32.totalorder %s93, %s96
    %p102 = scmp.eq.s32.totalorder %s10, 0
    %p103 = por %p101, %p102
    %p104 = scmp.ne.s32.totalorder %s93, %s96
    %p105 = scmp.eq.s32.totalorder %s15, 1
    %p106 = por %p104, %p105
    %p107 = scmp.ne.s32.totalorder %s96, %s97
    %p108 = scmp.eq.s32.totalorder %s15, 0
    %p109 = por %p107, %p108
    %p110 = scmp.ne.s32.totalorder %s96, %s97
    %p111 = scmp.eq.s32.totalorder %s16, 1
    %p112 = por %p110, %p111
    %p114 = scmp.ne.s32.totalorder %s97, %s113
    %p115 = scmp.eq.s32.totalorder %s16, 0
    %p116 = por %p114, %p115
    %s117 = ssub.s32 %s19, %s28
    %p118 = scmp.eq.s32.totalorder %s117, 0
    %s120 = sadd.s32 %s119, 1
    %s121 = scalar_select %p118, %s119, %s120
    %p124 = pneg %p118
    %p125 = scmp.eq.s32.totalorder %s10, 1
    %p126 = por %p124, %p125
    %p127 = scmp.ne.s32.totalorder %s119, %s122
    %p128 = scmp.eq.s32.totalorder %s10, 0
    %p129 = por %p127, %p128
    %p130 = scmp.ne.s32.totalorder %s119, %s122
    %p131 = scmp.eq.s32.totalorder %s15, 1
    %p132 = por %p130, %p131
    %p133 = scmp.ne.s32.totalorder %s122, %s123
    %p134 = scmp.eq.s32.totalorder %s15, 0
    %p135 = por %p133, %p134
    %p136 = scmp.ne.s32.totalorder %s122, %s123
    %p137 = scmp.eq.s32.totalorder %s16, 1
    %p138 = por %p136, %p137
    %p140 = scmp.ne.s32.totalorder %s123, %s139
    %p141 = scmp.eq.s32.totalorder %s16, 0
    %p142 = por %p140, %p141
    %s143 = ssub.s32 %s17, %s36
    %s144 = ssub.s32 %s18, %s32
    %s145 = sor.u32 %s143, %s144
    %s146 = ssub.s32 %s19, %s28
    %s147 = sor.u32 %s145, %s146
    %p148 = scmp.eq.s32.totalorder %s147, 0
    %s150 = sadd.s32 %s149, 1
    %s151 = scalar_select %p148, %s149, %s150
    %p154 = pneg %p148
    %p155 = scmp.eq.s32.totalorder %s10, 1
    %p156 = por %p154, %p155
    %p157 = scmp.ne.s32.totalorder %s149, %s152
    %p158 = scmp.eq.s32.totalorder %s10, 0
    %p159 = por %p157, %p158
    %p160 = scmp.ne.s32.totalorder %s149, %s152
    %p161 = scmp.eq.s32.totalorder %s15, 1
    %p162 = por %p160, %p161
    %p163 = scmp.ne.s32.totalorder %s152, %s153
    %p164 = scmp.eq.s32.totalorder %s15, 0
    %p165 = por %p163, %p164
    %p166 = scmp.ne.s32.totalorder %s152, %s153
    %p167 = scmp.eq.s32.totalorder %s16, 1
    %p168 = por %p166, %p167
    %p170 = scmp.ne.s32.totalorder %s153, %s169
    %p171 = scmp.eq.s32.totalorder %s16, 0
    %p172 = por %p170, %p171
    %p173 = scmp.le.s32.totalorder 1, %s10
    %p174 = scmp.lt.s32.totalorder %s10, 3
    %p175 = pnand %p173, %p174
    %p176 = pneg %p175
    // Predicated region
    $region9: #{_lambda_.9} parent=5 // pred_check
      _
    $region10: #{_lambda_.9} parent=5 // pred_check_branch
      %178 = sbr.rel (%p175) target = $region12
    $region11: #{_lambda_.9} parent=5 // pred_region
      %s179 = ssub.s32 %s10, 1
      // Predicated region
      $region13: #{_lambda_.9} parent=11 // pred_check
        %p180 = pneg %p83
      $region14: #{_lambda_.9} parent=11 // pred_check_branch
        %182 = sbr.rel (%p180) target = $region16
      $region15: #{_lambda_.9} parent=11 // pred_region
        %p183 = scmp.lt.s32.totalorder %s22, 0
        %s184 = scalar_select %p183, %s22, 0
        %s185 = smul.addr %s184, 4
        %s186 = scalar_lea.vmem %s1, %s185
      $region16: #{_lambda_.9} parent=11 // pred_fallthru
        _
      // Predicated region
      $region17: #{_lambda_.9} parent=11 // pred_check
        %p187 = pneg %p109
      $region18: #{_lambda_.9} parent=11 // pred_check_branch
        %189 = sbr.rel (%p187) target = $region20
      $region19: #{_lambda_.9} parent=11 // pred_region
        %p190 = scmp.lt.s32.totalorder %s22, 0
        %s191 = scalar_select %p190, %s22, 0
        %s192 = scalar_lea.vmem %s2, %s191
      $region20: #{_lambda_.9} parent=11 // pred_fallthru
        _
      // Predicated region
      $region21: #{_lambda_.9} parent=11 // pred_check
        %p193 = pneg %p135
      $region22: #{_lambda_.9} parent=11 // pred_check_branch
        %195 = sbr.rel (%p193) target = $region24
      $region23: #{_lambda_.9} parent=11 // pred_region
        %p196 = scmp.lt.s32.totalorder %s22, 0
        %s197 = scalar_select %p196, %s22, 0
        %s198 = scalar_lea.vmem %s3, %s197
      $region24: #{_lambda_.9} parent=11 // pred_fallthru
        _
    $region12: #{_lambda_.9} parent=5 // pred_fallthru
      _
    %p199 = scmp.lt.s32.totalorder %s10, 2
    // Predicated region
    $region25: #{_lambda_.9} parent=5 // pred_check
      %p200 = pneg %p199
    $region26: #{_lambda_.9} parent=5 // pred_check_branch
      %202 = sbr.rel (%p200) target = $region28
    $region27: #{_lambda_.9} parent=5 // pred_region
      // Predicated region
      $region29: #{_lambda_.9} parent=27 // pred_check
        %p203 = pneg %p51
      $region30: #{_lambda_.9} parent=27 // pred_check_branch
        %205 = sbr.rel (%p203) target = $region32
      $region31: #{_lambda_.9} parent=27 // pred_region
        %p206 = scmp.lt.s32.totalorder %s17, 1
        %s207 = scalar_select %p206, %s17, 1
        %p208 = scmp.lt.s32.totalorder %s18, 0
        %s209 = scalar_select %p208, %s18, 0
        %s210 = smul.addr %s209, 4
        %s211 = smul.addr %s207, 4
        %s212 = sadd.s32 %s210, %s211
        %s213 = smul.addr %s212, 4
        %s214 = scalar_lea.vmem %s0, %s213
      $region32: #{_lambda_.9} parent=27 // pred_fallthru
        _
    $region28: #{_lambda_.9} parent=5 // pred_fallthru
      _
    %p215 = scmp.le.s32.totalorder 1, %s10
    %p216 = scmp.lt.s32.totalorder %s10, 3
    %p217 = pnand %p215, %p216
    %p218 = pneg %p217
    // Predicated region
    $region33: #{_lambda_.9} parent=5 // pred_check
      _
    $region34: #{_lambda_.9} parent=5 // pred_check_branch
      %220 = sbr.rel (%p217) target = $region36
    $region35: #{_lambda_.9} parent=5 // pred_region
      %s221 = ssub.s32 %s10, 1
      %p222 = scmp.lt.s32.totalorder %s20, 1
      %s223 = scalar_select %p222, %s20, 1
      %p224 = scmp.lt.s32.totalorder %s21, 0
      %s225 = scalar_select %p224, %s21, 0
      %s226 = smul.addr %s225, 4
      %s227 = smul.addr %s223, 4
      %s228 = sadd.s32 %s226, %s227
      %s229 = smul.addr %s228, 4
      %s230 = scalar_lea.vmem %s0, %s229
      %p231 = pneg %p57
      %p232 = pneg %p54
      %p233 = scmp.lt.s32.totalorder %s22, 0
      %s234 = scalar_select %p233, %s22, 0
      %s235 = smul.addr %s234, 4
      %s236 = scalar_lea.vmem %s1, %s235
      %p237 = pneg %p83
      %p238 = pneg %p80
      %p239 = scmp.lt.s32.totalorder %s22, 0
      %s240 = scalar_select %p239, %s22, 0
      %s241 = scalar_lea.vmem %s2, %s240
      %p242 = pneg %p109
      %p243 = pneg %p106
      %p244 = scmp.lt.s32.totalorder %s22, 0
      %s245 = scalar_select %p244, %s22, 0
      %s246 = scalar_lea.vmem %s3, %s245
      %p247 = pneg %p135
      %p248 = pneg %p132
      %p249 = pneg %p165
      %p250 = pneg %p162
      %s251 = smul.u32 2, %s21
      %p252 = scmp.lt.s32.totalorder %s20, 1
      %s253 = scalar_select %p252, %s20, 1
      %p254 = scmp.lt.s32.totalorder %s251, 1
      %s255 = scalar_select %p254, %s251, 1
      %p256 = scmp.lt.s32.totalorder %s22, 0
      %s257 = scalar_select %p256, %s22, 0
      %s258 = sadd.s32 %s257, %s255
      %s259 = smul.addr %s253, 2
      %s260 = sadd.s32 %s258, %s259
      %s261 = smul.addr %s260, 4
      %s262 = scalar_lea.vmem %s4, %s261
      %p263 = scmp.lt.s32.totalorder %s20, 1
      %s264 = scalar_select %p263, %s20, 1
      %p265 = scmp.lt.s32.totalorder %s21, 0
      %s266 = scalar_select %p265, %s21, 0
      %s267 = smul.addr %s266, 4
      %s268 = smul.addr %s264, 4
      %s269 = sadd.s32 %s267, %s268
      %s270 = smul.addr %s269, 4
      %s271 = scalar_lea.vmem %s0, %s270
      %p272 = scmp.lt.s32.totalorder %s22, 0
      %s273 = scalar_select %p272, %s22, 0
      %s274 = smul.addr %s273, 4
      %s275 = scalar_lea.vmem %s1, %s274
      %p276 = scmp.lt.s32.totalorder %s22, 0
      %s277 = scalar_select %p276, %s22, 0
      %s278 = scalar_lea.vmem %s2, %s277
      %p279 = scmp.lt.s32.totalorder %s22, 0
      %s280 = scalar_select %p279, %s22, 0
      %s281 = scalar_lea.vmem %s3, %s280
      %s282 = smul.u32 2, %s21
      %p283 = scmp.lt.s32.totalorder %s20, 1
      %s284 = scalar_select %p283, %s20, 1
      %p285 = scmp.lt.s32.totalorder %s282, 1
      %s286 = scalar_select %p285, %s282, 1
      %p287 = scmp.lt.s32.totalorder %s22, 0
      %s288 = scalar_select %p287, %s22, 0
      %s289 = sadd.s32 %s288, %s286
      %s290 = smul.addr %s284, 2
      %s291 = sadd.s32 %s289, %s290
      %s292 = smul.addr %s291, 4
      %s293 = scalar_lea.vmem %s4, %s292
      %s294 = smul.u32 2, %s21
      %v296 = vld [vmem:[%s271] sm:$0xf]
      %v297 = vld [vmem:[%s271 + $0x4] sm:$0x1]
      %v298 = vld [vmem:[%s275] sm:$0xf]
      %v299 = vld [vmem:[%s275 + $0x4] sm:$0xf]
      %v300 = vld [vmem:[%s275 + $0x8] sm:$0xf]
      %v301 = vld [vmem:[%s275 + $0xc] sm:$0xf]
      %v302 = vld [vmem:[%s275 + $0x10] sm:$0xf]
      %v303 = vld [vmem:[%s275 + $0x14] sm:$0xf]
      %v304 = vld [vmem:[%s275 + $0x18] sm:$0xf]
      %v305 = vld [vmem:[%s275 + $0x1c] sm:$0xf]
      %v306 = vld [vmem:[%s275 + $0x20] sm:$0xf]
      %v307 = vld [vmem:[%s275 + $0x24] sm:$0xf]
      %v308 = vld [vmem:[%s275 + $0x28] sm:$0xf]
      %v309 = vld [vmem:[%s275 + $0x2c] sm:$0xf]
      %v310 = vld [vmem:[%s275 + $0x30] sm:$0xf]
      %v311 = vld [vmem:[%s275 + $0x34] sm:$0xf]
      %v312 = vld [vmem:[%s275 + $0x38] sm:$0xf]
      %v313 = vld [vmem:[%s275 + $0x3c] sm:$0xf]
      %v316 = vunpack.c.l.b16 %v296
      %v317 = vunpack.c.l.b16 %v297
      %v318 = vpack.c.b16 %v317, %v316
      %v336 = vunpack.c.l.b16 %v298
      %v337 = vunpack.c.l.b16 %v299
      %v338 = vunpack.c.l.b16 %v300
      %v339 = vunpack.c.l.b16 %v301
      %v340 = vunpack.c.l.b16 %v302
      %v341 = vunpack.c.l.b16 %v303
      %v342 = vunpack.c.l.b16 %v304
      %v343 = vunpack.c.l.b16 %v305
      %v344 = vunpack.c.l.b16 %v306
      %v345 = vunpack.c.l.b16 %v307
      %v346 = vunpack.c.l.b16 %v308
      %v347 = vunpack.c.l.b16 %v309
      %v348 = vunpack.c.l.b16 %v310
      %v349 = vunpack.c.l.b16 %v311
      %v350 = vunpack.c.l.b16 %v312
      %v351 = vunpack.c.l.b16 %v313
      %v352 = vpack.c.b16 %v337, %v336
      %v353 = vpack.c.b16 %v339, %v338
      %v354 = vpack.c.b16 %v341, %v340
      %v355 = vpack.c.b16 %v343, %v342
      %v356 = vpack.c.b16 %v345, %v344
      %v357 = vpack.c.b16 %v347, %v346
      %v358 = vpack.c.b16 %v349, %v348
      %v359 = vpack.c.b16 %v351, %v350
      %368 = vmatprep.subr.bf16.mxu0 0
      %369 = vmatpush1.bf16.msra.mxu0 %v352
      %370 = vmatprep.subr.bf16.mxu0 0
      %371 = vmatpush1.bf16.msra.mxu0 %v353
      %372 = vmatprep.subr.bf16.mxu0 0
      %373 = vmatpush1.bf16.msra.mxu0 %v354
      %374 = vmatprep.subr.bf16.mxu0 0
      %375 = vmatpush1.bf16.msra.mxu0 %v355
      %376 = vmatprep.subr.bf16.mxu0 0
      %377 = vmatpush1.bf16.msra.mxu0 %v356
      %378 = vmatprep.subr.bf16.mxu0 0
      %379 = vmatpush1.bf16.msra.mxu0 %v357
      %380 = vmatprep.subr.bf16.mxu0 0
      %381 = vmatpush1.bf16.msra.mxu0 %v358
      %382 = vmatprep.subr.bf16.mxu0 0
      %383 = vmatpush1.bf16.msra.mxu0 %v359
      %384 = vmatprep.subr.bf16.mxu0 0
      %385 = vmatpush1.bf16.msra.mxu0 0
      %386 = vmatprep.subr.bf16.mxu0 0
      %387 = vmatpush1.bf16.msra.mxu0 0
      %388 = vmatprep.subr.bf16.mxu0 0
      %389 = vmatpush1.bf16.msra.mxu0 0
      %390 = vmatprep.subr.bf16.mxu0 0
      %391 = vmatpush1.bf16.msra.mxu0 0
      %392 = vmatprep.subr.bf16.mxu0 0
      %393 = vmatpush1.bf16.msra.mxu0 0
      %394 = vmatprep.subr.bf16.mxu0 0
      %395 = vmatpush1.bf16.msra.mxu0 0
      %396 = vmatprep.subr.bf16.mxu0 0
      %397 = vmatpush1.bf16.msra.mxu0 0
      %398 = vmatprep.subr.bf16.mxu0 0
      %399 = vmatpush1.bf16.msra.mxu0 0
      %400 = vmatprep.mubr.bf16.mxu0 0
      %401 = vmatmul.mubr.bf16.gmra.mrb[0].mxu0 %v318
      %v402 = vpop.f32.mrb[0].mxu0
      %v403 = vadd.f32 0.0, %v402
      %v404 = vpop.f32.mrb[0].mxu0
      %v405 = vpop.f32.mrb[0].mxu0
      %v406 = vadd.f32 0.0, %v405
      %v407 = vpop.f32.mrb[0].mxu0
      %408 = vdwg.mxu0
      %409 = vst [vmem:[#allocation2] sm:$0xff] %v403
      %410 = vst [vmem:[#allocation2 + $0x8] sm:$0x3] %v406
      %v411 = vld [vmem:[#allocation2] sm:$0xff]
      %v412 = vld [vmem:[#allocation2 + $0x8] sm:$0x3]
      %v413 = vld [vmem:[%s271] sm:$0xf]
      %v414 = vld [vmem:[%s271 + $0x4] sm:$0x3]
      %v415 = vld [vmem:[%s275 + $0x40] sm:$0xf]
      %v416 = vld [vmem:[%s275 + $0x44] sm:$0xf]
      %v417 = vld [vmem:[%s275 + $0x48] sm:$0xf]
      %v418 = vld [vmem:[%s275 + $0x4c] sm:$0xf]
      %v419 = vld [vmem:[%s275 + $0x50] sm:$0xf]
      %v420 = vld [vmem:[%s275 + $0x54] sm:$0xf]
      %v421 = vld [vmem:[%s275 + $0x58] sm:$0xf]
      %v422 = vld [vmem:[%s275 + $0x5c] sm:$0xf]
      %v423 = vld [vmem:[%s275 + $0x60] sm:$0xf]
      %v424 = vld [vmem:[%s275 + $0x64] sm:$0xf]
      %v425 = vld [vmem:[%s275 + $0x68] sm:$0xf]
      %v426 = vld [vmem:[%s275 + $0x6c] sm:$0xf]
      %v427 = vld [vmem:[%s275 + $0x70] sm:$0xf]
      %v428 = vld [vmem:[%s275 + $0x74] sm:$0xf]
      %v429 = vld [vmem:[%s275 + $0x78] sm:$0xf]
      %v430 = vld [vmem:[%s275 + $0x7c] sm:$0xf]
      %v433 = vunpack.c.l.b16 %v413
      %v434 = vunpack.c.l.b16 %v414
      %v435 = vpack.c.b16 %v434, %v433
      %v437 = vshrl.u32 %v435, 16
      %v439 = vshll.u32 %v435, 16
      %v441 = vrot.slane %v439, 1
      %v442 = vor.u32 %v437, %v441
      %v460 = vunpack.c.l.b16 %v415
      %v461 = vunpack.c.l.b16 %v416
      %v462 = vunpack.c.l.b16 %v417
      %v463 = vunpack.c.l.b16 %v418
      %v464 = vunpack.c.l.b16 %v419
      %v465 = vunpack.c.l.b16 %v420
      %v466 = vunpack.c.l.b16 %v421
      %v467 = vunpack.c.l.b16 %v422
      %v468 = vunpack.c.l.b16 %v423
      %v469 = vunpack.c.l.b16 %v424
      %v470 = vunpack.c.l.b16 %v425
      %v471 = vunpack.c.l.b16 %v426
      %v472 = vunpack.c.l.b16 %v427
      %v473 = vunpack.c.l.b16 %v428
      %v474 = vunpack.c.l.b16 %v429
      %v475 = vunpack.c.l.b16 %v430
      %v476 = vpack.c.b16 %v461, %v460
      %v477 = vpack.c.b16 %v463, %v462
      %v478 = vpack.c.b16 %v465, %v464
      %v479 = vpack.c.b16 %v467, %v466
      %v480 = vpack.c.b16 %v469, %v468
      %v481 = vpack.c.b16 %v471, %v470
      %v482 = vpack.c.b16 %v473, %v472
      %v483 = vpack.c.b16 %v475, %v474
      %492 = vmatprep.subr.bf16.mxu0 0
      %493 = vmatpush1.bf16.msra.mxu0 %v476
      %494 = vmatprep.subr.bf16.mxu0 0
      %495 = vmatpush1.bf16.msra.mxu0 %v477
      %496 = vmatprep.subr.bf16.mxu0 0
      %497 = vmatpush1.bf16.msra.mxu0 %v478
      %498 = vmatprep.subr.bf16.mxu0 0
      %499 = vmatpush1.bf16.msra.mxu0 %v479
      %500 = vmatprep.subr.bf16.mxu0 0
      %501 = vmatpush1.bf16.msra.mxu0 %v480
      %502 = vmatprep.subr.bf16.mxu0 0
      %503 = vmatpush1.bf16.msra.mxu0 %v481
      %504 = vmatprep.subr.bf16.mxu0 0
      %505 = vmatpush1.bf16.msra.mxu0 %v482
      %506 = vmatprep.subr.bf16.mxu0 0
      %507 = vmatpush1.bf16.msra.mxu0 %v483
      %508 = vmatprep.subr.bf16.mxu0 0
      %509 = vmatpush1.bf16.msra.mxu0 0
      %510 = vmatprep.subr.bf16.mxu0 0
      %511 = vmatpush1.bf16.msra.mxu0 0
      %512 = vmatprep.subr.bf16.mxu0 0
      %513 = vmatpush1.bf16.msra.mxu0 0
      %514 = vmatprep.subr.bf16.mxu0 0
      %515 = vmatpush1.bf16.msra.mxu0 0
      %516 = vmatprep.subr.bf16.mxu0 0
      %517 = vmatpush1.bf16.msra.mxu0 0
      %518 = vmatprep.subr.bf16.mxu0 0
      %519 = vmatpush1.bf16.msra.mxu0 0
      %520 = vmatprep.subr.bf16.mxu0 0
      %521 = vmatpush1.bf16.msra.mxu0 0
      %522 = vmatprep.subr.bf16.mxu0 0
      %523 = vmatpush1.bf16.msra.mxu0 0
      %524 = vmatprep.mubr.bf16.mxu0 0
      %525 = vmatmul.mubr.bf16.gmra.mrb[0].mxu0 %v442
      %v526 = vpop.f32.mrb[0].mxu0
      %v527 = vadd.f32 0.0, %v526
      %v528 = vpop.f32.mrb[0].mxu0
      %v529 = vpop.f32.mrb[0].mxu0
      %v530 = vadd.f32 0.0, %v529
      %v531 = vpop.f32.mrb[0].mxu0
      %532 = vdwg.mxu0
      %v533 = vadd.f32 %v411, %v527
      %v534 = vadd.f32 %v412, %v530
      %535 = vst [vmem:[#allocation2] sm:$0xff] %v533
      %536 = vst [vmem:[#allocation2 + $0x8] sm:$0x3] %v534
      %v537 = vld [vmem:[#allocation2] sm:$0xff]
      %v538 = vld [vmem:[#allocation2 + $0x8] sm:$0x3]
      %v539 = vld [vmem:[%s271] sm:$0xe]
      %v540 = vld [vmem:[%s271 + $0x4] sm:$0x3]
      %v541 = vld [vmem:[%s275 + $0x80] sm:$0xf]
      %v542 = vld [vmem:[%s275 + $0x84] sm:$0xf]
      %v543 = vld [vmem:[%s275 + $0x88] sm:$0xf]
      %v544 = vld [vmem:[%s275 + $0x8c] sm:$0xf]
      %v545 = vld [vmem:[%s275 + $0x90] sm:$0xf]
      %v546 = vld [vmem:[%s275 + $0x94] sm:$0xf]
      %v547 = vld [vmem:[%s275 + $0x98] sm:$0xf]
      %v548 = vld [vmem:[%s275 + $0x9c] sm:$0xf]
      %v549 = vld [vmem:[%s275 + $0xa0] sm:$0xf]
      %v550 = vld [vmem:[%s275 + $0xa4] sm:$0xf]
      %v551 = vld [vmem:[%s275 + $0xa8] sm:$0xf]
      %v552 = vld [vmem:[%s275 + $0xac] sm:$0xf]
      %v553 = vld [vmem:[%s275 + $0xb0] sm:$0xf]
      %v554 = vld [vmem:[%s275 + $0xb4] sm:$0xf]
      %v555 = vld [vmem:[%s275 + $0xb8] sm:$0xf]
      %v556 = vld [vmem:[%s275 + $0xbc] sm:$0xf]
      %v559 = vunpack.c.l.b16 %v539
      %v560 = vunpack.c.l.b16 %v540
      %v561 = vpack.c.b16 %v560, %v559
      %v562 = vrot.slane %v561, 1
      %v580 = vunpack.c.l.b16 %v541
      %v581 = vunpack.c.l.b16 %v542
      %v582 = vunpack.c.l.b16 %v543
      %v583 = vunpack.c.l.b16 %v544
      %v584 = vunpack.c.l.b16 %v545
      %v585 = vunpack.c.l.b16 %v546
      %v586 = vunpack.c.l.b16 %v547
      %v587 = vunpack.c.l.b16 %v548
      %v588 = vunpack.c.l.b16 %v549
      %v589 = vunpack.c.l.b16 %v550
      %v590 = vunpack.c.l.b16 %v551
      %v591 = vunpack.c.l.b16 %v552
      %v592 = vunpack.c.l.b16 %v553
      %v593 = vunpack.c.l.b16 %v554
      %v594 = vunpack.c.l.b16 %v555
      %v595 = vunpack.c.l.b16 %v556
      %v596 = vpack.c.b16 %v581, %v580
      %v597 = vpack.c.b16 %v583, %v582
      %v598 = vpack.c.b16 %v585, %v584
      %v599 = vpack.c.b16 %v587, %v586
      %v600 = vpack.c.b16 %v589, %v588
      %v601 = vpack.c.b16 %v591, %v590
      %v602 = vpack.c.b16 %v593, %v592
      %v603 = vpack.c.b16 %v595, %v594
      %612 = vmatprep.subr.bf16.mxu0 0
      %613 = vmatpush1.bf16.msra.mxu0 %v596
      %614 = vmatprep.subr.bf16.mxu0 0
      %615 = vmatpush1.bf16.msra.mxu0 %v597
      %616 = vmatprep.subr.bf16.mxu0 0
      %617 = vmatpush1.bf16.msra.mxu0 %v598
      %618 = vmatprep.subr.bf16.mxu0 0
      %619 = vmatpush1.bf16.msra.mxu0 %v599
      %620 = vmatprep.subr.bf16.mxu0 0
      %621 = vmatpush1.bf16.msra.mxu0 %v600
      %622 = vmatprep.subr.bf16.mxu0 0
      %623 = vmatpush1.bf16.msra.mxu0 %v601
      %624 = vmatprep.subr.bf16.mxu0 0
      %625 = vmatpush1.bf16.msra.mxu0 %v602
      %626 = vmatprep.subr.bf16.mxu0 0
      %627 = vmatpush1.bf16.msra.mxu0 %v603
      %628 = vmatprep.subr.bf16.mxu0 0
      %629 = vmatpush1.bf16.msra.mxu0 0
      %630 = vmatprep.subr.bf16.mxu0 0
      %631 = vmatpush1.bf16.msra.mxu0 0
      %632 = vmatprep.subr.bf16.mxu0 0
      %633 = vmatpush1.bf16.msra.mxu0 0
      %634 = vmatprep.subr.bf16.mxu0 0
      %635 = vmatpush1.bf16.msra.mxu0 0
      %636 = vmatprep.subr.bf16.mxu0 0
      %637 = vmatpush1.bf16.msra.mxu0 0
      %638 = vmatprep.subr.bf16.mxu0 0
      %639 = vmatpush1.bf16.msra.mxu0 0
      %640 = vmatprep.subr.bf16.mxu0 0
      %641 = vmatpush1.bf16.msra.mxu0 0
      %642 = vmatprep.subr.bf16.mxu0 0
      %643 = vmatpush1.bf16.msra.mxu0 0
      %644 = vmatprep.mubr.bf16.mxu0 0
      %645 = vmatmul.mubr.bf16.gmra.mrb[0].mxu0 %v562
      %v646 = vpop.f32.mrb[0].mxu0
      %v647 = vadd.f32 0.0, %v646
      %v648 = vpop.f32.mrb[0].mxu0
      %v649 = vpop.f32.mrb[0].mxu0
      %v650 = vadd.f32 0.0, %v649
      %v651 = vpop.f32.mrb[0].mxu0
      %652 = vdwg.mxu0
      %v653 = vadd.f32 %v537, %v647
      %v654 = vadd.f32 %v538, %v650
      %655 = vst [vmem:[#allocation2] sm:$0xff] %v653
      %656 = vst [vmem:[#allocation2 + $0x8] sm:$0x3] %v654
      %v657 = vld [vmem:[#allocation2] sm:$0xff]
      %v658 = vld [vmem:[#allocation2 + $0x8] sm:$0x3]
      %v659 = vld [vmem:[%s271] sm:$0xe]
      %v660 = vld [vmem:[%s271 + $0x4] sm:$0x7]
      %v661 = vld [vmem:[%s275 + $0xc0] sm:$0xf]
      %v662 = vld [vmem:[%s275 + $0xc4] sm:$0xf]
      %v663 = vld [vmem:[%s275 + $0xc8] sm:$0xf]
      %v664 = vld [vmem:[%s275 + $0xcc] sm:$0xf]
      %v665 = vld [vmem:[%s275 + $0xd0] sm:$0xf]
      %v666 = vld [vmem:[%s275 + $0xd4] sm:$0xf]
      %v667 = vld [vmem:[%s275 + $0xd8] sm:$0xf]
      %v668 = vld [vmem:[%s275 + $0xdc] sm:$0xf]
      %v669 = vld [vmem:[%s275 + $0xe0] sm:$0xf]
      %v670 = vld [vmem:[%s275 + $0xe4] sm:$0xf]
      %v671 = vld [vmem:[%s275 + $0xe8] sm:$0xf]
      %v672 = vld [vmem:[%s275 + $0xec] sm:$0xf]
      %v673 = vld [vmem:[%s275 + $0xf0] sm:$0xf]
      %v674 = vld [vmem:[%s275 + $0xf4] sm:$0xf]
      %v675 = vld [vmem:[%s275 + $0xf8] sm:$0xf]
      %v676 = vld [vmem:[%s275 + $0xfc] sm:$0xf]
      %v679 = vunpack.c.l.b16 %v659
      %v680 = vunpack.c.l.b16 %v660
      %v681 = vpack.c.b16 %v680, %v679
      %v683 = vshrl.u32 %v681, 16
      %v685 = vrot.slane %v683, 1
      %v686 = vshll.u32 %v681, 16
      %v688 = vrot.slane %v686, 2
      %v689 = vor.u32 %v685, %v688
      %v707 = vunpack.c.l.b16 %v661
      %v708 = vunpack.c.l.b16 %v662
      %v709 = vunpack.c.l.b16 %v663
      %v710 = vunpack.c.l.b16 %v664
      %v711 = vunpack.c.l.b16 %v665
      %v712 = vunpack.c.l.b16 %v666
      %v713 = vunpack.c.l.b16 %v667
      %v714 = vunpack.c.l.b16 %v668
      %v715 = vunpack.c.l.b16 %v669
      %v716 = vunpack.c.l.b16 %v670
      %v717 = vunpack.c.l.b16 %v671
      %v718 = vunpack.c.l.b16 %v672
      %v719 = vunpack.c.l.b16 %v673
      %v720 = vunpack.c.l.b16 %v674
      %v721 = vunpack.c.l.b16 %v675
      %v722 = vunpack.c.l.b16 %v676
      %v723 = vpack.c.b16 %v708, %v707
      %v724 = vpack.c.b16 %v710, %v709
      %v725 = vpack.c.b16 %v712, %v711
      %v726 = vpack.c.b16 %v714, %v713
      %v727 = vpack.c.b16 %v716, %v715
      %v728 = vpack.c.b16 %v718, %v717
      %v729 = vpack.c.b16 %v720, %v719
      %v730 = vpack.c.b16 %v722, %v721
      %739 = vmatprep.subr.bf16.mxu0 0
      %740 = vmatpush1.bf16.msra.mxu0 %v723
      %741 = vmatprep.subr.bf16.mxu0 0
      %742 = vmatpush1.bf16.msra.mxu0 %v724
      %743 = vmatprep.subr.bf16.mxu0 0
      %744 = vmatpush1.bf16.msra.mxu0 %v725
      %745 = vmatprep.subr.bf16.mxu0 0
      %746 = vmatpush1.bf16.msra.mxu0 %v726
      %747 = vmatprep.subr.bf16.mxu0 0
      %748 = vmatpush1.bf16.msra.mxu0 %v727
      %749 = vmatprep.subr.bf16.mxu0 0
      %750 = vmatpush1.bf16.msra.mxu0 %v728
      %751 = vmatprep.subr.bf16.mxu0 0
      %752 = vmatpush1.bf16.msra.mxu0 %v729
      %753 = vmatprep.subr.bf16.mxu0 0
      %754 = vmatpush1.bf16.msra.mxu0 %v730
      %755 = vmatprep.subr.bf16.mxu0 0
      %756 = vmatpush1.bf16.msra.mxu0 0
      %757 = vmatprep.subr.bf16.mxu0 0
      %758 = vmatpush1.bf16.msra.mxu0 0
      %759 = vmatprep.subr.bf16.mxu0 0
      %760 = vmatpush1.bf16.msra.mxu0 0
      %761 = vmatprep.subr.bf16.mxu0 0
      %762 = vmatpush1.bf16.msra.mxu0 0
      %763 = vmatprep.subr.bf16.mxu0 0
      %764 = vmatpush1.bf16.msra.mxu0 0
      %765 = vmatprep.subr.bf16.mxu0 0
      %766 = vmatpush1.bf16.msra.mxu0 0
      %767 = vmatprep.subr.bf16.mxu0 0
      %768 = vmatpush1.bf16.msra.mxu0 0
      %769 = vmatprep.subr.bf16.mxu0 0
      %770 = vmatpush1.bf16.msra.mxu0 0
      %771 = vmatprep.mubr.bf16.mxu0 0
      %772 = vmatmul.mubr.bf16.gmra.mrb[0].mxu0 %v689
      %v773 = vpop.f32.mrb[0].mxu0
      %v774 = vadd.f32 0.0, %v773
      %v775 = vpop.f32.mrb[0].mxu0
      %v776 = vpop.f32.mrb[0].mxu0
      %v777 = vadd.f32 0.0, %v776
      %v778 = vpop.f32.mrb[0].mxu0
      %779 = vdwg.mxu0
      %v780 = vadd.f32 %v657, %v774
      %v781 = vadd.f32 %v658, %v777
      %782 = vst [vmem:[#allocation2] sm:$0xff] %v780
      %783 = vst [vmem:[#allocation2 + $0x8] sm:$0x3] %v781
      %v784 = vld [vmem:[#allocation2] sm:$0xff]
      %v785 = vld [vmem:[#allocation2 + $0x8] sm:$0x3]
      %v786 = vld [vmem:[%s271] sm:$0xc]
      %v787 = vld [vmem:[%s271 + $0x4] sm:$0xf]
      %v788 = vld [vmem:[%s275 + $0x100] sm:$0xf]
      %v789 = vld [vmem:[%s275 + $0x104] sm:$0xf]
      %v790 = vld [vmem:[%s275 + $0x108] sm:$0xf]
      %v791 = vld [vmem:[%s275 + $0x10c] sm:$0xf]
      %v792 = vld [vmem:[%s275 + $0x110] sm:$0xf]
      %v793 = vld [vmem:[%s275 + $0x114] sm:$0xf]
      %v794 = vld [vmem:[%s275 + $0x118] sm:$0xf]
      %v795 = vld [vmem:[%s275 + $0x11c] sm:$0xf]
      %v796 = vld [vmem:[%s275 + $0x120] sm:$0xf]
      %v797 = vld [vmem:[%s275 + $0x124] sm:$0xf]
      %v798 = vld [vmem:[%s275 + $0x128] sm:$0xf]
      %v799 = vld [vmem:[%s275 + $0x12c] sm:$0xf]
      %v800 = vld [vmem:[%s275 + $0x130] sm:$0xf]
      %v801 = vld [vmem:[%s275 + $0x134] sm:$0xf]
      %v802 = vld [vmem:[%s275 + $0x138] sm:$0xf]
      %v803 = vld [vmem:[%s275 + $0x13c] sm:$0xf]
      %v806 = vunpack.c.l.b16 %v786
      %v807 = vunpack.c.l.b16 %v787
      %v808 = vpack.c.b16 %v807, %v806
      %v810 = vshrl.u32 %v808, 16
      %v812 = vrot.slane %v810, 2
      %v813 = vshll.u32 %v808, 16
      %v815 = vrot.slane %v813, 3
      %v816 = vor.u32 %v812, %v815
      %v834 = vunpack.c.l.b16 %v788
      %v835 = vunpack.c.l.b16 %v789
      %v836 = vunpack.c.l.b16 %v790
      %v837 = vunpack.c.l.b16 %v791
      %v838 = vunpack.c.l.b16 %v792
      %v839 = vunpack.c.l.b16 %v793
      %v840 = vunpack.c.l.b16 %v794
      %v841 = vunpack.c.l.b16 %v795
      %v842 = vunpack.c.l.b16 %v796
      %v843 = vunpack.c.l.b16 %v797
      %v844 = vunpack.c.l.b16 %v798
      %v845 = vunpack.c.l.b16 %v799
      %v846 = vunpack.c.l.b16 %v800
      %v847 = vunpack.c.l.b16 %v801
      %v848 = vunpack.c.l.b16 %v802
      %v849 = vunpack.c.l.b16 %v803
      %v850 = vpack.c.b16 %v835, %v834
      %v851 = vpack.c.b16 %v837, %v836
      %v852 = vpack.c.b16 %v839, %v838
      %v853 = vpack.c.b16 %v841, %v840
      %v854 = vpack.c.b16 %v843, %v842
      %v855 = vpack.c.b16 %v845, %v844
      %v856 = vpack.c.b16 %v847, %v846
      %v857 = vpack.c.b16 %v849, %v848
      %866 = vmatprep.subr.bf16.mxu0 0
      %867 = vmatpush1.bf16.msra.mxu0 %v850
      %868 = vmatprep.subr.bf16.mxu0 0
      %869 = vmatpush1.bf16.msra.mxu0 %v851
      %870 = vmatprep.subr.bf16.mxu0 0
      %871 = vmatpush1.bf16.msra.mxu0 %v852
      %872 = vmatprep.subr.bf16.mxu0 0
      %873 = vmatpush1.bf16.msra.mxu0 %v853
      %874 = vmatprep.subr.bf16.mxu0 0
      %875 = vmatpush1.bf16.msra.mxu0 %v854
      %876 = vmatprep.subr.bf16.mxu0 0
      %877 = vmatpush1.bf16.msra.mxu0 %v855
      %878 = vmatprep.subr.bf16.mxu0 0
      %879 = vmatpush1.bf16.msra.mxu0 %v856
      %880 = vmatprep.subr.bf16.mxu0 0
      %881 = vmatpush1.bf16.msra.mxu0 %v857
      %882 = vmatprep.subr.bf16.mxu0 0
      %883 = vmatpush1.bf16.msra.mxu0 0
      %884 = vmatprep.subr.bf16.mxu0 0
      %885 = vmatpush1.bf16.msra.mxu0 0
      %886 = vmatprep.subr.bf16.mxu0 0
      %887 = vmatpush1.bf16.msra.mxu0 0
      %888 = vmatprep.subr.bf16.mxu0 0
      %889 = vmatpush1.bf16.msra.mxu0 0
      %890 = vmatprep.subr.bf16.mxu0 0
      %891 = vmatpush1.bf16.msra.mxu0 0
      %892 = vmatprep.subr.bf16.mxu0 0
      %893 = vmatpush1.bf16.msra.mxu0 0
      %894 = vmatprep.subr.bf16.mxu0 0
      %895 = vmatpush1.bf16.msra.mxu0 0
      %896 = vmatprep.subr.bf16.mxu0 0
      %897 = vmatpush1.bf16.msra.mxu0 0
      %898 = vmatprep.mubr.bf16.mxu0 0
      %899 = vmatmul.mubr.bf16.gmra.mrb[0].mxu0 %v816
      %v900 = vpop.f32.mrb[0].mxu0
      %v901 = vadd.f32 0.0, %v900
      %v902 = vpop.f32.mrb[0].mxu0
      %v903 = vpop.f32.mrb[0].mxu0
      %v904 = vadd.f32 0.0, %v903
      %v905 = vpop.f32.mrb[0].mxu0
      %906 = vdwg.mxu0
      %v907 = vadd.f32 %v784, %v901
      %v908 = vadd.f32 %v785, %v904
      %909 = vst [vmem:[#allocation2] sm:$0xff] %v907
      %910 = vst [vmem:[#allocation2 + $0x8] sm:$0x3] %v908
      %v911 = vld [vmem:[#allocation2] sm:$0xff]
      %v912 = vld [vmem:[#allocation2 + $0x8] sm:$0x3]
      %v913 = vld [vmem:[%s271] sm:$0x8]
      %v914 = vld [vmem:[%s271 + $0x4] sm:$0xf]
      %v915 = vld [vmem:[%s275 + $0x140] sm:$0xf]
      %v916 = vld [vmem:[%s275 + $0x144] sm:$0xf]
      %v917 = vld [vmem:[%s275 + $0x148] sm:$0xf]
      %v918 = vld [vmem:[%s275 + $0x14c] sm:$0xf]
      %v919 = vld [vmem:[%s275 + $0x150] sm:$0xf]
      %v920 = vld [vmem:[%s275 + $0x154] sm:$0xf]
      %v921 = vld [vmem:[%s275 + $0x158] sm:$0xf]
      %v922 = vld [vmem:[%s275 + $0x15c] sm:$0xf]
      %v923 = vld [vmem:[%s275 + $0x160] sm:$0xf]
      %v924 = vld [vmem:[%s275 + $0x164] sm:$0xf]
      %v925 = vld [vmem:[%s275 + $0x168] sm:$0xf]
      %v926 = vld [vmem:[%s275 + $0x16c] sm:$0xf]
      %v927 = vld [vmem:[%s275 + $0x170] sm:$0xf]
      %v928 = vld [vmem:[%s275 + $0x174] sm:$0xf]
      %v929 = vld [vmem:[%s275 + $0x178] sm:$0xf]
      %v930 = vld [vmem:[%s275 + $0x17c] sm:$0xf]
      %v933 = vunpack.c.l.b16 %v913
      %v934 = vunpack.c.l.b16 %v914
      %v935 = vpack.c.b16 %v934, %v933
      %v936 = vrot.slane %v935, 3
      %v954 = vunpack.c.l.b16 %v915
      %v955 = vunpack.c.l.b16 %v916
      %v956 = vunpack.c.l.b16 %v917
      %v957 = vunpack.c.l.b16 %v918
      %v958 = vunpack.c.l.b16 %v919
      %v959 = vunpack.c.l.b16 %v920
      %v960 = vunpack.c.l.b16 %v921
      %v961 = vunpack.c.l.b16 %v922
      %v962 = vunpack.c.l.b16 %v923
      %v963 = vunpack.c.l.b16 %v924
      %v964 = vunpack.c.l.b16 %v925
      %v965 = vunpack.c.l.b16 %v926
      %v966 = vunpack.c.l.b16 %v927
      %v967 = vunpack.c.l.b16 %v928
      %v968 = vunpack.c.l.b16 %v929
      %v969 = vunpack.c.l.b16 %v930
      %v970 = vpack.c.b16 %v955, %v954
      %v971 = vpack.c.b16 %v957, %v956
      %v972 = vpack.c.b16 %v959, %v958
      %v973 = vpack.c.b16 %v961, %v960
      %v974 = vpack.c.b16 %v963, %v962
      %v975 = vpack.c.b16 %v965, %v964
      %v976 = vpack.c.b16 %v967, %v966
      %v977 = vpack.c.b16 %v969, %v968
      %986 = vmatprep.subr.bf16.mxu0 0
      %987 = vmatpush1.bf16.msra.mxu0 %v970
      %988 = vmatprep.subr.bf16.mxu0 0
      %989 = vmatpush1.bf16.msra.mxu0 %v971
      %990 = vmatprep.subr.bf16.mxu0 0
      %991 = vmatpush1.bf16.msra.mxu0 %v972
      %992 = vmatprep.subr.bf16.mxu0 0
      %993 = vmatpush1.bf16.msra.mxu0 %v973
      %994 = vmatprep.subr.bf16.mxu0 0
      %995 = vmatpush1.bf16.msra.mxu0 %v974
      %996 = vmatprep.subr.bf16.mxu0 0
      %997 = vmatpush1.bf16.msra.mxu0 %v975
      %998 = vmatprep.subr.bf16.mxu0 0
      %999 = vmatpush1.bf16.msra.mxu0 %v976
      %1000 = vmatprep.subr.bf16.mxu0 0
      %1001 = vmatpush1.bf16.msra.mxu0 %v977
      %1002 = vmatprep.subr.bf16.mxu0 0
      %1003 = vmatpush1.bf16.msra.mxu0 0
      %1004 = vmatprep.subr.bf16.mxu0 0
      %1005 = vmatpush1.bf16.msra.mxu0 0
      %1006 = vmatprep.subr.bf16.mxu0 0
      %1007 = vmatpush1.bf16.msra.mxu0 0
      %1008 = vmatprep.subr.bf16.mxu0 0
      %1009 = vmatpush1.bf16.msra.mxu0 0
      %1010 = vmatprep.subr.bf16.mxu0 0
      %1011 = vmatpush1.bf16.msra.mxu0 0
      %1012 = vmatprep.subr.bf16.mxu0 0
      %1013 = vmatpush1.bf16.msra.mxu0 0
      %1014 = vmatprep.subr.bf16.mxu0 0
      %1015 = vmatpush1.bf16.msra.mxu0 0
      %1016 = vmatprep.subr.bf16.mxu0 0
      %1017 = vmatpush1.bf16.msra.mxu0 0
      %1018 = vmatprep.mubr.bf16.mxu0 0
      %1019 = vmatmul.mubr.bf16.gmra.mrb[0].mxu0 %v936
      %v1020 = vpop.f32.mrb[0].mxu0
      %v1021 = vadd.f32 0.0, %v1020
      %v1022 = vpop.f32.mrb[0].mxu0
      %v1023 = vpop.f32.mrb[0].mxu0
      %v1024 = vadd.f32 0.0, %v1023
      %v1025 = vpop.f32.mrb[0].mxu0
      %1026 = vdwg.mxu0
      %v1027 = vadd.f32 %v911, %v1021
      %v1028 = vadd.f32 %v912, %v1024
      %1029 = vst [vmem:[#allocation2] sm:$0xff] %v1027
      %1030 = vst [vmem:[#allocation2 + $0x8] sm:$0x3] %v1028
      %v1031 = vld [vmem:[#allocation2] sm:$0xff]
      %v1032 = vld [vmem:[#allocation2 + $0x8] sm:$0x3]
      %v1033 = vld [vmem:[%s271] sm:$0x8]
      %v1034 = vld [vmem:[%s271 + $0x4] sm:$0xf]
      %v1035 = vld [vmem:[%s271 + $0x8] sm:$0x1]
      %v1036 = vld [vmem:[%s275 + $0x180] sm:$0xf]
      %v1037 = vld [vmem:[%s275 + $0x184] sm:$0xf]
      %v1038 = vld [vmem:[%s275 + $0x188] sm:$0xf]
      %v1039 = vld [vmem:[%s275 + $0x18c] sm:$0xf]
      %v1040 = vld [vmem:[%s275 + $0x190] sm:$0xf]
      %v1041 = vld [vmem:[%s275 + $0x194] sm:$0xf]
      %v1042 = vld [vmem:[%s275 + $0x198] sm:$0xf]
      %v1043 = vld [vmem:[%s275 + $0x19c] sm:$0xf]
      %v1044 = vld [vmem:[%s275 + $0x1a0] sm:$0xf]
      %v1045 = vld [vmem:[%s275 + $0x1a4] sm:$0xf]
      %v1046 = vld [vmem:[%s275 + $0x1a8] sm:$0xf]
      %v1047 = vld [vmem:[%s275 + $0x1ac] sm:$0xf]
      %v1048 = vld [vmem:[%s275 + $0x1b0] sm:$0xf]
      %v1049 = vld [vmem:[%s275 + $0x1b4] sm:$0xf]
      %v1050 = vld [vmem:[%s275 + $0x1b8] sm:$0xf]
      %v1051 = vld [vmem:[%s275 + $0x1bc] sm:$0xf]
      %v1055 = vunpack.c.l.b16 %v1033
      %v1056 = vunpack.c.l.b16 %v1034
      %v1057 = vunpack.c.l.b16 %v1035
      %v1058 = vpack.c.b16 %v1056, %v1055
      %v1059 = vpack.c.b16 %v1057, %v1057
      %vm1060 = vsmask.f32 4352
      %v1062 = vshrl.u32 %v1058, 16
      %v1064 = vrot.slane %v1062, 3
      %v1065 = vshll.u32 %v1058, 16
      %v1067 = vrot.slane %v1065, 4
      %v1068 = vor.u32 %v1064, %v1067
      %v1070 = vshll.u32 %v1059, 16
      %v1072 = vrot.slane %v1070, 4
      %v1073 = vsel %vm1060, %v1068, %v1072
      %v1091 = vunpack.c.l.b16 %v1036
      %v1092 = vunpack.c.l.b16 %v1037
      %v1093 = vunpack.c.l.b16 %v1038
      %v1094 = vunpack.c.l.b16 %v1039
      %v1095 = vunpack.c.l.b16 %v1040
      %v1096 = vunpack.c.l.b16 %v1041
      %v1097 = vunpack.c.l.b16 %v1042
      %v1098 = vunpack.c.l.b16 %v1043
      %v1099 = vunpack.c.l.b16 %v1044
      %v1100 = vunpack.c.l.b16 %v1045
      %v1101 = vunpack.c.l.b16 %v1046
      %v1102 = vunpack.c.l.b16 %v1047
      %v1103 = vunpack.c.l.b16 %v1048
      %v1104 = vunpack.c.l.b16 %v1049
      %v1105 = vunpack.c.l.b16 %v1050
      %v1106 = vunpack.c.l.b16 %v1051
      %v1107 = vpack.c.b16 %v1092, %v1091
      %v1108 = vpack.c.b16 %v1094, %v1093
      %v1109 = vpack.c.b16 %v1096, %v1095
      %v1110 = vpack.c.b16 %v1098, %v1097
      %v1111 = vpack.c.b16 %v1100, %v1099
      %v1112 = vpack.c.b16 %v1102, %v1101
      %v1113 = vpack.c.b16 %v1104, %v1103
      %v1114 = vpack.c.b16 %v1106, %v1105
      %1123 = vmatprep.subr.bf16.mxu0 0
      %1124 = vmatpush1.bf16.msra.mxu0 %v1107
      %1125 = vmatprep.subr.bf16.mxu0 0
      %1126 = vmatpush1.bf16.msra.mxu0 %v1108
      %1127 = vmatprep.subr.bf16.mxu0 0
      %1128 = vmatpush1.bf16.msra.mxu0 %v1109
      %1129 = vmatprep.subr.bf16.mxu0 0
      %1130 = vmatpush1.bf16.msra.mxu0 %v1110
      %1131 = vmatprep.subr.bf16.mxu0 0
      %1132 = vmatpush1.bf16.msra.mxu0 %v1111
      %1133 = vmatprep.subr.bf16.mxu0 0
      %1134 = vmatpush1.bf16.msra.mxu0 %v1112
      %1135 = vmatprep.subr.bf16.mxu0 0
      %1136 = vmatpush1.bf16.msra.mxu0 %v1113
      %1137 = vmatprep.subr.bf16.mxu0 0
      %1138 = vmatpush1.bf16.msra.mxu0 %v1114
      %1139 = vmatprep.subr.bf16.mxu0 0
      %1140 = vmatpush1.bf16.msra.mxu0 0
      %1141 = vmatprep.subr.bf16.mxu0 0
      %1142 = vmatpush1.bf16.msra.mxu0 0
      %1143 = vmatprep.subr.bf16.mxu0 0
      %1144 = vmatpush1.bf16.msra.mxu0 0
      %1145 = vmatprep.subr.bf16.mxu0 0
      %1146 = vmatpush1.bf16.msra.mxu0 0
      %1147 = vmatprep.subr.bf16.mxu0 0
      %1148 = vmatpush1.bf16.msra.mxu0 0
      %1149 = vmatprep.subr.bf16.mxu0 0
      %1150 = vmatpush1.bf16.msra.mxu0 0
      %1151 = vmatprep.subr.bf16.mxu0 0
      %1152 = vmatpush1.bf16.msra.mxu0 0
      %1153 = vmatprep.subr.bf16.mxu0 0
      %1154 = vmatpush1.bf16.msra.mxu0 0
      %1155 = vmatprep.mubr.bf16.mxu0 0
      %1156 = vmatmul.mubr.bf16.gmra.mrb[0].mxu0 %v1073
      %v1157 = vpop.f32.mrb[0].mxu0
      %v1158 = vadd.f32 0.0, %v1157
      %v1159 = vpop.f32.mrb[0].mxu0
      %v1160 = vpop.f32.mrb[0].mxu0
      %v1161 = vadd.f32 0.0, %v1160
      %v1162 = vpop.f32.mrb[0].mxu0
      %1163 = vdwg.mxu0
      %v1164 = vadd.f32 %v1031, %v1158
      %v1165 = vadd.f32 %v1032, %v1161
      %1166 = vst [vmem:[#allocation2] sm:$0xff] %v1164
      %1167 = vst [vmem:[#allocation2 + $0x8] sm:$0x3] %v1165
      %v1168 = vld [vmem:[#allocation2] sm:$0xff]
      %v1169 = vld [vmem:[#allocation2 + $0x8] sm:$0x3]
      %v1170 = vld [vmem:[%s271 + $0x4] sm:$0xf]
      %v1171 = vld [vmem:[%s271 + $0x8] sm:$0x1]
      %v1172 = vld [vmem:[%s275 + $0x1c0] sm:$0xf]
      %v1173 = vld [vmem:[%s275 + $0x1c4] sm:$0xf]
      %v1174 = vld [vmem:[%s275 + $0x1c8] sm:$0xf]
      %v1175 = vld [vmem:[%s275 + $0x1cc] sm:$0xf]
      %v1176 = vld [vmem:[%s275 + $0x1d0] sm:$0xf]
      %v1177 = vld [vmem:[%s275 + $0x1d4] sm:$0xf]
      %v1178 = vld [vmem:[%s275 + $0x1d8] sm:$0xf]
      %v1179 = vld [vmem:[%s275 + $0x1dc] sm:$0xf]
      %v1180 = vld [vmem:[%s275 + $0x1e0] sm:$0xf]
      %v1181 = vld [vmem:[%s275 + $0x1e4] sm:$0xf]
      %v1182 = vld [vmem:[%s275 + $0x1e8] sm:$0xf]
      %v1183 = vld [vmem:[%s275 + $0x1ec] sm:$0xf]
      %v1184 = vld [vmem:[%s275 + $0x1f0] sm:$0xf]
      %v1185 = vld [vmem:[%s275 + $0x1f4] sm:$0xf]
      %v1186 = vld [vmem:[%s275 + $0x1f8] sm:$0xf]
      %v1187 = vld [vmem:[%s275 + $0x1fc] sm:$0xf]
      %v1190 = vunpack.c.l.b16 %v1170
      %v1191 = vunpack.c.l.b16 %v1171
      %v1192 = vpack.c.b16 %v1191, %v1190
      %v1210 = vunpack.c.l.b16 %v1172
      %v1211 = vunpack.c.l.b16 %v1173
      %v1212 = vunpack.c.l.b16 %v1174
      %v1213 = vunpack.c.l.b16 %v1175
      %v1214 = vunpack.c.l.b16 %v1176
      %v1215 = vunpack.c.l.b16 %v1177
      %v1216 = vunpack.c.l.b16 %v1178
      %v1217 = vunpack.c.l.b16 %v1179
      %v1218 = vunpack.c.l.b16 %v1180
      %v1219 = vunpack.c.l.b16 %v1181
      %v1220 = vunpack.c.l.b16 %v1182
      %v1221 = vunpack.c.l.b16 %v1183
      %v1222 = vunpack.c.l.b16 %v1184
      %v1223 = vunpack.c.l.b16 %v1185
      %v1224 = vunpack.c.l.b16 %v1186
      %v1225 = vunpack.c.l.b16 %v1187
      %v1226 = vpack.c.b16 %v1211, %v1210
      %v1227 = vpack.c.b16 %v1213, %v1212
      %v1228 = vpack.c.b16 %v1215, %v1214
      %v1229 = vpack.c.b16 %v1217, %v1216
      %v1230 = vpack.c.b16 %v1219, %v1218
      %v1231 = vpack.c.b16 %v1221, %v1220
      %v1232 = vpack.c.b16 %v1223, %v1222
      %v1233 = vpack.c.b16 %v1225, %v1224
      %1242 = vmatprep.subr.bf16.mxu0 0
      %1243 = vmatpush1.bf16.msra.mxu0 %v1226
      %1244 = vmatprep.subr.bf16.mxu0 0
      %1245 = vmatpush1.bf16.msra.mxu0 %v1227
      %1246 = vmatprep.subr.bf16.mxu0 0
      %1247 = vmatpush1.bf16.msra.mxu0 %v1228
      %1248 = vmatprep.subr.bf16.mxu0 0
      %1249 = vmatpush1.bf16.msra.mxu0 %v1229
      %1250 = vmatprep.subr.bf16.mxu0 0
      %1251 = vmatpush1.bf16.msra.mxu0 %v1230
      %1252 = vmatprep.subr.bf16.mxu0 0
      %1253 = vmatpush1.bf16.msra.mxu0 %v1231
      %1254 = vmatprep.subr.bf16.mxu0 0
      %1255 = vmatpush1.bf16.msra.mxu0 %v1232
      %1256 = vmatprep.subr.bf16.mxu0 0
      %1257 = vmatpush1.bf16.msra.mxu0 %v1233
      %1258 = vmatprep.subr.bf16.mxu0 0
      %1259 = vmatpush1.bf16.msra.mxu0 0
      %1260 = vmatprep.subr.bf16.mxu0 0
      %1261 = vmatpush1.bf16.msra.mxu0 0
      %1262 = vmatprep.subr.bf16.mxu0 0
      %1263 = vmatpush1.bf16.msra.mxu0 0
      %1264 = vmatprep.subr.bf16.mxu0 0
      %1265 = vmatpush1.bf16.msra.mxu0 0
      %1266 = vmatprep.subr.bf16.mxu0 0
      %1267 = vmatpush1.bf16.msra.mxu0 0
      %1268 = vmatprep.subr.bf16.mxu0 0
      %1269 = vmatpush1.bf16.msra.mxu0 0
      %1270 = vmatprep.subr.bf16.mxu0 0
      %1271 = vmatpush1.bf16.msra.mxu0 0
      %1272 = vmatprep.subr.bf16.mxu0 0
      %1273 = vmatpush1.bf16.msra.mxu0 0
      %1274 = vmatprep.mubr.bf16.mxu0 0
      %1275 = vmatmul.mubr.bf16.gmra.mrb[0].mxu0 %v1192
      %v1276 = vpop.f32.mrb[0].mxu0
      %v1277 = vadd.f32 0.0, %v1276
      %v1278 = vpop.f32.mrb[0].mxu0
      %v1279 = vpop.f32.mrb[0].mxu0
      %v1280 = vadd.f32 0.0, %v1279
      %v1281 = vpop.f32.mrb[0].mxu0
      %1282 = vdwg.mxu0
      %v1283 = vadd.f32 %v1168, %v1277
      %v1284 = vadd.f32 %v1169, %v1280
      %1285 = vst [vmem:[#allocation2] sm:$0xff] %v1283
      %1286 = vst [vmem:[#allocation2 + $0x8] sm:$0x3] %v1284
      %v1287 = vld [vmem:[#allocation2] sm:$0xff]
      %v1288 = vld [vmem:[#allocation2 + $0x8] sm:$0x3]
      %v1289 = vld [vmem:[%s271 + $0x4] sm:$0xe]
      %v1290 = vld [vmem:[%s271 + $0x8] sm:$0x3]
      %v1291 = vld [vmem:[%s275 + $0x200] sm:$0xf]
      %v1292 = vld [vmem:[%s275 + $0x204] sm:$0xf]
      %v1293 = vld [vmem:[%s275 + $0x208] sm:$0xf]
      %v1294 = vld [vmem:[%s275 + $0x20c] sm:$0xf]
      %v1295 = vld [vmem:[%s275 + $0x210] sm:$0xf]
      %v1296 = vld [vmem:[%s275 + $0x214] sm:$0xf]
      %v1297 = vld [vmem:[%s275 + $0x218] sm:$0xf]
      %v1298 = vld [vmem:[%s275 + $0x21c] sm:$0xf]
      %v1299 = vld [vmem:[%s275 + $0x220] sm:$0xf]
      %v1300 = vld [vmem:[%s275 + $0x224] sm:$0xf]
      %v1301 = vld [vmem:[%s275 + $0x228] sm:$0xf]
      %v1302 = vld [vmem:[%s275 + $0x22c] sm:$0xf]
      %v1303 = vld [vmem:[%s275 + $0x230] sm:$0xf]
      %v1304 = vld [vmem:[%s275 + $0x234] sm:$0xf]
      %v1305 = vld [vmem:[%s275 + $0x238] sm:$0xf]
      %v1306 = vld [vmem:[%s275 + $0x23c] sm:$0xf]
      %v1309 = vunpack.c.l.b16 %v1289
      %v1310 = vunpack.c.l.b16 %v1290
      %v1311 = vpack.c.b16 %v1310, %v1309
      %v1312 = vrot.slane %v1311, 1
      %v1330 = vunpack.c.l.b16 %v1291
      %v1331 = vunpack.c.l.b16 %v1292
      %v1332 = vunpack.c.l.b16 %v1293
      %v1333 = vunpack.c.l.b16 %v1294
      %v1334 = vunpack.c.l.b16 %v1295
      %v1335 = vunpack.c.l.b16 %v1296
      %v1336 = vunpack.c.l.b16 %v1297
      %v1337 = vunpack.c.l.b16 %v1298
      %v1338 = vunpack.c.l.b16 %v1299
      %v1339 = vunpack.c.l.b16 %v1300
      %v1340 = vunpack.c.l.b16 %v1301
      %v1341 = vunpack.c.l.b16 %v1302
      %v1342 = vunpack.c.l.b16 %v1303
      %v1343 = vunpack.c.l.b16 %v1304
      %v1344 = vunpack.c.l.b16 %v1305
      %v1345 = vunpack.c.l.b16 %v1306
      %v1346 = vpack.c.b16 %v1331, %v1330
      %v1347 = vpack.c.b16 %v1333, %v1332
      %v1348 = vpack.c.b16 %v1335, %v1334
      %v1349 = vpack.c.b16 %v1337, %v1336
      %v1350 = vpack.c.b16 %v1339, %v1338
      %v1351 = vpack.c.b16 %v1341, %v1340
      %v1352 = vpack.c.b16 %v1343, %v1342
      %v1353 = vpack.c.b16 %v1345, %v1344
      %1362 = vmatprep.subr.bf16.mxu0 0
      %1363 = vmatpush1.bf16.msra.mxu0 %v1346
      %1364 = vmatprep.subr.bf16.mxu0 0
      %1365 = vmatpush1.bf16.msra.mxu0 %v1347
      %1366 = vmatprep.subr.bf16.mxu0 0
      %1367 = vmatpush1.bf16.msra.mxu0 %v1348
      %1368 = vmatprep.subr.bf16.mxu0 0
      %1369 = vmatpush1.bf16.msra.mxu0 %v1349
      %1370 = vmatprep.subr.bf16.mxu0 0
      %1371 = vmatpush1.bf16.msra.mxu0 %v1350
      %1372 = vmatprep.subr.bf16.mxu0 0
      %1373 = vmatpush1.bf16.msra.mxu0 %v1351
      %1374 = vmatprep.subr.bf16.mxu0 0
      %1375 = vmatpush1.bf16.msra.mxu0 %v1352
      %1376 = vmatprep.subr.bf16.mxu0 0
      %1377 = vmatpush1.bf16.msra.mxu0 %v1353
      %1378 = vmatprep.subr.bf16.mxu0 0
      %1379 = vmatpush1.bf16.msra.mxu0 0
      %1380 = vmatprep.subr.bf16.mxu0 0
      %1381 = vmatpush1.bf16.msra.mxu0 0
      %1382 = vmatprep.subr.bf16.mxu0 0
      %1383 = vmatpush1.bf16.msra.mxu0 0
      %1384 = vmatprep.subr.bf16.mxu0 0
      %1385 = vmatpush1.bf16.msra.mxu0 0
      %1386 = vmatprep.subr.bf16.mxu0 0
      %1387 = vmatpush1.bf16.msra.mxu0 0
      %1388 = vmatprep.subr.bf16.mxu0 0
      %1389 = vmatpush1.bf16.msra.mxu0 0
      %1390 = vmatprep.subr.bf16.mxu0 0
      %1391 = vmatpush1.bf16.msra.mxu0 0
      %1392 = vmatprep.subr.bf16.mxu0 0
      %1393 = vmatpush1.bf16.msra.mxu0 0
      %1394 = vmatprep.mubr.bf16.mxu0 0
      %1395 = vmatmul.mubr.bf16.gmra.mrb[0].mxu0 %v1312
      %v1396 = vpop.f32.mrb[0].mxu0
      %v1397 = vadd.f32 0.0, %v1396
      %v1398 = vpop.f32.mrb[0].mxu0
      %v1399 = vpop.f32.mrb[0].mxu0
      %v1400 = vadd.f32 0.0, %v1399
      %v1401 = vpop.f32.mrb[0].mxu0
      %1402 = vdwg.mxu0
      %v1403 = vadd.f32 %v1287, %v1397
      %v1404 = vadd.f32 %v1288, %v1400
      %1405 = vst [vmem:[#allocation2] sm:$0xff] %v1403
      %1406 = vst [vmem:[#allocation2 + $0x8] sm:$0x3] %v1404
      %v1407 = vld [vmem:[#allocation2] sm:$0xff]
      %v1408 = vld [vmem:[#allocation2 + $0x8] sm:$0x3]
      %v1409 = vld [vmem:[%s271 + $0x4] sm:$0xe]
      %v1410 = vld [vmem:[%s271 + $0x8] sm:$0x7]
      %v1411 = vld [vmem:[%s275 + $0x240] sm:$0xf]
      %v1412 = vld [vmem:[%s275 + $0x244] sm:$0xf]
      %v1413 = vld [vmem:[%s275 + $0x248] sm:$0xf]
      %v1414 = vld [vmem:[%s275 + $0x24c] sm:$0xf]
      %v1415 = vld [vmem:[%s275 + $0x250] sm:$0xf]
      %v1416 = vld [vmem:[%s275 + $0x254] sm:$0xf]
      %v1417 = vld [vmem:[%s275 + $0x258] sm:$0xf]
      %v1418 = vld [vmem:[%s275 + $0x25c] sm:$0xf]
      %v1419 = vld [vmem:[%s275 + $0x260] sm:$0xf]
      %v1420 = vld [vmem:[%s275 + $0x264] sm:$0xf]
      %v1421 = vld [vmem:[%s275 + $0x268] sm:$0xf]
      %v1422 = vld [vmem:[%s275 + $0x26c] sm:$0xf]
      %v1423 = vld [vmem:[%s275 + $0x270] sm:$0xf]
      %v1424 = vld [vmem:[%s275 + $0x274] sm:$0xf]
      %v1425 = vld [vmem:[%s275 + $0x278] sm:$0xf]
      %v1426 = vld [vmem:[%s275 + $0x27c] sm:$0xf]
      %v1429 = vunpack.c.l.b16 %v1409
      %v1430 = vunpack.c.l.b16 %v1410
      %v1431 = vpack.c.b16 %v1430, %v1429
      %v1433 = vshrl.u32 %v1431, 16
      %v1435 = vrot.slane %v1433, 1
      %v1436 = vshll.u32 %v1431, 16
      %v1438 = vrot.slane %v1436, 2
      %v1439 = vor.u32 %v1435, %v1438
      %v1457 = vunpack.c.l.b16 %v1411
      %v1458 = vunpack.c.l.b16 %v1412
      %v1459 = vunpack.c.l.b16 %v1413
      %v1460 = vunpack.c.l.b16 %v1414
      %v1461 = vunpack.c.l.b16 %v1415
      %v1462 = vunpack.c.l.b16 %v1416
      %v1463 = vunpack.c.l.b16 %v1417
      %v1464 = vunpack.c.l.b16 %v1418
      %v1465 = vunpack.c.l.b16 %v1419
      %v1466 = vunpack.c.l.b16 %v1420
      %v1467 = vunpack.c.l.b16 %v1421
      %v1468 = vunpack.c.l.b16 %v1422
      %v1469 = vunpack.c.l.b16 %v1423
      %v1470 = vunpack.c.l.b16 %v1424
      %v1471 = vunpack.c.l.b16 %v1425
      %v1472 = vunpack.c.l.b16 %v1426
      %v1473 = vpack.c.b16 %v1458, %v1457
      %v1474 = vpack.c.b16 %v1460, %v1459
      %v1475 = vpack.c.b16 %v1462, %v1461
      %v1476 = vpack.c.b16 %v1464, %v1463
      %v1477 = vpack.c.b16 %v1466, %v1465
      %v1478 = vpack.c.b16 %v1468, %v1467
      %v1479 = vpack.c.b16 %v1470, %v1469
      %v1480 = vpack.c.b16 %v1472, %v1471
      %1489 = vmatprep.subr.bf16.mxu0 0
      %1490 = vmatpush1.bf16.msra.mxu0 %v1473
      %1491 = vmatprep.subr.bf16.mxu0 0
      %1492 = vmatpush1.bf16.msra.mxu0 %v1474
      %1493 = vmatprep.subr.bf16.mxu0 0
      %1494 = vmatpush1.bf16.msra.mxu0 %v1475
      %1495 = vmatprep.subr.bf16.mxu0 0
      %1496 = vmatpush1.bf16.msra.mxu0 %v1476
      %1497 = vmatprep.subr.bf16.mxu0 0
      %1498 = vmatpush1.bf16.msra.mxu0 %v1477
      %1499 = vmatprep.subr.bf16.mxu0 0
      %1500 = vmatpush1.bf16.msra.mxu0 %v1478
      %1501 = vmatprep.subr.bf16.mxu0 0
      %1502 = vmatpush1.bf16.msra.mxu0 %v1479
      %1503 = vmatprep.subr.bf16.mxu0 0
      %1504 = vmatpush1.bf16.msra.mxu0 %v1480
      %1505 = vmatprep.subr.bf16.mxu0 0
      %1506 = vmatpush1.bf16.msra.mxu0 0
      %1507 = vmatprep.subr.bf16.mxu0 0
      %1508 = vmatpush1.bf16.msra.mxu0 0
      %1509 = vmatprep.subr.bf16.mxu0 0
      %1510 = vmatpush1.bf16.msra.mxu0 0
      %1511 = vmatprep.subr.bf16.mxu0 0
      %1512 = vmatpush1.bf16.msra.mxu0 0
      %1513 = vmatprep.subr.bf16.mxu0 0
      %1514 = vmatpush1.bf16.msra.mxu0 0
      %1515 = vmatprep.subr.bf16.mxu0 0
      %1516 = vmatpush1.bf16.msra.mxu0 0
      %1517 = vmatprep.subr.bf16.mxu0 0
      %1518 = vmatpush1.bf16.msra.mxu0 0
      %1519 = vmatprep.subr.bf16.mxu0 0
      %1520 = vmatpush1.bf16.msra.mxu0 0
      %1521 = vmatprep.mubr.bf16.mxu0 0
      %1522 = vmatmul.mubr.bf16.gmra.mrb[0].mxu0 %v1439
      %v1523 = vpop.f32.mrb[0].mxu0
      %v1524 = vadd.f32 0.0, %v1523
      %v1525 = vpop.f32.mrb[0].mxu0
      %v1526 = vpop.f32.mrb[0].mxu0
      %v1527 = vadd.f32 0.0, %v1526
      %v1528 = vpop.f32.mrb[0].mxu0
      %1529 = vdwg.mxu0
      %v1530 = vadd.f32 %v1407, %v1524
      %v1531 = vadd.f32 %v1408, %v1527
      %1532 = vst [vmem:[#allocation2] sm:$0xff] %v1530
      %1533 = vst [vmem:[#allocation2 + $0x8] sm:$0x3] %v1531
      %v1534 = vld [vmem:[#allocation2] sm:$0xff]
      %v1535 = vld [vmem:[#allocation2 + $0x8] sm:$0x3]
      %v1536 = vld [vmem:[%s271 + $0x4] sm:$0xc]
      %v1537 = vld [vmem:[%s271 + $0x8] sm:$0x7]
      %v1538 = vld [vmem:[%s275 + $0x280] sm:$0xf]
      %v1539 = vld [vmem:[%s275 + $0x284] sm:$0xf]
      %v1540 = vld [vmem:[%s275 + $0x288] sm:$0xf]
      %v1541 = vld [vmem:[%s275 + $0x28c] sm:$0xf]
      %v1542 = vld [vmem:[%s275 + $0x290] sm:$0xf]
      %v1543 = vld [vmem:[%s275 + $0x294] sm:$0xf]
      %v1544 = vld [vmem:[%s275 + $0x298] sm:$0xf]
      %v1545 = vld [vmem:[%s275 + $0x29c] sm:$0xf]
      %v1546 = vld [vmem:[%s275 + $0x2a0] sm:$0xf]
      %v1547 = vld [vmem:[%s275 + $0x2a4] sm:$0xf]
      %v1548 = vld [vmem:[%s275 + $0x2a8] sm:$0xf]
      %v1549 = vld [vmem:[%s275 + $0x2ac] sm:$0xf]
      %v1550 = vld [vmem:[%s275 + $0x2b0] sm:$0xf]
      %v1551 = vld [vmem:[%s275 + $0x2b4] sm:$0xf]
      %v1552 = vld [vmem:[%s275 + $0x2b8] sm:$0xf]
      %v1553 = vld [vmem:[%s275 + $0x2bc] sm:$0xf]
      %v1556 = vunpack.c.l.b16 %v1536
      %v1557 = vunpack.c.l.b16 %v1537
      %v1558 = vpack.c.b16 %v1557, %v1556
      %v1559 = vrot.slane %v1558, 2
      %v1577 = vunpack.c.l.b16 %v1538
      %v1578 = vunpack.c.l.b16 %v1539
      %v1579 = vunpack.c.l.b16 %v1540
      %v1580 = vunpack.c.l.b16 %v1541
      %v1581 = vunpack.c.l.b16 %v1542
      %v1582 = vunpack.c.l.b16 %v1543
      %v1583 = vunpack.c.l.b16 %v1544
      %v1584 = vunpack.c.l.b16 %v1545
      %v1585 = vunpack.c.l.b16 %v1546
      %v1586 = vunpack.c.l.b16 %v1547
      %v1587 = vunpack.c.l.b16 %v1548
      %v1588 = vunpack.c.l.b16 %v1549
      %v1589 = vunpack.c.l.b16 %v1550
      %v1590 = vunpack.c.l.b16 %v1551
      %v1591 = vunpack.c.l.b16 %v1552
      %v1592 = vunpack.c.l.b16 %v1553
      %v1593 = vpack.c.b16 %v1578, %v1577
      %v1594 = vpack.c.b16 %v1580, %v1579
      %v1595 = vpack.c.b16 %v1582, %v1581
      %v1596 = vpack.c.b16 %v1584, %v1583
      %v1597 = vpack.c.b16 %v1586, %v1585
      %v1598 = vpack.c.b16 %v1588, %v1587
      %v1599 = vpack.c.b16 %v1590, %v1589
      %v1600 = vpack.c.b16 %v1592, %v1591
      %1609 = vmatprep.subr.bf16.mxu0 0
      %1610 = vmatpush1.bf16.msra.mxu0 %v1593
      %1611 = vmatprep.subr.bf16.mxu0 0
      %1612 = vmatpush1.bf16.msra.mxu0 %v1594
      %1613 = vmatprep.subr.bf16.mxu0 0
      %1614 = vmatpush1.bf16.msra.mxu0 %v1595
      %1615 = vmatprep.subr.bf16.mxu0 0
      %1616 = vmatpush1.bf16.msra.mxu0 %v1596
      %1617 = vmatprep.subr.bf16.mxu0 0
      %1618 = vmatpush1.bf16.msra.mxu0 %v1597
      %1619 = vmatprep.subr.bf16.mxu0 0
      %1620 = vmatpush1.bf16.msra.mxu0 %v1598
      %1621 = vmatprep.subr.bf16.mxu0 0
      %1622 = vmatpush1.bf16.msra.mxu0 %v1599
      %1623 = vmatprep.subr.bf16.mxu0 0
      %1624 = vmatpush1.bf16.msra.mxu0 %v1600
      %1625 = vmatprep.subr.bf16.mxu0 0
      %1626 = vmatpush1.bf16.msra.mxu0 0
      %1627 = vmatprep.subr.bf16.mxu0 0
      %1628 = vmatpush1.bf16.msra.mxu0 0
      %1629 = vmatprep.subr.bf16.mxu0 0
      %1630 = vmatpush1.bf16.msra.mxu0 0
      %1631 = vmatprep.subr.bf16.mxu0 0
      %1632 = vmatpush1.bf16.msra.mxu0 0
      %1633 = vmatprep.subr.bf16.mxu0 0
      %1634 = vmatpush1.bf16.msra.mxu0 0
      %1635 = vmatprep.subr.bf16.mxu0 0
      %1636 = vmatpush1.bf16.msra.mxu0 0
      %1637 = vmatprep.subr.bf16.mxu0 0
      %1638 = vmatpush1.bf16.msra.mxu0 0
      %1639 = vmatprep.subr.bf16.mxu0 0
      %1640 = vmatpush1.bf16.msra.mxu0 0
      %1641 = vmatprep.mubr.bf16.mxu0 0
      %1642 = vmatmul.mubr.bf16.gmra.mrb[0].mxu0 %v1559
      %v1643 = vpop.f32.mrb[0].mxu0
      %v1644 = vadd.f32 0.0, %v1643
      %v1645 = vpop.f32.mrb[0].mxu0
      %v1646 = vpop.f32.mrb[0].mxu0
      %v1647 = vadd.f32 0.0, %v1646
      %v1648 = vpop.f32.mrb[0].mxu0
      %1649 = vdwg.mxu0
      %v1650 = vadd.f32 %v1534, %v1644
      %v1651 = vadd.f32 %v1535, %v1647
      %1652 = vst [vmem:[#allocation2] sm:$0xff] %v1650
      %1653 = vst [vmem:[#allocation2 + $0x8] sm:$0x3] %v1651
      %v1654 = vld [vmem:[#allocation2] sm:$0xff]
      %v1655 = vld [vmem:[#allocation2 + $0x8] sm:$0x3]
      %v1656 = vld [vmem:[%s271 + $0x4] sm:$0xc]
      %v1657 = vld [vmem:[%s271 + $0x8] sm:$0xf]
      %v1658 = vld [vmem:[%s275 + $0x2c0] sm:$0xf]
      %v1659 = vld [vmem:[%s275 + $0x2c4] sm:$0xf]
      %v1660 = vld [vmem:[%s275 + $0x2c8] sm:$0xf]
      %v1661 = vld [vmem:[%s275 + $0x2cc] sm:$0xf]
      %v1662 = vld [vmem:[%s275 + $0x2d0] sm:$0xf]
      %v1663 = vld [vmem:[%s275 + $0x2d4] sm:$0xf]
      %v1664 = vld [vmem:[%s275 + $0x2d8] sm:$0xf]
      %v1665 = vld [vmem:[%s275 + $0x2dc] sm:$0xf]
      %v1666 = vld [vmem:[%s275 + $0x2e0] sm:$0xf]
      %v1667 = vld [vmem:[%s275 + $0x2e4] sm:$0xf]
      %v1668 = vld [vmem:[%s275 + $0x2e8] sm:$0xf]
      %v1669 = vld [vmem:[%s275 + $0x2ec] sm:$0xf]
      %v1670 = vld [vmem:[%s275 + $0x2f0] sm:$0xf]
      %v1671 = vld [vmem:[%s275 + $0x2f4] sm:$0xf]
      %v1672 = vld [vmem:[%s275 + $0x2f8] sm:$0xf]
      %v1673 = vld [vmem:[%s275 + $0x2fc] sm:$0xf]
      %v1676 = vunpack.c.l.b16 %v1656
      %v1677 = vunpack.c.l.b16 %v1657
      %v1678 = vpack.c.b16 %v1677, %v1676
      %v1680 = vshrl.u32 %v1678, 16
      %v1682 = vrot.slane %v1680, 2
      %v1683 = vshll.u32 %v1678, 16
      %v1685 = vrot.slane %v1683, 3
      %v1686 = vor.u32 %v1682, %v1685
      %v1704 = vunpack.c.l.b16 %v1658
      %v1705 = vunpack.c.l.b16 %v1659
      %v1706 = vunpack.c.l.b16 %v1660
      %v1707 = vunpack.c.l.b16 %v1661
      %v1708 = vunpack.c.l.b16 %v1662
      %v1709 = vunpack.c.l.b16 %v1663
      %v1710 = vunpack.c.l.b16 %v1664
      %v1711 = vunpack.c.l.b16 %v1665
      %v1712 = vunpack.c.l.b16 %v1666
      %v1713 = vunpack.c.l.b16 %v1667
      %v1714 = vunpack.c.l.b16 %v1668
      %v1715 = vunpack.c.l.b16 %v1669
      %v1716 = vunpack.c.l.b16 %v1670
      %v1717 = vunpack.c.l.b16 %v1671
      %v1718 = vunpack.c.l.b16 %v1672
      %v1719 = vunpack.c.l.b16 %v1673
      %v1720 = vpack.c.b16 %v1705, %v1704
      %v1721 = vpack.c.b16 %v1707, %v1706
      %v1722 = vpack.c.b16 %v1709, %v1708
      %v1723 = vpack.c.b16 %v1711, %v1710
      %v1724 = vpack.c.b16 %v1713, %v1712
      %v1725 = vpack.c.b16 %v1715, %v1714
      %v1726 = vpack.c.b16 %v1717, %v1716
      %v1727 = vpack.c.b16 %v1719, %v1718
      %1736 = vmatprep.subr.bf16.mxu0 0
      %1737 = vmatpush1.bf16.msra.mxu0 %v1720
      %1738 = vmatprep.subr.bf16.mxu0 0
      %1739 = vmatpush1.bf16.msra.mxu0 %v1721
      %1740 = vmatprep.subr.bf16.mxu0 0
      %1741 = vmatpush1.bf16.msra.mxu0 %v1722
      %1742 = vmatprep.subr.bf16.mxu0 0
      %1743 = vmatpush1.bf16.msra.mxu0 %v1723
      %1744 = vmatprep.subr.bf16.mxu0 0
      %1745 = vmatpush1.bf16.msra.mxu0 %v1724
      %1746 = vmatprep.subr.bf16.mxu0 0
      %1747 = vmatpush1.bf16.msra.mxu0 %v1725
      %1748 = vmatprep.subr.bf16.mxu0 0
      %1749 = vmatpush1.bf16.msra.mxu0 %v1726
      %1750 = vmatprep.subr.bf16.mxu0 0
      %1751 = vmatpush1.bf16.msra.mxu0 %v1727
      %1752 = vmatprep.subr.bf16.mxu0 0
      %1753 = vmatpush1.bf16.msra.mxu0 0
      %1754 = vmatprep.subr.bf16.mxu0 0
      %1755 = vmatpush1.bf16.msra.mxu0 0
      %1756 = vmatprep.subr.bf16.mxu0 0
      %1757 = vmatpush1.bf16.msra.mxu0 0
      %1758 = vmatprep.subr.bf16.mxu0 0
      %1759 = vmatpush1.bf16.msra.mxu0 0
      %1760 = vmatprep.subr.bf16.mxu0 0
      %1761 = vmatpush1.bf16.msra.mxu0 0
      %1762 = vmatprep.subr.bf16.mxu0 0
      %1763 = vmatpush1.bf16.msra.mxu0 0
      %1764 = vmatprep.subr.bf16.mxu0 0
      %1765 = vmatpush1.bf16.msra.mxu0 0
      %1766 = vmatprep.subr.bf16.mxu0 0
      %1767 = vmatpush1.bf16.msra.mxu0 0
      %1768 = vmatprep.mubr.bf16.mxu0 0
      %1769 = vmatmul.mubr.bf16.gmra.mrb[0].mxu0 %v1686
      %v1770 = vpop.f32.mrb[0].mxu0
      %v1771 = vadd.f32 0.0, %v1770
      %v1772 = vpop.f32.mrb[0].mxu0
      %v1773 = vpop.f32.mrb[0].mxu0
      %v1774 = vadd.f32 0.0, %v1773
      %v1775 = vpop.f32.mrb[0].mxu0
      %1776 = vdwg.mxu0
      %v1777 = vadd.f32 %v1654, %v1771
      %v1778 = vadd.f32 %v1655, %v1774
      %1779 = vst [vmem:[#allocation2] sm:$0xff] %v1777
      %1780 = vst [vmem:[#allocation2 + $0x8] sm:$0x3] %v1778
      %v1781 = vld [vmem:[#allocation2] sm:$0xff]
      %v1782 = vld [vmem:[#allocation2 + $0x8] sm:$0x3]
      %v1783 = vld [vmem:[%s271 + $0x4] sm:$0x8]
      %v1784 = vld [vmem:[%s271 + $0x8] sm:$0xf]
      %v1785 = vld [vmem:[%s271 + $0xc] sm:$0x1]
      %v1786 = vld [vmem:[%s275 + $0x300] sm:$0xf]
      %v1787 = vld [vmem:[%s275 + $0x304] sm:$0xf]
      %v1788 = vld [vmem:[%s275 + $0x308] sm:$0xf]
      %v1789 = vld [vmem:[%s275 + $0x30c] sm:$0xf]
      %v1790 = vld [vmem:[%s275 + $0x310] sm:$0xf]
      %v1791 = vld [vmem:[%s275 + $0x314] sm:$0xf]
      %v1792 = vld [vmem:[%s275 + $0x318] sm:$0xf]
      %v1793 = vld [vmem:[%s275 + $0x31c] sm:$0xf]
      %v1794 = vld [vmem:[%s275 + $0x320] sm:$0xf]
      %v1795 = vld [vmem:[%s275 + $0x324] sm:$0xf]
      %v1796 = vld [vmem:[%s275 + $0x328] sm:$0xf]
      %v1797 = vld [vmem:[%s275 + $0x32c] sm:$0xf]
      %v1798 = vld [vmem:[%s275 + $0x330] sm:$0xf]
      %v1799 = vld [vmem:[%s275 + $0x334] sm:$0xf]
      %v1800 = vld [vmem:[%s275 + $0x338] sm:$0xf]
      %v1801 = vld [vmem:[%s275 + $0x33c] sm:$0xf]
      %v1805 = vunpack.c.l.b16 %v1783
      %v1806 = vunpack.c.l.b16 %v1784
      %v1807 = vunpack.c.l.b16 %v1785
      %v1808 = vpack.c.b16 %v1806, %v1805
      %v1809 = vpack.c.b16 %v1807, %v1807
      %v1811 = vshrl.u32 %v1808, 16
      %v1813 = vrot.slane %v1811, 3
      %v1814 = vshll.u32 %v1808, 16
      %v1816 = vrot.slane %v1814, 4
      %v1817 = vor.u32 %v1813, %v1816
      %v1819 = vshll.u32 %v1809, 16
      %v1821 = vrot.slane %v1819, 4
      %v1822 = vsel %vm1060, %v1817, %v1821
      %v1840 = vunpack.c.l.b16 %v1786
      %v1841 = vunpack.c.l.b16 %v1787
      %v1842 = vunpack.c.l.b16 %v1788
      %v1843 = vunpack.c.l.b16 %v1789
      %v1844 = vunpack.c.l.b16 %v1790
      %v1845 = vunpack.c.l.b16 %v1791
      %v1846 = vunpack.c.l.b16 %v1792
      %v1847 = vunpack.c.l.b16 %v1793
      %v1848 = vunpack.c.l.b16 %v1794
      %v1849 = vunpack.c.l.b16 %v1795
      %v1850 = vunpack.c.l.b16 %v1796
      %v1851 = vunpack.c.l.b16 %v1797
      %v1852 = vunpack.c.l.b16 %v1798
      %v1853 = vunpack.c.l.b16 %v1799
      %v1854 = vunpack.c.l.b16 %v1800
      %v1855 = vunpack.c.l.b16 %v1801
      %v1856 = vpack.c.b16 %v1841, %v1840
      %v1857 = vpack.c.b16 %v1843, %v1842
      %v1858 = vpack.c.b16 %v1845, %v1844
      %v1859 = vpack.c.b16 %v1847, %v1846
      %v1860 = vpack.c.b16 %v1849, %v1848
      %v1861 = vpack.c.b16 %v1851, %v1850
      %v1862 = vpack.c.b16 %v1853, %v1852
      %v1863 = vpack.c.b16 %v1855, %v1854
      %1872 = vmatprep.subr.bf16.mxu0 0
      %1873 = vmatpush1.bf16.msra.mxu0 %v1856
      %1874 = vmatprep.subr.bf16.mxu0 0
      %1875 = vmatpush1.bf16.msra.mxu0 %v1857
      %1876 = vmatprep.subr.bf16.mxu0 0
      %1877 = vmatpush1.bf16.msra.mxu0 %v1858
      %1878 = vmatprep.subr.bf16.mxu0 0
      %1879 = vmatpush1.bf16.msra.mxu0 %v1859
      %1880 = vmatprep.subr.bf16.mxu0 0
      %1881 = vmatpush1.bf16.msra.mxu0 %v1860
      %1882 = vmatprep.subr.bf16.mxu0 0
      %1883 = vmatpush1.bf16.msra.mxu0 %v1861
      %1884 = vmatprep.subr.bf16.mxu0 0
      %1885 = vmatpush1.bf16.msra.mxu0 %v1862
      %1886 = vmatprep.subr.bf16.mxu0 0
      %1887 = vmatpush1.bf16.msra.mxu0 %v1863
      %1888 = vmatprep.subr.bf16.mxu0 0
      %1889 = vmatpush1.bf16.msra.mxu0 0
      %1890 = vmatprep.subr.bf16.mxu0 0
      %1891 = vmatpush1.bf16.msra.mxu0 0
      %1892 = vmatprep.subr.bf16.mxu0 0
      %1893 = vmatpush1.bf16.msra.mxu0 0
      %1894 = vmatprep.subr.bf16.mxu0 0
      %1895 = vmatpush1.bf16.msra.mxu0 0
      %1896 = vmatprep.subr.bf16.mxu0 0
      %1897 = vmatpush1.bf16.msra.mxu0 0
      %1898 = vmatprep.subr.bf16.mxu0 0
      %1899 = vmatpush1.bf16.msra.mxu0 0
      %1900 = vmatprep.subr.bf16.mxu0 0
      %1901 = vmatpush1.bf16.msra.mxu0 0
      %1902 = vmatprep.subr.bf16.mxu0 0
      %1903 = vmatpush1.bf16.msra.mxu0 0
      %1904 = vmatprep.mubr.bf16.mxu0 0
      %1905 = vmatmul.mubr.bf16.gmra.mrb[0].mxu0 %v1822
      %v1906 = vpop.f32.mrb[0].mxu0
      %v1907 = vadd.f32 0.0, %v1906
      %v1908 = vpop.f32.mrb[0].mxu0
      %v1909 = vpop.f32.mrb[0].mxu0
      %v1910 = vadd.f32 0.0, %v1909
      %v1911 = vpop.f32.mrb[0].mxu0
      %1912 = vdwg.mxu0
      %v1913 = vadd.f32 %v1781, %v1907
      %v1914 = vadd.f32 %v1782, %v1910
      %1915 = vst [vmem:[#allocation2] sm:$0xff] %v1913
      %1916 = vst [vmem:[#allocation2 + $0x8] sm:$0x3] %v1914
      %v1917 = vld [vmem:[#allocation2] sm:$0xff]
      %v1918 = vld [vmem:[#allocation2 + $0x8] sm:$0x3]
      %v1919 = vld [vmem:[%s271 + $0x8] sm:$0xf]
      %v1920 = vld [vmem:[%s271 + $0xc] sm:$0x1]
      %v1921 = vld [vmem:[%s275 + $0x340] sm:$0xf]
      %v1922 = vld [vmem:[%s275 + $0x344] sm:$0xf]
      %v1923 = vld [vmem:[%s275 + $0x348] sm:$0xf]
      %v1924 = vld [vmem:[%s275 + $0x34c] sm:$0xf]
      %v1925 = vld [vmem:[%s275 + $0x350] sm:$0xf]
      %v1926 = vld [vmem:[%s275 + $0x354] sm:$0xf]
      %v1927 = vld [vmem:[%s275 + $0x358] sm:$0xf]
      %v1928 = vld [vmem:[%s275 + $0x35c] sm:$0xf]
      %v1929 = vld [vmem:[%s275 + $0x360] sm:$0xf]
      %v1930 = vld [vmem:[%s275 + $0x364] sm:$0xf]
      %v1931 = vld [vmem:[%s275 + $0x368] sm:$0xf]
      %v1932 = vld [vmem:[%s275 + $0x36c] sm:$0xf]
      %v1933 = vld [vmem:[%s275 + $0x370] sm:$0xf]
      %v1934 = vld [vmem:[%s275 + $0x374] sm:$0xf]
      %v1935 = vld [vmem:[%s275 + $0x378] sm:$0xf]
      %v1936 = vld [vmem:[%s275 + $0x37c] sm:$0xf]
      %v1939 = vunpack.c.l.b16 %v1919
      %v1940 = vunpack.c.l.b16 %v1920
      %v1941 = vpack.c.b16 %v1940, %v1939
      %v1959 = vunpack.c.l.b16 %v1921
      %v1960 = vunpack.c.l.b16 %v1922
      %v1961 = vunpack.c.l.b16 %v1923
      %v1962 = vunpack.c.l.b16 %v1924
      %v1963 = vunpack.c.l.b16 %v1925
      %v1964 = vunpack.c.l.b16 %v1926
      %v1965 = vunpack.c.l.b16 %v1927
      %v1966 = vunpack.c.l.b16 %v1928
      %v1967 = vunpack.c.l.b16 %v1929
      %v1968 = vunpack.c.l.b16 %v1930
      %v1969 = vunpack.c.l.b16 %v1931
      %v1970 = vunpack.c.l.b16 %v1932
      %v1971 = vunpack.c.l.b16 %v1933
      %v1972 = vunpack.c.l.b16 %v1934
      %v1973 = vunpack.c.l.b16 %v1935
      %v1974 = vunpack.c.l.b16 %v1936
      %v1975 = vpack.c.b16 %v1960, %v1959
      %v1976 = vpack.c.b16 %v1962, %v1961
      %v1977 = vpack.c.b16 %v1964, %v1963
      %v1978 = vpack.c.b16 %v1966, %v1965
      %v1979 = vpack.c.b16 %v1968, %v1967
      %v1980 = vpack.c.b16 %v1970, %v1969
      %v1981 = vpack.c.b16 %v1972, %v1971
      %v1982 = vpack.c.b16 %v1974, %v1973
      %1991 = vmatprep.subr.bf16.mxu0 0
      %1992 = vmatpush1.bf16.msra.mxu0 %v1975
      %1993 = vmatprep.subr.bf16.mxu0 0
      %1994 = vmatpush1.bf16.msra.mxu0 %v1976
      %1995 = vmatprep.subr.bf16.mxu0 0
      %1996 = vmatpush1.bf16.msra.mxu0 %v1977
      %1997 = vmatprep.subr.bf16.mxu0 0
      %1998 = vmatpush1.bf16.msra.mxu0 %v1978
      %1999 = vmatprep.subr.bf16.mxu0 0
      %2000 = vmatpush1.bf16.msra.mxu0 %v1979
      %2001 = vmatprep.subr.bf16.mxu0 0
      %2002 = vmatpush1.bf16.msra.mxu0 %v1980
      %2003 = vmatprep.subr.bf16.mxu0 0
      %2004 = vmatpush1.bf16.msra.mxu0 %v1981
      %2005 = vmatprep.subr.bf16.mxu0 0
      %2006 = vmatpush1.bf16.msra.mxu0 %v1982
      %2007 = vmatprep.subr.bf16.mxu0 0
      %2008 = vmatpush1.bf16.msra.mxu0 0
      %2009 = vmatprep.subr.bf16.mxu0 0
      %2010 = vmatpush1.bf16.msra.mxu0 0
      %2011 = vmatprep.subr.bf16.mxu0 0
      %2012 = vmatpush1.bf16.msra.mxu0 0
      %2013 = vmatprep.subr.bf16.mxu0 0
      %2014 = vmatpush1.bf16.msra.mxu0 0
      %2015 = vmatprep.subr.bf16.mxu0 0
      %2016 = vmatpush1.bf16.msra.mxu0 0
      %2017 = vmatprep.subr.bf16.mxu0 0
      %2018 = vmatpush1.bf16.msra.mxu0 0
      %2019 = vmatprep.subr.bf16.mxu0 0
      %2020 = vmatpush1.bf16.msra.mxu0 0
      %2021 = vmatprep.subr.bf16.mxu0 0
      %2022 = vmatpush1.bf16.msra.mxu0 0
      %2023 = vmatprep.mubr.bf16.mxu0 0
      %2024 = vmatmul.mubr.bf16.gmra.mrb[0].mxu0 %v1941
      %v2025 = vpop.f32.mrb[0].mxu0
      %v2026 = vadd.f32 0.0, %v2025
      %v2027 = vpop.f32.mrb[0].mxu0
      %v2028 = vpop.f32.mrb[0].mxu0
      %v2029 = vadd.f32 0.0, %v2028
      %v2030 = vpop.f32.mrb[0].mxu0
      %2031 = vdwg.mxu0
      %v2032 = vadd.f32 %v1917, %v2026
      %v2033 = vadd.f32 %v1918, %v2029
      %2034 = vst [vmem:[#allocation2] sm:$0xff] %v2032
      %2035 = vst [vmem:[#allocation2 + $0x8] sm:$0x3] %v2033
      %v2036 = vld [vmem:[#allocation2] sm:$0xff]
      %v2037 = vld [vmem:[#allocation2 + $0x8] sm:$0x3]
      %v2038 = vld [vmem:[%s271 + $0x8] sm:$0xf]
      %v2039 = vld [vmem:[%s271 + $0xc] sm:$0x3]
      %v2040 = vld [vmem:[%s275 + $0x380] sm:$0xf]
      %v2041 = vld [vmem:[%s275 + $0x384] sm:$0xf]
      %v2042 = vld [vmem:[%s275 + $0x388] sm:$0xf]
      %v2043 = vld [vmem:[%s275 + $0x38c] sm:$0xf]
      %v2044 = vld [vmem:[%s275 + $0x390] sm:$0xf]
      %v2045 = vld [vmem:[%s275 + $0x394] sm:$0xf]
      %v2046 = vld [vmem:[%s275 + $0x398] sm:$0xf]
      %v2047 = vld [vmem:[%s275 + $0x39c] sm:$0xf]
      %v2048 = vld [vmem:[%s275 + $0x3a0] sm:$0xf]
      %v2049 = vld [vmem:[%s275 + $0x3a4] sm:$0xf]
      %v2050 = vld [vmem:[%s275 + $0x3a8] sm:$0xf]
      %v2051 = vld [vmem:[%s275 + $0x3ac] sm:$0xf]
      %v2052 = vld [vmem:[%s275 + $0x3b0] sm:$0xf]
      %v2053 = vld [vmem:[%s275 + $0x3b4] sm:$0xf]
      %v2054 = vld [vmem:[%s275 + $0x3b8] sm:$0xf]
      %v2055 = vld [vmem:[%s275 + $0x3bc] sm:$0xf]
      %v2058 = vunpack.c.l.b16 %v2038
      %v2059 = vunpack.c.l.b16 %v2039
      %v2060 = vpack.c.b16 %v2059, %v2058
      %v2062 = vshrl.u32 %v2060, 16
      %v2064 = vshll.u32 %v2060, 16
      %v2066 = vrot.slane %v2064, 1
      %v2067 = vor.u32 %v2062, %v2066
      %v2085 = vunpack.c.l.b16 %v2040
      %v2086 = vunpack.c.l.b16 %v2041
      %v2087 = vunpack.c.l.b16 %v2042
      %v2088 = vunpack.c.l.b16 %v2043
      %v2089 = vunpack.c.l.b16 %v2044
      %v2090 = vunpack.c.l.b16 %v2045
      %v2091 = vunpack.c.l.b16 %v2046
      %v2092 = vunpack.c.l.b16 %v2047
      %v2093 = vunpack.c.l.b16 %v2048
      %v2094 = vunpack.c.l.b16 %v2049
      %v2095 = vunpack.c.l.b16 %v2050
      %v2096 = vunpack.c.l.b16 %v2051
      %v2097 = vunpack.c.l.b16 %v2052
      %v2098 = vunpack.c.l.b16 %v2053
      %v2099 = vunpack.c.l.b16 %v2054
      %v2100 = vunpack.c.l.b16 %v2055
      %v2101 = vpack.c.b16 %v2086, %v2085
      %v2102 = vpack.c.b16 %v2088, %v2087
      %v2103 = vpack.c.b16 %v2090, %v2089
      %v2104 = vpack.c.b16 %v2092, %v2091
      %v2105 = vpack.c.b16 %v2094, %v2093
      %v2106 = vpack.c.b16 %v2096, %v2095
      %v2107 = vpack.c.b16 %v2098, %v2097
      %v2108 = vpack.c.b16 %v2100, %v2099
      %2117 = vmatprep.subr.bf16.mxu0 0
      %2118 = vmatpush1.bf16.msra.mxu0 %v2101
      %2119 = vmatprep.subr.bf16.mxu0 0
      %2120 = vmatpush1.bf16.msra.mxu0 %v2102
      %2121 = vmatprep.subr.bf16.mxu0 0
      %2122 = vmatpush1.bf16.msra.mxu0 %v2103
      %2123 = vmatprep.subr.bf16.mxu0 0
      %2124 = vmatpush1.bf16.msra.mxu0 %v2104
      %2125 = vmatprep.subr.bf16.mxu0 0
      %2126 = vmatpush1.bf16.msra.mxu0 %v2105
      %2127 = vmatprep.subr.bf16.mxu0 0
      %2128 = vmatpush1.bf16.msra.mxu0 %v2106
      %2129 = vmatprep.subr.bf16.mxu0 0
      %2130 = vmatpush1.bf16.msra.mxu0 %v2107
      %2131 = vmatprep.subr.bf16.mxu0 0
      %2132 = vmatpush1.bf16.msra.mxu0 %v2108
      %2133 = vmatprep.subr.bf16.mxu0 0
      %2134 = vmatpush1.bf16.msra.mxu0 0
      %2135 = vmatprep.subr.bf16.mxu0 0
      %2136 = vmatpush1.bf16.msra.mxu0 0
      %2137 = vmatprep.subr.bf16.mxu0 0
      %2138 = vmatpush1.bf16.msra.mxu0 0
      %2139 = vmatprep.subr.bf16.mxu0 0
      %2140 = vmatpush1.bf16.msra.mxu0 0
      %2141 = vmatprep.subr.bf16.mxu0 0
      %2142 = vmatpush1.bf16.msra.mxu0 0
      %2143 = vmatprep.subr.bf16.mxu0 0
      %2144 = vmatpush1.bf16.msra.mxu0 0
      %2145 = vmatprep.subr.bf16.mxu0 0
      %2146 = vmatpush1.bf16.msra.mxu0 0
      %2147 = vmatprep.subr.bf16.mxu0 0
      %2148 = vmatpush1.bf16.msra.mxu0 0
      %2149 = vmatprep.mubr.bf16.mxu0 0
      %2150 = vmatmul.mubr.bf16.gmra.mrb[0].mxu0 %v2067
      %v2151 = vpop.f32.mrb[0].mxu0
      %v2152 = vadd.f32 0.0, %v2151
      %v2153 = vpop.f32.mrb[0].mxu0
      %v2154 = vpop.f32.mrb[0].mxu0
      %v2155 = vadd.f32 0.0, %v2154
      %v2156 = vpop.f32.mrb[0].mxu0
      %2157 = vdwg.mxu0
      %v2158 = vadd.f32 %v2036, %v2152
      %v2159 = vadd.f32 %v2037, %v2155
      %2160 = vst [vmem:[#allocation2] sm:$0xff] %v2158
      %2161 = vst [vmem:[#allocation2 + $0x8] sm:$0x3] %v2159
      %v2162 = vld [vmem:[#allocation2] sm:$0xff]
      %v2163 = vld [vmem:[#allocation2 + $0x8] sm:$0x3]
      %v2164 = vld [vmem:[%s271 + $0x8] sm:$0xe]
      %v2165 = vld [vmem:[%s271 + $0xc] sm:$0x3]
      %v2166 = vld [vmem:[%s275 + $0x3c0] sm:$0xf]
      %v2167 = vld [vmem:[%s275 + $0x3c4] sm:$0xf]
      %v2168 = vld [vmem:[%s275 + $0x3c8] sm:$0xf]
      %v2169 = vld [vmem:[%s275 + $0x3cc] sm:$0xf]
      %v2170 = vld [vmem:[%s275 + $0x3d0] sm:$0xf]
      %v2171 = vld [vmem:[%s275 + $0x3d4] sm:$0xf]
      %v2172 = vld [vmem:[%s275 + $0x3d8] sm:$0xf]
      %v2173 = vld [vmem:[%s275 + $0x3dc] sm:$0xf]
      %v2174 = vld [vmem:[%s275 + $0x3e0] sm:$0xf]
      %v2175 = vld [vmem:[%s275 + $0x3e4] sm:$0xf]
      %v2176 = vld [vmem:[%s275 + $0x3e8] sm:$0xf]
      %v2177 = vld [vmem:[%s275 + $0x3ec] sm:$0xf]
      %v2178 = vld [vmem:[%s275 + $0x3f0] sm:$0xf]
      %v2179 = vld [vmem:[%s275 + $0x3f4] sm:$0xf]
      %v2180 = vld [vmem:[%s275 + $0x3f8] sm:$0xf]
      %v2181 = vld [vmem:[%s275 + $0x3fc] sm:$0xf]
      %v2184 = vunpack.c.l.b16 %v2164
      %v2185 = vunpack.c.l.b16 %v2165
      %v2186 = vpack.c.b16 %v2185, %v2184
      %v2187 = vrot.slane %v2186, 1
      %v2205 = vunpack.c.l.b16 %v2166
      %v2206 = vunpack.c.l.b16 %v2167
      %v2207 = vunpack.c.l.b16 %v2168
      %v2208 = vunpack.c.l.b16 %v2169
      %v2209 = vunpack.c.l.b16 %v2170
      %v2210 = vunpack.c.l.b16 %v2171
      %v2211 = vunpack.c.l.b16 %v2172
      %v2212 = vunpack.c.l.b16 %v2173
      %v2213 = vunpack.c.l.b16 %v2174
      %v2214 = vunpack.c.l.b16 %v2175
      %v2215 = vunpack.c.l.b16 %v2176
      %v2216 = vunpack.c.l.b16 %v2177
      %v2217 = vunpack.c.l.b16 %v2178
      %v2218 = vunpack.c.l.b16 %v2179
      %v2219 = vunpack.c.l.b16 %v2180
      %v2220 = vunpack.c.l.b16 %v2181
      %v2221 = vpack.c.b16 %v2206, %v2205
      %v2222 = vpack.c.b16 %v2208, %v2207
      %v2223 = vpack.c.b16 %v2210, %v2209
      %v2224 = vpack.c.b16 %v2212, %v2211
      %v2225 = vpack.c.b16 %v2214, %v2213
      %v2226 = vpack.c.b16 %v2216, %v2215
      %v2227 = vpack.c.b16 %v2218, %v2217
      %v2228 = vpack.c.b16 %v2220, %v2219
      %2237 = vmatprep.subr.bf16.mxu0 0
      %2238 = vmatpush1.bf16.msra.mxu0 %v2221
      %2239 = vmatprep.subr.bf16.mxu0 0
      %2240 = vmatpush1.bf16.msra.mxu0 %v2222
      %2241 = vmatprep.subr.bf16.mxu0 0
      %2242 = vmatpush1.bf16.msra.mxu0 %v2223
      %2243 = vmatprep.subr.bf16.mxu0 0
      %2244 = vmatpush1.bf16.msra.mxu0 %v2224
      %2245 = vmatprep.subr.bf16.mxu0 0
      %2246 = vmatpush1.bf16.msra.mxu0 %v2225
      %2247 = vmatprep.subr.bf16.mxu0 0
      %2248 = vmatpush1.bf16.msra.mxu0 %v2226
      %2249 = vmatprep.subr.bf16.mxu0 0
      %2250 = vmatpush1.bf16.msra.mxu0 %v2227
      %2251 = vmatprep.subr.bf16.mxu0 0
      %2252 = vmatpush1.bf16.msra.mxu0 %v2228
      %2253 = vmatprep.subr.bf16.mxu0 0
      %2254 = vmatpush1.bf16.msra.mxu0 0
      %2255 = vmatprep.subr.bf16.mxu0 0
      %2256 = vmatpush1.bf16.msra.mxu0 0
      %2257 = vmatprep.subr.bf16.mxu0 0
      %2258 = vmatpush1.bf16.msra.mxu0 0
      %2259 = vmatprep.subr.bf16.mxu0 0
      %2260 = vmatpush1.bf16.msra.mxu0 0
      %2261 = vmatprep.subr.bf16.mxu0 0
      %2262 = vmatpush1.bf16.msra.mxu0 0
      %2263 = vmatprep.subr.bf16.mxu0 0
      %2264 = vmatpush1.bf16.msra.mxu0 0
      %2265 = vmatprep.subr.bf16.mxu0 0
      %2266 = vmatpush1.bf16.msra.mxu0 0
      %2267 = vmatprep.subr.bf16.mxu0 0
      %2268 = vmatpush1.bf16.msra.mxu0 0
      %2269 = vmatprep.mubr.bf16.mxu0 0
      %2270 = vmatmul.mubr.bf16.gmra.mrb[0].mxu0 %v2187
      %v2271 = vpop.f32.mrb[0].mxu0
      %v2272 = vadd.f32 0.0, %v2271
      %v2273 = vpop.f32.mrb[0].mxu0
      %v2274 = vpop.f32.mrb[0].mxu0
      %v2275 = vadd.f32 0.0, %v2274
      %v2276 = vpop.f32.mrb[0].mxu0
      %2277 = vdwg.mxu0
      %v2278 = vadd.f32 %v2162, %v2272
      %v2279 = vadd.f32 %v2163, %v2275
      %2280 = vst [vmem:[#allocation2] sm:$0xff] %v2278
      %2281 = vst [vmem:[#allocation2 + $0x8] sm:$0x3] %v2279
      %v2282 = vld [vmem:[#allocation2] sm:$0xff]
      %v2283 = vld [vmem:[#allocation2 + $0x8] sm:$0x3]
      %v2284 = vld [vmem:[%s278] sm:$0x1]
      %v2286 = vlaneseq
      %v2287 = vshrl.u32 %v2286, 7
      %v2288 = vsub.s32 0, %v2287
      %v2289 = vrot.slane %v2284, %v2288
      %v2291 = vmul.f32 %v2282, %v2289
      %v2292 = vmul.f32 %v2283, %v2289
      %v2293 = vld [vmem:[%s281] sm:$0x1]
      %v2295 = vlaneseq
      %v2296 = vshrl.u32 %v2295, 7
      %v2297 = vsub.s32 0, %v2296
      %v2298 = vrot.slane %v2293, %v2297
      %v2300 = vadd.f32 %v2291, %v2298
      %v2301 = vadd.f32 %v2292, %v2298
      %v2302 = vpack.c.bf16 %v2301, %v2300
      %v2304 = vunpack.c.l.b16 %v2302
      %v2305 = vunpack.c.h.b16 %v2302
      %v2306 = vpack.c.b16 %v2304, %v2304
      %v2307 = vpack.c.b16 %v2305, %v2305
      %2310 = vst [vmem:[%s293] sm:$0xf] %v2306
      %2311 = vst [vmem:[%s293 + $0x4] sm:$0x1] %v2307
      %s2312 = smul.u32 2, %s21
      %p2313 = scmp.lt.s32.totalorder %s20, 1
      %s2314 = scalar_select %p2313, %s20, 1
      %p2315 = scmp.lt.s32.totalorder %s2312, 1
      %s2316 = scalar_select %p2315, %s2312, 1
      %p2317 = scmp.lt.s32.totalorder %s22, 0
      %s2318 = scalar_select %p2317, %s22, 0
      %s2319 = sadd.s32 %s2318, %s2316
      %s2320 = smul.addr %s2314, 2
      %s2321 = sadd.s32 %s2319, %s2320
      %s2322 = smul.addr %s2321, 4
      %s2323 = scalar_lea.vmem %s4, %s2322
      // Predicated region
      $region37: #{_lambda_.9} parent=35 // pred_check
        %p2324 = pneg %p162
      $region38: #{_lambda_.9} parent=35 // pred_check_branch
        %2326 = sbr.rel (%p2324) target = $region40
      $region39: #{_lambda_.9} parent=35 // pred_region
        %s2327 = smul.u32 2, %s21
      $region40: #{_lambda_.9} parent=35 // pred_fallthru
        _
    $region36: #{_lambda_.9} parent=5 // pred_fallthru
      _
    %p2328 = scmp.le.s32.totalorder 2, %s10
    // Predicated region
    $region41: #{_lambda_.9} parent=5 // pred_check
      %p2329 = pneg %p2328
    $region42: #{_lambda_.9} parent=5 // pred_check_branch
      %2331 = sbr.rel (%p2329) target = $region44
    $region43: #{_lambda_.9} parent=5 // pred_region
      %s2332 = ssub.s32 %s10, 2
      // Predicated region
      $region45: #{_lambda_.9} parent=43 // pred_check
        %p2333 = pneg %p168
      $region46: #{_lambda_.9} parent=43 // pred_check_branch
        %2335 = sbr.rel (%p2333) target = $region48
      $region47: #{_lambda_.9} parent=43 // pred_region
        %s2336 = smul.u32 2, %s24
        %p2337 = scmp.lt.s32.totalorder %s23, 1
        %s2338 = scalar_select %p2337, %s23, 1
        %p2339 = scmp.lt.s32.totalorder %s2336, 1
        %s2340 = scalar_select %p2339, %s2336, 1
        %p2341 = scmp.lt.s32.totalorder %s25, 0
        %s2342 = scalar_select %p2341, %s25, 0
        %s2343 = sadd.s32 %s2342, %s2340
        %s2344 = smul.addr %s2338, 2
        %s2345 = sadd.s32 %s2343, %s2344
        %s2346 = smul.addr %s2345, 4
        %s2347 = scalar_lea.vmem %s4, %s2346
      $region48: #{_lambda_.9} parent=43 // pred_fallthru
        _
    $region44: #{_lambda_.9} parent=5 // pred_fallthru
      _
  $region6: #{_lambda_.9} parent=0 // loop_footer
    %s14 = sadd.s32 1, %s10
  $region7: #{_lambda_.9} parent=0 // loop_footer_branch
    %9 = sbr.rel target = $region3
  $region8: #{_lambda_.9} parent=0 // loop_exit
    _

</llo_original>
